<compile_context>
chip_gen: v7x
topology: tpu7x:2x2x1
jax: 0.10.0
libtpu: 0.0.40
codegen_flags: <defaults>
</compile_context>

<pallas_src>
import functools

import jax
import jax.numpy as jnp
from jax import lax
from jax.experimental import pallas as pl
from jax.experimental.pallas import tpu as pltpu

EPS = 1e-5          # nn.BatchNorm2d default
NEG_SLOPE = 0.01    # nn.LeakyReLU default
LANE = 128


def _round_up(x, m):
    return (x + m - 1) // m * m


def _cdiv(a, b):
    return -(-a // b)


def _vmem_limit_bytes():
    """Per-generation VMEM budget (v5e/v6e: ~83 of 128 MiB; v7x: ~41 of 64 MiB)."""
    cap = 64 * 1024 * 1024
    try:
        cap = int(pltpu.get_tpu_info().vmem_capacity_bytes)
    except Exception:
        pass
    return max(32 * 1024 * 1024, min(int(cap * 0.65), 100 * 1024 * 1024))


def _pick_tile_rows(n, h, w, ce1, ce2, cp, cb, vmem_limit, block_rows=None):
    """Rows per tile: as large as the VMEM budget allows, preferring a divisor
    of H (no tail masking); otherwise a cdiv grid with in-kernel tail masks."""
    budget = int(vmem_limit * 0.55)
    th_max = h
    for ce in (ce1, ce2):
        fixed = 2 * 9 * ce * cp * cb                        # fused weights (x2 buf)
        per_row = w * (4 * ce * cb + 2 * cp * cb + 4 * cp)  # in+scratch+slab, y, acc
        th_max = min(th_max, max(1, (budget - fixed) // per_row))
    if block_rows is not None:
        th_max = min(th_max, max(1, block_rows // w))
    th_max = max(1, min(th_max, h))

    th = 1
    for cand in range(1, th_max + 1):                       # largest divisor of H
        if h % cand == 0:
            th = cand
    if th * 2 <= th_max and th < h:                         # divisors too small
        th = th_max                                         # -> ragged tiles
    if n * _cdiv(h, th) < 2 and h > 1:                      # >=2 steps for v7x megacore
        th = _cdiv(h, 2)
    return th, _cdiv(h, th) * th


# --------------------------------------------------------------------------- #
# Conv kernel: (optional fused BN+LeakyReLU of previous block on the input)
# -> 3x3 "same" conv as 9 accumulated matmuls -> raw output + BN partial stats.
# --------------------------------------------------------------------------- #
def _conv_kernel(top_ref, core_ref, bot_ref, w_ref, *rest,
                 th, w, cin, cp, h, apply_act, has_tail):
    """top_ref  : (1, 1, w, cin)   input row r0-1 (clamped; masked at border)
       core_ref : (1, th, w, cin)  input rows [r0, r0+th)
       bot_ref  : (1, 1, w, cin)   input row r0+th (clamped; masked at border)
       w_ref    : (9*cin, cp)      tap-major fused conv weights
       [scale_ref, shift_ref : (1, 1, cin)  folded BN of the previous block]
       y_ref    : (1, th, w, cp)   raw conv output (pre-BN)
       s1_ref   : (1, 1, 1, cp)    per-tile per-channel sum
       s2_ref   : (1, 1, 1, cp)    per-tile per-channel sum of squares
       buf_ref  : (th+2, w+2, cin) VMEM scratch: zero-padded input tile
    """
    if apply_act:
        scale_ref, shift_ref, y_ref, s1_ref, s2_ref, buf_ref = rest
        scale = scale_ref[...]                      # (1, 1, cin) float32
        shift = shift_ref[...]
    else:
        y_ref, s1_ref, s2_ref, buf_ref = rest

    r0 = pl.program_id(1) * th                      # first output row of this tile
    cdt = buf_ref.dtype
    tm = th * w

    ridx = None
    if has_tail:
        ridx = lax.broadcasted_iota(jnp.int32, (th, w), 0) + r0

    def prep(v):
        """Fused BN affine + LeakyReLU of the previous block (if any)."""
        if apply_act:
            v = v.astype(jnp.float32) * scale + shift
            v = jnp.maximum(v, NEG_SLOPE * v)
        return v.astype(cdt)

    # ---- assemble the zero-padded (th+2, w+2, cin) input tile in VMEM ------
    zcol = jnp.zeros((th + 2, 1, cin), cdt)
    buf_ref[:, 0:1, :] = zcol                       # left zero column
    buf_ref[:, w + 1:w + 2, :] = zcol               # right zero column

    core = prep(core_ref[0])                        # (th, w, cin)
    if has_tail:                                    # zero padded tail rows (>= H)
        core = jnp.where(ridx[:, :, None] < h, core, jnp.zeros_like(core))
    buf_ref[1:th + 1, 1:w + 1, :] = core

    top = prep(top_ref[0])                          # (1, w, cin)
    top = jnp.where(r0 > 0, top, jnp.zeros_like(top))           # pad above row 0
    buf_ref[0:1, 1:w + 1, :] = top

    bot = prep(bot_ref[0])                          # (1, w, cin)
    bot = jnp.where(r0 + th < h, bot, jnp.zeros_like(bot))      # pad below row H-1
    buf_ref[th + 1:th + 2, 1:w + 1, :] = bot

    # ---- 3x3 conv: 9 accumulated (tm, cin) @ (cin, cp) matmuls, f32 acc ----
    acc = None
    k = 0
    for dy in range(3):
        for dx in range(3):
            slab = buf_ref[dy:dy + th, dx:dx + w, :].reshape(tm, cin)
            part = jnp.dot(slab, w_ref[k * cin:(k + 1) * cin, :],
                           preferred_element_type=jnp.float32)
            acc = part if acc is None else acc + part
            k += 1

    y_ref[0] = acc.reshape(th, w, cp).astype(y_ref.dtype)

    # ---- per-tile BN partial statistics (exclude padded tail rows) ---------
    if has_tail:
        rmask = ridx.reshape(tm, 1) < h
        s_in = jnp.where(rmask, acc, 0.0)
        q_in = jnp.where(rmask, acc * acc, 0.0)
    else:
        s_in = acc
        q_in = acc * acc
    s1_ref[0, 0] = jnp.sum(s_in, axis=0, keepdims=True)
    s2_ref[0, 0] = jnp.sum(q_in, axis=0, keepdims=True)


# --------------------------------------------------------------------------- #
# Epilogue kernel: folded BatchNorm affine + LeakyReLU + channel crop.
# --------------------------------------------------------------------------- #
def _bn_act_kernel(y_ref, scale_ref, shift_ref, o_ref, *, planes):
    z = y_ref[0].astype(jnp.float32) * scale_ref[...] + shift_ref[...]
    z = jnp.maximum(z, NEG_SLOPE * z)
    o_ref[0] = z[:, :, :planes].astype(o_ref.dtype)


# --------------------------------------------------------------------------- #
# Wrappers.
# --------------------------------------------------------------------------- #
def _prep_weight(w_oihw, cin, cp, dtype):
    """(Cout, Cin_w, 3, 3) torch weight -> tap-major (9*cin, cp), zero padded."""
    cout, cin_w = w_oihw.shape[0], w_oihw.shape[1]
    wt = jnp.transpose(w_oihw, (2, 3, 1, 0))                 # (3, 3, cin_w, cout)
    wt = jnp.pad(wt, ((0, 0), (0, 0), (0, cin - cin_w), (0, cp - cout)))
    return wt.reshape(9 * cin, cp).astype(dtype)


def _fold_bn(s1, s2, gamma, beta, m, cp):
    """Global training-mode batch stats -> folded per-channel scale/shift."""
    cout = gamma.shape[0]
    mean = jnp.sum(s1, axis=(0, 1, 2)) / m                   # (cp,)
    var = jnp.maximum(jnp.sum(s2, axis=(0, 1, 2)) / m - mean * mean, 0.0)
    g = jnp.pad(gamma, (0, cp - cout))                       # padded channels -> 0
    b = jnp.pad(beta, (0, cp - cout))
    scale = (g * lax.rsqrt(var + EPS)).astype(jnp.float32)
    shift = (b - mean * scale).astype(jnp.float32)
    return scale.reshape(1, 1, cp), shift.reshape(1, 1, cp)


def _conv_call(x, wt, scale, shift, *, th, h_valid, cp, compute_dtype, vmem_limit):
    n, hp, w, cin = x.shape
    nt = hp // th
    apply_act = scale is not None
    has_tail = hp != h_valid

    kernel = functools.partial(
        _conv_kernel, th=th, w=w, cin=cin, cp=cp, h=h_valid,
        apply_act=apply_act, has_tail=has_tail)

    top_spec = pl.BlockSpec(
        (1, 1, w, cin), lambda nb, r: (nb, jnp.maximum(r * th - 1, 0), 0, 0))
    core_spec = pl.BlockSpec((1, th, w, cin), lambda nb, r: (nb, r, 0, 0))
    bot_spec = pl.BlockSpec(
        (1, 1, w, cin), lambda nb, r: (nb, jnp.minimum(r * th + th, hp - 1), 0, 0))
    w_spec = pl.BlockSpec((9 * cin, cp), lambda nb, r: (0, 0))

    in_specs = [top_spec, core_spec, bot_spec, w_spec]
    args = [x, x, x, wt]
    if apply_act:
        vec_spec = pl.BlockSpec((1, 1, cin), lambda nb, r: (0, 0, 0))
        in_specs += [vec_spec, vec_spec]
        args += [scale, shift]

    out_specs = (
        pl.BlockSpec((1, th, w, cp), lambda nb, r: (nb, r, 0, 0)),
        pl.BlockSpec((1, 1, 1, cp), lambda nb, r: (nb, r, 0, 0)),
        pl.BlockSpec((1, 1, 1, cp), lambda nb, r: (nb, r, 0, 0)),
    )
    out_shape = (
        jax.ShapeDtypeStruct((n, hp, w, cp), compute_dtype),
        jax.ShapeDtypeStruct((n, nt, 1, cp), jnp.float32),
        jax.ShapeDtypeStruct((n, nt, 1, cp), jnp.float32),
    )
    return pl.pallas_call(
        kernel,
        grid=(n, nt),
        in_specs=in_specs,
        out_specs=out_specs,
        out_shape=out_shape,
        scratch_shapes=[pltpu.VMEM((th + 2, w + 2, cin), compute_dtype)],
        compiler_params=pltpu.CompilerParams(
            dimension_semantics=("parallel", "parallel"),
            vmem_limit_bytes=vmem_limit),
    )(*args)


def _bn_act_call(y, scale, shift, *, planes, th, vmem_limit):
    n, hp, w, cp = y.shape
    nt = hp // th
    return pl.pallas_call(
        functools.partial(_bn_act_kernel, planes=planes),
        grid=(n, nt),
        in_specs=[pl.BlockSpec((1, th, w, cp), lambda nb, r: (nb, r, 0, 0)),
                  pl.BlockSpec((1, 1, cp), lambda nb, r: (0, 0, 0)),
                  pl.BlockSpec((1, 1, cp), lambda nb, r: (0, 0, 0))],
        out_specs=pl.BlockSpec((1, th, w, planes), lambda nb, r: (nb, r, 0, 0)),
        out_shape=jax.ShapeDtypeStruct((n, hp, w, planes), jnp.float32),
        compiler_params=pltpu.CompilerParams(
            dimension_semantics=("parallel", "parallel"),
            vmem_limit_bytes=vmem_limit),
    )(y, scale, shift)


def double_conv(x_nchw, params, *, compute_dtype=jnp.bfloat16, block_rows=None):
    """Pallas implementation of Double_conv.forward (NCHW in, NCHW out).

    Conv biases (params['b1'], params['b2']) are intentionally not applied:
    training-mode BatchNorm subtracts the batch mean, which cancels them.
    """
    n, inplanes, h, w = x_nchw.shape
    planes = params["w2"].shape[0]
    cp = _round_up(planes, LANE)
    cb = jnp.dtype(compute_dtype).itemsize
    vmem_limit = _vmem_limit_bytes()

    ce1 = _round_up(inplanes, LANE)                 # lane-padded VMEM footprint
    th, hp = _pick_tile_rows(n, h, w, ce1, cp, cp, cb, vmem_limit, block_rows)

    x = jnp.transpose(x_nchw, (0, 2, 3, 1)).astype(compute_dtype)   # NCHW -> NHWC
    if hp != h:
        x = jnp.pad(x, ((0, 0), (0, hp - h), (0, 0), (0, 0)))

    w1 = _prep_weight(params["w1"], inplanes, cp, compute_dtype)
    w2 = _prep_weight(params["w2"], cp, cp, compute_dtype)
    m = n * h * w

    # conv1 -> raw y1 + batch statistics.
    y1, s1a, s1b = _conv_call(x, w1, None, None, th=th, h_valid=h, cp=cp,
                              compute_dtype=compute_dtype, vmem_limit=vmem_limit)
    sc1, sh1 = _fold_bn(s1a, s1b, params["g1"], params["beta1"], m, cp)

    # conv2 with BN1 + LeakyReLU fused into its input stage -> raw y2 + stats.
    y2, s2a, s2b = _conv_call(y1, w2, sc1, sh1, th=th, h_valid=h, cp=cp,
                              compute_dtype=compute_dtype, vmem_limit=vmem_limit)
    sc2, sh2 = _fold_bn(s2a, s2b, params["g2"], params["beta2"], m, cp)

    # epilogue: BN2 + LeakyReLU + channel crop (lane padding removed in-kernel).
    out = _bn_act_call(y2, sc2, sh2, planes=planes, th=th, vmem_limit=vmem_limit)
    if hp != h:
        out = out[:, :h]
    return jnp.transpose(out, (0, 3, 1, 2))         # NHWC -> NCHW


def init_params(key, inplanes, planes):
    ks = jax.random.split(key, 8)
    return dict(
        w1=0.1 * jax.random.normal(ks[0], (planes, inplanes, 3, 3), jnp.float32),
        b1=0.1 * jax.random.normal(ks[1], (planes,), jnp.float32),
        g1=1.0 + 0.1 * jax.random.normal(ks[2], (planes,), jnp.float32),
        beta1=0.1 * jax.random.normal(ks[3], (planes,), jnp.float32),
        w2=0.1 * jax.random.normal(ks[4], (planes, planes, 3, 3), jnp.float32),
        b2=0.1 * jax.random.normal(ks[5], (planes,), jnp.float32),
        g2=1.0 + 0.1 * jax.random.normal(ks[6], (planes,), jnp.float32),
        beta2=0.1 * jax.random.normal(ks[7], (planes,), jnp.float32),
    )


def _ref_double_conv(x_nchw, params):
    """Pure-JAX reference matching PyTorch semantics (incl. the conv bias)."""
    def block(x, w, b, g, beta):
        y = lax.conv_general_dilated(
            x, w, window_strides=(1, 1), padding=((1, 1), (1, 1)),
            dimension_numbers=("NCHW", "OIHW", "NCHW"))
        y = y + b[None, :, None, None]
        mean = jnp.mean(y, axis=(0, 2, 3), keepdims=True)
        var = jnp.mean(jnp.square(y - mean), axis=(0, 2, 3), keepdims=True)
        y = (y - mean) * lax.rsqrt(var + EPS)
        y = y * g[None, :, None, None] + beta[None, :, None, None]
        return jnp.where(y >= 0, y, NEG_SLOPE * y)

    x = block(x_nchw, params["w1"], params["b1"], params["g1"], params["beta1"])
    x = block(x, params["w2"], params["b2"], params["g2"], params["beta2"])
    return x


if __name__ == "__main__":
    key = jax.random.PRNGKey(0)
    k_x, k_p = jax.random.split(key)

    N, inplanes, planes, H, W = 2, 4, 8, 16, 16
    x = jax.random.normal(k_x, (N, inplanes, H, W), jnp.float32)
    params = init_params(k_p, inplanes, planes)

    ref = jax.block_until_ready(_ref_double_conv(x, params))

    # f32 compute path: tight correctness check.
    fwd_f32 = jax.jit(functools.partial(double_conv, compute_dtype=jnp.float32))
    out = jax.block_until_ready(fwd_f32(x, params))
    assert out.shape == (N, planes, H, W), out.shape
    err = float(jnp.max(jnp.abs(out - ref)))
    assert err < 1e-3, f"f32 max abs error vs reference: {err}"

    # Default bf16 matmul / bf16 intermediates path (MXU-native on v5e/v6e/v7x).
    fwd_bf16 = jax.jit(double_conv)
    out_bf16 = jax.block_until_ready(fwd_bf16(x, params))
    err_bf16 = float(jnp.max(jnp.abs(out_bf16 - ref)))
    assert err_bf16 < 2.5e-1, f"bf16 max abs error vs reference: {err_bf16}"

    print("KERNEL_OK")
</pallas_src>

<mosaic_0001>
module attributes {stable_mosaic.version = 11 : i64} {
  func.func @_conv_kernel(%arg0: i32, %arg1: i32, %arg2: memref<1x1x16x4xf32, #tpu.memory_space<vmem>>, %arg3: memref<1x16x16x4xf32, #tpu.memory_space<vmem>>, %arg4: memref<1x1x16x4xf32, #tpu.memory_space<vmem>>, %arg5: memref<36x128xf32, #tpu.memory_space<vmem>>, %arg6: memref<1x16x16x128xf32, #tpu.memory_space<vmem>>, %arg7: memref<1x1x1x128xf32, #tpu.memory_space<vmem>>, %arg8: memref<1x1x1x128xf32, #tpu.memory_space<vmem>>, %arg9: memref<18x18x4xf32, #tpu.memory_space<vmem>>) attributes {dimension_semantics = [#tpu.dimension_semantics<parallel>, #tpu.dimension_semantics<parallel>], iteration_bounds = array<i64: 2, 1>, scalar_prefetch = 0 : i64, scratch_operands = 1 : i64, tpu.core_type = #tpu.core_type<tc>, window_params = [{transform_indices = @transform_0, window_bounds = array<i64: 1, 1, 16, 4>}, {transform_indices = @transform_1, window_bounds = array<i64: 1, 16, 16, 4>}, {transform_indices = @transform_2, window_bounds = array<i64: 1, 1, 16, 4>}, {pipeline_mode = #tpu.pipeline_mode<synchronous>, transform_indices = @transform_3, window_bounds = array<i64: 36, 128>}, {transform_indices = @transform_4, window_bounds = array<i64: 1, 16, 16, 128>}, {transform_indices = @transform_5, window_bounds = array<i64: 1, 1, 1, 128>}, {transform_indices = @transform_6, window_bounds = array<i64: 1, 1, 1, 128>}]} {
    %c16_i32 = arith.constant 16 : i32
    %0 = arith.muli %arg1, %c16_i32 : i32
    %cst = arith.constant 0.000000e+00 : f32
    %1 = vector.broadcast %cst : f32 to vector<18x1x4xf32>
    %c0 = arith.constant 0 : index
    %c0_0 = arith.constant 0 : index
    %c0_1 = arith.constant 0 : index
    %2 = vector.load %arg9[%c0, %c0_0, %c0_1] : memref<18x18x4xf32, #tpu.memory_space<vmem>>, vector<18x1x4xf32>
    tpu.vector_store %arg9[%c0, %c0_0, %c0_1], %1 {strides = array<i32>} : memref<18x18x4xf32, #tpu.memory_space<vmem>>, vector<18x1x4xf32>,
    %c0_2 = arith.constant 0 : index
    %c17 = arith.constant 17 : index
    %c0_3 = arith.constant 0 : index
    %3 = vector.load %arg9[%c0_2, %c17, %c0_3] : memref<18x18x4xf32, #tpu.memory_space<vmem>>, vector<18x1x4xf32>
    tpu.vector_store %arg9[%c0_2, %c17, %c0_3], %1 {strides = array<i32>} : memref<18x18x4xf32, #tpu.memory_space<vmem>>, vector<18x1x4xf32>,
    %c0_4 = arith.constant 0 : index
    %c0_5 = arith.constant 0 : index
    %c0_6 = arith.constant 0 : index
    %c0_7 = arith.constant 0 : index
    %4 = vector.load %arg3[%c0_4, %c0_5, %c0_6, %c0_7] : memref<1x16x16x4xf32, #tpu.memory_space<vmem>>, vector<1x16x16x4xf32>
    %5 = vector.shape_cast %4 : vector<1x16x16x4xf32> to vector<16x16x4xf32>
    %c1 = arith.constant 1 : index
    %c1_8 = arith.constant 1 : index
    %c0_9 = arith.constant 0 : index
    %6 = vector.load %arg9[%c1, %c1_8, %c0_9] : memref<18x18x4xf32, #tpu.memory_space<vmem>>, vector<16x16x4xf32>
    tpu.vector_store %arg9[%c1, %c1_8, %c0_9], %5 {strides = array<i32>} : memref<18x18x4xf32, #tpu.memory_space<vmem>>, vector<16x16x4xf32>,
    %c0_10 = arith.constant 0 : index
    %c0_11 = arith.constant 0 : index
    %c0_12 = arith.constant 0 : index
    %c0_13 = arith.constant 0 : index
    %7 = vector.load %arg2[%c0_10, %c0_11, %c0_12, %c0_13] : memref<1x1x16x4xf32, #tpu.memory_space<vmem>>, vector<1x1x16x4xf32>
    %8 = vector.shape_cast %7 : vector<1x1x16x4xf32> to vector<1x16x4xf32>
    %c0_i32 = arith.constant 0 : i32
    %9 = arith.cmpi sgt, %0, %c0_i32 : i32
    %cst_14 = arith.constant 0.000000e+00 : f32
    %10 = vector.broadcast %cst_14 : f32 to vector<1x16x4xf32>
    %11 = arith.select %9, %8, %10 : vector<1x16x4xf32>
    %c0_15 = arith.constant 0 : index
    %c1_16 = arith.constant 1 : index
    %c0_17 = arith.constant 0 : index
    %12 = vector.load %arg9[%c0_15, %c1_16, %c0_17] : memref<18x18x4xf32, #tpu.memory_space<vmem>>, vector<1x16x4xf32>
    tpu.vector_store %arg9[%c0_15, %c1_16, %c0_17], %11 {strides = array<i32>} : memref<18x18x4xf32, #tpu.memory_space<vmem>>, vector<1x16x4xf32>,
    %c0_18 = arith.constant 0 : index
    %c0_19 = arith.constant 0 : index
    %c0_20 = arith.constant 0 : index
    %c0_21 = arith.constant 0 : index
    %13 = vector.load %arg4[%c0_18, %c0_19, %c0_20, %c0_21] : memref<1x1x16x4xf32, #tpu.memory_space<vmem>>, vector<1x1x16x4xf32>
    %14 = vector.shape_cast %13 : vector<1x1x16x4xf32> to vector<1x16x4xf32>
    %c16_i32_22 = arith.constant 16 : i32
    %15 = arith.addi %0, %c16_i32_22 : i32
    %c16_i32_23 = arith.constant 16 : i32
    %16 = arith.cmpi slt, %15, %c16_i32_23 : i32
    %cst_24 = arith.constant 0.000000e+00 : f32
    %17 = vector.broadcast %cst_24 : f32 to vector<1x16x4xf32>
    %18 = arith.select %16, %14, %17 : vector<1x16x4xf32>
    %c17_25 = arith.constant 17 : index
    %c1_26 = arith.constant 1 : index
    %c0_27 = arith.constant 0 : index
    %19 = vector.load %arg9[%c17_25, %c1_26, %c0_27] : memref<18x18x4xf32, #tpu.memory_space<vmem>>, vector<1x16x4xf32>
    tpu.vector_store %arg9[%c17_25, %c1_26, %c0_27], %18 {strides = array<i32>} : memref<18x18x4xf32, #tpu.memory_space<vmem>>, vector<1x16x4xf32>,
    %c0_28 = arith.constant 0 : index
    %c0_29 = arith.constant 0 : index
    %c0_30 = arith.constant 0 : index
    %20 = vector.load %arg9[%c0_28, %c0_29, %c0_30] : memref<18x18x4xf32, #tpu.memory_space<vmem>>, vector<16x16x4xf32>
    %21 = vector.shape_cast %20 : vector<16x16x4xf32> to vector<256x4xf32>
    %c0_31 = arith.constant 0 : index
    %c0_32 = arith.constant 0 : index
    %22 = vector.load %arg5[%c0_31, %c0_32] : memref<36x128xf32, #tpu.memory_space<vmem>>, vector<4x128xf32>
    %cst_33 = arith.constant dense<0.000000e+00> : vector<256x128xf32>
    %23 = tpu.matmul %21, %22, %cst_33 {dimension_numbers = #tpu.dot_dimension_numbers<[1], [0], [0], [1], [0, 0, 1, 1], [], []>} : vector<256x4xf32>, vector<4x128xf32>, vector<256x128xf32> -> vector<256x128xf32>
    %c0_34 = arith.constant 0 : index
    %c1_35 = arith.constant 1 : index
    %c0_36 = arith.constant 0 : index
    %24 = vector.load %arg9[%c0_34, %c1_35, %c0_36] : memref<18x18x4xf32, #tpu.memory_space<vmem>>, vector<16x16x4xf32>
    %25 = vector.shape_cast %24 : vector<16x16x4xf32> to vector<256x4xf32>
    %c4 = arith.constant 4 : index
    %c0_37 = arith.constant 0 : index
    %26 = vector.load %arg5[%c4, %c0_37] : memref<36x128xf32, #tpu.memory_space<vmem>>, vector<4x128xf32>
    %cst_38 = arith.constant dense<0.000000e+00> : vector<256x128xf32>
    %27 = tpu.matmul %25, %26, %cst_38 {dimension_numbers = #tpu.dot_dimension_numbers<[1], [0], [0], [1], [0, 0, 1, 1], [], []>} : vector<256x4xf32>, vector<4x128xf32>, vector<256x128xf32> -> vector<256x128xf32>
    %28 = arith.addf %23, %27 : vector<256x128xf32>
    %c0_39 = arith.constant 0 : index
    %c2 = arith.constant 2 : index
    %c0_40 = arith.constant 0 : index
    %29 = vector.load %arg9[%c0_39, %c2, %c0_40] : memref<18x18x4xf32, #tpu.memory_space<vmem>>, vector<16x16x4xf32>
    %30 = vector.shape_cast %29 : vector<16x16x4xf32> to vector<256x4xf32>
    %c8 = arith.constant 8 : index
    %c0_41 = arith.constant 0 : index
    %31 = vector.load %arg5[%c8, %c0_41] : memref<36x128xf32, #tpu.memory_space<vmem>>, vector<4x128xf32>
    %cst_42 = arith.constant dense<0.000000e+00> : vector<256x128xf32>
    %32 = tpu.matmul %30, %31, %cst_42 {dimension_numbers = #tpu.dot_dimension_numbers<[1], [0], [0], [1], [0, 0, 1, 1], [], []>} : vector<256x4xf32>, vector<4x128xf32>, vector<256x128xf32> -> vector<256x128xf32>
    %33 = arith.addf %28, %32 : vector<256x128xf32>
    %c1_43 = arith.constant 1 : index
    %c0_44 = arith.constant 0 : index
    %c0_45 = arith.constant 0 : index
    %34 = vector.load %arg9[%c1_43, %c0_44, %c0_45] : memref<18x18x4xf32, #tpu.memory_space<vmem>>, vector<16x16x4xf32>
    %35 = vector.shape_cast %34 : vector<16x16x4xf32> to vector<256x4xf32>
    %c12 = arith.constant 12 : index
    %c0_46 = arith.constant 0 : index
    %36 = vector.load %arg5[%c12, %c0_46] : memref<36x128xf32, #tpu.memory_space<vmem>>, vector<4x128xf32>
    %cst_47 = arith.constant dense<0.000000e+00> : vector<256x128xf32>
    %37 = tpu.matmul %35, %36, %cst_47 {dimension_numbers = #tpu.dot_dimension_numbers<[1], [0], [0], [1], [0, 0, 1, 1], [], []>} : vector<256x4xf32>, vector<4x128xf32>, vector<256x128xf32> -> vector<256x128xf32>
    %38 = arith.addf %33, %37 : vector<256x128xf32>
    %c1_48 = arith.constant 1 : index
    %c1_49 = arith.constant 1 : index
    %c0_50 = arith.constant 0 : index
    %39 = vector.load %arg9[%c1_48, %c1_49, %c0_50] : memref<18x18x4xf32, #tpu.memory_space<vmem>>, vector<16x16x4xf32>
    %40 = vector.shape_cast %39 : vector<16x16x4xf32> to vector<256x4xf32>
    %c16 = arith.constant 16 : index
    %c0_51 = arith.constant 0 : index
    %41 = vector.load %arg5[%c16, %c0_51] : memref<36x128xf32, #tpu.memory_space<vmem>>, vector<4x128xf32>
    %cst_52 = arith.constant dense<0.000000e+00> : vector<256x128xf32>
    %42 = tpu.matmul %40, %41, %cst_52 {dimension_numbers = #tpu.dot_dimension_numbers<[1], [0], [0], [1], [0, 0, 1, 1], [], []>} : vector<256x4xf32>, vector<4x128xf32>, vector<256x128xf32> -> vector<256x128xf32>
    %43 = arith.addf %38, %42 : vector<256x128xf32>
    %c1_53 = arith.constant 1 : index
    %c2_54 = arith.constant 2 : index
    %c0_55 = arith.constant 0 : index
    %44 = vector.load %arg9[%c1_53, %c2_54, %c0_55] : memref<18x18x4xf32, #tpu.memory_space<vmem>>, vector<16x16x4xf32>
    %45 = vector.shape_cast %44 : vector<16x16x4xf32> to vector<256x4xf32>
    %c20 = arith.constant 20 : index
    %c0_56 = arith.constant 0 : index
    %46 = vector.load %arg5[%c20, %c0_56] : memref<36x128xf32, #tpu.memory_space<vmem>>, vector<4x128xf32>
    %cst_57 = arith.constant dense<0.000000e+00> : vector<256x128xf32>
    %47 = tpu.matmul %45, %46, %cst_57 {dimension_numbers = #tpu.dot_dimension_numbers<[1], [0], [0], [1], [0, 0, 1, 1], [], []>} : vector<256x4xf32>, vector<4x128xf32>, vector<256x128xf32> -> vector<256x128xf32>
    %48 = arith.addf %43, %47 : vector<256x128xf32>
    %c2_58 = arith.constant 2 : index
    %c0_59 = arith.constant 0 : index
    %c0_60 = arith.constant 0 : index
    %49 = vector.load %arg9[%c2_58, %c0_59, %c0_60] : memref<18x18x4xf32, #tpu.memory_space<vmem>>, vector<16x16x4xf32>
    %50 = vector.shape_cast %49 : vector<16x16x4xf32> to vector<256x4xf32>
    %c24 = arith.constant 24 : index
    %c0_61 = arith.constant 0 : index
    %51 = vector.load %arg5[%c24, %c0_61] : memref<36x128xf32, #tpu.memory_space<vmem>>, vector<4x128xf32>
    %cst_62 = arith.constant dense<0.000000e+00> : vector<256x128xf32>
    %52 = tpu.matmul %50, %51, %cst_62 {dimension_numbers = #tpu.dot_dimension_numbers<[1], [0], [0], [1], [0, 0, 1, 1], [], []>} : vector<256x4xf32>, vector<4x128xf32>, vector<256x128xf32> -> vector<256x128xf32>
    %53 = arith.addf %48, %52 : vector<256x128xf32>
    %c2_63 = arith.constant 2 : index
    %c1_64 = arith.constant 1 : index
    %c0_65 = arith.constant 0 : index
    %54 = vector.load %arg9[%c2_63, %c1_64, %c0_65] : memref<18x18x4xf32, #tpu.memory_space<vmem>>, vector<16x16x4xf32>
    %55 = vector.shape_cast %54 : vector<16x16x4xf32> to vector<256x4xf32>
    %c28 = arith.constant 28 : index
    %c0_66 = arith.constant 0 : index
    %56 = vector.load %arg5[%c28, %c0_66] : memref<36x128xf32, #tpu.memory_space<vmem>>, vector<4x128xf32>
    %cst_67 = arith.constant dense<0.000000e+00> : vector<256x128xf32>
    %57 = tpu.matmul %55, %56, %cst_67 {dimension_numbers = #tpu.dot_dimension_numbers<[1], [0], [0], [1], [0, 0, 1, 1], [], []>} : vector<256x4xf32>, vector<4x128xf32>, vector<256x128xf32> -> vector<256x128xf32>
    %58 = arith.addf %53, %57 : vector<256x128xf32>
    %c2_68 = arith.constant 2 : index
    %c2_69 = arith.constant 2 : index
    %c0_70 = arith.constant 0 : index
    %59 = vector.load %arg9[%c2_68, %c2_69, %c0_70] : memref<18x18x4xf32, #tpu.memory_space<vmem>>, vector<16x16x4xf32>
    %60 = vector.shape_cast %59 : vector<16x16x4xf32> to vector<256x4xf32>
    %c32 = arith.constant 32 : index
    %c0_71 = arith.constant 0 : index
    %61 = vector.load %arg5[%c32, %c0_71] : memref<36x128xf32, #tpu.memory_space<vmem>>, vector<4x128xf32>
    %cst_72 = arith.constant dense<0.000000e+00> : vector<256x128xf32>
    %62 = tpu.matmul %60, %61, %cst_72 {dimension_numbers = #tpu.dot_dimension_numbers<[1], [0], [0], [1], [0, 0, 1, 1], [], []>} : vector<256x4xf32>, vector<4x128xf32>, vector<256x128xf32> -> vector<256x128xf32>
    %63 = arith.addf %58, %62 : vector<256x128xf32>
    %64 = vector.shape_cast %63 : vector<256x128xf32> to vector<16x16x128xf32>
    %c0_73 = arith.constant 0 : index
    %c0_74 = arith.constant 0 : index
    %c0_75 = arith.constant 0 : index
    %c0_76 = arith.constant 0 : index
    %65 = vector.load %arg6[%c0_73, %c0_74, %c0_75, %c0_76] : memref<1x16x16x128xf32, #tpu.memory_space<vmem>>, vector<1x16x16x128xf32>
    %66 = vector.shape_cast %65 : vector<1x16x16x128xf32> to vector<16x16x128xf32>
    %67 = vector.shape_cast %64 : vector<16x16x128xf32> to vector<1x16x16x128xf32>
    tpu.vector_store %arg6[%c0_73, %c0_74, %c0_75, %c0_76], %67 {strides = array<i32>} : memref<1x16x16x128xf32, #tpu.memory_space<vmem>>, vector<1x16x16x128xf32>,
    %68 = arith.mulf %63, %63 : vector<256x128xf32>
    %cst_77 = arith.constant dense<0.000000e+00> : vector<128xf32>
    %69 = vector.multi_reduction <add>, %63, %cst_77 [0] : vector<256x128xf32> to vector<128xf32>
    %70 = vector.shape_cast %69 : vector<128xf32> to vector<1x128xf32>
    %c0_78 = arith.constant 0 : index
    %c0_79 = arith.constant 0 : index
    %c0_80 = arith.constant 0 : index
    %c0_81 = arith.constant 0 : index
    %71 = vector.load %arg7[%c0_78, %c0_79, %c0_80, %c0_81] : memref<1x1x1x128xf32, #tpu.memory_space<vmem>>, vector<1x1x1x128xf32>
    %72 = vector.shape_cast %71 : vector<1x1x1x128xf32> to vector<1x128xf32>
    %73 = vector.shape_cast %70 : vector<1x128xf32> to vector<1x1x1x128xf32>
    tpu.vector_store %arg7[%c0_78, %c0_79, %c0_80, %c0_81], %73 {strides = array<i32>} : memref<1x1x1x128xf32, #tpu.memory_space<vmem>>, vector<1x1x1x128xf32>,
    %cst_82 = arith.constant dense<0.000000e+00> : vector<128xf32>
    %74 = vector.multi_reduction <add>, %68, %cst_82 [0] : vector<256x128xf32> to vector<128xf32>
    %75 = vector.shape_cast %74 : vector<128xf32> to vector<1x128xf32>
    %c0_83 = arith.constant 0 : index
    %c0_84 = arith.constant 0 : index
    %c0_85 = arith.constant 0 : index
    %c0_86 = arith.constant 0 : index
    %76 = vector.load %arg8[%c0_83, %c0_84, %c0_85, %c0_86] : memref<1x1x1x128xf32, #tpu.memory_space<vmem>>, vector<1x1x1x128xf32>
    %77 = vector.shape_cast %76 : vector<1x1x1x128xf32> to vector<1x128xf32>
    %78 = vector.shape_cast %75 : vector<1x128xf32> to vector<1x1x1x128xf32>
    tpu.vector_store %arg8[%c0_83, %c0_84, %c0_85, %c0_86], %78 {strides = array<i32>} : memref<1x1x1x128xf32, #tpu.memory_space<vmem>>, vector<1x1x1x128xf32>,
    return
  }
  func.func @transform_0(%arg0: i32, %arg1: i32) -> (i32, i32, i32, i32) {
    %c16_i32 = arith.constant 16 : i32
    %0 = arith.muli %arg1, %c16_i32 : i32
    %c1_i32 = arith.constant 1 : i32
    %1 = arith.subi %0, %c1_i32 : i32
    %c0_i32 = arith.constant 0 : i32
    %2 = arith.maxsi %1, %c0_i32 : i32
    %c0_i32_0 = arith.constant 0 : i32
    %c0_i32_1 = arith.constant 0 : i32
    %c0_i32_2 = arith.constant 0 : i32
    return %arg0, %2, %c0_i32_0, %c0_i32_1 : i32, i32, i32, i32
  }
  func.func @transform_1(%arg0: i32, %arg1: i32) -> (i32, i32, i32, i32) {
    %c0_i32 = arith.constant 0 : i32
    %c0_i32_0 = arith.constant 0 : i32
    %c0_i32_1 = arith.constant 0 : i32
    return %arg0, %arg1, %c0_i32, %c0_i32_0 : i32, i32, i32, i32
  }
  func.func @transform_2(%arg0: i32, %arg1: i32) -> (i32, i32, i32, i32) {
    %c16_i32 = arith.constant 16 : i32
    %0 = arith.muli %arg1, %c16_i32 : i32
    %c16_i32_0 = arith.constant 16 : i32
    %1 = arith.addi %0, %c16_i32_0 : i32
    %c15_i32 = arith.constant 15 : i32
    %2 = arith.minsi %1, %c15_i32 : i32
    %c0_i32 = arith.constant 0 : i32
    %c0_i32_1 = arith.constant 0 : i32
    %c0_i32_2 = arith.constant 0 : i32
    return %arg0, %2, %c0_i32, %c0_i32_1 : i32, i32, i32, i32
  }
  func.func @transform_3(%arg0: i32, %arg1: i32) -> (i32, i32) {
    %c0_i32 = arith.constant 0 : i32
    %c0_i32_0 = arith.constant 0 : i32
    %c0_i32_1 = arith.constant 0 : i32
    return %c0_i32, %c0_i32_0 : i32, i32
  }
  func.func @transform_4(%arg0: i32, %arg1: i32) -> (i32, i32, i32, i32) {
    %c0_i32 = arith.constant 0 : i32
    %c0_i32_0 = arith.constant 0 : i32
    %c0_i32_1 = arith.constant 0 : i32
    return %arg0, %arg1, %c0_i32, %c0_i32_0 : i32, i32, i32, i32
  }
  func.func @transform_5(%arg0: i32, %arg1: i32) -> (i32, i32, i32, i32) {
    %c0_i32 = arith.constant 0 : i32
    %c0_i32_0 = arith.constant 0 : i32
    %c0_i32_1 = arith.constant 0 : i32
    return %arg0, %arg1, %c0_i32, %c0_i32_0 : i32, i32, i32, i32
  }
  func.func @transform_6(%arg0: i32, %arg1: i32) -> (i32, i32, i32, i32) {
    %c0_i32 = arith.constant 0 : i32
    %c0_i32_0 = arith.constant 0 : i32
    %c0_i32_1 = arith.constant 0 : i32
    return %arg0, %arg1, %c0_i32, %c0_i32_0 : i32, i32, i32, i32
  }
}

module attributes {stable_mosaic.version = 11 : i64} {
  func.func @_conv_kernel(%arg0: i32, %arg1: i32, %arg2: memref<1x1x16x128xf32, #tpu.memory_space<vmem>>, %arg3: memref<1x16x16x128xf32, #tpu.memory_space<vmem>>, %arg4: memref<1x1x16x128xf32, #tpu.memory_space<vmem>>, %arg5: memref<1152x128xf32, #tpu.memory_space<vmem>>, %arg6: memref<1x1x128xf32, #tpu.memory_space<vmem>>, %arg7: memref<1x1x128xf32, #tpu.memory_space<vmem>>, %arg8: memref<1x16x16x128xf32, #tpu.memory_space<vmem>>, %arg9: memref<1x1x1x128xf32, #tpu.memory_space<vmem>>, %arg10: memref<1x1x1x128xf32, #tpu.memory_space<vmem>>, %arg11: memref<18x18x128xf32, #tpu.memory_space<vmem>>) attributes {dimension_semantics = [#tpu.dimension_semantics<parallel>, #tpu.dimension_semantics<parallel>], iteration_bounds = array<i64: 2, 1>, scalar_prefetch = 0 : i64, scratch_operands = 1 : i64, tpu.core_type = #tpu.core_type<tc>, window_params = [{transform_indices = @transform_0, window_bounds = array<i64: 1, 1, 16, 128>}, {transform_indices = @transform_1, window_bounds = array<i64: 1, 16, 16, 128>}, {transform_indices = @transform_2, window_bounds = array<i64: 1, 1, 16, 128>}, {pipeline_mode = #tpu.pipeline_mode<synchronous>, transform_indices = @transform_3, window_bounds = array<i64: 1152, 128>}, {pipeline_mode = #tpu.pipeline_mode<synchronous>, transform_indices = @transform_4, window_bounds = array<i64: 1, 1, 128>}, {pipeline_mode = #tpu.pipeline_mode<synchronous>, transform_indices = @transform_5, window_bounds = array<i64: 1, 1, 128>}, {transform_indices = @transform_6, window_bounds = array<i64: 1, 16, 16, 128>}, {transform_indices = @transform_7, window_bounds = array<i64: 1, 1, 1, 128>}, {transform_indices = @transform_8, window_bounds = array<i64: 1, 1, 1, 128>}]} {
    %c0 = arith.constant 0 : index
    %c0_0 = arith.constant 0 : index
    %c0_1 = arith.constant 0 : index
    %0 = vector.load %arg6[%c0, %c0_0, %c0_1] : memref<1x1x128xf32, #tpu.memory_space<vmem>>, vector<1x1x128xf32>
    %c0_2 = arith.constant 0 : index
    %c0_3 = arith.constant 0 : index
    %c0_4 = arith.constant 0 : index
    %1 = vector.load %arg7[%c0_2, %c0_3, %c0_4] : memref<1x1x128xf32, #tpu.memory_space<vmem>>, vector<1x1x128xf32>
    %c16_i32 = arith.constant 16 : i32
    %2 = arith.muli %arg1, %c16_i32 : i32
    %cst = arith.constant 0.000000e+00 : f32
    %3 = vector.broadcast %cst : f32 to vector<18x1x128xf32>
    %c0_5 = arith.constant 0 : index
    %c0_6 = arith.constant 0 : index
    %c0_7 = arith.constant 0 : index
    %4 = vector.load %arg11[%c0_5, %c0_6, %c0_7] : memref<18x18x128xf32, #tpu.memory_space<vmem>>, vector<18x1x128xf32>
    tpu.vector_store %arg11[%c0_5, %c0_6, %c0_7], %3 {strides = array<i32>} : memref<18x18x128xf32, #tpu.memory_space<vmem>>, vector<18x1x128xf32>,
    %c0_8 = arith.constant 0 : index
    %c17 = arith.constant 17 : index
    %c0_9 = arith.constant 0 : index
    %5 = vector.load %arg11[%c0_8, %c17, %c0_9] : memref<18x18x128xf32, #tpu.memory_space<vmem>>, vector<18x1x128xf32>
    tpu.vector_store %arg11[%c0_8, %c17, %c0_9], %3 {strides = array<i32>} : memref<18x18x128xf32, #tpu.memory_space<vmem>>, vector<18x1x128xf32>,
    %c0_10 = arith.constant 0 : index
    %c0_11 = arith.constant 0 : index
    %c0_12 = arith.constant 0 : index
    %c0_13 = arith.constant 0 : index
    %6 = vector.load %arg3[%c0_10, %c0_11, %c0_12, %c0_13] : memref<1x16x16x128xf32, #tpu.memory_space<vmem>>, vector<1x16x16x128xf32>
    %7 = vector.shape_cast %6 : vector<1x16x16x128xf32> to vector<16x16x128xf32>
    %8 = vector.broadcast %0 : vector<1x1x128xf32> to vector<16x16x128xf32>
    %9 = arith.mulf %7, %8 : vector<16x16x128xf32>
    %10 = vector.broadcast %1 : vector<1x1x128xf32> to vector<16x16x128xf32>
    %11 = arith.addf %9, %10 : vector<16x16x128xf32>
    %cst_14 = arith.constant 0.00999999977 : f32
    %12 = vector.broadcast %cst_14 : f32 to vector<16x16x128xf32>
    %13 = arith.mulf %12, %11 : vector<16x16x128xf32>
    %14 = arith.maximumf %11, %13 : vector<16x16x128xf32>
    %c1 = arith.constant 1 : index
    %c1_15 = arith.constant 1 : index
    %c0_16 = arith.constant 0 : index
    %15 = vector.load %arg11[%c1, %c1_15, %c0_16] : memref<18x18x128xf32, #tpu.memory_space<vmem>>, vector<16x16x128xf32>
    tpu.vector_store %arg11[%c1, %c1_15, %c0_16], %14 {strides = array<i32>} : memref<18x18x128xf32, #tpu.memory_space<vmem>>, vector<16x16x128xf32>,
    %c0_17 = arith.constant 0 : index
    %c0_18 = arith.constant 0 : index
    %c0_19 = arith.constant 0 : index
    %c0_20 = arith.constant 0 : index
    %16 = vector.load %arg2[%c0_17, %c0_18, %c0_19, %c0_20] : memref<1x1x16x128xf32, #tpu.memory_space<vmem>>, vector<1x1x16x128xf32>
    %17 = vector.shape_cast %16 : vector<1x1x16x128xf32> to vector<1x16x128xf32>
    %18 = vector.broadcast %0 : vector<1x1x128xf32> to vector<1x16x128xf32>
    %19 = arith.mulf %17, %18 : vector<1x16x128xf32>
    %20 = vector.broadcast %1 : vector<1x1x128xf32> to vector<1x16x128xf32>
    %21 = arith.addf %19, %20 : vector<1x16x128xf32>
    %cst_21 = arith.constant 0.00999999977 : f32
    %22 = vector.broadcast %cst_21 : f32 to vector<1x16x128xf32>
    %23 = arith.mulf %22, %21 : vector<1x16x128xf32>
    %24 = arith.maximumf %21, %23 : vector<1x16x128xf32>
    %c0_i32 = arith.constant 0 : i32
    %25 = arith.cmpi sgt, %2, %c0_i32 : i32
    %cst_22 = arith.constant 0.000000e+00 : f32
    %26 = vector.broadcast %cst_22 : f32 to vector<1x16x128xf32>
    %27 = arith.select %25, %24, %26 : vector<1x16x128xf32>
    %c0_23 = arith.constant 0 : index
    %c1_24 = arith.constant 1 : index
    %c0_25 = arith.constant 0 : index
    %28 = vector.load %arg11[%c0_23, %c1_24, %c0_25] : memref<18x18x128xf32, #tpu.memory_space<vmem>>, vector<1x16x128xf32>
    tpu.vector_store %arg11[%c0_23, %c1_24, %c0_25], %27 {strides = array<i32>} : memref<18x18x128xf32, #tpu.memory_space<vmem>>, vector<1x16x128xf32>,
    %c0_26 = arith.constant 0 : index
    %c0_27 = arith.constant 0 : index
    %c0_28 = arith.constant 0 : index
    %c0_29 = arith.constant 0 : index
    %29 = vector.load %arg4[%c0_26, %c0_27, %c0_28, %c0_29] : memref<1x1x16x128xf32, #tpu.memory_space<vmem>>, vector<1x1x16x128xf32>
    %30 = vector.shape_cast %29 : vector<1x1x16x128xf32> to vector<1x16x128xf32>
    %31 = vector.broadcast %0 : vector<1x1x128xf32> to vector<1x16x128xf32>
    %32 = arith.mulf %30, %31 : vector<1x16x128xf32>
    %33 = vector.broadcast %1 : vector<1x1x128xf32> to vector<1x16x128xf32>
    %34 = arith.addf %32, %33 : vector<1x16x128xf32>
    %cst_30 = arith.constant 0.00999999977 : f32
    %35 = vector.broadcast %cst_30 : f32 to vector<1x16x128xf32>
    %36 = arith.mulf %35, %34 : vector<1x16x128xf32>
    %37 = arith.maximumf %34, %36 : vector<1x16x128xf32>
    %c16_i32_31 = arith.constant 16 : i32
    %38 = arith.addi %2, %c16_i32_31 : i32
    %c16_i32_32 = arith.constant 16 : i32
    %39 = arith.cmpi slt, %38, %c16_i32_32 : i32
    %cst_33 = arith.constant 0.000000e+00 : f32
    %40 = vector.broadcast %cst_33 : f32 to vector<1x16x128xf32>
    %41 = arith.select %39, %37, %40 : vector<1x16x128xf32>
    %c17_34 = arith.constant 17 : index
    %c1_35 = arith.constant 1 : index
    %c0_36 = arith.constant 0 : index
    %42 = vector.load %arg11[%c17_34, %c1_35, %c0_36] : memref<18x18x128xf32, #tpu.memory_space<vmem>>, vector<1x16x128xf32>
    tpu.vector_store %arg11[%c17_34, %c1_35, %c0_36], %41 {strides = array<i32>} : memref<18x18x128xf32, #tpu.memory_space<vmem>>, vector<1x16x128xf32>,
    %c0_37 = arith.constant 0 : index
    %c0_38 = arith.constant 0 : index
    %c0_39 = arith.constant 0 : index
    %43 = vector.load %arg11[%c0_37, %c0_38, %c0_39] : memref<18x18x128xf32, #tpu.memory_space<vmem>>, vector<16x16x128xf32>
    %44 = vector.shape_cast %43 : vector<16x16x128xf32> to vector<256x128xf32>
    %c0_40 = arith.constant 0 : index
    %c0_41 = arith.constant 0 : index
    %45 = vector.load %arg5[%c0_40, %c0_41] : memref<1152x128xf32, #tpu.memory_space<vmem>>, vector<128x128xf32>
    %cst_42 = arith.constant dense<0.000000e+00> : vector<256x128xf32>
    %46 = tpu.matmul %44, %45, %cst_42 {dimension_numbers = #tpu.dot_dimension_numbers<[1], [0], [0], [1], [0, 0, 1, 1], [], []>} : vector<256x128xf32>, vector<128x128xf32>, vector<256x128xf32> -> vector<256x128xf32>
    %c0_43 = arith.constant 0 : index
    %c1_44 = arith.constant 1 : index
    %c0_45 = arith.constant 0 : index
    %47 = vector.load %arg11[%c0_43, %c1_44, %c0_45] : memref<18x18x128xf32, #tpu.memory_space<vmem>>, vector<16x16x128xf32>
    %48 = vector.shape_cast %47 : vector<16x16x128xf32> to vector<256x128xf32>
    %c128 = arith.constant 128 : index
    %c0_46 = arith.constant 0 : index
    %49 = vector.load %arg5[%c128, %c0_46] : memref<1152x128xf32, #tpu.memory_space<vmem>>, vector<128x128xf32>
    %cst_47 = arith.constant dense<0.000000e+00> : vector<256x128xf32>
    %50 = tpu.matmul %48, %49, %cst_47 {dimension_numbers = #tpu.dot_dimension_numbers<[1], [0], [0], [1], [0, 0, 1, 1], [], []>} : vector<256x128xf32>, vector<128x128xf32>, vector<256x128xf32> -> vector<256x128xf32>
    %51 = arith.addf %46, %50 : vector<256x128xf32>
    %c0_48 = arith.constant 0 : index
    %c2 = arith.constant 2 : index
    %c0_49 = arith.constant 0 : index
    %52 = vector.load %arg11[%c0_48, %c2, %c0_49] : memref<18x18x128xf32, #tpu.memory_space<vmem>>, vector<16x16x128xf32>
    %53 = vector.shape_cast %52 : vector<16x16x128xf32> to vector<256x128xf32>
    %c256 = arith.constant 256 : index
    %c0_50 = arith.constant 0 : index
    %54 = vector.load %arg5[%c256, %c0_50] : memref<1152x128xf32, #tpu.memory_space<vmem>>, vector<128x128xf32>
    %cst_51 = arith.constant dense<0.000000e+00> : vector<256x128xf32>
    %55 = tpu.matmul %53, %54, %cst_51 {dimension_numbers = #tpu.dot_dimension_numbers<[1], [0], [0], [1], [0, 0, 1, 1], [], []>} : vector<256x128xf32>, vector<128x128xf32>, vector<256x128xf32> -> vector<256x128xf32>
    %56 = arith.addf %51, %55 : vector<256x128xf32>
    %c1_52 = arith.constant 1 : index
    %c0_53 = arith.constant 0 : index
    %c0_54 = arith.constant 0 : index
    %57 = vector.load %arg11[%c1_52, %c0_53, %c0_54] : memref<18x18x128xf32, #tpu.memory_space<vmem>>, vector<16x16x128xf32>
    %58 = vector.shape_cast %57 : vector<16x16x128xf32> to vector<256x128xf32>
    %c384 = arith.constant 384 : index
    %c0_55 = arith.constant 0 : index
    %59 = vector.load %arg5[%c384, %c0_55] : memref<1152x128xf32, #tpu.memory_space<vmem>>, vector<128x128xf32>
    %cst_56 = arith.constant dense<0.000000e+00> : vector<256x128xf32>
    %60 = tpu.matmul %58, %59, %cst_56 {dimension_numbers = #tpu.dot_dimension_numbers<[1], [0], [0], [1], [0, 0, 1, 1], [], []>} : vector<256x128xf32>, vector<128x128xf32>, vector<256x128xf32> -> vector<256x128xf32>
    %61 = arith.addf %56, %60 : vector<256x128xf32>
    %c1_57 = arith.constant 1 : index
    %c1_58 = arith.constant 1 : index
    %c0_59 = arith.constant 0 : index
    %62 = vector.load %arg11[%c1_57, %c1_58, %c0_59] : memref<18x18x128xf32, #tpu.memory_space<vmem>>, vector<16x16x128xf32>
    %63 = vector.shape_cast %62 : vector<16x16x128xf32> to vector<256x128xf32>
    %c512 = arith.constant 512 : index
    %c0_60 = arith.constant 0 : index
    %64 = vector.load %arg5[%c512, %c0_60] : memref<1152x128xf32, #tpu.memory_space<vmem>>, vector<128x128xf32>
    %cst_61 = arith.constant dense<0.000000e+00> : vector<256x128xf32>
    %65 = tpu.matmul %63, %64, %cst_61 {dimension_numbers = #tpu.dot_dimension_numbers<[1], [0], [0], [1], [0, 0, 1, 1], [], []>} : vector<256x128xf32>, vector<128x128xf32>, vector<256x128xf32> -> vector<256x128xf32>
    %66 = arith.addf %61, %65 : vector<256x128xf32>
    %c1_62 = arith.constant 1 : index
    %c2_63 = arith.constant 2 : index
    %c0_64 = arith.constant 0 : index
    %67 = vector.load %arg11[%c1_62, %c2_63, %c0_64] : memref<18x18x128xf32, #tpu.memory_space<vmem>>, vector<16x16x128xf32>
    %68 = vector.shape_cast %67 : vector<16x16x128xf32> to vector<256x128xf32>
    %c640 = arith.constant 640 : index
    %c0_65 = arith.constant 0 : index
    %69 = vector.load %arg5[%c640, %c0_65] : memref<1152x128xf32, #tpu.memory_space<vmem>>, vector<128x128xf32>
    %cst_66 = arith.constant dense<0.000000e+00> : vector<256x128xf32>
    %70 = tpu.matmul %68, %69, %cst_66 {dimension_numbers = #tpu.dot_dimension_numbers<[1], [0], [0], [1], [0, 0, 1, 1], [], []>} : vector<256x128xf32>, vector<128x128xf32>, vector<256x128xf32> -> vector<256x128xf32>
    %71 = arith.addf %66, %70 : vector<256x128xf32>
    %c2_67 = arith.constant 2 : index
    %c0_68 = arith.constant 0 : index
    %c0_69 = arith.constant 0 : index
    %72 = vector.load %arg11[%c2_67, %c0_68, %c0_69] : memref<18x18x128xf32, #tpu.memory_space<vmem>>, vector<16x16x128xf32>
    %73 = vector.shape_cast %72 : vector<16x16x128xf32> to vector<256x128xf32>
    %c768 = arith.constant 768 : index
    %c0_70 = arith.constant 0 : index
    %74 = vector.load %arg5[%c768, %c0_70] : memref<1152x128xf32, #tpu.memory_space<vmem>>, vector<128x128xf32>
    %cst_71 = arith.constant dense<0.000000e+00> : vector<256x128xf32>
    %75 = tpu.matmul %73, %74, %cst_71 {dimension_numbers = #tpu.dot_dimension_numbers<[1], [0], [0], [1], [0, 0, 1, 1], [], []>} : vector<256x128xf32>, vector<128x128xf32>, vector<256x128xf32> -> vector<256x128xf32>
    %76 = arith.addf %71, %75 : vector<256x128xf32>
    %c2_72 = arith.constant 2 : index
    %c1_73 = arith.constant 1 : index
    %c0_74 = arith.constant 0 : index
    %77 = vector.load %arg11[%c2_72, %c1_73, %c0_74] : memref<18x18x128xf32, #tpu.memory_space<vmem>>, vector<16x16x128xf32>
    %78 = vector.shape_cast %77 : vector<16x16x128xf32> to vector<256x128xf32>
    %c896 = arith.constant 896 : index
    %c0_75 = arith.constant 0 : index
    %79 = vector.load %arg5[%c896, %c0_75] : memref<1152x128xf32, #tpu.memory_space<vmem>>, vector<128x128xf32>
    %cst_76 = arith.constant dense<0.000000e+00> : vector<256x128xf32>
    %80 = tpu.matmul %78, %79, %cst_76 {dimension_numbers = #tpu.dot_dimension_numbers<[1], [0], [0], [1], [0, 0, 1, 1], [], []>} : vector<256x128xf32>, vector<128x128xf32>, vector<256x128xf32> -> vector<256x128xf32>
    %81 = arith.addf %76, %80 : vector<256x128xf32>
    %c2_77 = arith.constant 2 : index
    %c2_78 = arith.constant 2 : index
    %c0_79 = arith.constant 0 : index
    %82 = vector.load %arg11[%c2_77, %c2_78, %c0_79] : memref<18x18x128xf32, #tpu.memory_space<vmem>>, vector<16x16x128xf32>
    %83 = vector.shape_cast %82 : vector<16x16x128xf32> to vector<256x128xf32>
    %c1024 = arith.constant 1024 : index
    %c0_80 = arith.constant 0 : index
    %84 = vector.load %arg5[%c1024, %c0_80] : memref<1152x128xf32, #tpu.memory_space<vmem>>, vector<128x128xf32>
    %cst_81 = arith.constant dense<0.000000e+00> : vector<256x128xf32>
    %85 = tpu.matmul %83, %84, %cst_81 {dimension_numbers = #tpu.dot_dimension_numbers<[1], [0], [0], [1], [0, 0, 1, 1], [], []>} : vector<256x128xf32>, vector<128x128xf32>, vector<256x128xf32> -> vector<256x128xf32>
    %86 = arith.addf %81, %85 : vector<256x128xf32>
    %87 = vector.shape_cast %86 : vector<256x128xf32> to vector<16x16x128xf32>
    %c0_82 = arith.constant 0 : index
    %c0_83 = arith.constant 0 : index
    %c0_84 = arith.constant 0 : index
    %c0_85 = arith.constant 0 : index
    %88 = vector.load %arg8[%c0_82, %c0_83, %c0_84, %c0_85] : memref<1x16x16x128xf32, #tpu.memory_space<vmem>>, vector<1x16x16x128xf32>
    %89 = vector.shape_cast %88 : vector<1x16x16x128xf32> to vector<16x16x128xf32>
    %90 = vector.shape_cast %87 : vector<16x16x128xf32> to vector<1x16x16x128xf32>
    tpu.vector_store %arg8[%c0_82, %c0_83, %c0_84, %c0_85], %90 {strides = array<i32>} : memref<1x16x16x128xf32, #tpu.memory_space<vmem>>, vector<1x16x16x128xf32>,
    %91 = arith.mulf %86, %86 : vector<256x128xf32>
    %cst_86 = arith.constant dense<0.000000e+00> : vector<128xf32>
    %92 = vector.multi_reduction <add>, %86, %cst_86 [0] : vector<256x128xf32> to vector<128xf32>
    %93 = vector.shape_cast %92 : vector<128xf32> to vector<1x128xf32>
    %c0_87 = arith.constant 0 : index
    %c0_88 = arith.constant 0 : index
    %c0_89 = arith.constant 0 : index
    %c0_90 = arith.constant 0 : index
    %94 = vector.load %arg9[%c0_87, %c0_88, %c0_89, %c0_90] : memref<1x1x1x128xf32, #tpu.memory_space<vmem>>, vector<1x1x1x128xf32>
    %95 = vector.shape_cast %94 : vector<1x1x1x128xf32> to vector<1x128xf32>
    %96 = vector.shape_cast %93 : vector<1x128xf32> to vector<1x1x1x128xf32>
    tpu.vector_store %arg9[%c0_87, %c0_88, %c0_89, %c0_90], %96 {strides = array<i32>} : memref<1x1x1x128xf32, #tpu.memory_space<vmem>>, vector<1x1x1x128xf32>,
    %cst_91 = arith.constant dense<0.000000e+00> : vector<128xf32>
    %97 = vector.multi_reduction <add>, %91, %cst_91 [0] : vector<256x128xf32> to vector<128xf32>
    %98 = vector.shape_cast %97 : vector<128xf32> to vector<1x128xf32>
    %c0_92 = arith.constant 0 : index
    %c0_93 = arith.constant 0 : index
    %c0_94 = arith.constant 0 : index
    %c0_95 = arith.constant 0 : index
    %99 = vector.load %arg10[%c0_92, %c0_93, %c0_94, %c0_95] : memref<1x1x1x128xf32, #tpu.memory_space<vmem>>, vector<1x1x1x128xf32>
    %100 = vector.shape_cast %99 : vector<1x1x1x128xf32> to vector<1x128xf32>
    %101 = vector.shape_cast %98 : vector<1x128xf32> to vector<1x1x1x128xf32>
    tpu.vector_store %arg10[%c0_92, %c0_93, %c0_94, %c0_95], %101 {strides = array<i32>} : memref<1x1x1x128xf32, #tpu.memory_space<vmem>>, vector<1x1x1x128xf32>,
    return
  }
  func.func @transform_0(%arg0: i32, %arg1: i32) -> (i32, i32, i32, i32) {
    %c16_i32 = arith.constant 16 : i32
    %0 = arith.muli %arg1, %c16_i32 : i32
    %c1_i32 = arith.constant 1 : i32
    %1 = arith.subi %0, %c1_i32 : i32
    %c0_i32 = arith.constant 0 : i32
    %2 = arith.maxsi %1, %c0_i32 : i32
    %c0_i32_0 = arith.constant 0 : i32
    %c0_i32_1 = arith.constant 0 : i32
    %c0_i32_2 = arith.constant 0 : i32
    return %arg0, %2, %c0_i32_0, %c0_i32_1 : i32, i32, i32, i32
  }
  func.func @transform_1(%arg0: i32, %arg1: i32) -> (i32, i32, i32, i32) {
    %c0_i32 = arith.constant 0 : i32
    %c0_i32_0 = arith.constant 0 : i32
    %c0_i32_1 = arith.constant 0 : i32
    return %arg0, %arg1, %c0_i32, %c0_i32_0 : i32, i32, i32, i32
  }
  func.func @transform_2(%arg0: i32, %arg1: i32) -> (i32, i32, i32, i32) {
    %c16_i32 = arith.constant 16 : i32
    %0 = arith.muli %arg1, %c16_i32 : i32
    %c16_i32_0 = arith.constant 16 : i32
    %1 = arith.addi %0, %c16_i32_0 : i32
    %c15_i32 = arith.constant 15 : i32
    %2 = arith.minsi %1, %c15_i32 : i32
    %c0_i32 = arith.constant 0 : i32
    %c0_i32_1 = arith.constant 0 : i32
    %c0_i32_2 = arith.constant 0 : i32
    return %arg0, %2, %c0_i32, %c0_i32_1 : i32, i32, i32, i32
  }
  func.func @transform_3(%arg0: i32, %arg1: i32) -> (i32, i32) {
    %c0_i32 = arith.constant 0 : i32
    %c0_i32_0 = arith.constant 0 : i32
    %c0_i32_1 = arith.constant 0 : i32
    return %c0_i32, %c0_i32_0 : i32, i32
  }
  func.func @transform_4(%arg0: i32, %arg1: i32) -> (i32, i32, i32) {
    %c0_i32 = arith.constant 0 : i32
    %c0_i32_0 = arith.constant 0 : i32
    %c0_i32_1 = arith.constant 0 : i32
    %c0_i32_2 = arith.constant 0 : i32
    return %c0_i32, %c0_i32_0, %c0_i32_1 : i32, i32, i32
  }
  func.func @transform_5(%arg0: i32, %arg1: i32) -> (i32, i32, i32) {
    %c0_i32 = arith.constant 0 : i32
    %c0_i32_0 = arith.constant 0 : i32
    %c0_i32_1 = arith.constant 0 : i32
    %c0_i32_2 = arith.constant 0 : i32
    return %c0_i32, %c0_i32_0, %c0_i32_1 : i32, i32, i32
  }
  func.func @transform_6(%arg0: i32, %arg1: i32) -> (i32, i32, i32, i32) {
    %c0_i32 = arith.constant 0 : i32
    %c0_i32_0 = arith.constant 0 : i32
    %c0_i32_1 = arith.constant 0 : i32
    return %arg0, %arg1, %c0_i32, %c0_i32_0 : i32, i32, i32, i32
  }
  func.func @transform_7(%arg0: i32, %arg1: i32) -> (i32, i32, i32, i32) {
    %c0_i32 = arith.constant 0 : i32
    %c0_i32_0 = arith.constant 0 : i32
    %c0_i32_1 = arith.constant 0 : i32
    return %arg0, %arg1, %c0_i32, %c0_i32_0 : i32, i32, i32, i32
  }
  func.func @transform_8(%arg0: i32, %arg1: i32) -> (i32, i32, i32, i32) {
    %c0_i32 = arith.constant 0 : i32
    %c0_i32_0 = arith.constant 0 : i32
    %c0_i32_1 = arith.constant 0 : i32
    return %arg0, %arg1, %c0_i32, %c0_i32_0 : i32, i32, i32, i32
  }
}

module attributes {stable_mosaic.version = 11 : i64} {
  func.func @_bn_act_kernel(%arg0: i32, %arg1: i32, %arg2: memref<1x16x16x128xf32, #tpu.memory_space<vmem>>, %arg3: memref<1x1x128xf32, #tpu.memory_space<vmem>>, %arg4: memref<1x1x128xf32, #tpu.memory_space<vmem>>, %arg5: memref<1x16x16x8xf32, #tpu.memory_space<vmem>>) attributes {dimension_semantics = [#tpu.dimension_semantics<parallel>, #tpu.dimension_semantics<parallel>], iteration_bounds = array<i64: 2, 1>, scalar_prefetch = 0 : i64, scratch_operands = 0 : i64, tpu.core_type = #tpu.core_type<tc>, window_params = [{transform_indices = @transform_0, window_bounds = array<i64: 1, 16, 16, 128>}, {pipeline_mode = #tpu.pipeline_mode<synchronous>, transform_indices = @transform_1, window_bounds = array<i64: 1, 1, 128>}, {pipeline_mode = #tpu.pipeline_mode<synchronous>, transform_indices = @transform_2, window_bounds = array<i64: 1, 1, 128>}, {transform_indices = @transform_3, window_bounds = array<i64: 1, 16, 16, 8>}]} {
    %c0 = arith.constant 0 : index
    %c0_0 = arith.constant 0 : index
    %c0_1 = arith.constant 0 : index
    %c0_2 = arith.constant 0 : index
    %0 = vector.load %arg2[%c0, %c0_0, %c0_1, %c0_2] : memref<1x16x16x128xf32, #tpu.memory_space<vmem>>, vector<1x16x16x128xf32>
    %1 = vector.shape_cast %0 : vector<1x16x16x128xf32> to vector<16x16x128xf32>
    %c0_3 = arith.constant 0 : index
    %c0_4 = arith.constant 0 : index
    %c0_5 = arith.constant 0 : index
    %2 = vector.load %arg3[%c0_3, %c0_4, %c0_5] : memref<1x1x128xf32, #tpu.memory_space<vmem>>, vector<1x1x128xf32>
    %3 = vector.broadcast %2 : vector<1x1x128xf32> to vector<16x16x128xf32>
    %4 = arith.mulf %1, %3 : vector<16x16x128xf32>
    %c0_6 = arith.constant 0 : index
    %c0_7 = arith.constant 0 : index
    %c0_8 = arith.constant 0 : index
    %5 = vector.load %arg4[%c0_6, %c0_7, %c0_8] : memref<1x1x128xf32, #tpu.memory_space<vmem>>, vector<1x1x128xf32>
    %6 = vector.broadcast %5 : vector<1x1x128xf32> to vector<16x16x128xf32>
    %7 = arith.addf %4, %6 : vector<16x16x128xf32>
    %cst = arith.constant 0.00999999977 : f32
    %8 = vector.broadcast %cst : f32 to vector<16x16x128xf32>
    %9 = arith.mulf %8, %7 : vector<16x16x128xf32>
    %10 = arith.maximumf %7, %9 : vector<16x16x128xf32>
    %11 = vector.extract_strided_slice %10 {offsets = [0, 0, 0], sizes = [16, 16, 8], strides = [1, 1, 1]} : vector<16x16x128xf32> to vector<16x16x8xf32>
    %c0_9 = arith.constant 0 : index
    %c0_10 = arith.constant 0 : index
    %c0_11 = arith.constant 0 : index
    %c0_12 = arith.constant 0 : index
    %12 = vector.load %arg5[%c0_9, %c0_10, %c0_11, %c0_12] : memref<1x16x16x8xf32, #tpu.memory_space<vmem>>, vector<1x16x16x8xf32>
    %13 = vector.shape_cast %12 : vector<1x16x16x8xf32> to vector<16x16x8xf32>
    %14 = vector.shape_cast %11 : vector<16x16x8xf32> to vector<1x16x16x8xf32>
    tpu.vector_store %arg5[%c0_9, %c0_10, %c0_11, %c0_12], %14 {strides = array<i32>} : memref<1x16x16x8xf32, #tpu.memory_space<vmem>>, vector<1x16x16x8xf32>,
    return
  }
  func.func @transform_0(%arg0: i32, %arg1: i32) -> (i32, i32, i32, i32) {
    %c0_i32 = arith.constant 0 : i32
    %c0_i32_0 = arith.constant 0 : i32
    %c0_i32_1 = arith.constant 0 : i32
    return %arg0, %arg1, %c0_i32, %c0_i32_0 : i32, i32, i32, i32
  }
  func.func @transform_1(%arg0: i32, %arg1: i32) -> (i32, i32, i32) {
    %c0_i32 = arith.constant 0 : i32
    %c0_i32_0 = arith.constant 0 : i32
    %c0_i32_1 = arith.constant 0 : i32
    %c0_i32_2 = arith.constant 0 : i32
    return %c0_i32, %c0_i32_0, %c0_i32_1 : i32, i32, i32
  }
  func.func @transform_2(%arg0: i32, %arg1: i32) -> (i32, i32, i32) {
    %c0_i32 = arith.constant 0 : i32
    %c0_i32_0 = arith.constant 0 : i32
    %c0_i32_1 = arith.constant 0 : i32
    %c0_i32_2 = arith.constant 0 : i32
    return %c0_i32, %c0_i32_0, %c0_i32_1 : i32, i32, i32
  }
  func.func @transform_3(%arg0: i32, %arg1: i32) -> (i32, i32, i32, i32) {
    %c0_i32 = arith.constant 0 : i32
    %c0_i32_0 = arith.constant 0 : i32
    %c0_i32_1 = arith.constant 0 : i32
    return %arg0, %arg1, %c0_i32, %c0_i32_0 : i32, i32, i32, i32
  }
}

</mosaic_0001>

<llo_original>
// kernel: double_conv.5
$region0: #{double_conv.5}
  #allocation0 [shape = 'u32[]', space=smem, size = 0x4, offset = 0x4, fixed_abs, tag = 'smem constant byte address 0x4 - core index']
  #allocation1 [shape = 'u32[144,128]{1,0:T(1,128)}', space=vmem, size = 0x12000, scoped, tag = 'internal scratch']
  %s0 = inlined_call_operand.vmem [shape: f32[2,16,16,128], index: 0, kind: input, shape index: {}]
  %s1 = inlined_call_operand.vmem [shape: f32[1,1,128], index: 1, kind: input, shape index: {}]
  %s2 = inlined_call_operand.vmem [shape: f32[1,1,128], index: 2, kind: input, shape index: {}]
  %s3 = inlined_call_operand.vmem [shape: f32[2,16,16,8], index: 3, kind: output, shape index: {}]
  %s4 = sld [smem:[#allocation0]]
  $region45: #{double_conv.5} parent=0
    _
  %s6 = ssub.s32 1, %s4
  %s7 = scalar_select 0, %s6, %s4
  loop: start=0, step=1, limit=4
  $region2: #{double_conv.5} parent=0 // loop_pre_header
    _
  $region3: #{double_conv.5} parent=0 // loop_header
    %s9 = sphi 0, %s13
    %p10 = scmp.ge.s32.totalorder %s9, 4
    %s16 = sphi 0, %s28
    %s17 = sphi 0, %s24
    %s18 = sphi 0, %s16
    %s19 = sphi 0, %s17
    %s20 = sphi 0, %s18
    %s21 = sphi 0, %s19
    %s33 = sphi 0, %s35
    %s36 = sphi 0, %s33
    %s37 = sphi 0, %s36
    %s53 = sphi 0, %s37
    %s57 = sphi 0, %s57
    %s59 = sphi 0, %s57
    %s60 = sphi 0, %s59
    %s74 = sphi 0, %s60
    %s78 = sphi 0, %s78
    %s80 = sphi 0, %s78
    %s81 = sphi 0, %s80
    %s95 = sphi 0, %s81
    %s103 = sphi 0, %s105
    %s106 = sphi 0, %s103
    %s107 = sphi 0, %s106
    %s123 = sphi 0, %s107
  $region4: #{double_conv.5} parent=0 // loop_header_branch
    %12 = sbr.rel (%p10) target = $region8
  $region5: #{double_conv.5} parent=0 // loop_body
    %s14 = ssub.s32 %s9, 1
    %s15 = ssub.s32 %s9, 2
    %s22 = sadd.s32 1, %s17
    %p23 = scmp.ge.s32.totalorder %s22, 1
    %s24 = scalar_select %p23, 0, %s22
    %s25 = sadd.s32 1, %s16
    %s26 = scalar_select %p23, %s25, %s16
    %p27 = scmp.ge.s32.totalorder %s26, 2
    %s28 = scalar_select %p27, 0, %s26
    %s29 = ssub.s32 %s16, %s28
    %s30 = ssub.s32 %s17, %s24
    %s31 = sor.u32 %s29, %s30
    %p32 = scmp.eq.s32.totalorder %s31, 0
    %s34 = sadd.s32 %s33, 1
    %s35 = scalar_select %p32, %s33, %s34
    %p38 = pneg %p32
    %p39 = scmp.eq.s32.totalorder %s9, 1
    %p40 = por %p38, %p39
    %p41 = scmp.ne.s32.totalorder %s33, %s36
    %p42 = scmp.eq.s32.totalorder %s9, 0
    %p43 = por %p41, %p42
    %p44 = scmp.ne.s32.totalorder %s33, %s36
    %p45 = scmp.eq.s32.totalorder %s14, 1
    %p46 = por %p44, %p45
    %p47 = scmp.ne.s32.totalorder %s36, %s37
    %p48 = scmp.eq.s32.totalorder %s14, 0
    %p49 = por %p47, %p48
    %p50 = scmp.ne.s32.totalorder %s36, %s37
    %p51 = scmp.eq.s32.totalorder %s15, 1
    %p52 = por %p50, %p51
    %p54 = scmp.ne.s32.totalorder %s37, %s53
    %p55 = scmp.eq.s32.totalorder %s15, 0
    %p56 = por %p54, %p55
    %s58 = sadd.s32 %s57, 1
    %p61 = scmp.eq.s32.totalorder %s9, 1
    %p62 = scmp.ne.s32.totalorder %s57, %s59
    %p63 = scmp.eq.s32.totalorder %s9, 0
    %p64 = por %p62, %p63
    %p65 = scmp.ne.s32.totalorder %s57, %s59
    %p66 = scmp.eq.s32.totalorder %s14, 1
    %p67 = por %p65, %p66
    %p68 = scmp.ne.s32.totalorder %s59, %s60
    %p69 = scmp.eq.s32.totalorder %s14, 0
    %p70 = por %p68, %p69
    %p71 = scmp.ne.s32.totalorder %s59, %s60
    %p72 = scmp.eq.s32.totalorder %s15, 1
    %p73 = por %p71, %p72
    %p75 = scmp.ne.s32.totalorder %s60, %s74
    %p76 = scmp.eq.s32.totalorder %s15, 0
    %p77 = por %p75, %p76
    %s79 = sadd.s32 %s78, 1
    %p82 = scmp.eq.s32.totalorder %s9, 1
    %p83 = scmp.ne.s32.totalorder %s78, %s80
    %p84 = scmp.eq.s32.totalorder %s9, 0
    %p85 = por %p83, %p84
    %p86 = scmp.ne.s32.totalorder %s78, %s80
    %p87 = scmp.eq.s32.totalorder %s14, 1
    %p88 = por %p86, %p87
    %p89 = scmp.ne.s32.totalorder %s80, %s81
    %p90 = scmp.eq.s32.totalorder %s14, 0
    %p91 = por %p89, %p90
    %p92 = scmp.ne.s32.totalorder %s80, %s81
    %p93 = scmp.eq.s32.totalorder %s15, 1
    %p94 = por %p92, %p93
    %p96 = scmp.ne.s32.totalorder %s81, %s95
    %p97 = scmp.eq.s32.totalorder %s15, 0
    %p98 = por %p96, %p97
    %s99 = ssub.s32 %s16, %s28
    %s100 = ssub.s32 %s17, %s24
    %s101 = sor.u32 %s99, %s100
    %p102 = scmp.eq.s32.totalorder %s101, 0
    %s104 = sadd.s32 %s103, 1
    %s105 = scalar_select %p102, %s103, %s104
    %p108 = pneg %p102
    %p109 = scmp.eq.s32.totalorder %s9, 1
    %p110 = por %p108, %p109
    %p111 = scmp.ne.s32.totalorder %s103, %s106
    %p112 = scmp.eq.s32.totalorder %s9, 0
    %p113 = por %p111, %p112
    %p114 = scmp.ne.s32.totalorder %s103, %s106
    %p115 = scmp.eq.s32.totalorder %s14, 1
    %p116 = por %p114, %p115
    %p117 = scmp.ne.s32.totalorder %s106, %s107
    %p118 = scmp.eq.s32.totalorder %s14, 0
    %p119 = por %p117, %p118
    %p120 = scmp.ne.s32.totalorder %s106, %s107
    %p121 = scmp.eq.s32.totalorder %s15, 1
    %p122 = por %p120, %p121
    %p124 = scmp.ne.s32.totalorder %s107, %s123
    %p125 = scmp.eq.s32.totalorder %s15, 0
    %p126 = por %p124, %p125
    %p127 = scmp.le.s32.totalorder 1, %s9
    %p128 = scmp.lt.s32.totalorder %s9, 3
    %p129 = pnand %p127, %p128
    %p130 = pneg %p129
    // Predicated region
    $region9: #{double_conv.5} parent=5 // pred_check
      _
    $region10: #{double_conv.5} parent=5 // pred_check_branch
      %132 = sbr.rel (%p129) target = $region12
    $region11: #{double_conv.5} parent=5 // pred_region
      %s133 = ssub.s32 %s9, 1
      // Predicated region
      $region13: #{double_conv.5} parent=11 // pred_check
        %p134 = pneg %p70
      $region14: #{double_conv.5} parent=11 // pred_check_branch
        %136 = sbr.rel (%p134) target = $region16
      $region15: #{double_conv.5} parent=11 // pred_region
        _
      $region16: #{double_conv.5} parent=11 // pred_fallthru
        _
      // Predicated region
      $region17: #{double_conv.5} parent=11 // pred_check
        %p137 = pneg %p91
      $region18: #{double_conv.5} parent=11 // pred_check_branch
        %139 = sbr.rel (%p137) target = $region20
      $region19: #{double_conv.5} parent=11 // pred_region
        _
      $region20: #{double_conv.5} parent=11 // pred_fallthru
        _
    $region12: #{double_conv.5} parent=5 // pred_fallthru
      _
    %p140 = scmp.lt.s32.totalorder %s9, 2
    // Predicated region
    $region21: #{double_conv.5} parent=5 // pred_check
      %p141 = pneg %p140
    $region22: #{double_conv.5} parent=5 // pred_check_branch
      %143 = sbr.rel (%p141) target = $region24
    $region23: #{double_conv.5} parent=5 // pred_region
      // Predicated region
      $region25: #{double_conv.5} parent=23 // pred_check
        %p144 = pneg %p43
      $region26: #{double_conv.5} parent=23 // pred_check_branch
        %146 = sbr.rel (%p144) target = $region28
      $region27: #{double_conv.5} parent=23 // pred_region
        %s147 = smul.u32 16, %s17
        %p148 = scmp.lt.s32.totalorder %s16, 1
        %s149 = scalar_select %p148, %s16, 1
        %p150 = scmp.lt.s32.totalorder %s147, 15
        %s151 = scalar_select %p150, %s147, 15
        %s152 = smul.addr %s151, 2
        %s153 = smul.addr %s149, 32
        %s154 = sadd.s32 %s152, %s153
        %s155 = smul.addr %s154, 8
        %s156 = scalar_lea.vmem %s0, %s155
        %s157 = smul.u32 16, %s17
      $region28: #{double_conv.5} parent=23 // pred_fallthru
        _
    $region24: #{double_conv.5} parent=5 // pred_fallthru
      _
    %p158 = scmp.le.s32.totalorder 1, %s9
    %p159 = scmp.lt.s32.totalorder %s9, 3
    %p160 = pnand %p158, %p159
    %p161 = pneg %p160
    // Predicated region
    $region29: #{double_conv.5} parent=5 // pred_check
      _
    $region30: #{double_conv.5} parent=5 // pred_check_branch
      %163 = sbr.rel (%p160) target = $region32
    $region31: #{double_conv.5} parent=5 // pred_region
      %s164 = ssub.s32 %s9, 1
      %s165 = smul.u32 16, %s19
      %p166 = scmp.lt.s32.totalorder %s18, 1
      %s167 = scalar_select %p166, %s18, 1
      %p168 = scmp.lt.s32.totalorder %s165, 15
      %s169 = scalar_select %p168, %s165, 15
      %s170 = smul.addr %s169, 2
      %s171 = smul.addr %s167, 32
      %s172 = sadd.s32 %s170, %s171
      %s173 = smul.addr %s172, 8
      %s174 = scalar_lea.vmem %s0, %s173
      %p175 = pneg %p49
      %p176 = pneg %p46
      %p177 = pneg %p70
      %p178 = pneg %p67
      %p179 = pneg %p91
      %p180 = pneg %p88
      %p181 = pneg %p119
      %p182 = pneg %p116
      %s183 = smul.u32 16, %s19
      %p184 = scmp.lt.s32.totalorder %s18, 1
      %s185 = scalar_select %p184, %s18, 1
      %p186 = scmp.lt.s32.totalorder %s183, 15
      %s187 = scalar_select %p186, %s183, 15
      %s188 = smul.addr %s187, 2
      %s189 = smul.addr %s185, 32
      %s190 = sadd.s32 %s188, %s189
      %s191 = smul.addr %s190, 8
      %s192 = scalar_lea.vmem %s3, %s191
      %s193 = smul.u32 16, %s19
      %p194 = scmp.lt.s32.totalorder %s18, 1
      %s195 = scalar_select %p194, %s18, 1
      %p196 = scmp.lt.s32.totalorder %s193, 15
      %s197 = scalar_select %p196, %s193, 15
      %s198 = smul.addr %s197, 2
      %s199 = smul.addr %s195, 32
      %s200 = sadd.s32 %s198, %s199
      %s201 = smul.addr %s200, 8
      %s202 = scalar_lea.vmem %s0, %s201
      %s203 = smul.u32 16, %s19
      %s204 = smul.u32 16, %s19
      %p205 = scmp.lt.s32.totalorder %s18, 1
      %s206 = scalar_select %p205, %s18, 1
      %p207 = scmp.lt.s32.totalorder %s204, 15
      %s208 = scalar_select %p207, %s204, 15
      %s209 = smul.addr %s208, 2
      %s210 = smul.addr %s206, 32
      %s211 = sadd.s32 %s209, %s210
      %s212 = smul.addr %s211, 8
      %s213 = scalar_lea.vmem %s3, %s212
      %s214 = smul.u32 16, %s19
      %v215 = vld [vmem:[%s202] sm:$0xff]
      %v216 = vld [vmem:[%s202 + $0x8] sm:$0xff]
      %v217 = vld [vmem:[%s202 + $0x10] sm:$0xff]
      %v218 = vld [vmem:[%s202 + $0x18] sm:$0xff]
      %v219 = vld [vmem:[%s202 + $0x20] sm:$0xff]
      %v220 = vld [vmem:[%s202 + $0x28] sm:$0xff]
      %v221 = vld [vmem:[%s202 + $0x30] sm:$0xff]
      %v222 = vld [vmem:[%s202 + $0x38] sm:$0xff]
      %v223 = vld [vmem:[%s202 + $0x40] sm:$0xff]
      %v224 = vld [vmem:[%s202 + $0x48] sm:$0xff]
      %v225 = vld [vmem:[%s202 + $0x50] sm:$0xff]
      %v226 = vld [vmem:[%s202 + $0x58] sm:$0xff]
      %v227 = vld [vmem:[%s202 + $0x60] sm:$0xff]
      %v228 = vld [vmem:[%s202 + $0x68] sm:$0xff]
      %v229 = vld [vmem:[%s202 + $0x70] sm:$0xff]
      %v230 = vld [vmem:[%s202 + $0x78] sm:$0xff]
      %v231 = vld [vmem:[%s202 + $0x80] sm:$0xff]
      %v232 = vld [vmem:[%s202 + $0x88] sm:$0xff]
      %v233 = vld [vmem:[%s202 + $0x90] sm:$0xff]
      %v234 = vld [vmem:[%s202 + $0x98] sm:$0xff]
      %v235 = vld [vmem:[%s202 + $0xa0] sm:$0xff]
      %v236 = vld [vmem:[%s202 + $0xa8] sm:$0xff]
      %v237 = vld [vmem:[%s202 + $0xb0] sm:$0xff]
      %v238 = vld [vmem:[%s202 + $0xb8] sm:$0xff]
      %v239 = vld [vmem:[%s202 + $0xc0] sm:$0xff]
      %v240 = vld [vmem:[%s202 + $0xc8] sm:$0xff]
      %v241 = vld [vmem:[%s202 + $0xd0] sm:$0xff]
      %v242 = vld [vmem:[%s202 + $0xd8] sm:$0xff]
      %v243 = vld [vmem:[%s202 + $0xe0] sm:$0xff]
      %v244 = vld [vmem:[%s202 + $0xe8] sm:$0xff]
      %v245 = vld [vmem:[%s202 + $0xf0] sm:$0xff]
      %v246 = vld [vmem:[%s202 + $0xf8] sm:$0xff]
      %v247 = vld [vmem:[%s1] sm:$0x1]
      %v249 = vlaneseq
      %v250 = vshrl.u32 %v249, 7
      %v251 = vsub.s32 0, %v250
      %v252 = vrot.slane %v247, %v251
      %v254 = vmul.f32 %v215, %v252
      %v255 = vmul.f32 %v216, %v252
      %v256 = vmul.f32 %v217, %v252
      %v257 = vmul.f32 %v218, %v252
      %v258 = vmul.f32 %v219, %v252
      %v259 = vmul.f32 %v220, %v252
      %v260 = vmul.f32 %v221, %v252
      %v261 = vmul.f32 %v222, %v252
      %v262 = vmul.f32 %v223, %v252
      %v263 = vmul.f32 %v224, %v252
      %v264 = vmul.f32 %v225, %v252
      %v265 = vmul.f32 %v226, %v252
      %v266 = vmul.f32 %v227, %v252
      %v267 = vmul.f32 %v228, %v252
      %v268 = vmul.f32 %v229, %v252
      %v269 = vmul.f32 %v230, %v252
      %v270 = vmul.f32 %v231, %v252
      %v271 = vmul.f32 %v232, %v252
      %v272 = vmul.f32 %v233, %v252
      %v273 = vmul.f32 %v234, %v252
      %v274 = vmul.f32 %v235, %v252
      %v275 = vmul.f32 %v236, %v252
      %v276 = vmul.f32 %v237, %v252
      %v277 = vmul.f32 %v238, %v252
      %v278 = vmul.f32 %v239, %v252
      %v279 = vmul.f32 %v240, %v252
      %v280 = vmul.f32 %v241, %v252
      %v281 = vmul.f32 %v242, %v252
      %v282 = vmul.f32 %v243, %v252
      %v283 = vmul.f32 %v244, %v252
      %v284 = vmul.f32 %v245, %v252
      %v285 = vmul.f32 %v246, %v252
      %v286 = vld [vmem:[%s2] sm:$0x1]
      %v288 = vlaneseq
      %v289 = vshrl.u32 %v288, 7
      %v290 = vsub.s32 0, %v289
      %v291 = vrot.slane %v286, %v290
      %v293 = vadd.f32 %v254, %v291
      %v294 = vadd.f32 %v255, %v291
      %v295 = vadd.f32 %v256, %v291
      %v296 = vadd.f32 %v257, %v291
      %v297 = vadd.f32 %v258, %v291
      %v298 = vadd.f32 %v259, %v291
      %v299 = vadd.f32 %v260, %v291
      %v300 = vadd.f32 %v261, %v291
      %v301 = vadd.f32 %v262, %v291
      %v302 = vadd.f32 %v263, %v291
      %v303 = vadd.f32 %v264, %v291
      %v304 = vadd.f32 %v265, %v291
      %v305 = vadd.f32 %v266, %v291
      %v306 = vadd.f32 %v267, %v291
      %v307 = vadd.f32 %v268, %v291
      %v308 = vadd.f32 %v269, %v291
      %v309 = vadd.f32 %v270, %v291
      %v310 = vadd.f32 %v271, %v291
      %v311 = vadd.f32 %v272, %v291
      %v312 = vadd.f32 %v273, %v291
      %v313 = vadd.f32 %v274, %v291
      %v314 = vadd.f32 %v275, %v291
      %v315 = vadd.f32 %v276, %v291
      %v316 = vadd.f32 %v277, %v291
      %v317 = vadd.f32 %v278, %v291
      %v318 = vadd.f32 %v279, %v291
      %v319 = vadd.f32 %v280, %v291
      %v320 = vadd.f32 %v281, %v291
      %v321 = vadd.f32 %v282, %v291
      %v322 = vadd.f32 %v283, %v291
      %v323 = vadd.f32 %v284, %v291
      %v324 = vadd.f32 %v285, %v291
      %v325 = vmul.f32 %v293, 0.01
      %v326 = vmul.f32 %v294, 0.01
      %v327 = vmul.f32 %v295, 0.01
      %v328 = vmul.f32 %v296, 0.01
      %v329 = vmul.f32 %v297, 0.01
      %v330 = vmul.f32 %v298, 0.01
      %v331 = vmul.f32 %v299, 0.01
      %v332 = vmul.f32 %v300, 0.01
      %v333 = vmul.f32 %v301, 0.01
      %v334 = vmul.f32 %v302, 0.01
      %v335 = vmul.f32 %v303, 0.01
      %v336 = vmul.f32 %v304, 0.01
      %v337 = vmul.f32 %v305, 0.01
      %v338 = vmul.f32 %v306, 0.01
      %v339 = vmul.f32 %v307, 0.01
      %v340 = vmul.f32 %v308, 0.01
      %v341 = vmul.f32 %v309, 0.01
      %v342 = vmul.f32 %v310, 0.01
      %v343 = vmul.f32 %v311, 0.01
      %v344 = vmul.f32 %v312, 0.01
      %v345 = vmul.f32 %v313, 0.01
      %v346 = vmul.f32 %v314, 0.01
      %v347 = vmul.f32 %v315, 0.01
      %v348 = vmul.f32 %v316, 0.01
      %v349 = vmul.f32 %v317, 0.01
      %v350 = vmul.f32 %v318, 0.01
      %v351 = vmul.f32 %v319, 0.01
      %v352 = vmul.f32 %v320, 0.01
      %v353 = vmul.f32 %v321, 0.01
      %v354 = vmul.f32 %v322, 0.01
      %v355 = vmul.f32 %v323, 0.01
      %v356 = vmul.f32 %v324, 0.01
      %v357 = vmax.f32 %v293, %v325
      %v358 = vmax.f32 %v294, %v326
      %v359 = vmax.f32 %v295, %v327
      %v360 = vmax.f32 %v296, %v328
      %v361 = vmax.f32 %v297, %v329
      %v362 = vmax.f32 %v298, %v330
      %v363 = vmax.f32 %v299, %v331
      %v364 = vmax.f32 %v300, %v332
      %v365 = vmax.f32 %v301, %v333
      %v366 = vmax.f32 %v302, %v334
      %v367 = vmax.f32 %v303, %v335
      %v368 = vmax.f32 %v304, %v336
      %v369 = vmax.f32 %v305, %v337
      %v370 = vmax.f32 %v306, %v338
      %v371 = vmax.f32 %v307, %v339
      %v372 = vmax.f32 %v308, %v340
      %v373 = vmax.f32 %v309, %v341
      %v374 = vmax.f32 %v310, %v342
      %v375 = vmax.f32 %v311, %v343
      %v376 = vmax.f32 %v312, %v344
      %v377 = vmax.f32 %v313, %v345
      %v378 = vmax.f32 %v314, %v346
      %v379 = vmax.f32 %v315, %v347
      %v380 = vmax.f32 %v316, %v348
      %v381 = vmax.f32 %v317, %v349
      %v382 = vmax.f32 %v318, %v350
      %v383 = vmax.f32 %v319, %v351
      %v384 = vmax.f32 %v320, %v352
      %v385 = vmax.f32 %v321, %v353
      %v386 = vmax.f32 %v322, %v354
      %v387 = vmax.f32 %v323, %v355
      %v388 = vmax.f32 %v324, %v356
      %vm389 = vcmask 64512
      %390 = vst.msk [vmem:[%s213] sm:$0xff] %vm389, %v357
      %391 = vst.msk [vmem:[%s213 + $0x8] sm:$0xff] %vm389, %v358
      %392 = vst.msk [vmem:[%s213 + $0x10] sm:$0xff] %vm389, %v359
      %393 = vst.msk [vmem:[%s213 + $0x18] sm:$0xff] %vm389, %v360
      %394 = vst.msk [vmem:[%s213 + $0x20] sm:$0xff] %vm389, %v361
      %395 = vst.msk [vmem:[%s213 + $0x28] sm:$0xff] %vm389, %v362
      %396 = vst.msk [vmem:[%s213 + $0x30] sm:$0xff] %vm389, %v363
      %397 = vst.msk [vmem:[%s213 + $0x38] sm:$0xff] %vm389, %v364
      %398 = vst.msk [vmem:[%s213 + $0x40] sm:$0xff] %vm389, %v365
      %399 = vst.msk [vmem:[%s213 + $0x48] sm:$0xff] %vm389, %v366
      %400 = vst.msk [vmem:[%s213 + $0x50] sm:$0xff] %vm389, %v367
      %401 = vst.msk [vmem:[%s213 + $0x58] sm:$0xff] %vm389, %v368
      %402 = vst.msk [vmem:[%s213 + $0x60] sm:$0xff] %vm389, %v369
      %403 = vst.msk [vmem:[%s213 + $0x68] sm:$0xff] %vm389, %v370
      %404 = vst.msk [vmem:[%s213 + $0x70] sm:$0xff] %vm389, %v371
      %405 = vst.msk [vmem:[%s213 + $0x78] sm:$0xff] %vm389, %v372
      %406 = vst.msk [vmem:[%s213 + $0x80] sm:$0xff] %vm389, %v373
      %407 = vst.msk [vmem:[%s213 + $0x88] sm:$0xff] %vm389, %v374
      %408 = vst.msk [vmem:[%s213 + $0x90] sm:$0xff] %vm389, %v375
      %409 = vst.msk [vmem:[%s213 + $0x98] sm:$0xff] %vm389, %v376
      %410 = vst.msk [vmem:[%s213 + $0xa0] sm:$0xff] %vm389, %v377
      %411 = vst.msk [vmem:[%s213 + $0xa8] sm:$0xff] %vm389, %v378
      %412 = vst.msk [vmem:[%s213 + $0xb0] sm:$0xff] %vm389, %v379
      %413 = vst.msk [vmem:[%s213 + $0xb8] sm:$0xff] %vm389, %v380
      %414 = vst.msk [vmem:[%s213 + $0xc0] sm:$0xff] %vm389, %v381
      %415 = vst.msk [vmem:[%s213 + $0xc8] sm:$0xff] %vm389, %v382
      %416 = vst.msk [vmem:[%s213 + $0xd0] sm:$0xff] %vm389, %v383
      %417 = vst.msk [vmem:[%s213 + $0xd8] sm:$0xff] %vm389, %v384
      %418 = vst.msk [vmem:[%s213 + $0xe0] sm:$0xff] %vm389, %v385
      %419 = vst.msk [vmem:[%s213 + $0xe8] sm:$0xff] %vm389, %v386
      %420 = vst.msk [vmem:[%s213 + $0xf0] sm:$0xff] %vm389, %v387
      %421 = vst.msk [vmem:[%s213 + $0xf8] sm:$0xff] %vm389, %v388
      %s422 = smul.u32 16, %s19
      %p423 = scmp.lt.s32.totalorder %s18, 1
      %s424 = scalar_select %p423, %s18, 1
      %p425 = scmp.lt.s32.totalorder %s422, 15
      %s426 = scalar_select %p425, %s422, 15
      %s427 = smul.addr %s426, 2
      %s428 = smul.addr %s424, 32
      %s429 = sadd.s32 %s427, %s428
      %s430 = smul.addr %s429, 8
      %s431 = scalar_lea.vmem %s3, %s430
      // Predicated region
      $region33: #{double_conv.5} parent=31 // pred_check
        %p432 = pneg %p116
      $region34: #{double_conv.5} parent=31 // pred_check_branch
        %434 = sbr.rel (%p432) target = $region36
      $region35: #{double_conv.5} parent=31 // pred_region
        %s435 = smul.u32 16, %s19
      $region36: #{double_conv.5} parent=31 // pred_fallthru
        _
    $region32: #{double_conv.5} parent=5 // pred_fallthru
      _
    %p436 = scmp.le.s32.totalorder 2, %s9
    // Predicated region
    $region37: #{double_conv.5} parent=5 // pred_check
      %p437 = pneg %p436
    $region38: #{double_conv.5} parent=5 // pred_check_branch
      %439 = sbr.rel (%p437) target = $region40
    $region39: #{double_conv.5} parent=5 // pred_region
      %s440 = ssub.s32 %s9, 2
      // Predicated region
      $region41: #{double_conv.5} parent=39 // pred_check
        %p441 = pneg %p122
      $region42: #{double_conv.5} parent=39 // pred_check_branch
        %443 = sbr.rel (%p441) target = $region44
      $region43: #{double_conv.5} parent=39 // pred_region
        %s444 = smul.u32 16, %s21
        %p445 = scmp.lt.s32.totalorder %s20, 1
        %s446 = scalar_select %p445, %s20, 1
        %p447 = scmp.lt.s32.totalorder %s444, 15
        %s448 = scalar_select %p447, %s444, 15
        %s449 = smul.addr %s448, 2
        %s450 = smul.addr %s446, 32
        %s451 = sadd.s32 %s449, %s450
        %s452 = smul.addr %s451, 8
        %s453 = scalar_lea.vmem %s3, %s452
      $region44: #{double_conv.5} parent=39 // pred_fallthru
        _
    $region40: #{double_conv.5} parent=5 // pred_fallthru
      _
  $region6: #{double_conv.5} parent=0 // loop_footer
    %s13 = sadd.s32 1, %s9
  $region7: #{double_conv.5} parent=0 // loop_footer_branch
    %8 = sbr.rel target = $region3
  $region8: #{double_conv.5} parent=0 // loop_exit
    _

// kernel: double_conv.4
$region0: #{double_conv.4}
  #allocation0 [shape = 'u32[]', space=smem, size = 0x4, offset = 0x4, fixed_abs, tag = 'smem constant byte address 0x4 - core index']
  #allocation1 [shape = 'u32[144,128]{1,0:T(1,128)}', space=vmem, size = 0x12000, scoped, tag = 'internal scratch']
  #allocation2 [shape = 'f32[18,18,128]{2,1,0:T(8,128)}', space=vmem, size = 0x36000, scoped, tag = 'scratch operand']
  %s0 = inlined_call_operand.vmem [shape: f32[2,16,16,128], index: 0, kind: input, shape index: {}, may-alias: {0,1,2}]
  %s1 = inlined_call_operand.vmem [shape: f32[2,16,16,128], index: 1, kind: input, shape index: {}, may-alias: {0,1,2}]
  %s2 = inlined_call_operand.vmem [shape: f32[2,16,16,128], index: 2, kind: input, shape index: {}, may-alias: {0,1,2}]
  %s3 = inlined_call_operand.vmem [shape: f32[1152,128], index: 3, kind: input, shape index: {}]
  %s4 = inlined_call_operand.vmem [shape: f32[1,1,128], index: 4, kind: input, shape index: {}]
  %s5 = inlined_call_operand.vmem [shape: f32[1,1,128], index: 5, kind: input, shape index: {}]
  %s6 = inlined_call_operand.vmem [shape: f32[2,16,16,128], index: 6, kind: output, shape index: {0}]
  %s7 = inlined_call_operand.vmem [shape: f32[2,1,1,128], index: 7, kind: output, shape index: {1}]
  %s8 = inlined_call_operand.vmem [shape: f32[2,1,1,128], index: 8, kind: output, shape index: {2}]
  %9 = xla_tuple %s6, %s7, %s8
  %s10 = sld [smem:[#allocation0]]
  $region73: #{double_conv.4} parent=0
    _
  %s12 = ssub.s32 1, %s10
  %s13 = scalar_select 0, %s12, %s10
  loop: start=0, step=1, limit=4
  $region2: #{double_conv.4} parent=0 // loop_pre_header
    _
  $region3: #{double_conv.4} parent=0 // loop_header
    %s15 = sphi 0, %s19
    %p16 = scmp.ge.s32.totalorder %s15, 4
    %s22 = sphi 0, %s34
    %s23 = sphi 0, %s30
    %s24 = sphi 0, %s22
    %s25 = sphi 0, %s23
    %s26 = sphi 0, %s24
    %s27 = sphi 0, %s25
    %s47 = sphi 0, %s49
    %s50 = sphi 0, %s47
    %s51 = sphi 0, %s50
    %s67 = sphi 0, %s51
    %s75 = sphi 0, %s77
    %s78 = sphi 0, %s75
    %s79 = sphi 0, %s78
    %s95 = sphi 0, %s79
    %s111 = sphi 0, %s113
    %s114 = sphi 0, %s111
    %s115 = sphi 0, %s114
    %s131 = sphi 0, %s115
    %s135 = sphi 0, %s135
    %s137 = sphi 0, %s135
    %s138 = sphi 0, %s137
    %s152 = sphi 0, %s138
    %s156 = sphi 0, %s156
    %s158 = sphi 0, %s156
    %s159 = sphi 0, %s158
    %s173 = sphi 0, %s159
    %s177 = sphi 0, %s177
    %s179 = sphi 0, %s177
    %s180 = sphi 0, %s179
    %s194 = sphi 0, %s180
    %s202 = sphi 0, %s204
    %s205 = sphi 0, %s202
    %s206 = sphi 0, %s205
    %s222 = sphi 0, %s206
    %s230 = sphi 0, %s232
    %s233 = sphi 0, %s230
    %s234 = sphi 0, %s233
    %s250 = sphi 0, %s234
    %s258 = sphi 0, %s260
    %s261 = sphi 0, %s258
    %s262 = sphi 0, %s261
    %s278 = sphi 0, %s262
  $region4: #{double_conv.4} parent=0 // loop_header_branch
    %18 = sbr.rel (%p16) target = $region8
  $region5: #{double_conv.4} parent=0 // loop_body
    %s20 = ssub.s32 %s15, 1
    %s21 = ssub.s32 %s15, 2
    %s28 = sadd.s32 1, %s23
    %p29 = scmp.ge.s32.totalorder %s28, 1
    %s30 = scalar_select %p29, 0, %s28
    %s31 = sadd.s32 1, %s22
    %s32 = scalar_select %p29, %s31, %s22
    %p33 = scmp.ge.s32.totalorder %s32, 2
    %s34 = scalar_select %p33, 0, %s32
    %s35 = smul.u32 %s23, 16
    %s36 = ssub.s32 %s35, 1
    %p37 = scmp.gt.s32.totalorder %s36, 0
    %s38 = scalar_select %p37, %s36, 0
    %s39 = smul.u32 %s30, 16
    %s40 = ssub.s32 %s39, 1
    %p41 = scmp.gt.s32.totalorder %s40, 0
    %s42 = scalar_select %p41, %s40, 0
    %s43 = ssub.s32 %s22, %s34
    %s44 = ssub.s32 %s38, %s42
    %s45 = sor.u32 %s43, %s44
    %p46 = scmp.eq.s32.totalorder %s45, 0
    %s48 = sadd.s32 %s47, 1
    %s49 = scalar_select %p46, %s47, %s48
    %p52 = pneg %p46
    %p53 = scmp.eq.s32.totalorder %s15, 1
    %p54 = por %p52, %p53
    %p55 = scmp.ne.s32.totalorder %s47, %s50
    %p56 = scmp.eq.s32.totalorder %s15, 0
    %p57 = por %p55, %p56
    %p58 = scmp.ne.s32.totalorder %s47, %s50
    %p59 = scmp.eq.s32.totalorder %s20, 1
    %p60 = por %p58, %p59
    %p61 = scmp.ne.s32.totalorder %s50, %s51
    %p62 = scmp.eq.s32.totalorder %s20, 0
    %p63 = por %p61, %p62
    %p64 = scmp.ne.s32.totalorder %s50, %s51
    %p65 = scmp.eq.s32.totalorder %s21, 1
    %p66 = por %p64, %p65
    %p68 = scmp.ne.s32.totalorder %s51, %s67
    %p69 = scmp.eq.s32.totalorder %s21, 0
    %p70 = por %p68, %p69
    %s71 = ssub.s32 %s22, %s34
    %s72 = ssub.s32 %s23, %s30
    %s73 = sor.u32 %s71, %s72
    %p74 = scmp.eq.s32.totalorder %s73, 0
    %s76 = sadd.s32 %s75, 1
    %s77 = scalar_select %p74, %s75, %s76
    %p80 = pneg %p74
    %p81 = scmp.eq.s32.totalorder %s15, 1
    %p82 = por %p80, %p81
    %p83 = scmp.ne.s32.totalorder %s75, %s78
    %p84 = scmp.eq.s32.totalorder %s15, 0
    %p85 = por %p83, %p84
    %p86 = scmp.ne.s32.totalorder %s75, %s78
    %p87 = scmp.eq.s32.totalorder %s20, 1
    %p88 = por %p86, %p87
    %p89 = scmp.ne.s32.totalorder %s78, %s79
    %p90 = scmp.eq.s32.totalorder %s20, 0
    %p91 = por %p89, %p90
    %p92 = scmp.ne.s32.totalorder %s78, %s79
    %p93 = scmp.eq.s32.totalorder %s21, 1
    %p94 = por %p92, %p93
    %p96 = scmp.ne.s32.totalorder %s79, %s95
    %p97 = scmp.eq.s32.totalorder %s21, 0
    %p98 = por %p96, %p97
    %s99 = smul.u32 %s23, 16
    %s100 = sadd.s32 %s99, 16
    %p101 = scmp.lt.s32.totalorder %s100, 15
    %s102 = scalar_select %p101, %s100, 15
    %s103 = smul.u32 %s30, 16
    %s104 = sadd.s32 %s103, 16
    %p105 = scmp.lt.s32.totalorder %s104, 15
    %s106 = scalar_select %p105, %s104, 15
    %s107 = ssub.s32 %s22, %s34
    %s108 = ssub.s32 %s102, %s106
    %s109 = sor.u32 %s107, %s108
    %p110 = scmp.eq.s32.totalorder %s109, 0
    %s112 = sadd.s32 %s111, 1
    %s113 = scalar_select %p110, %s111, %s112
    %p116 = pneg %p110
    %p117 = scmp.eq.s32.totalorder %s15, 1
    %p118 = por %p116, %p117
    %p119 = scmp.ne.s32.totalorder %s111, %s114
    %p120 = scmp.eq.s32.totalorder %s15, 0
    %p121 = por %p119, %p120
    %p122 = scmp.ne.s32.totalorder %s111, %s114
    %p123 = scmp.eq.s32.totalorder %s20, 1
    %p124 = por %p122, %p123
    %p125 = scmp.ne.s32.totalorder %s114, %s115
    %p126 = scmp.eq.s32.totalorder %s20, 0
    %p127 = por %p125, %p126
    %p128 = scmp.ne.s32.totalorder %s114, %s115
    %p129 = scmp.eq.s32.totalorder %s21, 1
    %p130 = por %p128, %p129
    %p132 = scmp.ne.s32.totalorder %s115, %s131
    %p133 = scmp.eq.s32.totalorder %s21, 0
    %p134 = por %p132, %p133
    %s136 = sadd.s32 %s135, 1
    %p139 = scmp.eq.s32.totalorder %s15, 1
    %p140 = scmp.ne.s32.totalorder %s135, %s137
    %p141 = scmp.eq.s32.totalorder %s15, 0
    %p142 = por %p140, %p141
    %p143 = scmp.ne.s32.totalorder %s135, %s137
    %p144 = scmp.eq.s32.totalorder %s20, 1
    %p145 = por %p143, %p144
    %p146 = scmp.ne.s32.totalorder %s137, %s138
    %p147 = scmp.eq.s32.totalorder %s20, 0
    %p148 = por %p146, %p147
    %p149 = scmp.ne.s32.totalorder %s137, %s138
    %p150 = scmp.eq.s32.totalorder %s21, 1
    %p151 = por %p149, %p150
    %p153 = scmp.ne.s32.totalorder %s138, %s152
    %p154 = scmp.eq.s32.totalorder %s21, 0
    %p155 = por %p153, %p154
    %s157 = sadd.s32 %s156, 1
    %p160 = scmp.eq.s32.totalorder %s15, 1
    %p161 = scmp.ne.s32.totalorder %s156, %s158
    %p162 = scmp.eq.s32.totalorder %s15, 0
    %p163 = por %p161, %p162
    %p164 = scmp.ne.s32.totalorder %s156, %s158
    %p165 = scmp.eq.s32.totalorder %s20, 1
    %p166 = por %p164, %p165
    %p167 = scmp.ne.s32.totalorder %s158, %s159
    %p168 = scmp.eq.s32.totalorder %s20, 0
    %p169 = por %p167, %p168
    %p170 = scmp.ne.s32.totalorder %s158, %s159
    %p171 = scmp.eq.s32.totalorder %s21, 1
    %p172 = por %p170, %p171
    %p174 = scmp.ne.s32.totalorder %s159, %s173
    %p175 = scmp.eq.s32.totalorder %s21, 0
    %p176 = por %p174, %p175
    %s178 = sadd.s32 %s177, 1
    %p181 = scmp.eq.s32.totalorder %s15, 1
    %p182 = scmp.ne.s32.totalorder %s177, %s179
    %p183 = scmp.eq.s32.totalorder %s15, 0
    %p184 = por %p182, %p183
    %p185 = scmp.ne.s32.totalorder %s177, %s179
    %p186 = scmp.eq.s32.totalorder %s20, 1
    %p187 = por %p185, %p186
    %p188 = scmp.ne.s32.totalorder %s179, %s180
    %p189 = scmp.eq.s32.totalorder %s20, 0
    %p190 = por %p188, %p189
    %p191 = scmp.ne.s32.totalorder %s179, %s180
    %p192 = scmp.eq.s32.totalorder %s21, 1
    %p193 = por %p191, %p192
    %p195 = scmp.ne.s32.totalorder %s180, %s194
    %p196 = scmp.eq.s32.totalorder %s21, 0
    %p197 = por %p195, %p196
    %s198 = ssub.s32 %s22, %s34
    %s199 = ssub.s32 %s23, %s30
    %s200 = sor.u32 %s198, %s199
    %p201 = scmp.eq.s32.totalorder %s200, 0
    %s203 = sadd.s32 %s202, 1
    %s204 = scalar_select %p201, %s202, %s203
    %p207 = pneg %p201
    %p208 = scmp.eq.s32.totalorder %s15, 1
    %p209 = por %p207, %p208
    %p210 = scmp.ne.s32.totalorder %s202, %s205
    %p211 = scmp.eq.s32.totalorder %s15, 0
    %p212 = por %p210, %p211
    %p213 = scmp.ne.s32.totalorder %s202, %s205
    %p214 = scmp.eq.s32.totalorder %s20, 1
    %p215 = por %p213, %p214
    %p216 = scmp.ne.s32.totalorder %s205, %s206
    %p217 = scmp.eq.s32.totalorder %s20, 0
    %p218 = por %p216, %p217
    %p219 = scmp.ne.s32.totalorder %s205, %s206
    %p220 = scmp.eq.s32.totalorder %s21, 1
    %p221 = por %p219, %p220
    %p223 = scmp.ne.s32.totalorder %s206, %s222
    %p224 = scmp.eq.s32.totalorder %s21, 0
    %p225 = por %p223, %p224
    %s226 = ssub.s32 %s22, %s34
    %s227 = ssub.s32 %s23, %s30
    %s228 = sor.u32 %s226, %s227
    %p229 = scmp.eq.s32.totalorder %s228, 0
    %s231 = sadd.s32 %s230, 1
    %s232 = scalar_select %p229, %s230, %s231
    %p235 = pneg %p229
    %p236 = scmp.eq.s32.totalorder %s15, 1
    %p237 = por %p235, %p236
    %p238 = scmp.ne.s32.totalorder %s230, %s233
    %p239 = scmp.eq.s32.totalorder %s15, 0
    %p240 = por %p238, %p239
    %p241 = scmp.ne.s32.totalorder %s230, %s233
    %p242 = scmp.eq.s32.totalorder %s20, 1
    %p243 = por %p241, %p242
    %p244 = scmp.ne.s32.totalorder %s233, %s234
    %p245 = scmp.eq.s32.totalorder %s20, 0
    %p246 = por %p244, %p245
    %p247 = scmp.ne.s32.totalorder %s233, %s234
    %p248 = scmp.eq.s32.totalorder %s21, 1
    %p249 = por %p247, %p248
    %p251 = scmp.ne.s32.totalorder %s234, %s250
    %p252 = scmp.eq.s32.totalorder %s21, 0
    %p253 = por %p251, %p252
    %s254 = ssub.s32 %s22, %s34
    %s255 = ssub.s32 %s23, %s30
    %s256 = sor.u32 %s254, %s255
    %p257 = scmp.eq.s32.totalorder %s256, 0
    %s259 = sadd.s32 %s258, 1
    %s260 = scalar_select %p257, %s258, %s259
    %p263 = pneg %p257
    %p264 = scmp.eq.s32.totalorder %s15, 1
    %p265 = por %p263, %p264
    %p266 = scmp.ne.s32.totalorder %s258, %s261
    %p267 = scmp.eq.s32.totalorder %s15, 0
    %p268 = por %p266, %p267
    %p269 = scmp.ne.s32.totalorder %s258, %s261
    %p270 = scmp.eq.s32.totalorder %s20, 1
    %p271 = por %p269, %p270
    %p272 = scmp.ne.s32.totalorder %s261, %s262
    %p273 = scmp.eq.s32.totalorder %s20, 0
    %p274 = por %p272, %p273
    %p275 = scmp.ne.s32.totalorder %s261, %s262
    %p276 = scmp.eq.s32.totalorder %s21, 1
    %p277 = por %p275, %p276
    %p279 = scmp.ne.s32.totalorder %s262, %s278
    %p280 = scmp.eq.s32.totalorder %s21, 0
    %p281 = por %p279, %p280
    %p282 = scmp.le.s32.totalorder 1, %s15
    %p283 = scmp.lt.s32.totalorder %s15, 3
    %p284 = pnand %p282, %p283
    %p285 = pneg %p284
    // Predicated region
    $region9: #{double_conv.4} parent=5 // pred_check
      _
    $region10: #{double_conv.4} parent=5 // pred_check_branch
      %287 = sbr.rel (%p284) target = $region12
    $region11: #{double_conv.4} parent=5 // pred_region
      %s288 = ssub.s32 %s15, 1
      // Predicated region
      $region13: #{double_conv.4} parent=11 // pred_check
        %p289 = pneg %p148
      $region14: #{double_conv.4} parent=11 // pred_check_branch
        %291 = sbr.rel (%p289) target = $region16
      $region15: #{double_conv.4} parent=11 // pred_region
        _
      $region16: #{double_conv.4} parent=11 // pred_fallthru
        _
      // Predicated region
      $region17: #{double_conv.4} parent=11 // pred_check
        %p292 = pneg %p169
      $region18: #{double_conv.4} parent=11 // pred_check_branch
        %294 = sbr.rel (%p292) target = $region20
      $region19: #{double_conv.4} parent=11 // pred_region
        _
      $region20: #{double_conv.4} parent=11 // pred_fallthru
        _
      // Predicated region
      $region21: #{double_conv.4} parent=11 // pred_check
        %p295 = pneg %p190
      $region22: #{double_conv.4} parent=11 // pred_check_branch
        %297 = sbr.rel (%p295) target = $region24
      $region23: #{double_conv.4} parent=11 // pred_region
        _
      $region24: #{double_conv.4} parent=11 // pred_fallthru
        _
    $region12: #{double_conv.4} parent=5 // pred_fallthru
      _
    %p298 = scmp.lt.s32.totalorder %s15, 2
    // Predicated region
    $region25: #{double_conv.4} parent=5 // pred_check
      %p299 = pneg %p298
    $region26: #{double_conv.4} parent=5 // pred_check_branch
      %301 = sbr.rel (%p299) target = $region28
    $region27: #{double_conv.4} parent=5 // pred_region
      // Predicated region
      $region29: #{double_conv.4} parent=27 // pred_check
        %p302 = pneg %p57
      $region30: #{double_conv.4} parent=27 // pred_check_branch
        %304 = sbr.rel (%p302) target = $region32
      $region31: #{double_conv.4} parent=27 // pred_region
        %s305 = smul.u32 %s23, 16
        %s306 = ssub.s32 %s305, 1
        %p307 = scmp.gt.s32.totalorder %s306, 0
        %s308 = scalar_select %p307, %s306, 0
        %p309 = scmp.lt.s32.totalorder %s22, 1
        %s310 = scalar_select %p309, %s22, 1
        %p311 = scmp.lt.s32.totalorder %s308, 15
        %s312 = scalar_select %p311, %s308, 15
        %s313 = smul.addr %s312, 2
        %s314 = smul.addr %s310, 32
        %s315 = sadd.s32 %s313, %s314
        %s316 = smul.addr %s315, 8
        %s317 = scalar_lea.vmem %s0, %s316
        %s318 = smul.u32 %s23, 16
        %s319 = ssub.s32 %s318, 1
        %p320 = scmp.gt.s32.totalorder %s319, 0
        %s321 = scalar_select %p320, %s319, 0
      $region32: #{double_conv.4} parent=27 // pred_fallthru
        _
      // Predicated region
      $region33: #{double_conv.4} parent=27 // pred_check
        %p322 = pneg %p85
      $region34: #{double_conv.4} parent=27 // pred_check_branch
        %324 = sbr.rel (%p322) target = $region36
      $region35: #{double_conv.4} parent=27 // pred_region
        %s325 = smul.u32 16, %s23
        %p326 = scmp.lt.s32.totalorder %s22, 1
        %s327 = scalar_select %p326, %s22, 1
        %p328 = scmp.lt.s32.totalorder %s325, 15
        %s329 = scalar_select %p328, %s325, 15
        %s330 = smul.addr %s329, 2
        %s331 = smul.addr %s327, 32
        %s332 = sadd.s32 %s330, %s331
        %s333 = smul.addr %s332, 8
        %s334 = scalar_lea.vmem %s1, %s333
        %s335 = smul.u32 16, %s23
      $region36: #{double_conv.4} parent=27 // pred_fallthru
        _
      // Predicated region
      $region37: #{double_conv.4} parent=27 // pred_check
        %p336 = pneg %p121
      $region38: #{double_conv.4} parent=27 // pred_check_branch
        %338 = sbr.rel (%p336) target = $region40
      $region39: #{double_conv.4} parent=27 // pred_region
        %s339 = smul.u32 %s23, 16
        %s340 = sadd.s32 %s339, 16
        %p341 = scmp.lt.s32.totalorder %s340, 15
        %s342 = scalar_select %p341, %s340, 15
        %p343 = scmp.lt.s32.totalorder %s22, 1
        %s344 = scalar_select %p343, %s22, 1
        %p345 = scmp.lt.s32.totalorder %s342, 15
        %s346 = scalar_select %p345, %s342, 15
        %s347 = smul.addr %s346, 2
        %s348 = smul.addr %s344, 32
        %s349 = sadd.s32 %s347, %s348
        %s350 = smul.addr %s349, 8
        %s351 = scalar_lea.vmem %s2, %s350
        %s352 = smul.u32 %s23, 16
        %s353 = sadd.s32 %s352, 16
        %p354 = scmp.lt.s32.totalorder %s353, 15
        %s355 = scalar_select %p354, %s353, 15
      $region40: #{double_conv.4} parent=27 // pred_fallthru
        _
    $region28: #{double_conv.4} parent=5 // pred_fallthru
      _
    %p356 = scmp.le.s32.totalorder 1, %s15
    %p357 = scmp.lt.s32.totalorder %s15, 3
    %p358 = pnand %p356, %p357
    %p359 = pneg %p358
    // Predicated region
    $region41: #{double_conv.4} parent=5 // pred_check
      _
    $region42: #{double_conv.4} parent=5 // pred_check_branch
      %361 = sbr.rel (%p358) target = $region44
    $region43: #{double_conv.4} parent=5 // pred_region
      %s362 = ssub.s32 %s15, 1
      %s363 = smul.u32 %s25, 16
      %s364 = ssub.s32 %s363, 1
      %p365 = scmp.gt.s32.totalorder %s364, 0
      %s366 = scalar_select %p365, %s364, 0
      %p367 = scmp.lt.s32.totalorder %s24, 1
      %s368 = scalar_select %p367, %s24, 1
      %p369 = scmp.lt.s32.totalorder %s366, 15
      %s370 = scalar_select %p369, %s366, 15
      %s371 = smul.addr %s370, 2
      %s372 = smul.addr %s368, 32
      %s373 = sadd.s32 %s371, %s372
      %s374 = smul.addr %s373, 8
      %s375 = scalar_lea.vmem %s0, %s374
      %p376 = pneg %p63
      %p377 = pneg %p60
      %s378 = smul.u32 16, %s25
      %p379 = scmp.lt.s32.totalorder %s24, 1
      %s380 = scalar_select %p379, %s24, 1
      %p381 = scmp.lt.s32.totalorder %s378, 15
      %s382 = scalar_select %p381, %s378, 15
      %s383 = smul.addr %s382, 2
      %s384 = smul.addr %s380, 32
      %s385 = sadd.s32 %s383, %s384
      %s386 = smul.addr %s385, 8
      %s387 = scalar_lea.vmem %s1, %s386
      %p388 = pneg %p91
      %p389 = pneg %p88
      %s390 = smul.u32 %s25, 16
      %s391 = sadd.s32 %s390, 16
      %p392 = scmp.lt.s32.totalorder %s391, 15
      %s393 = scalar_select %p392, %s391, 15
      %p394 = scmp.lt.s32.totalorder %s24, 1
      %s395 = scalar_select %p394, %s24, 1
      %p396 = scmp.lt.s32.totalorder %s393, 15
      %s397 = scalar_select %p396, %s393, 15
      %s398 = smul.addr %s397, 2
      %s399 = smul.addr %s395, 32
      %s400 = sadd.s32 %s398, %s399
      %s401 = smul.addr %s400, 8
      %s402 = scalar_lea.vmem %s2, %s401
      %p403 = pneg %p127
      %p404 = pneg %p124
      %p405 = pneg %p148
      %p406 = pneg %p145
      %p407 = pneg %p169
      %p408 = pneg %p166
      %p409 = pneg %p190
      %p410 = pneg %p187
      %p411 = pneg %p218
      %p412 = pneg %p215
      %s413 = smul.u32 16, %s25
      %p414 = scmp.lt.s32.totalorder %s24, 1
      %s415 = scalar_select %p414, %s24, 1
      %p416 = scmp.lt.s32.totalorder %s413, 15
      %s417 = scalar_select %p416, %s413, 15
      %s418 = smul.addr %s417, 2
      %s419 = smul.addr %s415, 32
      %s420 = sadd.s32 %s418, %s419
      %s421 = smul.addr %s420, 8
      %s422 = scalar_lea.vmem %s6, %s421
      %p423 = pneg %p246
      %p424 = pneg %p243
      %p425 = scmp.lt.s32.totalorder %s24, 1
      %s426 = scalar_select %p425, %s24, 1
      %p427 = scmp.lt.s32.totalorder %s25, 0
      %s428 = scalar_select %p427, %s25, 0
      %s429 = sadd.s32 %s428, %s426
      %s430 = scalar_lea.vmem %s7, %s429
      %p431 = pneg %p274
      %p432 = pneg %p271
      %p433 = scmp.lt.s32.totalorder %s24, 1
      %s434 = scalar_select %p433, %s24, 1
      %p435 = scmp.lt.s32.totalorder %s25, 0
      %s436 = scalar_select %p435, %s25, 0
      %s437 = sadd.s32 %s436, %s434
      %s438 = scalar_lea.vmem %s8, %s437
      %s439 = smul.u32 %s25, 16
      %s440 = ssub.s32 %s439, 1
      %p441 = scmp.gt.s32.totalorder %s440, 0
      %s442 = scalar_select %p441, %s440, 0
      %p443 = scmp.lt.s32.totalorder %s24, 1
      %s444 = scalar_select %p443, %s24, 1
      %p445 = scmp.lt.s32.totalorder %s442, 15
      %s446 = scalar_select %p445, %s442, 15
      %s447 = smul.addr %s446, 2
      %s448 = smul.addr %s444, 32
      %s449 = sadd.s32 %s447, %s448
      %s450 = smul.addr %s449, 8
      %s451 = scalar_lea.vmem %s0, %s450
      %s452 = smul.u32 %s25, 16
      %s453 = ssub.s32 %s452, 1
      %p454 = scmp.gt.s32.totalorder %s453, 0
      %s455 = scalar_select %p454, %s453, 0
      %s456 = smul.u32 16, %s25
      %p457 = scmp.lt.s32.totalorder %s24, 1
      %s458 = scalar_select %p457, %s24, 1
      %p459 = scmp.lt.s32.totalorder %s456, 15
      %s460 = scalar_select %p459, %s456, 15
      %s461 = smul.addr %s460, 2
      %s462 = smul.addr %s458, 32
      %s463 = sadd.s32 %s461, %s462
      %s464 = smul.addr %s463, 8
      %s465 = scalar_lea.vmem %s1, %s464
      %s466 = smul.u32 16, %s25
      %s467 = smul.u32 %s25, 16
      %s468 = sadd.s32 %s467, 16
      %p469 = scmp.lt.s32.totalorder %s468, 15
      %s470 = scalar_select %p469, %s468, 15
      %p471 = scmp.lt.s32.totalorder %s24, 1
      %s472 = scalar_select %p471, %s24, 1
      %p473 = scmp.lt.s32.totalorder %s470, 15
      %s474 = scalar_select %p473, %s470, 15
      %s475 = smul.addr %s474, 2
      %s476 = smul.addr %s472, 32
      %s477 = sadd.s32 %s475, %s476
      %s478 = smul.addr %s477, 8
      %s479 = scalar_lea.vmem %s2, %s478
      %s480 = smul.u32 %s25, 16
      %s481 = sadd.s32 %s480, 16
      %p482 = scmp.lt.s32.totalorder %s481, 15
      %s483 = scalar_select %p482, %s481, 15
      %s484 = smul.u32 16, %s25
      %p485 = scmp.lt.s32.totalorder %s24, 1
      %s486 = scalar_select %p485, %s24, 1
      %p487 = scmp.lt.s32.totalorder %s484, 15
      %s488 = scalar_select %p487, %s484, 15
      %s489 = smul.addr %s488, 2
      %s490 = smul.addr %s486, 32
      %s491 = sadd.s32 %s489, %s490
      %s492 = smul.addr %s491, 8
      %s493 = scalar_lea.vmem %s6, %s492
      %s494 = smul.u32 16, %s25
      %p495 = scmp.lt.s32.totalorder %s24, 1
      %s496 = scalar_select %p495, %s24, 1
      %p497 = scmp.lt.s32.totalorder %s25, 0
      %s498 = scalar_select %p497, %s25, 0
      %s499 = sadd.s32 %s498, %s496
      %s500 = scalar_lea.vmem %s7, %s499
      %p501 = scmp.lt.s32.totalorder %s24, 1
      %s502 = scalar_select %p501, %s24, 1
      %p503 = scmp.lt.s32.totalorder %s25, 0
      %s504 = scalar_select %p503, %s25, 0
      %s505 = sadd.s32 %s504, %s502
      %s506 = scalar_lea.vmem %s8, %s505
      %v507 = vld [vmem:[%s4] sm:$0x1]
      %v508 = vld [vmem:[%s5] sm:$0x1]
      %s509 = smul.u32 %s25, 16
      %510 = vst [vmem:[#allocation2] sm:$0x1] 0.0
      %511 = vst [vmem:[#allocation2 + $0x18] sm:$0x1] 0.0
      %512 = vst [vmem:[#allocation2 + $0x30] sm:$0x1] 0.0
      %513 = vst [vmem:[#allocation2 + $0x48] sm:$0x1] 0.0
      %514 = vst [vmem:[#allocation2 + $0x60] sm:$0x1] 0.0
      %515 = vst [vmem:[#allocation2 + $0x78] sm:$0x1] 0.0
      %516 = vst [vmem:[#allocation2 + $0x90] sm:$0x1] 0.0
      %517 = vst [vmem:[#allocation2 + $0xa8] sm:$0x1] 0.0
      %518 = vst [vmem:[#allocation2 + $0xc0] sm:$0x1] 0.0
      %519 = vst [vmem:[#allocation2 + $0xd8] sm:$0x1] 0.0
      %520 = vst [vmem:[#allocation2 + $0xf0] sm:$0x1] 0.0
      %521 = vst [vmem:[#allocation2 + $0x108] sm:$0x1] 0.0
      %522 = vst [vmem:[#allocation2 + $0x120] sm:$0x1] 0.0
      %523 = vst [vmem:[#allocation2 + $0x138] sm:$0x1] 0.0
      %524 = vst [vmem:[#allocation2 + $0x150] sm:$0x1] 0.0
      %525 = vst [vmem:[#allocation2 + $0x168] sm:$0x1] 0.0
      %526 = vst [vmem:[#allocation2 + $0x180] sm:$0x1] 0.0
      %527 = vst [vmem:[#allocation2 + $0x198] sm:$0x1] 0.0
      %528 = vst [vmem:[#allocation2 + $0x11] sm:$0x1] 0.0
      %529 = vst [vmem:[#allocation2 + $0x29] sm:$0x1] 0.0
      %530 = vst [vmem:[#allocation2 + $0x41] sm:$0x1] 0.0
      %531 = vst [vmem:[#allocation2 + $0x59] sm:$0x1] 0.0
      %532 = vst [vmem:[#allocation2 + $0x71] sm:$0x1] 0.0
      %533 = vst [vmem:[#allocation2 + $0x89] sm:$0x1] 0.0
      %534 = vst [vmem:[#allocation2 + $0xa1] sm:$0x1] 0.0
      %535 = vst [vmem:[#allocation2 + $0xb9] sm:$0x1] 0.0
      %536 = vst [vmem:[#allocation2 + $0xd1] sm:$0x1] 0.0
      %537 = vst [vmem:[#allocation2 + $0xe9] sm:$0x1] 0.0
      %538 = vst [vmem:[#allocation2 + $0x101] sm:$0x1] 0.0
      %539 = vst [vmem:[#allocation2 + $0x119] sm:$0x1] 0.0
      %540 = vst [vmem:[#allocation2 + $0x131] sm:$0x1] 0.0
      %541 = vst [vmem:[#allocation2 + $0x149] sm:$0x1] 0.0
      %542 = vst [vmem:[#allocation2 + $0x161] sm:$0x1] 0.0
      %543 = vst [vmem:[#allocation2 + $0x179] sm:$0x1] 0.0
      %544 = vst [vmem:[#allocation2 + $0x191] sm:$0x1] 0.0
      %545 = vst [vmem:[#allocation2 + $0x1a9] sm:$0x1] 0.0
      %v546 = vld [vmem:[%s465] sm:$0xff]
      %v547 = vld [vmem:[%s465 + $0x8] sm:$0xff]
      %v548 = vld [vmem:[%s465 + $0x10] sm:$0xff]
      %v549 = vld [vmem:[%s465 + $0x18] sm:$0xff]
      %v550 = vld [vmem:[%s465 + $0x20] sm:$0xff]
      %v551 = vld [vmem:[%s465 + $0x28] sm:$0xff]
      %v552 = vld [vmem:[%s465 + $0x30] sm:$0xff]
      %v553 = vld [vmem:[%s465 + $0x38] sm:$0xff]
      %v554 = vld [vmem:[%s465 + $0x40] sm:$0xff]
      %v555 = vld [vmem:[%s465 + $0x48] sm:$0xff]
      %v556 = vld [vmem:[%s465 + $0x50] sm:$0xff]
      %v557 = vld [vmem:[%s465 + $0x58] sm:$0xff]
      %v558 = vld [vmem:[%s465 + $0x60] sm:$0xff]
      %v559 = vld [vmem:[%s465 + $0x68] sm:$0xff]
      %v560 = vld [vmem:[%s465 + $0x70] sm:$0xff]
      %v561 = vld [vmem:[%s465 + $0x78] sm:$0xff]
      %v562 = vld [vmem:[%s465 + $0x80] sm:$0xff]
      %v563 = vld [vmem:[%s465 + $0x88] sm:$0xff]
      %v564 = vld [vmem:[%s465 + $0x90] sm:$0xff]
      %v565 = vld [vmem:[%s465 + $0x98] sm:$0xff]
      %v566 = vld [vmem:[%s465 + $0xa0] sm:$0xff]
      %v567 = vld [vmem:[%s465 + $0xa8] sm:$0xff]
      %v568 = vld [vmem:[%s465 + $0xb0] sm:$0xff]
      %v569 = vld [vmem:[%s465 + $0xb8] sm:$0xff]
      %v570 = vld [vmem:[%s465 + $0xc0] sm:$0xff]
      %v571 = vld [vmem:[%s465 + $0xc8] sm:$0xff]
      %v572 = vld [vmem:[%s465 + $0xd0] sm:$0xff]
      %v573 = vld [vmem:[%s465 + $0xd8] sm:$0xff]
      %v574 = vld [vmem:[%s465 + $0xe0] sm:$0xff]
      %v575 = vld [vmem:[%s465 + $0xe8] sm:$0xff]
      %v576 = vld [vmem:[%s465 + $0xf0] sm:$0xff]
      %v577 = vld [vmem:[%s465 + $0xf8] sm:$0xff]
      %v579 = vlaneseq
      %v580 = vshrl.u32 %v579, 7
      %v581 = vsub.s32 0, %v580
      %v582 = vrot.slane %v507, %v581
      %v584 = vmul.f32 %v546, %v582
      %v585 = vmul.f32 %v547, %v582
      %v586 = vmul.f32 %v548, %v582
      %v587 = vmul.f32 %v549, %v582
      %v588 = vmul.f32 %v550, %v582
      %v589 = vmul.f32 %v551, %v582
      %v590 = vmul.f32 %v552, %v582
      %v591 = vmul.f32 %v553, %v582
      %v592 = vmul.f32 %v554, %v582
      %v593 = vmul.f32 %v555, %v582
      %v594 = vmul.f32 %v556, %v582
      %v595 = vmul.f32 %v557, %v582
      %v596 = vmul.f32 %v558, %v582
      %v597 = vmul.f32 %v559, %v582
      %v598 = vmul.f32 %v560, %v582
      %v599 = vmul.f32 %v561, %v582
      %v600 = vmul.f32 %v562, %v582
      %v601 = vmul.f32 %v563, %v582
      %v602 = vmul.f32 %v564, %v582
      %v603 = vmul.f32 %v565, %v582
      %v604 = vmul.f32 %v566, %v582
      %v605 = vmul.f32 %v567, %v582
      %v606 = vmul.f32 %v568, %v582
      %v607 = vmul.f32 %v569, %v582
      %v608 = vmul.f32 %v570, %v582
      %v609 = vmul.f32 %v571, %v582
      %v610 = vmul.f32 %v572, %v582
      %v611 = vmul.f32 %v573, %v582
      %v612 = vmul.f32 %v574, %v582
      %v613 = vmul.f32 %v575, %v582
      %v614 = vmul.f32 %v576, %v582
      %v615 = vmul.f32 %v577, %v582
      %v617 = vlaneseq
      %v618 = vshrl.u32 %v617, 7
      %v619 = vsub.s32 0, %v618
      %v620 = vrot.slane %v508, %v619
      %v622 = vadd.f32 %v584, %v620
      %v623 = vadd.f32 %v585, %v620
      %v624 = vadd.f32 %v586, %v620
      %v625 = vadd.f32 %v587, %v620
      %v626 = vadd.f32 %v588, %v620
      %v627 = vadd.f32 %v589, %v620
      %v628 = vadd.f32 %v590, %v620
      %v629 = vadd.f32 %v591, %v620
      %v630 = vadd.f32 %v592, %v620
      %v631 = vadd.f32 %v593, %v620
      %v632 = vadd.f32 %v594, %v620
      %v633 = vadd.f32 %v595, %v620
      %v634 = vadd.f32 %v596, %v620
      %v635 = vadd.f32 %v597, %v620
      %v636 = vadd.f32 %v598, %v620
      %v637 = vadd.f32 %v599, %v620
      %v638 = vadd.f32 %v600, %v620
      %v639 = vadd.f32 %v601, %v620
      %v640 = vadd.f32 %v602, %v620
      %v641 = vadd.f32 %v603, %v620
      %v642 = vadd.f32 %v604, %v620
      %v643 = vadd.f32 %v605, %v620
      %v644 = vadd.f32 %v606, %v620
      %v645 = vadd.f32 %v607, %v620
      %v646 = vadd.f32 %v608, %v620
      %v647 = vadd.f32 %v609, %v620
      %v648 = vadd.f32 %v610, %v620
      %v649 = vadd.f32 %v611, %v620
      %v650 = vadd.f32 %v612, %v620
      %v651 = vadd.f32 %v613, %v620
      %v652 = vadd.f32 %v614, %v620
      %v653 = vadd.f32 %v615, %v620
      %v654 = vmul.f32 %v622, 0.01
      %v655 = vmul.f32 %v623, 0.01
      %v656 = vmul.f32 %v624, 0.01
      %v657 = vmul.f32 %v625, 0.01
      %v658 = vmul.f32 %v626, 0.01
      %v659 = vmul.f32 %v627, 0.01
      %v660 = vmul.f32 %v628, 0.01
      %v661 = vmul.f32 %v629, 0.01
      %v662 = vmul.f32 %v630, 0.01
      %v663 = vmul.f32 %v631, 0.01
      %v664 = vmul.f32 %v632, 0.01
      %v665 = vmul.f32 %v633, 0.01
      %v666 = vmul.f32 %v634, 0.01
      %v667 = vmul.f32 %v635, 0.01
      %v668 = vmul.f32 %v636, 0.01
      %v669 = vmul.f32 %v637, 0.01
      %v670 = vmul.f32 %v638, 0.01
      %v671 = vmul.f32 %v639, 0.01
      %v672 = vmul.f32 %v640, 0.01
      %v673 = vmul.f32 %v641, 0.01
      %v674 = vmul.f32 %v642, 0.01
      %v675 = vmul.f32 %v643, 0.01
      %v676 = vmul.f32 %v644, 0.01
      %v677 = vmul.f32 %v645, 0.01
      %v678 = vmul.f32 %v646, 0.01
      %v679 = vmul.f32 %v647, 0.01
      %v680 = vmul.f32 %v648, 0.01
      %v681 = vmul.f32 %v649, 0.01
      %v682 = vmul.f32 %v650, 0.01
      %v683 = vmul.f32 %v651, 0.01
      %v684 = vmul.f32 %v652, 0.01
      %v685 = vmul.f32 %v653, 0.01
      %v686 = vmax.f32 %v622, %v654
      %v687 = vmax.f32 %v623, %v655
      %v688 = vmax.f32 %v624, %v656
      %v689 = vmax.f32 %v625, %v657
      %v690 = vmax.f32 %v626, %v658
      %v691 = vmax.f32 %v627, %v659
      %v692 = vmax.f32 %v628, %v660
      %v693 = vmax.f32 %v629, %v661
      %v694 = vmax.f32 %v630, %v662
      %v695 = vmax.f32 %v631, %v663
      %v696 = vmax.f32 %v632, %v664
      %v697 = vmax.f32 %v633, %v665
      %v698 = vmax.f32 %v634, %v666
      %v699 = vmax.f32 %v635, %v667
      %v700 = vmax.f32 %v636, %v668
      %v701 = vmax.f32 %v637, %v669
      %v702 = vmax.f32 %v638, %v670
      %v703 = vmax.f32 %v639, %v671
      %v704 = vmax.f32 %v640, %v672
      %v705 = vmax.f32 %v641, %v673
      %v706 = vmax.f32 %v642, %v674
      %v707 = vmax.f32 %v643, %v675
      %v708 = vmax.f32 %v644, %v676
      %v709 = vmax.f32 %v645, %v677
      %v710 = vmax.f32 %v646, %v678
      %v711 = vmax.f32 %v647, %v679
      %v712 = vmax.f32 %v648, %v680
      %v713 = vmax.f32 %v649, %v681
      %v714 = vmax.f32 %v650, %v682
      %v715 = vmax.f32 %v651, %v683
      %v716 = vmax.f32 %v652, %v684
      %v717 = vmax.f32 %v653, %v685
      %s718 = scalar_lea.vmem [#allocation2], 24
      %719 = vst [vmem:[%s718 + $0x1] sm:$0xff] %v686
      %720 = vst [vmem:[%s718 + $0x9] sm:$0xff] %v687
      %721 = vst [vmem:[%s718 + $0x19] sm:$0xff] %v688
      %722 = vst [vmem:[%s718 + $0x21] sm:$0xff] %v689
      %723 = vst [vmem:[%s718 + $0x31] sm:$0xff] %v690
      %724 = vst [vmem:[%s718 + $0x39] sm:$0xff] %v691
      %725 = vst [vmem:[%s718 + $0x49] sm:$0xff] %v692
      %726 = vst [vmem:[%s718 + $0x51] sm:$0xff] %v693
      %727 = vst [vmem:[%s718 + $0x61] sm:$0xff] %v694
      %728 = vst [vmem:[%s718 + $0x69] sm:$0xff] %v695
      %729 = vst [vmem:[%s718 + $0x79] sm:$0xff] %v696
      %730 = vst [vmem:[%s718 + $0x81] sm:$0xff] %v697
      %731 = vst [vmem:[%s718 + $0x91] sm:$0xff] %v698
      %732 = vst [vmem:[%s718 + $0x99] sm:$0xff] %v699
      %733 = vst [vmem:[%s718 + $0xa9] sm:$0xff] %v700
      %734 = vst [vmem:[%s718 + $0xb1] sm:$0xff] %v701
      %735 = vst [vmem:[%s718 + $0xc1] sm:$0xff] %v702
      %736 = vst [vmem:[%s718 + $0xc9] sm:$0xff] %v703
      %737 = vst [vmem:[%s718 + $0xd9] sm:$0xff] %v704
      %738 = vst [vmem:[%s718 + $0xe1] sm:$0xff] %v705
      %739 = vst [vmem:[%s718 + $0xf1] sm:$0xff] %v706
      %740 = vst [vmem:[%s718 + $0xf9] sm:$0xff] %v707
      %741 = vst [vmem:[%s718 + $0x109] sm:$0xff] %v708
      %742 = vst [vmem:[%s718 + $0x111] sm:$0xff] %v709
      %743 = vst [vmem:[%s718 + $0x121] sm:$0xff] %v710
      %744 = vst [vmem:[%s718 + $0x129] sm:$0xff] %v711
      %745 = vst [vmem:[%s718 + $0x139] sm:$0xff] %v712
      %746 = vst [vmem:[%s718 + $0x141] sm:$0xff] %v713
      %747 = vst [vmem:[%s718 + $0x151] sm:$0xff] %v714
      %748 = vst [vmem:[%s718 + $0x159] sm:$0xff] %v715
      %749 = vst [vmem:[%s718 + $0x169] sm:$0xff] %v716
      %750 = vst [vmem:[%s718 + $0x171] sm:$0xff] %v717
      %v751 = vld [vmem:[%s451] sm:$0xff]
      %v752 = vld [vmem:[%s451 + $0x8] sm:$0xff]
      %v753 = vmul.f32 %v751, %v582
      %v754 = vmul.f32 %v752, %v582
      %v755 = vadd.f32 %v753, %v620
      %v756 = vadd.f32 %v754, %v620
      %v757 = vmul.f32 %v755, 0.01
      %v758 = vmul.f32 %v756, 0.01
      %v759 = vmax.f32 %v755, %v757
      %v760 = vmax.f32 %v756, %v758
      %p761 = scmp.gt.s32.totalorder %s509, 0
      %s762 = scalar_select %p761, 1, 0
      %v763 = vstv %s762
      %vm764 = vcmp.eq.s32.totalorder %v763, 1
      %v765 = vsel %vm764, %v759, 0.0
      %v766 = vsel %vm764, %v760, 0.0
      %767 = vst [vmem:[#allocation2 + $0x1] sm:$0xff] %v765
      %768 = vst [vmem:[#allocation2 + $0x9] sm:$0xff] %v766
      %v769 = vld [vmem:[%s479] sm:$0xff]
      %v770 = vld [vmem:[%s479 + $0x8] sm:$0xff]
      %v771 = vmul.f32 %v769, %v582
      %v772 = vmul.f32 %v770, %v582
      %v773 = vadd.f32 %v771, %v620
      %v774 = vadd.f32 %v772, %v620
      %v775 = vmul.f32 %v773, 0.01
      %v776 = vmul.f32 %v774, 0.01
      %v777 = vmax.f32 %v773, %v775
      %v778 = vmax.f32 %v774, %v776
      %s779 = sadd.s32 %s509, 16
      %p780 = scmp.lt.s32.totalorder %s779, 16
      %s781 = scalar_select %p780, 1, 0
      %v782 = vstv %s781
      %vm783 = vcmp.eq.s32.totalorder %v782, 1
      %v784 = vsel %vm783, %v777, 0.0
      %v785 = vsel %vm783, %v778, 0.0
      %s786 = scalar_lea.vmem [#allocation2], 408
      %787 = vst [vmem:[%s786 + $0x1] sm:$0xff] %v784
      %788 = vst [vmem:[%s786 + $0x9] sm:$0xff] %v785
      %v789 = vld [vmem:[#allocation2] sm:$0xff]
      %v790 = vld [vmem:[#allocation2 + $0x8] sm:$0xff]
      %v791 = vld [vmem:[#allocation2 + $0x18] sm:$0xff]
      %v792 = vld [vmem:[#allocation2 + $0x20] sm:$0xff]
      %v793 = vld [vmem:[#allocation2 + $0x30] sm:$0xff]
      %v794 = vld [vmem:[#allocation2 + $0x38] sm:$0xff]
      %v795 = vld [vmem:[#allocation2 + $0x48] sm:$0xff]
      %v796 = vld [vmem:[#allocation2 + $0x50] sm:$0xff]
      %v797 = vld [vmem:[#allocation2 + $0x60] sm:$0xff]
      %v798 = vld [vmem:[#allocation2 + $0x68] sm:$0xff]
      %v799 = vld [vmem:[#allocation2 + $0x78] sm:$0xff]
      %v800 = vld [vmem:[#allocation2 + $0x80] sm:$0xff]
      %v801 = vld [vmem:[#allocation2 + $0x90] sm:$0xff]
      %v802 = vld [vmem:[#allocation2 + $0x98] sm:$0xff]
      %v803 = vld [vmem:[#allocation2 + $0xa8] sm:$0xff]
      %v804 = vld [vmem:[#allocation2 + $0xb0] sm:$0xff]
      %v805 = vld [vmem:[#allocation2 + $0xc0] sm:$0xff]
      %v806 = vld [vmem:[#allocation2 + $0xc8] sm:$0xff]
      %v807 = vld [vmem:[#allocation2 + $0xd8] sm:$0xff]
      %v808 = vld [vmem:[#allocation2 + $0xe0] sm:$0xff]
      %v809 = vld [vmem:[#allocation2 + $0xf0] sm:$0xff]
      %v810 = vld [vmem:[#allocation2 + $0xf8] sm:$0xff]
      %v811 = vld [vmem:[#allocation2 + $0x108] sm:$0xff]
      %v812 = vld [vmem:[#allocation2 + $0x110] sm:$0xff]
      %v813 = vld [vmem:[#allocation2 + $0x120] sm:$0xff]
      %v814 = vld [vmem:[#allocation2 + $0x128] sm:$0xff]
      %v815 = vld [vmem:[#allocation2 + $0x138] sm:$0xff]
      %v816 = vld [vmem:[#allocation2 + $0x140] sm:$0xff]
      %v817 = vld [vmem:[#allocation2 + $0x150] sm:$0xff]
      %v818 = vld [vmem:[#allocation2 + $0x158] sm:$0xff]
      %v819 = vld [vmem:[#allocation2 + $0x168] sm:$0xff]
      %v820 = vld [vmem:[#allocation2 + $0x170] sm:$0xff]
      %v821 = vld [vmem:[%s3] sm:$0xff]
      %v822 = vld [vmem:[%s3 + $0x8] sm:$0xff]
      %v823 = vld [vmem:[%s3 + $0x10] sm:$0xff]
      %v824 = vld [vmem:[%s3 + $0x18] sm:$0xff]
      %v825 = vld [vmem:[%s3 + $0x20] sm:$0xff]
      %v826 = vld [vmem:[%s3 + $0x28] sm:$0xff]
      %v827 = vld [vmem:[%s3 + $0x30] sm:$0xff]
      %v828 = vld [vmem:[%s3 + $0x38] sm:$0xff]
      %v829 = vld [vmem:[%s3 + $0x40] sm:$0xff]
      %v830 = vld [vmem:[%s3 + $0x48] sm:$0xff]
      %v831 = vld [vmem:[%s3 + $0x50] sm:$0xff]
      %v832 = vld [vmem:[%s3 + $0x58] sm:$0xff]
      %v833 = vld [vmem:[%s3 + $0x60] sm:$0xff]
      %v834 = vld [vmem:[%s3 + $0x68] sm:$0xff]
      %v835 = vld [vmem:[%s3 + $0x70] sm:$0xff]
      %v836 = vld [vmem:[%s3 + $0x78] sm:$0xff]
      %v837 = vld [vmem:[#allocation2 + $0x1] sm:$0xff]
      %v838 = vld [vmem:[#allocation2 + $0x9] sm:$0xff]
      %v839 = vld [vmem:[#allocation2 + $0x19] sm:$0xff]
      %v840 = vld [vmem:[#allocation2 + $0x21] sm:$0xff]
      %v841 = vld [vmem:[#allocation2 + $0x31] sm:$0xff]
      %v842 = vld [vmem:[#allocation2 + $0x39] sm:$0xff]
      %v843 = vld [vmem:[#allocation2 + $0x49] sm:$0xff]
      %v844 = vld [vmem:[#allocation2 + $0x51] sm:$0xff]
      %v845 = vld [vmem:[#allocation2 + $0x61] sm:$0xff]
      %v846 = vld [vmem:[#allocation2 + $0x69] sm:$0xff]
      %v847 = vld [vmem:[#allocation2 + $0x79] sm:$0xff]
      %v848 = vld [vmem:[#allocation2 + $0x81] sm:$0xff]
      %v849 = vld [vmem:[#allocation2 + $0x91] sm:$0xff]
      %v850 = vld [vmem:[#allocation2 + $0x99] sm:$0xff]
      %v851 = vld [vmem:[#allocation2 + $0xa9] sm:$0xff]
      %v852 = vld [vmem:[#allocation2 + $0xb1] sm:$0xff]
      %v853 = vld [vmem:[#allocation2 + $0xc1] sm:$0xff]
      %v854 = vld [vmem:[#allocation2 + $0xc9] sm:$0xff]
      %v855 = vld [vmem:[#allocation2 + $0xd9] sm:$0xff]
      %v856 = vld [vmem:[#allocation2 + $0xe1] sm:$0xff]
      %v857 = vld [vmem:[#allocation2 + $0xf1] sm:$0xff]
      %v858 = vld [vmem:[#allocation2 + $0xf9] sm:$0xff]
      %v859 = vld [vmem:[#allocation2 + $0x109] sm:$0xff]
      %v860 = vld [vmem:[#allocation2 + $0x111] sm:$0xff]
      %v861 = vld [vmem:[#allocation2 + $0x121] sm:$0xff]
      %v862 = vld [vmem:[#allocation2 + $0x129] sm:$0xff]
      %v863 = vld [vmem:[#allocation2 + $0x139] sm:$0xff]
      %v864 = vld [vmem:[#allocation2 + $0x141] sm:$0xff]
      %v865 = vld [vmem:[#allocation2 + $0x151] sm:$0xff]
      %v866 = vld [vmem:[#allocation2 + $0x159] sm:$0xff]
      %v867 = vld [vmem:[#allocation2 + $0x169] sm:$0xff]
      %v868 = vld [vmem:[#allocation2 + $0x171] sm:$0xff]
      %v869 = vld [vmem:[%s3 + $0x80] sm:$0xff]
      %v870 = vld [vmem:[%s3 + $0x88] sm:$0xff]
      %v871 = vld [vmem:[%s3 + $0x90] sm:$0xff]
      %v872 = vld [vmem:[%s3 + $0x98] sm:$0xff]
      %v873 = vld [vmem:[%s3 + $0xa0] sm:$0xff]
      %v874 = vld [vmem:[%s3 + $0xa8] sm:$0xff]
      %v875 = vld [vmem:[%s3 + $0xb0] sm:$0xff]
      %v876 = vld [vmem:[%s3 + $0xb8] sm:$0xff]
      %v877 = vld [vmem:[%s3 + $0xc0] sm:$0xff]
      %v878 = vld [vmem:[%s3 + $0xc8] sm:$0xff]
      %v879 = vld [vmem:[%s3 + $0xd0] sm:$0xff]
      %v880 = vld [vmem:[%s3 + $0xd8] sm:$0xff]
      %v881 = vld [vmem:[%s3 + $0xe0] sm:$0xff]
      %v882 = vld [vmem:[%s3 + $0xe8] sm:$0xff]
      %v883 = vld [vmem:[%s3 + $0xf0] sm:$0xff]
      %v884 = vld [vmem:[%s3 + $0xf8] sm:$0xff]
      %885 = vmatprep.subr.mxu0 0.0
      %886 = vmatpush1.msra.mxu0 %v869
      %887 = vmatprep.subr.mxu0 0.0
      %888 = vmatpush1.msra.mxu0 %v870
      %889 = vmatprep.subr.mxu0 0.0
      %890 = vmatpush1.msra.mxu0 %v871
      %891 = vmatprep.subr.mxu0 0.0
      %892 = vmatpush1.msra.mxu0 %v872
      %893 = vmatprep.subr.mxu0 0.0
      %894 = vmatpush1.msra.mxu0 %v873
      %895 = vmatprep.subr.mxu0 0.0
      %896 = vmatpush1.msra.mxu0 %v874
      %897 = vmatprep.subr.mxu0 0.0
      %898 = vmatpush1.msra.mxu0 %v875
      %899 = vmatprep.subr.mxu0 0.0
      %900 = vmatpush1.msra.mxu0 %v876
      %901 = vmatprep.subr.mxu0 0.0
      %902 = vmatpush1.msra.mxu0 %v877
      %903 = vmatprep.subr.mxu0 0.0
      %904 = vmatpush1.msra.mxu0 %v878
      %905 = vmatprep.subr.mxu0 0.0
      %906 = vmatpush1.msra.mxu0 %v879
      %907 = vmatprep.subr.mxu0 0.0
      %908 = vmatpush1.msra.mxu0 %v880
      %909 = vmatprep.subr.mxu0 0.0
      %910 = vmatpush1.msra.mxu0 %v881
      %911 = vmatprep.subr.mxu0 0.0
      %912 = vmatpush1.msra.mxu0 %v882
      %913 = vmatprep.subr.mxu0 0.0
      %914 = vmatpush1.msra.mxu0 %v883
      %915 = vmatprep.subr.mxu0 0.0
      %916 = vmatpush1.msra.mxu0 %v884
      %917 = vmatprep.subr.mxu0 0.0
      %918 = vmatpush1.msra.mxu0 0.0
      %919 = vmatprep.subr.mxu0 0.0
      %920 = vmatpush1.msra.mxu0 0.0
      %921 = vmatprep.subr.mxu0 0.0
      %922 = vmatpush1.msra.mxu0 0.0
      %923 = vmatprep.subr.mxu0 0.0
      %924 = vmatpush1.msra.mxu0 0.0
      %925 = vmatprep.subr.mxu0 0.0
      %926 = vmatpush1.msra.mxu0 0.0
      %927 = vmatprep.subr.mxu0 0.0
      %928 = vmatpush1.msra.mxu0 0.0
      %929 = vmatprep.subr.mxu0 0.0
      %930 = vmatpush1.msra.mxu0 0.0
      %931 = vmatprep.subr.mxu0 0.0
      %932 = vmatpush1.msra.mxu0 0.0
      %933 = vmatprep.subr.mxu0 0.0
      %934 = vmatpush1.msra.mxu0 0.0
      %935 = vmatprep.subr.mxu0 0.0
      %936 = vmatpush1.msra.mxu0 0.0
      %937 = vmatprep.subr.mxu0 0.0
      %938 = vmatpush1.msra.mxu0 0.0
      %939 = vmatprep.subr.mxu0 0.0
      %940 = vmatpush1.msra.mxu0 0.0
      %941 = vmatprep.subr.mxu0 0.0
      %942 = vmatpush1.msra.mxu0 0.0
      %943 = vmatprep.subr.mxu0 0.0
      %944 = vmatpush1.msra.mxu0 0.0
      %945 = vmatprep.subr.mxu0 0.0
      %946 = vmatpush1.msra.mxu0 0.0
      %947 = vmatprep.subr.mxu0 0.0
      %948 = vmatpush1.msra.mxu0 0.0
      %949 = vmatprep.mubr.f32.mxu0 0.0
      %950 = vmatmul.mubr.f32.gmra.mrb[0].mxu0 %v837
      %v951 = vpop.f32.mrb[0].mxu0
      %v952 = vadd.f32 0.0, %v951
      %v953 = vpop.f32.mrb[0].mxu0
      %954 = vmatprep.mubr.f32.mxu0 0.0
      %955 = vmatmul.mubr.f32.gmra.mrb[0].mxu0 %v838
      %v956 = vpop.f32.mrb[0].mxu0
      %v957 = vadd.f32 0.0, %v956
      %v958 = vpop.f32.mrb[0].mxu0
      %959 = vmatprep.mubr.f32.mxu0 0.0
      %960 = vmatmul.mubr.f32.gmra.mrb[0].mxu0 %v839
      %v961 = vpop.f32.mrb[0].mxu0
      %v962 = vadd.f32 0.0, %v961
      %v963 = vpop.f32.mrb[0].mxu0
      %964 = vmatprep.mubr.f32.mxu0 0.0
      %965 = vmatmul.mubr.f32.gmra.mrb[0].mxu0 %v840
      %v966 = vpop.f32.mrb[0].mxu0
      %v967 = vadd.f32 0.0, %v966
      %v968 = vpop.f32.mrb[0].mxu0
      %969 = vmatprep.mubr.f32.mxu0 0.0
      %970 = vmatmul.mubr.f32.gmra.mrb[0].mxu0 %v841
      %v971 = vpop.f32.mrb[0].mxu0
      %v972 = vadd.f32 0.0, %v971
      %v973 = vpop.f32.mrb[0].mxu0
      %974 = vmatprep.mubr.f32.mxu0 0.0
      %975 = vmatmul.mubr.f32.gmra.mrb[0].mxu0 %v842
      %v976 = vpop.f32.mrb[0].mxu0
      %v977 = vadd.f32 0.0, %v976
      %v978 = vpop.f32.mrb[0].mxu0
      %979 = vmatprep.mubr.f32.mxu0 0.0
      %980 = vmatmul.mubr.f32.gmra.mrb[0].mxu0 %v843
      %v981 = vpop.f32.mrb[0].mxu0
      %v982 = vadd.f32 0.0, %v981
      %v983 = vpop.f32.mrb[0].mxu0
      %984 = vmatprep.mubr.f32.mxu0 0.0
      %985 = vmatmul.mubr.f32.gmra.mrb[0].mxu0 %v844
      %v986 = vpop.f32.mrb[0].mxu0
      %v987 = vadd.f32 0.0, %v986
      %v988 = vpop.f32.mrb[0].mxu0
      %989 = vmatprep.mubr.f32.mxu0 0.0
      %990 = vmatmul.mubr.f32.gmra.mrb[0].mxu0 %v845
      %v991 = vpop.f32.mrb[0].mxu0
      %v992 = vadd.f32 0.0, %v991
      %v993 = vpop.f32.mrb[0].mxu0
      %994 = vmatprep.mubr.f32.mxu0 0.0
      %995 = vmatmul.mubr.f32.gmra.mrb[0].mxu0 %v846
      %v996 = vpop.f32.mrb[0].mxu0
      %v997 = vadd.f32 0.0, %v996
      %v998 = vpop.f32.mrb[0].mxu0
      %999 = vmatprep.mubr.f32.mxu0 0.0
      %1000 = vmatmul.mubr.f32.gmra.mrb[0].mxu0 %v847
      %v1001 = vpop.f32.mrb[0].mxu0
      %v1002 = vadd.f32 0.0, %v1001
      %v1003 = vpop.f32.mrb[0].mxu0
      %1004 = vmatprep.mubr.f32.mxu0 0.0
      %1005 = vmatmul.mubr.f32.gmra.mrb[0].mxu0 %v848
      %v1006 = vpop.f32.mrb[0].mxu0
      %v1007 = vadd.f32 0.0, %v1006
      %v1008 = vpop.f32.mrb[0].mxu0
      %1009 = vmatprep.mubr.f32.mxu0 0.0
      %1010 = vmatmul.mubr.f32.gmra.mrb[0].mxu0 %v849
      %v1011 = vpop.f32.mrb[0].mxu0
      %v1012 = vadd.f32 0.0, %v1011
      %v1013 = vpop.f32.mrb[0].mxu0
      %1014 = vmatprep.mubr.f32.mxu0 0.0
      %1015 = vmatmul.mubr.f32.gmra.mrb[0].mxu0 %v850
      %v1016 = vpop.f32.mrb[0].mxu0
      %v1017 = vadd.f32 0.0, %v1016
      %v1018 = vpop.f32.mrb[0].mxu0
      %1019 = vmatprep.mubr.f32.mxu0 0.0
      %1020 = vmatmul.mubr.f32.gmra.mrb[0].mxu0 %v851
      %v1021 = vpop.f32.mrb[0].mxu0
      %v1022 = vadd.f32 0.0, %v1021
      %v1023 = vpop.f32.mrb[0].mxu0
      %1024 = vmatprep.mubr.f32.mxu0 0.0
      %1025 = vmatmul.mubr.f32.gmra.mrb[0].mxu0 %v852
      %v1026 = vpop.f32.mrb[0].mxu0
      %v1027 = vadd.f32 0.0, %v1026
      %v1028 = vpop.f32.mrb[0].mxu0
      %1029 = vmatprep.mubr.f32.mxu0 0.0
      %1030 = vmatmul.mubr.f32.gmra.mrb[0].mxu0 %v853
      %v1031 = vpop.f32.mrb[0].mxu0
      %v1032 = vadd.f32 0.0, %v1031
      %v1033 = vpop.f32.mrb[0].mxu0
      %1034 = vmatprep.mubr.f32.mxu0 0.0
      %1035 = vmatmul.mubr.f32.gmra.mrb[0].mxu0 %v854
      %v1036 = vpop.f32.mrb[0].mxu0
      %v1037 = vadd.f32 0.0, %v1036
      %v1038 = vpop.f32.mrb[0].mxu0
      %1039 = vmatprep.mubr.f32.mxu0 0.0
      %1040 = vmatmul.mubr.f32.gmra.mrb[0].mxu0 %v855
      %v1041 = vpop.f32.mrb[0].mxu0
      %v1042 = vadd.f32 0.0, %v1041
      %v1043 = vpop.f32.mrb[0].mxu0
      %1044 = vmatprep.mubr.f32.mxu0 0.0
      %1045 = vmatmul.mubr.f32.gmra.mrb[0].mxu0 %v856
      %v1046 = vpop.f32.mrb[0].mxu0
      %v1047 = vadd.f32 0.0, %v1046
      %v1048 = vpop.f32.mrb[0].mxu0
      %1049 = vmatprep.mubr.f32.mxu0 0.0
      %1050 = vmatmul.mubr.f32.gmra.mrb[0].mxu0 %v857
      %v1051 = vpop.f32.mrb[0].mxu0
      %v1052 = vadd.f32 0.0, %v1051
      %v1053 = vpop.f32.mrb[0].mxu0
      %1054 = vmatprep.mubr.f32.mxu0 0.0
      %1055 = vmatmul.mubr.f32.gmra.mrb[0].mxu0 %v858
      %v1056 = vpop.f32.mrb[0].mxu0
      %v1057 = vadd.f32 0.0, %v1056
      %v1058 = vpop.f32.mrb[0].mxu0
      %1059 = vmatprep.mubr.f32.mxu0 0.0
      %1060 = vmatmul.mubr.f32.gmra.mrb[0].mxu0 %v859
      %v1061 = vpop.f32.mrb[0].mxu0
      %v1062 = vadd.f32 0.0, %v1061
      %v1063 = vpop.f32.mrb[0].mxu0
      %1064 = vmatprep.mubr.f32.mxu0 0.0
      %1065 = vmatmul.mubr.f32.gmra.mrb[0].mxu0 %v860
      %v1066 = vpop.f32.mrb[0].mxu0
      %v1067 = vadd.f32 0.0, %v1066
      %v1068 = vpop.f32.mrb[0].mxu0
      %1069 = vmatprep.mubr.f32.mxu0 0.0
      %1070 = vmatmul.mubr.f32.gmra.mrb[0].mxu0 %v861
      %v1071 = vpop.f32.mrb[0].mxu0
      %v1072 = vadd.f32 0.0, %v1071
      %v1073 = vpop.f32.mrb[0].mxu0
      %1074 = vmatprep.mubr.f32.mxu0 0.0
      %1075 = vmatmul.mubr.f32.gmra.mrb[0].mxu0 %v862
      %v1076 = vpop.f32.mrb[0].mxu0
      %v1077 = vadd.f32 0.0, %v1076
      %v1078 = vpop.f32.mrb[0].mxu0
      %1079 = vmatprep.mubr.f32.mxu0 0.0
      %1080 = vmatmul.mubr.f32.gmra.mrb[0].mxu0 %v863
      %v1081 = vpop.f32.mrb[0].mxu0
      %v1082 = vadd.f32 0.0, %v1081
      %v1083 = vpop.f32.mrb[0].mxu0
      %1084 = vmatprep.mubr.f32.mxu0 0.0
      %1085 = vmatmul.mubr.f32.gmra.mrb[0].mxu0 %v864
      %v1086 = vpop.f32.mrb[0].mxu0
      %v1087 = vadd.f32 0.0, %v1086
      %v1088 = vpop.f32.mrb[0].mxu0
      %1089 = vmatprep.mubr.f32.mxu0 0.0
      %1090 = vmatmul.mubr.f32.gmra.mrb[0].mxu0 %v865
      %v1091 = vpop.f32.mrb[0].mxu0
      %v1092 = vadd.f32 0.0, %v1091
      %v1093 = vpop.f32.mrb[0].mxu0
      %1094 = vmatprep.mubr.f32.mxu0 0.0
      %1095 = vmatmul.mubr.f32.gmra.mrb[0].mxu0 %v866
      %v1096 = vpop.f32.mrb[0].mxu0
      %v1097 = vadd.f32 0.0, %v1096
      %v1098 = vpop.f32.mrb[0].mxu0
      %1099 = vmatprep.mubr.f32.mxu0 0.0
      %1100 = vmatmul.mubr.f32.gmra.mrb[0].mxu0 %v867
      %v1101 = vpop.f32.mrb[0].mxu0
      %v1102 = vadd.f32 0.0, %v1101
      %v1103 = vpop.f32.mrb[0].mxu0
      %1104 = vmatprep.mubr.f32.mxu0 0.0
      %1105 = vmatmul.mubr.f32.gmra.mrb[0].mxu0 %v868
      %v1106 = vpop.f32.mrb[0].mxu0
      %v1107 = vadd.f32 0.0, %v1106
      %v1108 = vpop.f32.mrb[0].mxu0
      %1109 = vdwg.mxu0
      %1110 = vmatprep.subr.mxu0 0.0
      %1111 = vmatpush1.msra.mxu0 %v821
      %1112 = vmatprep.subr.mxu0 0.0
      %1113 = vmatpush1.msra.mxu0 %v822
      %1114 = vmatprep.subr.mxu0 0.0
      %1115 = vmatpush1.msra.mxu0 %v823
      %1116 = vmatprep.subr.mxu0 0.0
      %1117 = vmatpush1.msra.mxu0 %v824
      %1118 = vmatprep.subr.mxu0 0.0
      %1119 = vmatpush1.msra.mxu0 %v825
      %1120 = vmatprep.subr.mxu0 0.0
      %1121 = vmatpush1.msra.mxu0 %v826
      %1122 = vmatprep.subr.mxu0 0.0
      %1123 = vmatpush1.msra.mxu0 %v827
      %1124 = vmatprep.subr.mxu0 0.0
      %1125 = vmatpush1.msra.mxu0 %v828
      %1126 = vmatprep.subr.mxu0 0.0
      %1127 = vmatpush1.msra.mxu0 %v829
      %1128 = vmatprep.subr.mxu0 0.0
      %1129 = vmatpush1.msra.mxu0 %v830
      %1130 = vmatprep.subr.mxu0 0.0
      %1131 = vmatpush1.msra.mxu0 %v831
      %1132 = vmatprep.subr.mxu0 0.0
      %1133 = vmatpush1.msra.mxu0 %v832
      %1134 = vmatprep.subr.mxu0 0.0
      %1135 = vmatpush1.msra.mxu0 %v833
      %1136 = vmatprep.subr.mxu0 0.0
      %1137 = vmatpush1.msra.mxu0 %v834
      %1138 = vmatprep.subr.mxu0 0.0
      %1139 = vmatpush1.msra.mxu0 %v835
      %1140 = vmatprep.subr.mxu0 0.0
      %1141 = vmatpush1.msra.mxu0 %v836
      %1142 = vmatprep.subr.mxu0 0.0
      %1143 = vmatpush1.msra.mxu0 0.0
      %1144 = vmatprep.subr.mxu0 0.0
      %1145 = vmatpush1.msra.mxu0 0.0
      %1146 = vmatprep.subr.mxu0 0.0
      %1147 = vmatpush1.msra.mxu0 0.0
      %1148 = vmatprep.subr.mxu0 0.0
      %1149 = vmatpush1.msra.mxu0 0.0
      %1150 = vmatprep.subr.mxu0 0.0
      %1151 = vmatpush1.msra.mxu0 0.0
      %1152 = vmatprep.subr.mxu0 0.0
      %1153 = vmatpush1.msra.mxu0 0.0
      %1154 = vmatprep.subr.mxu0 0.0
      %1155 = vmatpush1.msra.mxu0 0.0
      %1156 = vmatprep.subr.mxu0 0.0
      %1157 = vmatpush1.msra.mxu0 0.0
      %1158 = vmatprep.subr.mxu0 0.0
      %1159 = vmatpush1.msra.mxu0 0.0
      %1160 = vmatprep.subr.mxu0 0.0
      %1161 = vmatpush1.msra.mxu0 0.0
      %1162 = vmatprep.subr.mxu0 0.0
      %1163 = vmatpush1.msra.mxu0 0.0
      %1164 = vmatprep.subr.mxu0 0.0
      %1165 = vmatpush1.msra.mxu0 0.0
      %1166 = vmatprep.subr.mxu0 0.0
      %1167 = vmatpush1.msra.mxu0 0.0
      %1168 = vmatprep.subr.mxu0 0.0
      %1169 = vmatpush1.msra.mxu0 0.0
      %1170 = vmatprep.subr.mxu0 0.0
      %1171 = vmatpush1.msra.mxu0 0.0
      %1172 = vmatprep.subr.mxu0 0.0
      %1173 = vmatpush1.msra.mxu0 0.0
      %1174 = vmatprep.mubr.f32.mxu0 0.0
      %1175 = vmatmul.mubr.f32.gmra.mrb[0].mxu0 %v789
      %v1176 = vpop.f32.mrb[0].mxu0
      %v1177 = vadd.f32 %v952, %v1176
      %v1178 = vpop.f32.mrb[0].mxu0
      %1179 = vmatprep.mubr.f32.mxu0 0.0
      %1180 = vmatmul.mubr.f32.gmra.mrb[0].mxu0 %v790
      %v1181 = vpop.f32.mrb[0].mxu0
      %v1182 = vadd.f32 %v957, %v1181
      %v1183 = vpop.f32.mrb[0].mxu0
      %1184 = vmatprep.mubr.f32.mxu0 0.0
      %1185 = vmatmul.mubr.f32.gmra.mrb[0].mxu0 %v791
      %v1186 = vpop.f32.mrb[0].mxu0
      %v1187 = vadd.f32 %v962, %v1186
      %v1188 = vpop.f32.mrb[0].mxu0
      %1189 = vmatprep.mubr.f32.mxu0 0.0
      %1190 = vmatmul.mubr.f32.gmra.mrb[0].mxu0 %v792
      %v1191 = vpop.f32.mrb[0].mxu0
      %v1192 = vadd.f32 %v967, %v1191
      %v1193 = vpop.f32.mrb[0].mxu0
      %1194 = vmatprep.mubr.f32.mxu0 0.0
      %1195 = vmatmul.mubr.f32.gmra.mrb[0].mxu0 %v793
      %v1196 = vpop.f32.mrb[0].mxu0
      %v1197 = vadd.f32 %v972, %v1196
      %v1198 = vpop.f32.mrb[0].mxu0
      %1199 = vmatprep.mubr.f32.mxu0 0.0
      %1200 = vmatmul.mubr.f32.gmra.mrb[0].mxu0 %v794
      %v1201 = vpop.f32.mrb[0].mxu0
      %v1202 = vadd.f32 %v977, %v1201
      %v1203 = vpop.f32.mrb[0].mxu0
      %1204 = vmatprep.mubr.f32.mxu0 0.0
      %1205 = vmatmul.mubr.f32.gmra.mrb[0].mxu0 %v795
      %v1206 = vpop.f32.mrb[0].mxu0
      %v1207 = vadd.f32 %v982, %v1206
      %v1208 = vpop.f32.mrb[0].mxu0
      %1209 = vmatprep.mubr.f32.mxu0 0.0
      %1210 = vmatmul.mubr.f32.gmra.mrb[0].mxu0 %v796
      %v1211 = vpop.f32.mrb[0].mxu0
      %v1212 = vadd.f32 %v987, %v1211
      %v1213 = vpop.f32.mrb[0].mxu0
      %1214 = vmatprep.mubr.f32.mxu0 0.0
      %1215 = vmatmul.mubr.f32.gmra.mrb[0].mxu0 %v797
      %v1216 = vpop.f32.mrb[0].mxu0
      %v1217 = vadd.f32 %v992, %v1216
      %v1218 = vpop.f32.mrb[0].mxu0
      %1219 = vmatprep.mubr.f32.mxu0 0.0
      %1220 = vmatmul.mubr.f32.gmra.mrb[0].mxu0 %v798
      %v1221 = vpop.f32.mrb[0].mxu0
      %v1222 = vadd.f32 %v997, %v1221
      %v1223 = vpop.f32.mrb[0].mxu0
      %1224 = vmatprep.mubr.f32.mxu0 0.0
      %1225 = vmatmul.mubr.f32.gmra.mrb[0].mxu0 %v799
      %v1226 = vpop.f32.mrb[0].mxu0
      %v1227 = vadd.f32 %v1002, %v1226
      %v1228 = vpop.f32.mrb[0].mxu0
      %1229 = vmatprep.mubr.f32.mxu0 0.0
      %1230 = vmatmul.mubr.f32.gmra.mrb[0].mxu0 %v800
      %v1231 = vpop.f32.mrb[0].mxu0
      %v1232 = vadd.f32 %v1007, %v1231
      %v1233 = vpop.f32.mrb[0].mxu0
      %1234 = vmatprep.mubr.f32.mxu0 0.0
      %1235 = vmatmul.mubr.f32.gmra.mrb[0].mxu0 %v801
      %v1236 = vpop.f32.mrb[0].mxu0
      %v1237 = vadd.f32 %v1012, %v1236
      %v1238 = vpop.f32.mrb[0].mxu0
      %1239 = vmatprep.mubr.f32.mxu0 0.0
      %1240 = vmatmul.mubr.f32.gmra.mrb[0].mxu0 %v802
      %v1241 = vpop.f32.mrb[0].mxu0
      %v1242 = vadd.f32 %v1017, %v1241
      %v1243 = vpop.f32.mrb[0].mxu0
      %1244 = vmatprep.mubr.f32.mxu0 0.0
      %1245 = vmatmul.mubr.f32.gmra.mrb[0].mxu0 %v803
      %v1246 = vpop.f32.mrb[0].mxu0
      %v1247 = vadd.f32 %v1022, %v1246
      %v1248 = vpop.f32.mrb[0].mxu0
      %1249 = vmatprep.mubr.f32.mxu0 0.0
      %1250 = vmatmul.mubr.f32.gmra.mrb[0].mxu0 %v804
      %v1251 = vpop.f32.mrb[0].mxu0
      %v1252 = vadd.f32 %v1027, %v1251
      %v1253 = vpop.f32.mrb[0].mxu0
      %1254 = vmatprep.mubr.f32.mxu0 0.0
      %1255 = vmatmul.mubr.f32.gmra.mrb[0].mxu0 %v805
      %v1256 = vpop.f32.mrb[0].mxu0
      %v1257 = vadd.f32 %v1032, %v1256
      %v1258 = vpop.f32.mrb[0].mxu0
      %1259 = vmatprep.mubr.f32.mxu0 0.0
      %1260 = vmatmul.mubr.f32.gmra.mrb[0].mxu0 %v806
      %v1261 = vpop.f32.mrb[0].mxu0
      %v1262 = vadd.f32 %v1037, %v1261
      %v1263 = vpop.f32.mrb[0].mxu0
      %1264 = vmatprep.mubr.f32.mxu0 0.0
      %1265 = vmatmul.mubr.f32.gmra.mrb[0].mxu0 %v807
      %v1266 = vpop.f32.mrb[0].mxu0
      %v1267 = vadd.f32 %v1042, %v1266
      %v1268 = vpop.f32.mrb[0].mxu0
      %1269 = vmatprep.mubr.f32.mxu0 0.0
      %1270 = vmatmul.mubr.f32.gmra.mrb[0].mxu0 %v808
      %v1271 = vpop.f32.mrb[0].mxu0
      %v1272 = vadd.f32 %v1047, %v1271
      %v1273 = vpop.f32.mrb[0].mxu0
      %1274 = vmatprep.mubr.f32.mxu0 0.0
      %1275 = vmatmul.mubr.f32.gmra.mrb[0].mxu0 %v809
      %v1276 = vpop.f32.mrb[0].mxu0
      %v1277 = vadd.f32 %v1052, %v1276
      %v1278 = vpop.f32.mrb[0].mxu0
      %1279 = vmatprep.mubr.f32.mxu0 0.0
      %1280 = vmatmul.mubr.f32.gmra.mrb[0].mxu0 %v810
      %v1281 = vpop.f32.mrb[0].mxu0
      %v1282 = vadd.f32 %v1057, %v1281
      %v1283 = vpop.f32.mrb[0].mxu0
      %1284 = vmatprep.mubr.f32.mxu0 0.0
      %1285 = vmatmul.mubr.f32.gmra.mrb[0].mxu0 %v811
      %v1286 = vpop.f32.mrb[0].mxu0
      %v1287 = vadd.f32 %v1062, %v1286
      %v1288 = vpop.f32.mrb[0].mxu0
      %1289 = vmatprep.mubr.f32.mxu0 0.0
      %1290 = vmatmul.mubr.f32.gmra.mrb[0].mxu0 %v812
      %v1291 = vpop.f32.mrb[0].mxu0
      %v1292 = vadd.f32 %v1067, %v1291
      %v1293 = vpop.f32.mrb[0].mxu0
      %1294 = vmatprep.mubr.f32.mxu0 0.0
      %1295 = vmatmul.mubr.f32.gmra.mrb[0].mxu0 %v813
      %v1296 = vpop.f32.mrb[0].mxu0
      %v1297 = vadd.f32 %v1072, %v1296
      %v1298 = vpop.f32.mrb[0].mxu0
      %1299 = vmatprep.mubr.f32.mxu0 0.0
      %1300 = vmatmul.mubr.f32.gmra.mrb[0].mxu0 %v814
      %v1301 = vpop.f32.mrb[0].mxu0
      %v1302 = vadd.f32 %v1077, %v1301
      %v1303 = vpop.f32.mrb[0].mxu0
      %1304 = vmatprep.mubr.f32.mxu0 0.0
      %1305 = vmatmul.mubr.f32.gmra.mrb[0].mxu0 %v815
      %v1306 = vpop.f32.mrb[0].mxu0
      %v1307 = vadd.f32 %v1082, %v1306
      %v1308 = vpop.f32.mrb[0].mxu0
      %1309 = vmatprep.mubr.f32.mxu0 0.0
      %1310 = vmatmul.mubr.f32.gmra.mrb[0].mxu0 %v816
      %v1311 = vpop.f32.mrb[0].mxu0
      %v1312 = vadd.f32 %v1087, %v1311
      %v1313 = vpop.f32.mrb[0].mxu0
      %1314 = vmatprep.mubr.f32.mxu0 0.0
      %1315 = vmatmul.mubr.f32.gmra.mrb[0].mxu0 %v817
      %v1316 = vpop.f32.mrb[0].mxu0
      %v1317 = vadd.f32 %v1092, %v1316
      %v1318 = vpop.f32.mrb[0].mxu0
      %1319 = vmatprep.mubr.f32.mxu0 0.0
      %1320 = vmatmul.mubr.f32.gmra.mrb[0].mxu0 %v818
      %v1321 = vpop.f32.mrb[0].mxu0
      %v1322 = vadd.f32 %v1097, %v1321
      %v1323 = vpop.f32.mrb[0].mxu0
      %1324 = vmatprep.mubr.f32.mxu0 0.0
      %1325 = vmatmul.mubr.f32.gmra.mrb[0].mxu0 %v819
      %v1326 = vpop.f32.mrb[0].mxu0
      %v1327 = vadd.f32 %v1102, %v1326
      %v1328 = vpop.f32.mrb[0].mxu0
      %1329 = vmatprep.mubr.f32.mxu0 0.0
      %1330 = vmatmul.mubr.f32.gmra.mrb[0].mxu0 %v820
      %v1331 = vpop.f32.mrb[0].mxu0
      %v1332 = vadd.f32 %v1107, %v1331
      %v1333 = vpop.f32.mrb[0].mxu0
      %1334 = vdwg.mxu0
      %v1335 = vld [vmem:[#allocation2 + $0x2] sm:$0xff]
      %v1336 = vld [vmem:[#allocation2 + $0xa] sm:$0xff]
      %v1337 = vld [vmem:[#allocation2 + $0x1a] sm:$0xff]
      %v1338 = vld [vmem:[#allocation2 + $0x22] sm:$0xff]
      %v1339 = vld [vmem:[#allocation2 + $0x32] sm:$0xff]
      %v1340 = vld [vmem:[#allocation2 + $0x3a] sm:$0xff]
      %v1341 = vld [vmem:[#allocation2 + $0x4a] sm:$0xff]
      %v1342 = vld [vmem:[#allocation2 + $0x52] sm:$0xff]
      %v1343 = vld [vmem:[#allocation2 + $0x62] sm:$0xff]
      %v1344 = vld [vmem:[#allocation2 + $0x6a] sm:$0xff]
      %v1345 = vld [vmem:[#allocation2 + $0x7a] sm:$0xff]
      %v1346 = vld [vmem:[#allocation2 + $0x82] sm:$0xff]
      %v1347 = vld [vmem:[#allocation2 + $0x92] sm:$0xff]
      %v1348 = vld [vmem:[#allocation2 + $0x9a] sm:$0xff]
      %v1349 = vld [vmem:[#allocation2 + $0xaa] sm:$0xff]
      %v1350 = vld [vmem:[#allocation2 + $0xb2] sm:$0xff]
      %v1351 = vld [vmem:[#allocation2 + $0xc2] sm:$0xff]
      %v1352 = vld [vmem:[#allocation2 + $0xca] sm:$0xff]
      %v1353 = vld [vmem:[#allocation2 + $0xda] sm:$0xff]
      %v1354 = vld [vmem:[#allocation2 + $0xe2] sm:$0xff]
      %v1355 = vld [vmem:[#allocation2 + $0xf2] sm:$0xff]
      %v1356 = vld [vmem:[#allocation2 + $0xfa] sm:$0xff]
      %v1357 = vld [vmem:[#allocation2 + $0x10a] sm:$0xff]
      %v1358 = vld [vmem:[#allocation2 + $0x112] sm:$0xff]
      %v1359 = vld [vmem:[#allocation2 + $0x122] sm:$0xff]
      %v1360 = vld [vmem:[#allocation2 + $0x12a] sm:$0xff]
      %v1361 = vld [vmem:[#allocation2 + $0x13a] sm:$0xff]
      %v1362 = vld [vmem:[#allocation2 + $0x142] sm:$0xff]
      %v1363 = vld [vmem:[#allocation2 + $0x152] sm:$0xff]
      %v1364 = vld [vmem:[#allocation2 + $0x15a] sm:$0xff]
      %v1365 = vld [vmem:[#allocation2 + $0x16a] sm:$0xff]
      %v1366 = vld [vmem:[#allocation2 + $0x172] sm:$0xff]
      %v1367 = vld [vmem:[%s3 + $0x100] sm:$0xff]
      %v1368 = vld [vmem:[%s3 + $0x108] sm:$0xff]
      %v1369 = vld [vmem:[%s3 + $0x110] sm:$0xff]
      %v1370 = vld [vmem:[%s3 + $0x118] sm:$0xff]
      %v1371 = vld [vmem:[%s3 + $0x120] sm:$0xff]
      %v1372 = vld [vmem:[%s3 + $0x128] sm:$0xff]
      %v1373 = vld [vmem:[%s3 + $0x130] sm:$0xff]
      %v1374 = vld [vmem:[%s3 + $0x138] sm:$0xff]
      %v1375 = vld [vmem:[%s3 + $0x140] sm:$0xff]
      %v1376 = vld [vmem:[%s3 + $0x148] sm:$0xff]
      %v1377 = vld [vmem:[%s3 + $0x150] sm:$0xff]
      %v1378 = vld [vmem:[%s3 + $0x158] sm:$0xff]
      %v1379 = vld [vmem:[%s3 + $0x160] sm:$0xff]
      %v1380 = vld [vmem:[%s3 + $0x168] sm:$0xff]
      %v1381 = vld [vmem:[%s3 + $0x170] sm:$0xff]
      %v1382 = vld [vmem:[%s3 + $0x178] sm:$0xff]
      %1383 = vmatprep.subr.mxu0 0.0
      %1384 = vmatpush1.msra.mxu0 %v1367
      %1385 = vmatprep.subr.mxu0 0.0
      %1386 = vmatpush1.msra.mxu0 %v1368
      %1387 = vmatprep.subr.mxu0 0.0
      %1388 = vmatpush1.msra.mxu0 %v1369
      %1389 = vmatprep.subr.mxu0 0.0
      %1390 = vmatpush1.msra.mxu0 %v1370
      %1391 = vmatprep.subr.mxu0 0.0
      %1392 = vmatpush1.msra.mxu0 %v1371
      %1393 = vmatprep.subr.mxu0 0.0
      %1394 = vmatpush1.msra.mxu0 %v1372
      %1395 = vmatprep.subr.mxu0 0.0
      %1396 = vmatpush1.msra.mxu0 %v1373
      %1397 = vmatprep.subr.mxu0 0.0
      %1398 = vmatpush1.msra.mxu0 %v1374
      %1399 = vmatprep.subr.mxu0 0.0
      %1400 = vmatpush1.msra.mxu0 %v1375
      %1401 = vmatprep.subr.mxu0 0.0
      %1402 = vmatpush1.msra.mxu0 %v1376
      %1403 = vmatprep.subr.mxu0 0.0
      %1404 = vmatpush1.msra.mxu0 %v1377
      %1405 = vmatprep.subr.mxu0 0.0
      %1406 = vmatpush1.msra.mxu0 %v1378
      %1407 = vmatprep.subr.mxu0 0.0
      %1408 = vmatpush1.msra.mxu0 %v1379
      %1409 = vmatprep.subr.mxu0 0.0
      %1410 = vmatpush1.msra.mxu0 %v1380
      %1411 = vmatprep.subr.mxu0 0.0
      %1412 = vmatpush1.msra.mxu0 %v1381
      %1413 = vmatprep.subr.mxu0 0.0
      %1414 = vmatpush1.msra.mxu0 %v1382
      %1415 = vmatprep.subr.mxu0 0.0
      %1416 = vmatpush1.msra.mxu0 0.0
      %1417 = vmatprep.subr.mxu0 0.0
      %1418 = vmatpush1.msra.mxu0 0.0
      %1419 = vmatprep.subr.mxu0 0.0
      %1420 = vmatpush1.msra.mxu0 0.0
      %1421 = vmatprep.subr.mxu0 0.0
      %1422 = vmatpush1.msra.mxu0 0.0
      %1423 = vmatprep.subr.mxu0 0.0
      %1424 = vmatpush1.msra.mxu0 0.0
      %1425 = vmatprep.subr.mxu0 0.0
      %1426 = vmatpush1.msra.mxu0 0.0
      %1427 = vmatprep.subr.mxu0 0.0
      %1428 = vmatpush1.msra.mxu0 0.0
      %1429 = vmatprep.subr.mxu0 0.0
      %1430 = vmatpush1.msra.mxu0 0.0
      %1431 = vmatprep.subr.mxu0 0.0
      %1432 = vmatpush1.msra.mxu0 0.0
      %1433 = vmatprep.subr.mxu0 0.0
      %1434 = vmatpush1.msra.mxu0 0.0
      %1435 = vmatprep.subr.mxu0 0.0
      %1436 = vmatpush1.msra.mxu0 0.0
      %1437 = vmatprep.subr.mxu0 0.0
      %1438 = vmatpush1.msra.mxu0 0.0
      %1439 = vmatprep.subr.mxu0 0.0
      %1440 = vmatpush1.msra.mxu0 0.0
      %1441 = vmatprep.subr.mxu0 0.0
      %1442 = vmatpush1.msra.mxu0 0.0
      %1443 = vmatprep.subr.mxu0 0.0
      %1444 = vmatpush1.msra.mxu0 0.0
      %1445 = vmatprep.subr.mxu0 0.0
      %1446 = vmatpush1.msra.mxu0 0.0
      %1447 = vmatprep.mubr.f32.mxu0 0.0
      %1448 = vmatmul.mubr.f32.gmra.mrb[0].mxu0 %v1335
      %v1449 = vpop.f32.mrb[0].mxu0
      %v1450 = vadd.f32 0.0, %v1449
      %v1451 = vpop.f32.mrb[0].mxu0
      %1452 = vmatprep.mubr.f32.mxu0 0.0
      %1453 = vmatmul.mubr.f32.gmra.mrb[0].mxu0 %v1336
      %v1454 = vpop.f32.mrb[0].mxu0
      %v1455 = vadd.f32 0.0, %v1454
      %v1456 = vpop.f32.mrb[0].mxu0
      %1457 = vmatprep.mubr.f32.mxu0 0.0
      %1458 = vmatmul.mubr.f32.gmra.mrb[0].mxu0 %v1337
      %v1459 = vpop.f32.mrb[0].mxu0
      %v1460 = vadd.f32 0.0, %v1459
      %v1461 = vpop.f32.mrb[0].mxu0
      %1462 = vmatprep.mubr.f32.mxu0 0.0
      %1463 = vmatmul.mubr.f32.gmra.mrb[0].mxu0 %v1338
      %v1464 = vpop.f32.mrb[0].mxu0
      %v1465 = vadd.f32 0.0, %v1464
      %v1466 = vpop.f32.mrb[0].mxu0
      %1467 = vmatprep.mubr.f32.mxu0 0.0
      %1468 = vmatmul.mubr.f32.gmra.mrb[0].mxu0 %v1339
      %v1469 = vpop.f32.mrb[0].mxu0
      %v1470 = vadd.f32 0.0, %v1469
      %v1471 = vpop.f32.mrb[0].mxu0
      %1472 = vmatprep.mubr.f32.mxu0 0.0
      %1473 = vmatmul.mubr.f32.gmra.mrb[0].mxu0 %v1340
      %v1474 = vpop.f32.mrb[0].mxu0
      %v1475 = vadd.f32 0.0, %v1474
      %v1476 = vpop.f32.mrb[0].mxu0
      %1477 = vmatprep.mubr.f32.mxu0 0.0
      %1478 = vmatmul.mubr.f32.gmra.mrb[0].mxu0 %v1341
      %v1479 = vpop.f32.mrb[0].mxu0
      %v1480 = vadd.f32 0.0, %v1479
      %v1481 = vpop.f32.mrb[0].mxu0
      %1482 = vmatprep.mubr.f32.mxu0 0.0
      %1483 = vmatmul.mubr.f32.gmra.mrb[0].mxu0 %v1342
      %v1484 = vpop.f32.mrb[0].mxu0
      %v1485 = vadd.f32 0.0, %v1484
      %v1486 = vpop.f32.mrb[0].mxu0
      %1487 = vmatprep.mubr.f32.mxu0 0.0
      %1488 = vmatmul.mubr.f32.gmra.mrb[0].mxu0 %v1343
      %v1489 = vpop.f32.mrb[0].mxu0
      %v1490 = vadd.f32 0.0, %v1489
      %v1491 = vpop.f32.mrb[0].mxu0
      %1492 = vmatprep.mubr.f32.mxu0 0.0
      %1493 = vmatmul.mubr.f32.gmra.mrb[0].mxu0 %v1344
      %v1494 = vpop.f32.mrb[0].mxu0
      %v1495 = vadd.f32 0.0, %v1494
      %v1496 = vpop.f32.mrb[0].mxu0
      %1497 = vmatprep.mubr.f32.mxu0 0.0
      %1498 = vmatmul.mubr.f32.gmra.mrb[0].mxu0 %v1345
      %v1499 = vpop.f32.mrb[0].mxu0
      %v1500 = vadd.f32 0.0, %v1499
      %v1501 = vpop.f32.mrb[0].mxu0
      %1502 = vmatprep.mubr.f32.mxu0 0.0
      %1503 = vmatmul.mubr.f32.gmra.mrb[0].mxu0 %v1346
      %v1504 = vpop.f32.mrb[0].mxu0
      %v1505 = vadd.f32 0.0, %v1504
      %v1506 = vpop.f32.mrb[0].mxu0
      %1507 = vmatprep.mubr.f32.mxu0 0.0
      %1508 = vmatmul.mubr.f32.gmra.mrb[0].mxu0 %v1347
      %v1509 = vpop.f32.mrb[0].mxu0
      %v1510 = vadd.f32 0.0, %v1509
      %v1511 = vpop.f32.mrb[0].mxu0
      %1512 = vmatprep.mubr.f32.mxu0 0.0
      %1513 = vmatmul.mubr.f32.gmra.mrb[0].mxu0 %v1348
      %v1514 = vpop.f32.mrb[0].mxu0
      %v1515 = vadd.f32 0.0, %v1514
      %v1516 = vpop.f32.mrb[0].mxu0
      %1517 = vmatprep.mubr.f32.mxu0 0.0
      %1518 = vmatmul.mubr.f32.gmra.mrb[0].mxu0 %v1349
      %v1519 = vpop.f32.mrb[0].mxu0
      %v1520 = vadd.f32 0.0, %v1519
      %v1521 = vpop.f32.mrb[0].mxu0
      %1522 = vmatprep.mubr.f32.mxu0 0.0
      %1523 = vmatmul.mubr.f32.gmra.mrb[0].mxu0 %v1350
      %v1524 = vpop.f32.mrb[0].mxu0
      %v1525 = vadd.f32 0.0, %v1524
      %v1526 = vpop.f32.mrb[0].mxu0
      %1527 = vmatprep.mubr.f32.mxu0 0.0
      %1528 = vmatmul.mubr.f32.gmra.mrb[0].mxu0 %v1351
      %v1529 = vpop.f32.mrb[0].mxu0
      %v1530 = vadd.f32 0.0, %v1529
      %v1531 = vpop.f32.mrb[0].mxu0
      %1532 = vmatprep.mubr.f32.mxu0 0.0
      %1533 = vmatmul.mubr.f32.gmra.mrb[0].mxu0 %v1352
      %v1534 = vpop.f32.mrb[0].mxu0
      %v1535 = vadd.f32 0.0, %v1534
      %v1536 = vpop.f32.mrb[0].mxu0
      %1537 = vmatprep.mubr.f32.mxu0 0.0
      %1538 = vmatmul.mubr.f32.gmra.mrb[0].mxu0 %v1353
      %v1539 = vpop.f32.mrb[0].mxu0
      %v1540 = vadd.f32 0.0, %v1539
      %v1541 = vpop.f32.mrb[0].mxu0
      %1542 = vmatprep.mubr.f32.mxu0 0.0
      %1543 = vmatmul.mubr.f32.gmra.mrb[0].mxu0 %v1354
      %v1544 = vpop.f32.mrb[0].mxu0
      %v1545 = vadd.f32 0.0, %v1544
      %v1546 = vpop.f32.mrb[0].mxu0
      %1547 = vmatprep.mubr.f32.mxu0 0.0
      %1548 = vmatmul.mubr.f32.gmra.mrb[0].mxu0 %v1355
      %v1549 = vpop.f32.mrb[0].mxu0
      %v1550 = vadd.f32 0.0, %v1549
      %v1551 = vpop.f32.mrb[0].mxu0
      %1552 = vmatprep.mubr.f32.mxu0 0.0
      %1553 = vmatmul.mubr.f32.gmra.mrb[0].mxu0 %v1356
      %v1554 = vpop.f32.mrb[0].mxu0
      %v1555 = vadd.f32 0.0, %v1554
      %v1556 = vpop.f32.mrb[0].mxu0
      %1557 = vmatprep.mubr.f32.mxu0 0.0
      %1558 = vmatmul.mubr.f32.gmra.mrb[0].mxu0 %v1357
      %v1559 = vpop.f32.mrb[0].mxu0
      %v1560 = vadd.f32 0.0, %v1559
      %v1561 = vpop.f32.mrb[0].mxu0
      %1562 = vmatprep.mubr.f32.mxu0 0.0
      %1563 = vmatmul.mubr.f32.gmra.mrb[0].mxu0 %v1358
      %v1564 = vpop.f32.mrb[0].mxu0
      %v1565 = vadd.f32 0.0, %v1564
      %v1566 = vpop.f32.mrb[0].mxu0
      %1567 = vmatprep.mubr.f32.mxu0 0.0
      %1568 = vmatmul.mubr.f32.gmra.mrb[0].mxu0 %v1359
      %v1569 = vpop.f32.mrb[0].mxu0
      %v1570 = vadd.f32 0.0, %v1569
      %v1571 = vpop.f32.mrb[0].mxu0
      %1572 = vmatprep.mubr.f32.mxu0 0.0
      %1573 = vmatmul.mubr.f32.gmra.mrb[0].mxu0 %v1360
      %v1574 = vpop.f32.mrb[0].mxu0
      %v1575 = vadd.f32 0.0, %v1574
      %v1576 = vpop.f32.mrb[0].mxu0
      %1577 = vmatprep.mubr.f32.mxu0 0.0
      %1578 = vmatmul.mubr.f32.gmra.mrb[0].mxu0 %v1361
      %v1579 = vpop.f32.mrb[0].mxu0
      %v1580 = vadd.f32 0.0, %v1579
      %v1581 = vpop.f32.mrb[0].mxu0
      %1582 = vmatprep.mubr.f32.mxu0 0.0
      %1583 = vmatmul.mubr.f32.gmra.mrb[0].mxu0 %v1362
      %v1584 = vpop.f32.mrb[0].mxu0
      %v1585 = vadd.f32 0.0, %v1584
      %v1586 = vpop.f32.mrb[0].mxu0
      %1587 = vmatprep.mubr.f32.mxu0 0.0
      %1588 = vmatmul.mubr.f32.gmra.mrb[0].mxu0 %v1363
      %v1589 = vpop.f32.mrb[0].mxu0
      %v1590 = vadd.f32 0.0, %v1589
      %v1591 = vpop.f32.mrb[0].mxu0
      %1592 = vmatprep.mubr.f32.mxu0 0.0
      %1593 = vmatmul.mubr.f32.gmra.mrb[0].mxu0 %v1364
      %v1594 = vpop.f32.mrb[0].mxu0
      %v1595 = vadd.f32 0.0, %v1594
      %v1596 = vpop.f32.mrb[0].mxu0
      %1597 = vmatprep.mubr.f32.mxu0 0.0
      %1598 = vmatmul.mubr.f32.gmra.mrb[0].mxu0 %v1365
      %v1599 = vpop.f32.mrb[0].mxu0
      %v1600 = vadd.f32 0.0, %v1599
      %v1601 = vpop.f32.mrb[0].mxu0
      %1602 = vmatprep.mubr.f32.mxu0 0.0
      %1603 = vmatmul.mubr.f32.gmra.mrb[0].mxu0 %v1366
      %v1604 = vpop.f32.mrb[0].mxu0
      %v1605 = vadd.f32 0.0, %v1604
      %v1606 = vpop.f32.mrb[0].mxu0
      %1607 = vdwg.mxu0
      %v1608 = vadd.f32 %v1177, %v1450
      %v1609 = vadd.f32 %v1182, %v1455
      %v1610 = vadd.f32 %v1187, %v1460
      %v1611 = vadd.f32 %v1192, %v1465
      %v1612 = vadd.f32 %v1197, %v1470
      %v1613 = vadd.f32 %v1202, %v1475
      %v1614 = vadd.f32 %v1207, %v1480
      %v1615 = vadd.f32 %v1212, %v1485
      %v1616 = vadd.f32 %v1217, %v1490
      %v1617 = vadd.f32 %v1222, %v1495
      %v1618 = vadd.f32 %v1227, %v1500
      %v1619 = vadd.f32 %v1232, %v1505
      %v1620 = vadd.f32 %v1237, %v1510
      %v1621 = vadd.f32 %v1242, %v1515
      %v1622 = vadd.f32 %v1247, %v1520
      %v1623 = vadd.f32 %v1252, %v1525
      %v1624 = vadd.f32 %v1257, %v1530
      %v1625 = vadd.f32 %v1262, %v1535
      %v1626 = vadd.f32 %v1267, %v1540
      %v1627 = vadd.f32 %v1272, %v1545
      %v1628 = vadd.f32 %v1277, %v1550
      %v1629 = vadd.f32 %v1282, %v1555
      %v1630 = vadd.f32 %v1287, %v1560
      %v1631 = vadd.f32 %v1292, %v1565
      %v1632 = vadd.f32 %v1297, %v1570
      %v1633 = vadd.f32 %v1302, %v1575
      %v1634 = vadd.f32 %v1307, %v1580
      %v1635 = vadd.f32 %v1312, %v1585
      %v1636 = vadd.f32 %v1317, %v1590
      %v1637 = vadd.f32 %v1322, %v1595
      %v1638 = vadd.f32 %v1327, %v1600
      %v1639 = vadd.f32 %v1332, %v1605
      %v1640 = vld [vmem:[%s718] sm:$0xff]
      %v1641 = vld [vmem:[%s718 + $0x8] sm:$0xff]
      %v1642 = vld [vmem:[%s718 + $0x18] sm:$0xff]
      %v1643 = vld [vmem:[%s718 + $0x20] sm:$0xff]
      %v1644 = vld [vmem:[%s718 + $0x30] sm:$0xff]
      %v1645 = vld [vmem:[%s718 + $0x38] sm:$0xff]
      %v1646 = vld [vmem:[%s718 + $0x48] sm:$0xff]
      %v1647 = vld [vmem:[%s718 + $0x50] sm:$0xff]
      %v1648 = vld [vmem:[%s718 + $0x60] sm:$0xff]
      %v1649 = vld [vmem:[%s718 + $0x68] sm:$0xff]
      %v1650 = vld [vmem:[%s718 + $0x78] sm:$0xff]
      %v1651 = vld [vmem:[%s718 + $0x80] sm:$0xff]
      %v1652 = vld [vmem:[%s718 + $0x90] sm:$0xff]
      %v1653 = vld [vmem:[%s718 + $0x98] sm:$0xff]
      %v1654 = vld [vmem:[%s718 + $0xa8] sm:$0xff]
      %v1655 = vld [vmem:[%s718 + $0xb0] sm:$0xff]
      %v1656 = vld [vmem:[%s718 + $0xc0] sm:$0xff]
      %v1657 = vld [vmem:[%s718 + $0xc8] sm:$0xff]
      %v1658 = vld [vmem:[%s718 + $0xd8] sm:$0xff]
      %v1659 = vld [vmem:[%s718 + $0xe0] sm:$0xff]
      %v1660 = vld [vmem:[%s718 + $0xf0] sm:$0xff]
      %v1661 = vld [vmem:[%s718 + $0xf8] sm:$0xff]
      %v1662 = vld [vmem:[%s718 + $0x108] sm:$0xff]
      %v1663 = vld [vmem:[%s718 + $0x110] sm:$0xff]
      %v1664 = vld [vmem:[%s718 + $0x120] sm:$0xff]
      %v1665 = vld [vmem:[%s718 + $0x128] sm:$0xff]
      %v1666 = vld [vmem:[%s718 + $0x138] sm:$0xff]
      %v1667 = vld [vmem:[%s718 + $0x140] sm:$0xff]
      %v1668 = vld [vmem:[%s718 + $0x150] sm:$0xff]
      %v1669 = vld [vmem:[%s718 + $0x158] sm:$0xff]
      %v1670 = vld [vmem:[%s718 + $0x168] sm:$0xff]
      %v1671 = vld [vmem:[%s718 + $0x170] sm:$0xff]
      %v1672 = vld [vmem:[%s3 + $0x180] sm:$0xff]
      %v1673 = vld [vmem:[%s3 + $0x188] sm:$0xff]
      %v1674 = vld [vmem:[%s3 + $0x190] sm:$0xff]
      %v1675 = vld [vmem:[%s3 + $0x198] sm:$0xff]
      %v1676 = vld [vmem:[%s3 + $0x1a0] sm:$0xff]
      %v1677 = vld [vmem:[%s3 + $0x1a8] sm:$0xff]
      %v1678 = vld [vmem:[%s3 + $0x1b0] sm:$0xff]
      %v1679 = vld [vmem:[%s3 + $0x1b8] sm:$0xff]
      %v1680 = vld [vmem:[%s3 + $0x1c0] sm:$0xff]
      %v1681 = vld [vmem:[%s3 + $0x1c8] sm:$0xff]
      %v1682 = vld [vmem:[%s3 + $0x1d0] sm:$0xff]
      %v1683 = vld [vmem:[%s3 + $0x1d8] sm:$0xff]
      %v1684 = vld [vmem:[%s3 + $0x1e0] sm:$0xff]
      %v1685 = vld [vmem:[%s3 + $0x1e8] sm:$0xff]
      %v1686 = vld [vmem:[%s3 + $0x1f0] sm:$0xff]
      %v1687 = vld [vmem:[%s3 + $0x1f8] sm:$0xff]
      %1688 = vmatprep.subr.mxu0 0.0
      %1689 = vmatpush1.msra.mxu0 %v1672
      %1690 = vmatprep.subr.mxu0 0.0
      %1691 = vmatpush1.msra.mxu0 %v1673
      %1692 = vmatprep.subr.mxu0 0.0
      %1693 = vmatpush1.msra.mxu0 %v1674
      %1694 = vmatprep.subr.mxu0 0.0
      %1695 = vmatpush1.msra.mxu0 %v1675
      %1696 = vmatprep.subr.mxu0 0.0
      %1697 = vmatpush1.msra.mxu0 %v1676
      %1698 = vmatprep.subr.mxu0 0.0
      %1699 = vmatpush1.msra.mxu0 %v1677
      %1700 = vmatprep.subr.mxu0 0.0
      %1701 = vmatpush1.msra.mxu0 %v1678
      %1702 = vmatprep.subr.mxu0 0.0
      %1703 = vmatpush1.msra.mxu0 %v1679
      %1704 = vmatprep.subr.mxu0 0.0
      %1705 = vmatpush1.msra.mxu0 %v1680
      %1706 = vmatprep.subr.mxu0 0.0
      %1707 = vmatpush1.msra.mxu0 %v1681
      %1708 = vmatprep.subr.mxu0 0.0
      %1709 = vmatpush1.msra.mxu0 %v1682
      %1710 = vmatprep.subr.mxu0 0.0
      %1711 = vmatpush1.msra.mxu0 %v1683
      %1712 = vmatprep.subr.mxu0 0.0
      %1713 = vmatpush1.msra.mxu0 %v1684
      %1714 = vmatprep.subr.mxu0 0.0
      %1715 = vmatpush1.msra.mxu0 %v1685
      %1716 = vmatprep.subr.mxu0 0.0
      %1717 = vmatpush1.msra.mxu0 %v1686
      %1718 = vmatprep.subr.mxu0 0.0
      %1719 = vmatpush1.msra.mxu0 %v1687
      %1720 = vmatprep.subr.mxu0 0.0
      %1721 = vmatpush1.msra.mxu0 0.0
      %1722 = vmatprep.subr.mxu0 0.0
      %1723 = vmatpush1.msra.mxu0 0.0
      %1724 = vmatprep.subr.mxu0 0.0
      %1725 = vmatpush1.msra.mxu0 0.0
      %1726 = vmatprep.subr.mxu0 0.0
      %1727 = vmatpush1.msra.mxu0 0.0
      %1728 = vmatprep.subr.mxu0 0.0
      %1729 = vmatpush1.msra.mxu0 0.0
      %1730 = vmatprep.subr.mxu0 0.0
      %1731 = vmatpush1.msra.mxu0 0.0
      %1732 = vmatprep.subr.mxu0 0.0
      %1733 = vmatpush1.msra.mxu0 0.0
      %1734 = vmatprep.subr.mxu0 0.0
      %1735 = vmatpush1.msra.mxu0 0.0
      %1736 = vmatprep.subr.mxu0 0.0
      %1737 = vmatpush1.msra.mxu0 0.0
      %1738 = vmatprep.subr.mxu0 0.0
      %1739 = vmatpush1.msra.mxu0 0.0
      %1740 = vmatprep.subr.mxu0 0.0
      %1741 = vmatpush1.msra.mxu0 0.0
      %1742 = vmatprep.subr.mxu0 0.0
      %1743 = vmatpush1.msra.mxu0 0.0
      %1744 = vmatprep.subr.mxu0 0.0
      %1745 = vmatpush1.msra.mxu0 0.0
      %1746 = vmatprep.subr.mxu0 0.0
      %1747 = vmatpush1.msra.mxu0 0.0
      %1748 = vmatprep.subr.mxu0 0.0
      %1749 = vmatpush1.msra.mxu0 0.0
      %1750 = vmatprep.subr.mxu0 0.0
      %1751 = vmatpush1.msra.mxu0 0.0
      %1752 = vmatprep.mubr.f32.mxu0 0.0
      %1753 = vmatmul.mubr.f32.gmra.mrb[0].mxu0 %v1640
      %v1754 = vpop.f32.mrb[0].mxu0
      %v1755 = vadd.f32 0.0, %v1754
      %v1756 = vpop.f32.mrb[0].mxu0
      %1757 = vmatprep.mubr.f32.mxu0 0.0
      %1758 = vmatmul.mubr.f32.gmra.mrb[0].mxu0 %v1641
      %v1759 = vpop.f32.mrb[0].mxu0
      %v1760 = vadd.f32 0.0, %v1759
      %v1761 = vpop.f32.mrb[0].mxu0
      %1762 = vmatprep.mubr.f32.mxu0 0.0
      %1763 = vmatmul.mubr.f32.gmra.mrb[0].mxu0 %v1642
      %v1764 = vpop.f32.mrb[0].mxu0
      %v1765 = vadd.f32 0.0, %v1764
      %v1766 = vpop.f32.mrb[0].mxu0
      %1767 = vmatprep.mubr.f32.mxu0 0.0
      %1768 = vmatmul.mubr.f32.gmra.mrb[0].mxu0 %v1643
      %v1769 = vpop.f32.mrb[0].mxu0
      %v1770 = vadd.f32 0.0, %v1769
      %v1771 = vpop.f32.mrb[0].mxu0
      %1772 = vmatprep.mubr.f32.mxu0 0.0
      %1773 = vmatmul.mubr.f32.gmra.mrb[0].mxu0 %v1644
      %v1774 = vpop.f32.mrb[0].mxu0
      %v1775 = vadd.f32 0.0, %v1774
      %v1776 = vpop.f32.mrb[0].mxu0
      %1777 = vmatprep.mubr.f32.mxu0 0.0
      %1778 = vmatmul.mubr.f32.gmra.mrb[0].mxu0 %v1645
      %v1779 = vpop.f32.mrb[0].mxu0
      %v1780 = vadd.f32 0.0, %v1779
      %v1781 = vpop.f32.mrb[0].mxu0
      %1782 = vmatprep.mubr.f32.mxu0 0.0
      %1783 = vmatmul.mubr.f32.gmra.mrb[0].mxu0 %v1646
      %v1784 = vpop.f32.mrb[0].mxu0
      %v1785 = vadd.f32 0.0, %v1784
      %v1786 = vpop.f32.mrb[0].mxu0
      %1787 = vmatprep.mubr.f32.mxu0 0.0
      %1788 = vmatmul.mubr.f32.gmra.mrb[0].mxu0 %v1647
      %v1789 = vpop.f32.mrb[0].mxu0
      %v1790 = vadd.f32 0.0, %v1789
      %v1791 = vpop.f32.mrb[0].mxu0
      %1792 = vmatprep.mubr.f32.mxu0 0.0
      %1793 = vmatmul.mubr.f32.gmra.mrb[0].mxu0 %v1648
      %v1794 = vpop.f32.mrb[0].mxu0
      %v1795 = vadd.f32 0.0, %v1794
      %v1796 = vpop.f32.mrb[0].mxu0
      %1797 = vmatprep.mubr.f32.mxu0 0.0
      %1798 = vmatmul.mubr.f32.gmra.mrb[0].mxu0 %v1649
      %v1799 = vpop.f32.mrb[0].mxu0
      %v1800 = vadd.f32 0.0, %v1799
      %v1801 = vpop.f32.mrb[0].mxu0
      %1802 = vmatprep.mubr.f32.mxu0 0.0
      %1803 = vmatmul.mubr.f32.gmra.mrb[0].mxu0 %v1650
      %v1804 = vpop.f32.mrb[0].mxu0
      %v1805 = vadd.f32 0.0, %v1804
      %v1806 = vpop.f32.mrb[0].mxu0
      %1807 = vmatprep.mubr.f32.mxu0 0.0
      %1808 = vmatmul.mubr.f32.gmra.mrb[0].mxu0 %v1651
      %v1809 = vpop.f32.mrb[0].mxu0
      %v1810 = vadd.f32 0.0, %v1809
      %v1811 = vpop.f32.mrb[0].mxu0
      %1812 = vmatprep.mubr.f32.mxu0 0.0
      %1813 = vmatmul.mubr.f32.gmra.mrb[0].mxu0 %v1652
      %v1814 = vpop.f32.mrb[0].mxu0
      %v1815 = vadd.f32 0.0, %v1814
      %v1816 = vpop.f32.mrb[0].mxu0
      %1817 = vmatprep.mubr.f32.mxu0 0.0
      %1818 = vmatmul.mubr.f32.gmra.mrb[0].mxu0 %v1653
      %v1819 = vpop.f32.mrb[0].mxu0
      %v1820 = vadd.f32 0.0, %v1819
      %v1821 = vpop.f32.mrb[0].mxu0
      %1822 = vmatprep.mubr.f32.mxu0 0.0
      %1823 = vmatmul.mubr.f32.gmra.mrb[0].mxu0 %v1654
      %v1824 = vpop.f32.mrb[0].mxu0
      %v1825 = vadd.f32 0.0, %v1824
      %v1826 = vpop.f32.mrb[0].mxu0
      %1827 = vmatprep.mubr.f32.mxu0 0.0
      %1828 = vmatmul.mubr.f32.gmra.mrb[0].mxu0 %v1655
      %v1829 = vpop.f32.mrb[0].mxu0
      %v1830 = vadd.f32 0.0, %v1829
      %v1831 = vpop.f32.mrb[0].mxu0
      %1832 = vmatprep.mubr.f32.mxu0 0.0
      %1833 = vmatmul.mubr.f32.gmra.mrb[0].mxu0 %v1656
      %v1834 = vpop.f32.mrb[0].mxu0
      %v1835 = vadd.f32 0.0, %v1834
      %v1836 = vpop.f32.mrb[0].mxu0
      %1837 = vmatprep.mubr.f32.mxu0 0.0
      %1838 = vmatmul.mubr.f32.gmra.mrb[0].mxu0 %v1657
      %v1839 = vpop.f32.mrb[0].mxu0
      %v1840 = vadd.f32 0.0, %v1839
      %v1841 = vpop.f32.mrb[0].mxu0
      %1842 = vmatprep.mubr.f32.mxu0 0.0
      %1843 = vmatmul.mubr.f32.gmra.mrb[0].mxu0 %v1658
      %v1844 = vpop.f32.mrb[0].mxu0
      %v1845 = vadd.f32 0.0, %v1844
      %v1846 = vpop.f32.mrb[0].mxu0
      %1847 = vmatprep.mubr.f32.mxu0 0.0
      %1848 = vmatmul.mubr.f32.gmra.mrb[0].mxu0 %v1659
      %v1849 = vpop.f32.mrb[0].mxu0
      %v1850 = vadd.f32 0.0, %v1849
      %v1851 = vpop.f32.mrb[0].mxu0
      %1852 = vmatprep.mubr.f32.mxu0 0.0
      %1853 = vmatmul.mubr.f32.gmra.mrb[0].mxu0 %v1660
      %v1854 = vpop.f32.mrb[0].mxu0
      %v1855 = vadd.f32 0.0, %v1854
      %v1856 = vpop.f32.mrb[0].mxu0
      %1857 = vmatprep.mubr.f32.mxu0 0.0
      %1858 = vmatmul.mubr.f32.gmra.mrb[0].mxu0 %v1661
      %v1859 = vpop.f32.mrb[0].mxu0
      %v1860 = vadd.f32 0.0, %v1859
      %v1861 = vpop.f32.mrb[0].mxu0
      %1862 = vmatprep.mubr.f32.mxu0 0.0
      %1863 = vmatmul.mubr.f32.gmra.mrb[0].mxu0 %v1662
      %v1864 = vpop.f32.mrb[0].mxu0
      %v1865 = vadd.f32 0.0, %v1864
      %v1866 = vpop.f32.mrb[0].mxu0
      %1867 = vmatprep.mubr.f32.mxu0 0.0
      %1868 = vmatmul.mubr.f32.gmra.mrb[0].mxu0 %v1663
      %v1869 = vpop.f32.mrb[0].mxu0
      %v1870 = vadd.f32 0.0, %v1869
      %v1871 = vpop.f32.mrb[0].mxu0
      %1872 = vmatprep.mubr.f32.mxu0 0.0
      %1873 = vmatmul.mubr.f32.gmra.mrb[0].mxu0 %v1664
      %v1874 = vpop.f32.mrb[0].mxu0
      %v1875 = vadd.f32 0.0, %v1874
      %v1876 = vpop.f32.mrb[0].mxu0
      %1877 = vmatprep.mubr.f32.mxu0 0.0
      %1878 = vmatmul.mubr.f32.gmra.mrb[0].mxu0 %v1665
      %v1879 = vpop.f32.mrb[0].mxu0
      %v1880 = vadd.f32 0.0, %v1879
      %v1881 = vpop.f32.mrb[0].mxu0
      %1882 = vmatprep.mubr.f32.mxu0 0.0
      %1883 = vmatmul.mubr.f32.gmra.mrb[0].mxu0 %v1666
      %v1884 = vpop.f32.mrb[0].mxu0
      %v1885 = vadd.f32 0.0, %v1884
      %v1886 = vpop.f32.mrb[0].mxu0
      %1887 = vmatprep.mubr.f32.mxu0 0.0
      %1888 = vmatmul.mubr.f32.gmra.mrb[0].mxu0 %v1667
      %v1889 = vpop.f32.mrb[0].mxu0
      %v1890 = vadd.f32 0.0, %v1889
      %v1891 = vpop.f32.mrb[0].mxu0
      %1892 = vmatprep.mubr.f32.mxu0 0.0
      %1893 = vmatmul.mubr.f32.gmra.mrb[0].mxu0 %v1668
      %v1894 = vpop.f32.mrb[0].mxu0
      %v1895 = vadd.f32 0.0, %v1894
      %v1896 = vpop.f32.mrb[0].mxu0
      %1897 = vmatprep.mubr.f32.mxu0 0.0
      %1898 = vmatmul.mubr.f32.gmra.mrb[0].mxu0 %v1669
      %v1899 = vpop.f32.mrb[0].mxu0
      %v1900 = vadd.f32 0.0, %v1899
      %v1901 = vpop.f32.mrb[0].mxu0
      %1902 = vmatprep.mubr.f32.mxu0 0.0
      %1903 = vmatmul.mubr.f32.gmra.mrb[0].mxu0 %v1670
      %v1904 = vpop.f32.mrb[0].mxu0
      %v1905 = vadd.f32 0.0, %v1904
      %v1906 = vpop.f32.mrb[0].mxu0
      %1907 = vmatprep.mubr.f32.mxu0 0.0
      %1908 = vmatmul.mubr.f32.gmra.mrb[0].mxu0 %v1671
      %v1909 = vpop.f32.mrb[0].mxu0
      %v1910 = vadd.f32 0.0, %v1909
      %v1911 = vpop.f32.mrb[0].mxu0
      %1912 = vdwg.mxu0
      %v1913 = vadd.f32 %v1608, %v1755
      %v1914 = vadd.f32 %v1609, %v1760
      %v1915 = vadd.f32 %v1610, %v1765
      %v1916 = vadd.f32 %v1611, %v1770
      %v1917 = vadd.f32 %v1612, %v1775
      %v1918 = vadd.f32 %v1613, %v1780
      %v1919 = vadd.f32 %v1614, %v1785
      %v1920 = vadd.f32 %v1615, %v1790
      %v1921 = vadd.f32 %v1616, %v1795
      %v1922 = vadd.f32 %v1617, %v1800
      %v1923 = vadd.f32 %v1618, %v1805
      %v1924 = vadd.f32 %v1619, %v1810
      %v1925 = vadd.f32 %v1620, %v1815
      %v1926 = vadd.f32 %v1621, %v1820
      %v1927 = vadd.f32 %v1622, %v1825
      %v1928 = vadd.f32 %v1623, %v1830
      %v1929 = vadd.f32 %v1624, %v1835
      %v1930 = vadd.f32 %v1625, %v1840
      %v1931 = vadd.f32 %v1626, %v1845
      %v1932 = vadd.f32 %v1627, %v1850
      %v1933 = vadd.f32 %v1628, %v1855
      %v1934 = vadd.f32 %v1629, %v1860
      %v1935 = vadd.f32 %v1630, %v1865
      %v1936 = vadd.f32 %v1631, %v1870
      %v1937 = vadd.f32 %v1632, %v1875
      %v1938 = vadd.f32 %v1633, %v1880
      %v1939 = vadd.f32 %v1634, %v1885
      %v1940 = vadd.f32 %v1635, %v1890
      %v1941 = vadd.f32 %v1636, %v1895
      %v1942 = vadd.f32 %v1637, %v1900
      %v1943 = vadd.f32 %v1638, %v1905
      %v1944 = vadd.f32 %v1639, %v1910
      %v1945 = vld [vmem:[%s718 + $0x1] sm:$0xff]
      %v1946 = vld [vmem:[%s718 + $0x9] sm:$0xff]
      %v1947 = vld [vmem:[%s718 + $0x19] sm:$0xff]
      %v1948 = vld [vmem:[%s718 + $0x21] sm:$0xff]
      %v1949 = vld [vmem:[%s718 + $0x31] sm:$0xff]
      %v1950 = vld [vmem:[%s718 + $0x39] sm:$0xff]
      %v1951 = vld [vmem:[%s718 + $0x49] sm:$0xff]
      %v1952 = vld [vmem:[%s718 + $0x51] sm:$0xff]
      %v1953 = vld [vmem:[%s718 + $0x61] sm:$0xff]
      %v1954 = vld [vmem:[%s718 + $0x69] sm:$0xff]
      %v1955 = vld [vmem:[%s718 + $0x79] sm:$0xff]
      %v1956 = vld [vmem:[%s718 + $0x81] sm:$0xff]
      %v1957 = vld [vmem:[%s718 + $0x91] sm:$0xff]
      %v1958 = vld [vmem:[%s718 + $0x99] sm:$0xff]
      %v1959 = vld [vmem:[%s718 + $0xa9] sm:$0xff]
      %v1960 = vld [vmem:[%s718 + $0xb1] sm:$0xff]
      %v1961 = vld [vmem:[%s718 + $0xc1] sm:$0xff]
      %v1962 = vld [vmem:[%s718 + $0xc9] sm:$0xff]
      %v1963 = vld [vmem:[%s718 + $0xd9] sm:$0xff]
      %v1964 = vld [vmem:[%s718 + $0xe1] sm:$0xff]
      %v1965 = vld [vmem:[%s718 + $0xf1] sm:$0xff]
      %v1966 = vld [vmem:[%s718 + $0xf9] sm:$0xff]
      %v1967 = vld [vmem:[%s718 + $0x109] sm:$0xff]
      %v1968 = vld [vmem:[%s718 + $0x111] sm:$0xff]
      %v1969 = vld [vmem:[%s718 + $0x121] sm:$0xff]
      %v1970 = vld [vmem:[%s718 + $0x129] sm:$0xff]
      %v1971 = vld [vmem:[%s718 + $0x139] sm:$0xff]
      %v1972 = vld [vmem:[%s718 + $0x141] sm:$0xff]
      %v1973 = vld [vmem:[%s718 + $0x151] sm:$0xff]
      %v1974 = vld [vmem:[%s718 + $0x159] sm:$0xff]
      %v1975 = vld [vmem:[%s718 + $0x169] sm:$0xff]
      %v1976 = vld [vmem:[%s718 + $0x171] sm:$0xff]
      %v1977 = vld [vmem:[%s3 + $0x200] sm:$0xff]
      %v1978 = vld [vmem:[%s3 + $0x208] sm:$0xff]
      %v1979 = vld [vmem:[%s3 + $0x210] sm:$0xff]
      %v1980 = vld [vmem:[%s3 + $0x218] sm:$0xff]
      %v1981 = vld [vmem:[%s3 + $0x220] sm:$0xff]
      %v1982 = vld [vmem:[%s3 + $0x228] sm:$0xff]
      %v1983 = vld [vmem:[%s3 + $0x230] sm:$0xff]
      %v1984 = vld [vmem:[%s3 + $0x238] sm:$0xff]
      %v1985 = vld [vmem:[%s3 + $0x240] sm:$0xff]
      %v1986 = vld [vmem:[%s3 + $0x248] sm:$0xff]
      %v1987 = vld [vmem:[%s3 + $0x250] sm:$0xff]
      %v1988 = vld [vmem:[%s3 + $0x258] sm:$0xff]
      %v1989 = vld [vmem:[%s3 + $0x260] sm:$0xff]
      %v1990 = vld [vmem:[%s3 + $0x268] sm:$0xff]
      %v1991 = vld [vmem:[%s3 + $0x270] sm:$0xff]
      %v1992 = vld [vmem:[%s3 + $0x278] sm:$0xff]
      %1993 = vmatprep.subr.mxu0 0.0
      %1994 = vmatpush1.msra.mxu0 %v1977
      %1995 = vmatprep.subr.mxu0 0.0
      %1996 = vmatpush1.msra.mxu0 %v1978
      %1997 = vmatprep.subr.mxu0 0.0
      %1998 = vmatpush1.msra.mxu0 %v1979
      %1999 = vmatprep.subr.mxu0 0.0
      %2000 = vmatpush1.msra.mxu0 %v1980
      %2001 = vmatprep.subr.mxu0 0.0
      %2002 = vmatpush1.msra.mxu0 %v1981
      %2003 = vmatprep.subr.mxu0 0.0
      %2004 = vmatpush1.msra.mxu0 %v1982
      %2005 = vmatprep.subr.mxu0 0.0
      %2006 = vmatpush1.msra.mxu0 %v1983
      %2007 = vmatprep.subr.mxu0 0.0
      %2008 = vmatpush1.msra.mxu0 %v1984
      %2009 = vmatprep.subr.mxu0 0.0
      %2010 = vmatpush1.msra.mxu0 %v1985
      %2011 = vmatprep.subr.mxu0 0.0
      %2012 = vmatpush1.msra.mxu0 %v1986
      %2013 = vmatprep.subr.mxu0 0.0
      %2014 = vmatpush1.msra.mxu0 %v1987
      %2015 = vmatprep.subr.mxu0 0.0
      %2016 = vmatpush1.msra.mxu0 %v1988
      %2017 = vmatprep.subr.mxu0 0.0
      %2018 = vmatpush1.msra.mxu0 %v1989
      %2019 = vmatprep.subr.mxu0 0.0
      %2020 = vmatpush1.msra.mxu0 %v1990
      %2021 = vmatprep.subr.mxu0 0.0
      %2022 = vmatpush1.msra.mxu0 %v1991
      %2023 = vmatprep.subr.mxu0 0.0
      %2024 = vmatpush1.msra.mxu0 %v1992
      %2025 = vmatprep.subr.mxu0 0.0
      %2026 = vmatpush1.msra.mxu0 0.0
      %2027 = vmatprep.subr.mxu0 0.0
      %2028 = vmatpush1.msra.mxu0 0.0
      %2029 = vmatprep.subr.mxu0 0.0
      %2030 = vmatpush1.msra.mxu0 0.0
      %2031 = vmatprep.subr.mxu0 0.0
      %2032 = vmatpush1.msra.mxu0 0.0
      %2033 = vmatprep.subr.mxu0 0.0
      %2034 = vmatpush1.msra.mxu0 0.0
      %2035 = vmatprep.subr.mxu0 0.0
      %2036 = vmatpush1.msra.mxu0 0.0
      %2037 = vmatprep.subr.mxu0 0.0
      %2038 = vmatpush1.msra.mxu0 0.0
      %2039 = vmatprep.subr.mxu0 0.0
      %2040 = vmatpush1.msra.mxu0 0.0
      %2041 = vmatprep.subr.mxu0 0.0
      %2042 = vmatpush1.msra.mxu0 0.0
      %2043 = vmatprep.subr.mxu0 0.0
      %2044 = vmatpush1.msra.mxu0 0.0
      %2045 = vmatprep.subr.mxu0 0.0
      %2046 = vmatpush1.msra.mxu0 0.0
      %2047 = vmatprep.subr.mxu0 0.0
      %2048 = vmatpush1.msra.mxu0 0.0
      %2049 = vmatprep.subr.mxu0 0.0
      %2050 = vmatpush1.msra.mxu0 0.0
      %2051 = vmatprep.subr.mxu0 0.0
      %2052 = vmatpush1.msra.mxu0 0.0
      %2053 = vmatprep.subr.mxu0 0.0
      %2054 = vmatpush1.msra.mxu0 0.0
      %2055 = vmatprep.subr.mxu0 0.0
      %2056 = vmatpush1.msra.mxu0 0.0
      %2057 = vmatprep.mubr.f32.mxu0 0.0
      %2058 = vmatmul.mubr.f32.gmra.mrb[0].mxu0 %v1945
      %v2059 = vpop.f32.mrb[0].mxu0
      %v2060 = vadd.f32 0.0, %v2059
      %v2061 = vpop.f32.mrb[0].mxu0
      %2062 = vmatprep.mubr.f32.mxu0 0.0
      %2063 = vmatmul.mubr.f32.gmra.mrb[0].mxu0 %v1946
      %v2064 = vpop.f32.mrb[0].mxu0
      %v2065 = vadd.f32 0.0, %v2064
      %v2066 = vpop.f32.mrb[0].mxu0
      %2067 = vmatprep.mubr.f32.mxu0 0.0
      %2068 = vmatmul.mubr.f32.gmra.mrb[0].mxu0 %v1947
      %v2069 = vpop.f32.mrb[0].mxu0
      %v2070 = vadd.f32 0.0, %v2069
      %v2071 = vpop.f32.mrb[0].mxu0
      %2072 = vmatprep.mubr.f32.mxu0 0.0
      %2073 = vmatmul.mubr.f32.gmra.mrb[0].mxu0 %v1948
      %v2074 = vpop.f32.mrb[0].mxu0
      %v2075 = vadd.f32 0.0, %v2074
      %v2076 = vpop.f32.mrb[0].mxu0
      %2077 = vmatprep.mubr.f32.mxu0 0.0
      %2078 = vmatmul.mubr.f32.gmra.mrb[0].mxu0 %v1949
      %v2079 = vpop.f32.mrb[0].mxu0
      %v2080 = vadd.f32 0.0, %v2079
      %v2081 = vpop.f32.mrb[0].mxu0
      %2082 = vmatprep.mubr.f32.mxu0 0.0
      %2083 = vmatmul.mubr.f32.gmra.mrb[0].mxu0 %v1950
      %v2084 = vpop.f32.mrb[0].mxu0
      %v2085 = vadd.f32 0.0, %v2084
      %v2086 = vpop.f32.mrb[0].mxu0
      %2087 = vmatprep.mubr.f32.mxu0 0.0
      %2088 = vmatmul.mubr.f32.gmra.mrb[0].mxu0 %v1951
      %v2089 = vpop.f32.mrb[0].mxu0
      %v2090 = vadd.f32 0.0, %v2089
      %v2091 = vpop.f32.mrb[0].mxu0
      %2092 = vmatprep.mubr.f32.mxu0 0.0
      %2093 = vmatmul.mubr.f32.gmra.mrb[0].mxu0 %v1952
      %v2094 = vpop.f32.mrb[0].mxu0
      %v2095 = vadd.f32 0.0, %v2094
      %v2096 = vpop.f32.mrb[0].mxu0
      %2097 = vmatprep.mubr.f32.mxu0 0.0
      %2098 = vmatmul.mubr.f32.gmra.mrb[0].mxu0 %v1953
      %v2099 = vpop.f32.mrb[0].mxu0
      %v2100 = vadd.f32 0.0, %v2099
      %v2101 = vpop.f32.mrb[0].mxu0
      %2102 = vmatprep.mubr.f32.mxu0 0.0
      %2103 = vmatmul.mubr.f32.gmra.mrb[0].mxu0 %v1954
      %v2104 = vpop.f32.mrb[0].mxu0
      %v2105 = vadd.f32 0.0, %v2104
      %v2106 = vpop.f32.mrb[0].mxu0
      %2107 = vmatprep.mubr.f32.mxu0 0.0
      %2108 = vmatmul.mubr.f32.gmra.mrb[0].mxu0 %v1955
      %v2109 = vpop.f32.mrb[0].mxu0
      %v2110 = vadd.f32 0.0, %v2109
      %v2111 = vpop.f32.mrb[0].mxu0
      %2112 = vmatprep.mubr.f32.mxu0 0.0
      %2113 = vmatmul.mubr.f32.gmra.mrb[0].mxu0 %v1956
      %v2114 = vpop.f32.mrb[0].mxu0
      %v2115 = vadd.f32 0.0, %v2114
      %v2116 = vpop.f32.mrb[0].mxu0
      %2117 = vmatprep.mubr.f32.mxu0 0.0
      %2118 = vmatmul.mubr.f32.gmra.mrb[0].mxu0 %v1957
      %v2119 = vpop.f32.mrb[0].mxu0
      %v2120 = vadd.f32 0.0, %v2119
      %v2121 = vpop.f32.mrb[0].mxu0
      %2122 = vmatprep.mubr.f32.mxu0 0.0
      %2123 = vmatmul.mubr.f32.gmra.mrb[0].mxu0 %v1958
      %v2124 = vpop.f32.mrb[0].mxu0
      %v2125 = vadd.f32 0.0, %v2124
      %v2126 = vpop.f32.mrb[0].mxu0
      %2127 = vmatprep.mubr.f32.mxu0 0.0
      %2128 = vmatmul.mubr.f32.gmra.mrb[0].mxu0 %v1959
      %v2129 = vpop.f32.mrb[0].mxu0
      %v2130 = vadd.f32 0.0, %v2129
      %v2131 = vpop.f32.mrb[0].mxu0
      %2132 = vmatprep.mubr.f32.mxu0 0.0
      %2133 = vmatmul.mubr.f32.gmra.mrb[0].mxu0 %v1960
      %v2134 = vpop.f32.mrb[0].mxu0
      %v2135 = vadd.f32 0.0, %v2134
      %v2136 = vpop.f32.mrb[0].mxu0
      %2137 = vmatprep.mubr.f32.mxu0 0.0
      %2138 = vmatmul.mubr.f32.gmra.mrb[0].mxu0 %v1961
      %v2139 = vpop.f32.mrb[0].mxu0
      %v2140 = vadd.f32 0.0, %v2139
      %v2141 = vpop.f32.mrb[0].mxu0
      %2142 = vmatprep.mubr.f32.mxu0 0.0
      %2143 = vmatmul.mubr.f32.gmra.mrb[0].mxu0 %v1962
      %v2144 = vpop.f32.mrb[0].mxu0
      %v2145 = vadd.f32 0.0, %v2144
      %v2146 = vpop.f32.mrb[0].mxu0
      %2147 = vmatprep.mubr.f32.mxu0 0.0
      %2148 = vmatmul.mubr.f32.gmra.mrb[0].mxu0 %v1963
      %v2149 = vpop.f32.mrb[0].mxu0
      %v2150 = vadd.f32 0.0, %v2149
      %v2151 = vpop.f32.mrb[0].mxu0
      %2152 = vmatprep.mubr.f32.mxu0 0.0
      %2153 = vmatmul.mubr.f32.gmra.mrb[0].mxu0 %v1964
      %v2154 = vpop.f32.mrb[0].mxu0
      %v2155 = vadd.f32 0.0, %v2154
      %v2156 = vpop.f32.mrb[0].mxu0
      %2157 = vmatprep.mubr.f32.mxu0 0.0
      %2158 = vmatmul.mubr.f32.gmra.mrb[0].mxu0 %v1965
      %v2159 = vpop.f32.mrb[0].mxu0
      %v2160 = vadd.f32 0.0, %v2159
      %v2161 = vpop.f32.mrb[0].mxu0
      %2162 = vmatprep.mubr.f32.mxu0 0.0
      %2163 = vmatmul.mubr.f32.gmra.mrb[0].mxu0 %v1966
      %v2164 = vpop.f32.mrb[0].mxu0
      %v2165 = vadd.f32 0.0, %v2164
      %v2166 = vpop.f32.mrb[0].mxu0
      %2167 = vmatprep.mubr.f32.mxu0 0.0
      %2168 = vmatmul.mubr.f32.gmra.mrb[0].mxu0 %v1967
      %v2169 = vpop.f32.mrb[0].mxu0
      %v2170 = vadd.f32 0.0, %v2169
      %v2171 = vpop.f32.mrb[0].mxu0
      %2172 = vmatprep.mubr.f32.mxu0 0.0
      %2173 = vmatmul.mubr.f32.gmra.mrb[0].mxu0 %v1968
      %v2174 = vpop.f32.mrb[0].mxu0
      %v2175 = vadd.f32 0.0, %v2174
      %v2176 = vpop.f32.mrb[0].mxu0
      %2177 = vmatprep.mubr.f32.mxu0 0.0
      %2178 = vmatmul.mubr.f32.gmra.mrb[0].mxu0 %v1969
      %v2179 = vpop.f32.mrb[0].mxu0
      %v2180 = vadd.f32 0.0, %v2179
      %v2181 = vpop.f32.mrb[0].mxu0
      %2182 = vmatprep.mubr.f32.mxu0 0.0
      %2183 = vmatmul.mubr.f32.gmra.mrb[0].mxu0 %v1970
      %v2184 = vpop.f32.mrb[0].mxu0
      %v2185 = vadd.f32 0.0, %v2184
      %v2186 = vpop.f32.mrb[0].mxu0
      %2187 = vmatprep.mubr.f32.mxu0 0.0
      %2188 = vmatmul.mubr.f32.gmra.mrb[0].mxu0 %v1971
      %v2189 = vpop.f32.mrb[0].mxu0
      %v2190 = vadd.f32 0.0, %v2189
      %v2191 = vpop.f32.mrb[0].mxu0
      %2192 = vmatprep.mubr.f32.mxu0 0.0
      %2193 = vmatmul.mubr.f32.gmra.mrb[0].mxu0 %v1972
      %v2194 = vpop.f32.mrb[0].mxu0
      %v2195 = vadd.f32 0.0, %v2194
      %v2196 = vpop.f32.mrb[0].mxu0
      %2197 = vmatprep.mubr.f32.mxu0 0.0
      %2198 = vmatmul.mubr.f32.gmra.mrb[0].mxu0 %v1973
      %v2199 = vpop.f32.mrb[0].mxu0
      %v2200 = vadd.f32 0.0, %v2199
      %v2201 = vpop.f32.mrb[0].mxu0
      %2202 = vmatprep.mubr.f32.mxu0 0.0
      %2203 = vmatmul.mubr.f32.gmra.mrb[0].mxu0 %v1974
      %v2204 = vpop.f32.mrb[0].mxu0
      %v2205 = vadd.f32 0.0, %v2204
      %v2206 = vpop.f32.mrb[0].mxu0
      %2207 = vmatprep.mubr.f32.mxu0 0.0
      %2208 = vmatmul.mubr.f32.gmra.mrb[0].mxu0 %v1975
      %v2209 = vpop.f32.mrb[0].mxu0
      %v2210 = vadd.f32 0.0, %v2209
      %v2211 = vpop.f32.mrb[0].mxu0
      %2212 = vmatprep.mubr.f32.mxu0 0.0
      %2213 = vmatmul.mubr.f32.gmra.mrb[0].mxu0 %v1976
      %v2214 = vpop.f32.mrb[0].mxu0
      %v2215 = vadd.f32 0.0, %v2214
      %v2216 = vpop.f32.mrb[0].mxu0
      %2217 = vdwg.mxu0
      %v2218 = vadd.f32 %v1913, %v2060
      %v2219 = vadd.f32 %v1914, %v2065
      %v2220 = vadd.f32 %v1915, %v2070
      %v2221 = vadd.f32 %v1916, %v2075
      %v2222 = vadd.f32 %v1917, %v2080
      %v2223 = vadd.f32 %v1918, %v2085
      %v2224 = vadd.f32 %v1919, %v2090
      %v2225 = vadd.f32 %v1920, %v2095
      %v2226 = vadd.f32 %v1921, %v2100
      %v2227 = vadd.f32 %v1922, %v2105
      %v2228 = vadd.f32 %v1923, %v2110
      %v2229 = vadd.f32 %v1924, %v2115
      %v2230 = vadd.f32 %v1925, %v2120
      %v2231 = vadd.f32 %v1926, %v2125
      %v2232 = vadd.f32 %v1927, %v2130
      %v2233 = vadd.f32 %v1928, %v2135
      %v2234 = vadd.f32 %v1929, %v2140
      %v2235 = vadd.f32 %v1930, %v2145
      %v2236 = vadd.f32 %v1931, %v2150
      %v2237 = vadd.f32 %v1932, %v2155
      %v2238 = vadd.f32 %v1933, %v2160
      %v2239 = vadd.f32 %v1934, %v2165
      %v2240 = vadd.f32 %v1935, %v2170
      %v2241 = vadd.f32 %v1936, %v2175
      %v2242 = vadd.f32 %v1937, %v2180
      %v2243 = vadd.f32 %v1938, %v2185
      %v2244 = vadd.f32 %v1939, %v2190
      %v2245 = vadd.f32 %v1940, %v2195
      %v2246 = vadd.f32 %v1941, %v2200
      %v2247 = vadd.f32 %v1942, %v2205
      %v2248 = vadd.f32 %v1943, %v2210
      %v2249 = vadd.f32 %v1944, %v2215
      %v2250 = vld [vmem:[%s718 + $0x2] sm:$0xff]
      %v2251 = vld [vmem:[%s718 + $0xa] sm:$0xff]
      %v2252 = vld [vmem:[%s718 + $0x1a] sm:$0xff]
      %v2253 = vld [vmem:[%s718 + $0x22] sm:$0xff]
      %v2254 = vld [vmem:[%s718 + $0x32] sm:$0xff]
      %v2255 = vld [vmem:[%s718 + $0x3a] sm:$0xff]
      %v2256 = vld [vmem:[%s718 + $0x4a] sm:$0xff]
      %v2257 = vld [vmem:[%s718 + $0x52] sm:$0xff]
      %v2258 = vld [vmem:[%s718 + $0x62] sm:$0xff]
      %v2259 = vld [vmem:[%s718 + $0x6a] sm:$0xff]
      %v2260 = vld [vmem:[%s718 + $0x7a] sm:$0xff]
      %v2261 = vld [vmem:[%s718 + $0x82] sm:$0xff]
      %v2262 = vld [vmem:[%s718 + $0x92] sm:$0xff]
      %v2263 = vld [vmem:[%s718 + $0x9a] sm:$0xff]
      %v2264 = vld [vmem:[%s718 + $0xaa] sm:$0xff]
      %v2265 = vld [vmem:[%s718 + $0xb2] sm:$0xff]
      %v2266 = vld [vmem:[%s718 + $0xc2] sm:$0xff]
      %v2267 = vld [vmem:[%s718 + $0xca] sm:$0xff]
      %v2268 = vld [vmem:[%s718 + $0xda] sm:$0xff]
      %v2269 = vld [vmem:[%s718 + $0xe2] sm:$0xff]
      %v2270 = vld [vmem:[%s718 + $0xf2] sm:$0xff]
      %v2271 = vld [vmem:[%s718 + $0xfa] sm:$0xff]
      %v2272 = vld [vmem:[%s718 + $0x10a] sm:$0xff]
      %v2273 = vld [vmem:[%s718 + $0x112] sm:$0xff]
      %v2274 = vld [vmem:[%s718 + $0x122] sm:$0xff]
      %v2275 = vld [vmem:[%s718 + $0x12a] sm:$0xff]
      %v2276 = vld [vmem:[%s718 + $0x13a] sm:$0xff]
      %v2277 = vld [vmem:[%s718 + $0x142] sm:$0xff]
      %v2278 = vld [vmem:[%s718 + $0x152] sm:$0xff]
      %v2279 = vld [vmem:[%s718 + $0x15a] sm:$0xff]
      %v2280 = vld [vmem:[%s718 + $0x16a] sm:$0xff]
      %v2281 = vld [vmem:[%s718 + $0x172] sm:$0xff]
      %v2282 = vld [vmem:[%s3 + $0x280] sm:$0xff]
      %v2283 = vld [vmem:[%s3 + $0x288] sm:$0xff]
      %v2284 = vld [vmem:[%s3 + $0x290] sm:$0xff]
      %v2285 = vld [vmem:[%s3 + $0x298] sm:$0xff]
      %v2286 = vld [vmem:[%s3 + $0x2a0] sm:$0xff]
      %v2287 = vld [vmem:[%s3 + $0x2a8] sm:$0xff]
      %v2288 = vld [vmem:[%s3 + $0x2b0] sm:$0xff]
      %v2289 = vld [vmem:[%s3 + $0x2b8] sm:$0xff]
      %v2290 = vld [vmem:[%s3 + $0x2c0] sm:$0xff]
      %v2291 = vld [vmem:[%s3 + $0x2c8] sm:$0xff]
      %v2292 = vld [vmem:[%s3 + $0x2d0] sm:$0xff]
      %v2293 = vld [vmem:[%s3 + $0x2d8] sm:$0xff]
      %v2294 = vld [vmem:[%s3 + $0x2e0] sm:$0xff]
      %v2295 = vld [vmem:[%s3 + $0x2e8] sm:$0xff]
      %v2296 = vld [vmem:[%s3 + $0x2f0] sm:$0xff]
      %v2297 = vld [vmem:[%s3 + $0x2f8] sm:$0xff]
      %2298 = vmatprep.subr.mxu0 0.0
      %2299 = vmatpush1.msra.mxu0 %v2282
      %2300 = vmatprep.subr.mxu0 0.0
      %2301 = vmatpush1.msra.mxu0 %v2283
      %2302 = vmatprep.subr.mxu0 0.0
      %2303 = vmatpush1.msra.mxu0 %v2284
      %2304 = vmatprep.subr.mxu0 0.0
      %2305 = vmatpush1.msra.mxu0 %v2285
      %2306 = vmatprep.subr.mxu0 0.0
      %2307 = vmatpush1.msra.mxu0 %v2286
      %2308 = vmatprep.subr.mxu0 0.0
      %2309 = vmatpush1.msra.mxu0 %v2287
      %2310 = vmatprep.subr.mxu0 0.0
      %2311 = vmatpush1.msra.mxu0 %v2288
      %2312 = vmatprep.subr.mxu0 0.0
      %2313 = vmatpush1.msra.mxu0 %v2289
      %2314 = vmatprep.subr.mxu0 0.0
      %2315 = vmatpush1.msra.mxu0 %v2290
      %2316 = vmatprep.subr.mxu0 0.0
      %2317 = vmatpush1.msra.mxu0 %v2291
      %2318 = vmatprep.subr.mxu0 0.0
      %2319 = vmatpush1.msra.mxu0 %v2292
      %2320 = vmatprep.subr.mxu0 0.0
      %2321 = vmatpush1.msra.mxu0 %v2293
      %2322 = vmatprep.subr.mxu0 0.0
      %2323 = vmatpush1.msra.mxu0 %v2294
      %2324 = vmatprep.subr.mxu0 0.0
      %2325 = vmatpush1.msra.mxu0 %v2295
      %2326 = vmatprep.subr.mxu0 0.0
      %2327 = vmatpush1.msra.mxu0 %v2296
      %2328 = vmatprep.subr.mxu0 0.0
      %2329 = vmatpush1.msra.mxu0 %v2297
      %2330 = vmatprep.subr.mxu0 0.0
      %2331 = vmatpush1.msra.mxu0 0.0
      %2332 = vmatprep.subr.mxu0 0.0
      %2333 = vmatpush1.msra.mxu0 0.0
      %2334 = vmatprep.subr.mxu0 0.0
      %2335 = vmatpush1.msra.mxu0 0.0
      %2336 = vmatprep.subr.mxu0 0.0
      %2337 = vmatpush1.msra.mxu0 0.0
      %2338 = vmatprep.subr.mxu0 0.0
      %2339 = vmatpush1.msra.mxu0 0.0
      %2340 = vmatprep.subr.mxu0 0.0
      %2341 = vmatpush1.msra.mxu0 0.0
      %2342 = vmatprep.subr.mxu0 0.0
      %2343 = vmatpush1.msra.mxu0 0.0
      %2344 = vmatprep.subr.mxu0 0.0
      %2345 = vmatpush1.msra.mxu0 0.0
      %2346 = vmatprep.subr.mxu0 0.0
      %2347 = vmatpush1.msra.mxu0 0.0
      %2348 = vmatprep.subr.mxu0 0.0
      %2349 = vmatpush1.msra.mxu0 0.0
      %2350 = vmatprep.subr.mxu0 0.0
      %2351 = vmatpush1.msra.mxu0 0.0
      %2352 = vmatprep.subr.mxu0 0.0
      %2353 = vmatpush1.msra.mxu0 0.0
      %2354 = vmatprep.subr.mxu0 0.0
      %2355 = vmatpush1.msra.mxu0 0.0
      %2356 = vmatprep.subr.mxu0 0.0
      %2357 = vmatpush1.msra.mxu0 0.0
      %2358 = vmatprep.subr.mxu0 0.0
      %2359 = vmatpush1.msra.mxu0 0.0
      %2360 = vmatprep.subr.mxu0 0.0
      %2361 = vmatpush1.msra.mxu0 0.0
      %2362 = vmatprep.mubr.f32.mxu0 0.0
      %2363 = vmatmul.mubr.f32.gmra.mrb[0].mxu0 %v2250
      %v2364 = vpop.f32.mrb[0].mxu0
      %v2365 = vadd.f32 0.0, %v2364
      %v2366 = vpop.f32.mrb[0].mxu0
      %2367 = vmatprep.mubr.f32.mxu0 0.0
      %2368 = vmatmul.mubr.f32.gmra.mrb[0].mxu0 %v2251
      %v2369 = vpop.f32.mrb[0].mxu0
      %v2370 = vadd.f32 0.0, %v2369
      %v2371 = vpop.f32.mrb[0].mxu0
      %2372 = vmatprep.mubr.f32.mxu0 0.0
      %2373 = vmatmul.mubr.f32.gmra.mrb[0].mxu0 %v2252
      %v2374 = vpop.f32.mrb[0].mxu0
      %v2375 = vadd.f32 0.0, %v2374
      %v2376 = vpop.f32.mrb[0].mxu0
      %2377 = vmatprep.mubr.f32.mxu0 0.0
      %2378 = vmatmul.mubr.f32.gmra.mrb[0].mxu0 %v2253
      %v2379 = vpop.f32.mrb[0].mxu0
      %v2380 = vadd.f32 0.0, %v2379
      %v2381 = vpop.f32.mrb[0].mxu0
      %2382 = vmatprep.mubr.f32.mxu0 0.0
      %2383 = vmatmul.mubr.f32.gmra.mrb[0].mxu0 %v2254
      %v2384 = vpop.f32.mrb[0].mxu0
      %v2385 = vadd.f32 0.0, %v2384
      %v2386 = vpop.f32.mrb[0].mxu0
      %2387 = vmatprep.mubr.f32.mxu0 0.0
      %2388 = vmatmul.mubr.f32.gmra.mrb[0].mxu0 %v2255
      %v2389 = vpop.f32.mrb[0].mxu0
      %v2390 = vadd.f32 0.0, %v2389
      %v2391 = vpop.f32.mrb[0].mxu0
      %2392 = vmatprep.mubr.f32.mxu0 0.0
      %2393 = vmatmul.mubr.f32.gmra.mrb[0].mxu0 %v2256
      %v2394 = vpop.f32.mrb[0].mxu0
      %v2395 = vadd.f32 0.0, %v2394
      %v2396 = vpop.f32.mrb[0].mxu0
      %2397 = vmatprep.mubr.f32.mxu0 0.0
      %2398 = vmatmul.mubr.f32.gmra.mrb[0].mxu0 %v2257
      %v2399 = vpop.f32.mrb[0].mxu0
      %v2400 = vadd.f32 0.0, %v2399
      %v2401 = vpop.f32.mrb[0].mxu0
      %2402 = vmatprep.mubr.f32.mxu0 0.0
      %2403 = vmatmul.mubr.f32.gmra.mrb[0].mxu0 %v2258
      %v2404 = vpop.f32.mrb[0].mxu0
      %v2405 = vadd.f32 0.0, %v2404
      %v2406 = vpop.f32.mrb[0].mxu0
      %2407 = vmatprep.mubr.f32.mxu0 0.0
      %2408 = vmatmul.mubr.f32.gmra.mrb[0].mxu0 %v2259
      %v2409 = vpop.f32.mrb[0].mxu0
      %v2410 = vadd.f32 0.0, %v2409
      %v2411 = vpop.f32.mrb[0].mxu0
      %2412 = vmatprep.mubr.f32.mxu0 0.0
      %2413 = vmatmul.mubr.f32.gmra.mrb[0].mxu0 %v2260
      %v2414 = vpop.f32.mrb[0].mxu0
      %v2415 = vadd.f32 0.0, %v2414
      %v2416 = vpop.f32.mrb[0].mxu0
      %2417 = vmatprep.mubr.f32.mxu0 0.0
      %2418 = vmatmul.mubr.f32.gmra.mrb[0].mxu0 %v2261
      %v2419 = vpop.f32.mrb[0].mxu0
      %v2420 = vadd.f32 0.0, %v2419
      %v2421 = vpop.f32.mrb[0].mxu0
      %2422 = vmatprep.mubr.f32.mxu0 0.0
      %2423 = vmatmul.mubr.f32.gmra.mrb[0].mxu0 %v2262
      %v2424 = vpop.f32.mrb[0].mxu0
      %v2425 = vadd.f32 0.0, %v2424
      %v2426 = vpop.f32.mrb[0].mxu0
      %2427 = vmatprep.mubr.f32.mxu0 0.0
      %2428 = vmatmul.mubr.f32.gmra.mrb[0].mxu0 %v2263
      %v2429 = vpop.f32.mrb[0].mxu0
      %v2430 = vadd.f32 0.0, %v2429
      %v2431 = vpop.f32.mrb[0].mxu0
      %2432 = vmatprep.mubr.f32.mxu0 0.0
      %2433 = vmatmul.mubr.f32.gmra.mrb[0].mxu0 %v2264
      %v2434 = vpop.f32.mrb[0].mxu0
      %v2435 = vadd.f32 0.0, %v2434
      %v2436 = vpop.f32.mrb[0].mxu0
      %2437 = vmatprep.mubr.f32.mxu0 0.0
      %2438 = vmatmul.mubr.f32.gmra.mrb[0].mxu0 %v2265
      %v2439 = vpop.f32.mrb[0].mxu0
      %v2440 = vadd.f32 0.0, %v2439
      %v2441 = vpop.f32.mrb[0].mxu0
      %2442 = vmatprep.mubr.f32.mxu0 0.0
      %2443 = vmatmul.mubr.f32.gmra.mrb[0].mxu0 %v2266
      %v2444 = vpop.f32.mrb[0].mxu0
      %v2445 = vadd.f32 0.0, %v2444
      %v2446 = vpop.f32.mrb[0].mxu0
      %2447 = vmatprep.mubr.f32.mxu0 0.0
      %2448 = vmatmul.mubr.f32.gmra.mrb[0].mxu0 %v2267
      %v2449 = vpop.f32.mrb[0].mxu0
      %v2450 = vadd.f32 0.0, %v2449
      %v2451 = vpop.f32.mrb[0].mxu0
      %2452 = vmatprep.mubr.f32.mxu0 0.0
      %2453 = vmatmul.mubr.f32.gmra.mrb[0].mxu0 %v2268
      %v2454 = vpop.f32.mrb[0].mxu0
      %v2455 = vadd.f32 0.0, %v2454
      %v2456 = vpop.f32.mrb[0].mxu0
      %2457 = vmatprep.mubr.f32.mxu0 0.0
      %2458 = vmatmul.mubr.f32.gmra.mrb[0].mxu0 %v2269
      %v2459 = vpop.f32.mrb[0].mxu0
      %v2460 = vadd.f32 0.0, %v2459
      %v2461 = vpop.f32.mrb[0].mxu0
      %2462 = vmatprep.mubr.f32.mxu0 0.0
      %2463 = vmatmul.mubr.f32.gmra.mrb[0].mxu0 %v2270
      %v2464 = vpop.f32.mrb[0].mxu0
      %v2465 = vadd.f32 0.0, %v2464
      %v2466 = vpop.f32.mrb[0].mxu0
      %2467 = vmatprep.mubr.f32.mxu0 0.0
      %2468 = vmatmul.mubr.f32.gmra.mrb[0].mxu0 %v2271
      %v2469 = vpop.f32.mrb[0].mxu0
      %v2470 = vadd.f32 0.0, %v2469
      %v2471 = vpop.f32.mrb[0].mxu0
      %2472 = vmatprep.mubr.f32.mxu0 0.0
      %2473 = vmatmul.mubr.f32.gmra.mrb[0].mxu0 %v2272
      %v2474 = vpop.f32.mrb[0].mxu0
      %v2475 = vadd.f32 0.0, %v2474
      %v2476 = vpop.f32.mrb[0].mxu0
      %2477 = vmatprep.mubr.f32.mxu0 0.0
      %2478 = vmatmul.mubr.f32.gmra.mrb[0].mxu0 %v2273
      %v2479 = vpop.f32.mrb[0].mxu0
      %v2480 = vadd.f32 0.0, %v2479
      %v2481 = vpop.f32.mrb[0].mxu0
      %2482 = vmatprep.mubr.f32.mxu0 0.0
      %2483 = vmatmul.mubr.f32.gmra.mrb[0].mxu0 %v2274
      %v2484 = vpop.f32.mrb[0].mxu0
      %v2485 = vadd.f32 0.0, %v2484
      %v2486 = vpop.f32.mrb[0].mxu0
      %2487 = vmatprep.mubr.f32.mxu0 0.0
      %2488 = vmatmul.mubr.f32.gmra.mrb[0].mxu0 %v2275
      %v2489 = vpop.f32.mrb[0].mxu0
      %v2490 = vadd.f32 0.0, %v2489
      %v2491 = vpop.f32.mrb[0].mxu0
      %2492 = vmatprep.mubr.f32.mxu0 0.0
      %2493 = vmatmul.mubr.f32.gmra.mrb[0].mxu0 %v2276
      %v2494 = vpop.f32.mrb[0].mxu0
      %v2495 = vadd.f32 0.0, %v2494
      %v2496 = vpop.f32.mrb[0].mxu0
      %2497 = vmatprep.mubr.f32.mxu0 0.0
      %2498 = vmatmul.mubr.f32.gmra.mrb[0].mxu0 %v2277
      %v2499 = vpop.f32.mrb[0].mxu0
      %v2500 = vadd.f32 0.0, %v2499
      %v2501 = vpop.f32.mrb[0].mxu0
      %2502 = vmatprep.mubr.f32.mxu0 0.0
      %2503 = vmatmul.mubr.f32.gmra.mrb[0].mxu0 %v2278
      %v2504 = vpop.f32.mrb[0].mxu0
      %v2505 = vadd.f32 0.0, %v2504
      %v2506 = vpop.f32.mrb[0].mxu0
      %2507 = vmatprep.mubr.f32.mxu0 0.0
      %2508 = vmatmul.mubr.f32.gmra.mrb[0].mxu0 %v2279
      %v2509 = vpop.f32.mrb[0].mxu0
      %v2510 = vadd.f32 0.0, %v2509
      %v2511 = vpop.f32.mrb[0].mxu0
      %2512 = vmatprep.mubr.f32.mxu0 0.0
      %2513 = vmatmul.mubr.f32.gmra.mrb[0].mxu0 %v2280
      %v2514 = vpop.f32.mrb[0].mxu0
      %v2515 = vadd.f32 0.0, %v2514
      %v2516 = vpop.f32.mrb[0].mxu0
      %2517 = vmatprep.mubr.f32.mxu0 0.0
      %2518 = vmatmul.mubr.f32.gmra.mrb[0].mxu0 %v2281
      %v2519 = vpop.f32.mrb[0].mxu0
      %v2520 = vadd.f32 0.0, %v2519
      %v2521 = vpop.f32.mrb[0].mxu0
      %2522 = vdwg.mxu0
      %v2523 = vadd.f32 %v2218, %v2365
      %v2524 = vadd.f32 %v2219, %v2370
      %v2525 = vadd.f32 %v2220, %v2375
      %v2526 = vadd.f32 %v2221, %v2380
      %v2527 = vadd.f32 %v2222, %v2385
      %v2528 = vadd.f32 %v2223, %v2390
      %v2529 = vadd.f32 %v2224, %v2395
      %v2530 = vadd.f32 %v2225, %v2400
      %v2531 = vadd.f32 %v2226, %v2405
      %v2532 = vadd.f32 %v2227, %v2410
      %v2533 = vadd.f32 %v2228, %v2415
      %v2534 = vadd.f32 %v2229, %v2420
      %v2535 = vadd.f32 %v2230, %v2425
      %v2536 = vadd.f32 %v2231, %v2430
      %v2537 = vadd.f32 %v2232, %v2435
      %v2538 = vadd.f32 %v2233, %v2440
      %v2539 = vadd.f32 %v2234, %v2445
      %v2540 = vadd.f32 %v2235, %v2450
      %v2541 = vadd.f32 %v2236, %v2455
      %v2542 = vadd.f32 %v2237, %v2460
      %v2543 = vadd.f32 %v2238, %v2465
      %v2544 = vadd.f32 %v2239, %v2470
      %v2545 = vadd.f32 %v2240, %v2475
      %v2546 = vadd.f32 %v2241, %v2480
      %v2547 = vadd.f32 %v2242, %v2485
      %v2548 = vadd.f32 %v2243, %v2490
      %v2549 = vadd.f32 %v2244, %v2495
      %v2550 = vadd.f32 %v2245, %v2500
      %v2551 = vadd.f32 %v2246, %v2505
      %v2552 = vadd.f32 %v2247, %v2510
      %v2553 = vadd.f32 %v2248, %v2515
      %v2554 = vadd.f32 %v2249, %v2520
      %s2555 = scalar_lea.vmem [#allocation2], 48
      %v2556 = vld [vmem:[%s2555] sm:$0xff]
      %v2557 = vld [vmem:[%s2555 + $0x8] sm:$0xff]
      %v2558 = vld [vmem:[%s2555 + $0x18] sm:$0xff]
      %v2559 = vld [vmem:[%s2555 + $0x20] sm:$0xff]
      %v2560 = vld [vmem:[%s2555 + $0x30] sm:$0xff]
      %v2561 = vld [vmem:[%s2555 + $0x38] sm:$0xff]
      %v2562 = vld [vmem:[%s2555 + $0x48] sm:$0xff]
      %v2563 = vld [vmem:[%s2555 + $0x50] sm:$0xff]
      %v2564 = vld [vmem:[%s2555 + $0x60] sm:$0xff]
      %v2565 = vld [vmem:[%s2555 + $0x68] sm:$0xff]
      %v2566 = vld [vmem:[%s2555 + $0x78] sm:$0xff]
      %v2567 = vld [vmem:[%s2555 + $0x80] sm:$0xff]
      %v2568 = vld [vmem:[%s2555 + $0x90] sm:$0xff]
      %v2569 = vld [vmem:[%s2555 + $0x98] sm:$0xff]
      %v2570 = vld [vmem:[%s2555 + $0xa8] sm:$0xff]
      %v2571 = vld [vmem:[%s2555 + $0xb0] sm:$0xff]
      %v2572 = vld [vmem:[%s2555 + $0xc0] sm:$0xff]
      %v2573 = vld [vmem:[%s2555 + $0xc8] sm:$0xff]
      %v2574 = vld [vmem:[%s2555 + $0xd8] sm:$0xff]
      %v2575 = vld [vmem:[%s2555 + $0xe0] sm:$0xff]
      %v2576 = vld [vmem:[%s2555 + $0xf0] sm:$0xff]
      %v2577 = vld [vmem:[%s2555 + $0xf8] sm:$0xff]
      %v2578 = vld [vmem:[%s2555 + $0x108] sm:$0xff]
      %v2579 = vld [vmem:[%s2555 + $0x110] sm:$0xff]
      %v2580 = vld [vmem:[%s2555 + $0x120] sm:$0xff]
      %v2581 = vld [vmem:[%s2555 + $0x128] sm:$0xff]
      %v2582 = vld [vmem:[%s2555 + $0x138] sm:$0xff]
      %v2583 = vld [vmem:[%s2555 + $0x140] sm:$0xff]
      %v2584 = vld [vmem:[%s2555 + $0x150] sm:$0xff]
      %v2585 = vld [vmem:[%s2555 + $0x158] sm:$0xff]
      %v2586 = vld [vmem:[%s2555 + $0x168] sm:$0xff]
      %v2587 = vld [vmem:[%s2555 + $0x170] sm:$0xff]
      %v2588 = vld [vmem:[%s3 + $0x300] sm:$0xff]
      %v2589 = vld [vmem:[%s3 + $0x308] sm:$0xff]
      %v2590 = vld [vmem:[%s3 + $0x310] sm:$0xff]
      %v2591 = vld [vmem:[%s3 + $0x318] sm:$0xff]
      %v2592 = vld [vmem:[%s3 + $0x320] sm:$0xff]
      %v2593 = vld [vmem:[%s3 + $0x328] sm:$0xff]
      %v2594 = vld [vmem:[%s3 + $0x330] sm:$0xff]
      %v2595 = vld [vmem:[%s3 + $0x338] sm:$0xff]
      %v2596 = vld [vmem:[%s3 + $0x340] sm:$0xff]
      %v2597 = vld [vmem:[%s3 + $0x348] sm:$0xff]
      %v2598 = vld [vmem:[%s3 + $0x350] sm:$0xff]
      %v2599 = vld [vmem:[%s3 + $0x358] sm:$0xff]
      %v2600 = vld [vmem:[%s3 + $0x360] sm:$0xff]
      %v2601 = vld [vmem:[%s3 + $0x368] sm:$0xff]
      %v2602 = vld [vmem:[%s3 + $0x370] sm:$0xff]
      %v2603 = vld [vmem:[%s3 + $0x378] sm:$0xff]
      %2604 = vmatprep.subr.mxu0 0.0
      %2605 = vmatpush1.msra.mxu0 %v2588
      %2606 = vmatprep.subr.mxu0 0.0
      %2607 = vmatpush1.msra.mxu0 %v2589
      %2608 = vmatprep.subr.mxu0 0.0
      %2609 = vmatpush1.msra.mxu0 %v2590
      %2610 = vmatprep.subr.mxu0 0.0
      %2611 = vmatpush1.msra.mxu0 %v2591
      %2612 = vmatprep.subr.mxu0 0.0
      %2613 = vmatpush1.msra.mxu0 %v2592
      %2614 = vmatprep.subr.mxu0 0.0
      %2615 = vmatpush1.msra.mxu0 %v2593
      %2616 = vmatprep.subr.mxu0 0.0
      %2617 = vmatpush1.msra.mxu0 %v2594
      %2618 = vmatprep.subr.mxu0 0.0
      %2619 = vmatpush1.msra.mxu0 %v2595
      %2620 = vmatprep.subr.mxu0 0.0
      %2621 = vmatpush1.msra.mxu0 %v2596
      %2622 = vmatprep.subr.mxu0 0.0
      %2623 = vmatpush1.msra.mxu0 %v2597
      %2624 = vmatprep.subr.mxu0 0.0
      %2625 = vmatpush1.msra.mxu0 %v2598
      %2626 = vmatprep.subr.mxu0 0.0
      %2627 = vmatpush1.msra.mxu0 %v2599
      %2628 = vmatprep.subr.mxu0 0.0
      %2629 = vmatpush1.msra.mxu0 %v2600
      %2630 = vmatprep.subr.mxu0 0.0
      %2631 = vmatpush1.msra.mxu0 %v2601
      %2632 = vmatprep.subr.mxu0 0.0
      %2633 = vmatpush1.msra.mxu0 %v2602
      %2634 = vmatprep.subr.mxu0 0.0
      %2635 = vmatpush1.msra.mxu0 %v2603
      %2636 = vmatprep.subr.mxu0 0.0
      %2637 = vmatpush1.msra.mxu0 0.0
      %2638 = vmatprep.subr.mxu0 0.0
      %2639 = vmatpush1.msra.mxu0 0.0
      %2640 = vmatprep.subr.mxu0 0.0
      %2641 = vmatpush1.msra.mxu0 0.0
      %2642 = vmatprep.subr.mxu0 0.0
      %2643 = vmatpush1.msra.mxu0 0.0
      %2644 = vmatprep.subr.mxu0 0.0
      %2645 = vmatpush1.msra.mxu0 0.0
      %2646 = vmatprep.subr.mxu0 0.0
      %2647 = vmatpush1.msra.mxu0 0.0
      %2648 = vmatprep.subr.mxu0 0.0
      %2649 = vmatpush1.msra.mxu0 0.0
      %2650 = vmatprep.subr.mxu0 0.0
      %2651 = vmatpush1.msra.mxu0 0.0
      %2652 = vmatprep.subr.mxu0 0.0
      %2653 = vmatpush1.msra.mxu0 0.0
      %2654 = vmatprep.subr.mxu0 0.0
      %2655 = vmatpush1.msra.mxu0 0.0
      %2656 = vmatprep.subr.mxu0 0.0
      %2657 = vmatpush1.msra.mxu0 0.0
      %2658 = vmatprep.subr.mxu0 0.0
      %2659 = vmatpush1.msra.mxu0 0.0
      %2660 = vmatprep.subr.mxu0 0.0
      %2661 = vmatpush1.msra.mxu0 0.0
      %2662 = vmatprep.subr.mxu0 0.0
      %2663 = vmatpush1.msra.mxu0 0.0
      %2664 = vmatprep.subr.mxu0 0.0
      %2665 = vmatpush1.msra.mxu0 0.0
      %2666 = vmatprep.subr.mxu0 0.0
      %2667 = vmatpush1.msra.mxu0 0.0
      %2668 = vmatprep.mubr.f32.mxu0 0.0
      %2669 = vmatmul.mubr.f32.gmra.mrb[0].mxu0 %v2556
      %v2670 = vpop.f32.mrb[0].mxu0
      %v2671 = vadd.f32 0.0, %v2670
      %v2672 = vpop.f32.mrb[0].mxu0
      %2673 = vmatprep.mubr.f32.mxu0 0.0
      %2674 = vmatmul.mubr.f32.gmra.mrb[0].mxu0 %v2557
      %v2675 = vpop.f32.mrb[0].mxu0
      %v2676 = vadd.f32 0.0, %v2675
      %v2677 = vpop.f32.mrb[0].mxu0
      %2678 = vmatprep.mubr.f32.mxu0 0.0
      %2679 = vmatmul.mubr.f32.gmra.mrb[0].mxu0 %v2558
      %v2680 = vpop.f32.mrb[0].mxu0
      %v2681 = vadd.f32 0.0, %v2680
      %v2682 = vpop.f32.mrb[0].mxu0
      %2683 = vmatprep.mubr.f32.mxu0 0.0
      %2684 = vmatmul.mubr.f32.gmra.mrb[0].mxu0 %v2559
      %v2685 = vpop.f32.mrb[0].mxu0
      %v2686 = vadd.f32 0.0, %v2685
      %v2687 = vpop.f32.mrb[0].mxu0
      %2688 = vmatprep.mubr.f32.mxu0 0.0
      %2689 = vmatmul.mubr.f32.gmra.mrb[0].mxu0 %v2560
      %v2690 = vpop.f32.mrb[0].mxu0
      %v2691 = vadd.f32 0.0, %v2690
      %v2692 = vpop.f32.mrb[0].mxu0
      %2693 = vmatprep.mubr.f32.mxu0 0.0
      %2694 = vmatmul.mubr.f32.gmra.mrb[0].mxu0 %v2561
      %v2695 = vpop.f32.mrb[0].mxu0
      %v2696 = vadd.f32 0.0, %v2695
      %v2697 = vpop.f32.mrb[0].mxu0
      %2698 = vmatprep.mubr.f32.mxu0 0.0
      %2699 = vmatmul.mubr.f32.gmra.mrb[0].mxu0 %v2562
      %v2700 = vpop.f32.mrb[0].mxu0
      %v2701 = vadd.f32 0.0, %v2700
      %v2702 = vpop.f32.mrb[0].mxu0
      %2703 = vmatprep.mubr.f32.mxu0 0.0
      %2704 = vmatmul.mubr.f32.gmra.mrb[0].mxu0 %v2563
      %v2705 = vpop.f32.mrb[0].mxu0
      %v2706 = vadd.f32 0.0, %v2705
      %v2707 = vpop.f32.mrb[0].mxu0
      %2708 = vmatprep.mubr.f32.mxu0 0.0
      %2709 = vmatmul.mubr.f32.gmra.mrb[0].mxu0 %v2564
      %v2710 = vpop.f32.mrb[0].mxu0
      %v2711 = vadd.f32 0.0, %v2710
      %v2712 = vpop.f32.mrb[0].mxu0
      %2713 = vmatprep.mubr.f32.mxu0 0.0
      %2714 = vmatmul.mubr.f32.gmra.mrb[0].mxu0 %v2565
      %v2715 = vpop.f32.mrb[0].mxu0
      %v2716 = vadd.f32 0.0, %v2715
      %v2717 = vpop.f32.mrb[0].mxu0
      %2718 = vmatprep.mubr.f32.mxu0 0.0
      %2719 = vmatmul.mubr.f32.gmra.mrb[0].mxu0 %v2566
      %v2720 = vpop.f32.mrb[0].mxu0
      %v2721 = vadd.f32 0.0, %v2720
      %v2722 = vpop.f32.mrb[0].mxu0
      %2723 = vmatprep.mubr.f32.mxu0 0.0
      %2724 = vmatmul.mubr.f32.gmra.mrb[0].mxu0 %v2567
      %v2725 = vpop.f32.mrb[0].mxu0
      %v2726 = vadd.f32 0.0, %v2725
      %v2727 = vpop.f32.mrb[0].mxu0
      %2728 = vmatprep.mubr.f32.mxu0 0.0
      %2729 = vmatmul.mubr.f32.gmra.mrb[0].mxu0 %v2568
      %v2730 = vpop.f32.mrb[0].mxu0
      %v2731 = vadd.f32 0.0, %v2730
      %v2732 = vpop.f32.mrb[0].mxu0
      %2733 = vmatprep.mubr.f32.mxu0 0.0
      %2734 = vmatmul.mubr.f32.gmra.mrb[0].mxu0 %v2569
      %v2735 = vpop.f32.mrb[0].mxu0
      %v2736 = vadd.f32 0.0, %v2735
      %v2737 = vpop.f32.mrb[0].mxu0
      %2738 = vmatprep.mubr.f32.mxu0 0.0
      %2739 = vmatmul.mubr.f32.gmra.mrb[0].mxu0 %v2570
      %v2740 = vpop.f32.mrb[0].mxu0
      %v2741 = vadd.f32 0.0, %v2740
      %v2742 = vpop.f32.mrb[0].mxu0
      %2743 = vmatprep.mubr.f32.mxu0 0.0
      %2744 = vmatmul.mubr.f32.gmra.mrb[0].mxu0 %v2571
      %v2745 = vpop.f32.mrb[0].mxu0
      %v2746 = vadd.f32 0.0, %v2745
      %v2747 = vpop.f32.mrb[0].mxu0
      %2748 = vmatprep.mubr.f32.mxu0 0.0
      %2749 = vmatmul.mubr.f32.gmra.mrb[0].mxu0 %v2572
      %v2750 = vpop.f32.mrb[0].mxu0
      %v2751 = vadd.f32 0.0, %v2750
      %v2752 = vpop.f32.mrb[0].mxu0
      %2753 = vmatprep.mubr.f32.mxu0 0.0
      %2754 = vmatmul.mubr.f32.gmra.mrb[0].mxu0 %v2573
      %v2755 = vpop.f32.mrb[0].mxu0
      %v2756 = vadd.f32 0.0, %v2755
      %v2757 = vpop.f32.mrb[0].mxu0
      %2758 = vmatprep.mubr.f32.mxu0 0.0
      %2759 = vmatmul.mubr.f32.gmra.mrb[0].mxu0 %v2574
      %v2760 = vpop.f32.mrb[0].mxu0
      %v2761 = vadd.f32 0.0, %v2760
      %v2762 = vpop.f32.mrb[0].mxu0
      %2763 = vmatprep.mubr.f32.mxu0 0.0
      %2764 = vmatmul.mubr.f32.gmra.mrb[0].mxu0 %v2575
      %v2765 = vpop.f32.mrb[0].mxu0
      %v2766 = vadd.f32 0.0, %v2765
      %v2767 = vpop.f32.mrb[0].mxu0
      %2768 = vmatprep.mubr.f32.mxu0 0.0
      %2769 = vmatmul.mubr.f32.gmra.mrb[0].mxu0 %v2576
      %v2770 = vpop.f32.mrb[0].mxu0
      %v2771 = vadd.f32 0.0, %v2770
      %v2772 = vpop.f32.mrb[0].mxu0
      %2773 = vmatprep.mubr.f32.mxu0 0.0
      %2774 = vmatmul.mubr.f32.gmra.mrb[0].mxu0 %v2577
      %v2775 = vpop.f32.mrb[0].mxu0
      %v2776 = vadd.f32 0.0, %v2775
      %v2777 = vpop.f32.mrb[0].mxu0
      %2778 = vmatprep.mubr.f32.mxu0 0.0
      %2779 = vmatmul.mubr.f32.gmra.mrb[0].mxu0 %v2578
      %v2780 = vpop.f32.mrb[0].mxu0
      %v2781 = vadd.f32 0.0, %v2780
      %v2782 = vpop.f32.mrb[0].mxu0
      %2783 = vmatprep.mubr.f32.mxu0 0.0
      %2784 = vmatmul.mubr.f32.gmra.mrb[0].mxu0 %v2579
      %v2785 = vpop.f32.mrb[0].mxu0
      %v2786 = vadd.f32 0.0, %v2785
      %v2787 = vpop.f32.mrb[0].mxu0
      %2788 = vmatprep.mubr.f32.mxu0 0.0
      %2789 = vmatmul.mubr.f32.gmra.mrb[0].mxu0 %v2580
      %v2790 = vpop.f32.mrb[0].mxu0
      %v2791 = vadd.f32 0.0, %v2790
      %v2792 = vpop.f32.mrb[0].mxu0
      %2793 = vmatprep.mubr.f32.mxu0 0.0
      %2794 = vmatmul.mubr.f32.gmra.mrb[0].mxu0 %v2581
      %v2795 = vpop.f32.mrb[0].mxu0
      %v2796 = vadd.f32 0.0, %v2795
      %v2797 = vpop.f32.mrb[0].mxu0
      %2798 = vmatprep.mubr.f32.mxu0 0.0
      %2799 = vmatmul.mubr.f32.gmra.mrb[0].mxu0 %v2582
      %v2800 = vpop.f32.mrb[0].mxu0
      %v2801 = vadd.f32 0.0, %v2800
      %v2802 = vpop.f32.mrb[0].mxu0
      %2803 = vmatprep.mubr.f32.mxu0 0.0
      %2804 = vmatmul.mubr.f32.gmra.mrb[0].mxu0 %v2583
      %v2805 = vpop.f32.mrb[0].mxu0
      %v2806 = vadd.f32 0.0, %v2805
      %v2807 = vpop.f32.mrb[0].mxu0
      %2808 = vmatprep.mubr.f32.mxu0 0.0
      %2809 = vmatmul.mubr.f32.gmra.mrb[0].mxu0 %v2584
      %v2810 = vpop.f32.mrb[0].mxu0
      %v2811 = vadd.f32 0.0, %v2810
      %v2812 = vpop.f32.mrb[0].mxu0
      %2813 = vmatprep.mubr.f32.mxu0 0.0
      %2814 = vmatmul.mubr.f32.gmra.mrb[0].mxu0 %v2585
      %v2815 = vpop.f32.mrb[0].mxu0
      %v2816 = vadd.f32 0.0, %v2815
      %v2817 = vpop.f32.mrb[0].mxu0
      %2818 = vmatprep.mubr.f32.mxu0 0.0
      %2819 = vmatmul.mubr.f32.gmra.mrb[0].mxu0 %v2586
      %v2820 = vpop.f32.mrb[0].mxu0
      %v2821 = vadd.f32 0.0, %v2820
      %v2822 = vpop.f32.mrb[0].mxu0
      %2823 = vmatprep.mubr.f32.mxu0 0.0
      %2824 = vmatmul.mubr.f32.gmra.mrb[0].mxu0 %v2587
      %v2825 = vpop.f32.mrb[0].mxu0
      %v2826 = vadd.f32 0.0, %v2825
      %v2827 = vpop.f32.mrb[0].mxu0
      %2828 = vdwg.mxu0
      %v2829 = vadd.f32 %v2523, %v2671
      %v2830 = vadd.f32 %v2524, %v2676
      %v2831 = vadd.f32 %v2525, %v2681
      %v2832 = vadd.f32 %v2526, %v2686
      %v2833 = vadd.f32 %v2527, %v2691
      %v2834 = vadd.f32 %v2528, %v2696
      %v2835 = vadd.f32 %v2529, %v2701
      %v2836 = vadd.f32 %v2530, %v2706
      %v2837 = vadd.f32 %v2531, %v2711
      %v2838 = vadd.f32 %v2532, %v2716
      %v2839 = vadd.f32 %v2533, %v2721
      %v2840 = vadd.f32 %v2534, %v2726
      %v2841 = vadd.f32 %v2535, %v2731
      %v2842 = vadd.f32 %v2536, %v2736
      %v2843 = vadd.f32 %v2537, %v2741
      %v2844 = vadd.f32 %v2538, %v2746
      %v2845 = vadd.f32 %v2539, %v2751
      %v2846 = vadd.f32 %v2540, %v2756
      %v2847 = vadd.f32 %v2541, %v2761
      %v2848 = vadd.f32 %v2542, %v2766
      %v2849 = vadd.f32 %v2543, %v2771
      %v2850 = vadd.f32 %v2544, %v2776
      %v2851 = vadd.f32 %v2545, %v2781
      %v2852 = vadd.f32 %v2546, %v2786
      %v2853 = vadd.f32 %v2547, %v2791
      %v2854 = vadd.f32 %v2548, %v2796
      %v2855 = vadd.f32 %v2549, %v2801
      %v2856 = vadd.f32 %v2550, %v2806
      %v2857 = vadd.f32 %v2551, %v2811
      %v2858 = vadd.f32 %v2552, %v2816
      %v2859 = vadd.f32 %v2553, %v2821
      %v2860 = vadd.f32 %v2554, %v2826
      %v2861 = vld [vmem:[%s2555 + $0x1] sm:$0xff]
      %v2862 = vld [vmem:[%s2555 + $0x9] sm:$0xff]
      %v2863 = vld [vmem:[%s2555 + $0x19] sm:$0xff]
      %v2864 = vld [vmem:[%s2555 + $0x21] sm:$0xff]
      %v2865 = vld [vmem:[%s2555 + $0x31] sm:$0xff]
      %v2866 = vld [vmem:[%s2555 + $0x39] sm:$0xff]
      %v2867 = vld [vmem:[%s2555 + $0x49] sm:$0xff]
      %v2868 = vld [vmem:[%s2555 + $0x51] sm:$0xff]
      %v2869 = vld [vmem:[%s2555 + $0x61] sm:$0xff]
      %v2870 = vld [vmem:[%s2555 + $0x69] sm:$0xff]
      %v2871 = vld [vmem:[%s2555 + $0x79] sm:$0xff]
      %v2872 = vld [vmem:[%s2555 + $0x81] sm:$0xff]
      %v2873 = vld [vmem:[%s2555 + $0x91] sm:$0xff]
      %v2874 = vld [vmem:[%s2555 + $0x99] sm:$0xff]
      %v2875 = vld [vmem:[%s2555 + $0xa9] sm:$0xff]
      %v2876 = vld [vmem:[%s2555 + $0xb1] sm:$0xff]
      %v2877 = vld [vmem:[%s2555 + $0xc1] sm:$0xff]
      %v2878 = vld [vmem:[%s2555 + $0xc9] sm:$0xff]
      %v2879 = vld [vmem:[%s2555 + $0xd9] sm:$0xff]
      %v2880 = vld [vmem:[%s2555 + $0xe1] sm:$0xff]
      %v2881 = vld [vmem:[%s2555 + $0xf1] sm:$0xff]
      %v2882 = vld [vmem:[%s2555 + $0xf9] sm:$0xff]
      %v2883 = vld [vmem:[%s2555 + $0x109] sm:$0xff]
      %v2884 = vld [vmem:[%s2555 + $0x111] sm:$0xff]
      %v2885 = vld [vmem:[%s2555 + $0x121] sm:$0xff]
      %v2886 = vld [vmem:[%s2555 + $0x129] sm:$0xff]
      %v2887 = vld [vmem:[%s2555 + $0x139] sm:$0xff]
      %v2888 = vld [vmem:[%s2555 + $0x141] sm:$0xff]
      %v2889 = vld [vmem:[%s2555 + $0x151] sm:$0xff]
      %v2890 = vld [vmem:[%s2555 + $0x159] sm:$0xff]
      %v2891 = vld [vmem:[%s2555 + $0x169] sm:$0xff]
      %v2892 = vld [vmem:[%s2555 + $0x171] sm:$0xff]
      %v2893 = vld [vmem:[%s3 + $0x380] sm:$0xff]
      %v2894 = vld [vmem:[%s3 + $0x388] sm:$0xff]
      %v2895 = vld [vmem:[%s3 + $0x390] sm:$0xff]
      %v2896 = vld [vmem:[%s3 + $0x398] sm:$0xff]
      %v2897 = vld [vmem:[%s3 + $0x3a0] sm:$0xff]
      %v2898 = vld [vmem:[%s3 + $0x3a8] sm:$0xff]
      %v2899 = vld [vmem:[%s3 + $0x3b0] sm:$0xff]
      %v2900 = vld [vmem:[%s3 + $0x3b8] sm:$0xff]
      %v2901 = vld [vmem:[%s3 + $0x3c0] sm:$0xff]
      %v2902 = vld [vmem:[%s3 + $0x3c8] sm:$0xff]
      %v2903 = vld [vmem:[%s3 + $0x3d0] sm:$0xff]
      %v2904 = vld [vmem:[%s3 + $0x3d8] sm:$0xff]
      %v2905 = vld [vmem:[%s3 + $0x3e0] sm:$0xff]
      %v2906 = vld [vmem:[%s3 + $0x3e8] sm:$0xff]
      %v2907 = vld [vmem:[%s3 + $0x3f0] sm:$0xff]
      %v2908 = vld [vmem:[%s3 + $0x3f8] sm:$0xff]
      %2909 = vmatprep.subr.mxu0 0.0
      %2910 = vmatpush1.msra.mxu0 %v2893
      %2911 = vmatprep.subr.mxu0 0.0
      %2912 = vmatpush1.msra.mxu0 %v2894
      %2913 = vmatprep.subr.mxu0 0.0
      %2914 = vmatpush1.msra.mxu0 %v2895
      %2915 = vmatprep.subr.mxu0 0.0
      %2916 = vmatpush1.msra.mxu0 %v2896
      %2917 = vmatprep.subr.mxu0 0.0
      %2918 = vmatpush1.msra.mxu0 %v2897
      %2919 = vmatprep.subr.mxu0 0.0
      %2920 = vmatpush1.msra.mxu0 %v2898
      %2921 = vmatprep.subr.mxu0 0.0
      %2922 = vmatpush1.msra.mxu0 %v2899
      %2923 = vmatprep.subr.mxu0 0.0
      %2924 = vmatpush1.msra.mxu0 %v2900
      %2925 = vmatprep.subr.mxu0 0.0
      %2926 = vmatpush1.msra.mxu0 %v2901
      %2927 = vmatprep.subr.mxu0 0.0
      %2928 = vmatpush1.msra.mxu0 %v2902
      %2929 = vmatprep.subr.mxu0 0.0
      %2930 = vmatpush1.msra.mxu0 %v2903
      %2931 = vmatprep.subr.mxu0 0.0
      %2932 = vmatpush1.msra.mxu0 %v2904
      %2933 = vmatprep.subr.mxu0 0.0
      %2934 = vmatpush1.msra.mxu0 %v2905
      %2935 = vmatprep.subr.mxu0 0.0
      %2936 = vmatpush1.msra.mxu0 %v2906
      %2937 = vmatprep.subr.mxu0 0.0
      %2938 = vmatpush1.msra.mxu0 %v2907
      %2939 = vmatprep.subr.mxu0 0.0
      %2940 = vmatpush1.msra.mxu0 %v2908
      %2941 = vmatprep.subr.mxu0 0.0
      %2942 = vmatpush1.msra.mxu0 0.0
      %2943 = vmatprep.subr.mxu0 0.0
      %2944 = vmatpush1.msra.mxu0 0.0
      %2945 = vmatprep.subr.mxu0 0.0
      %2946 = vmatpush1.msra.mxu0 0.0
      %2947 = vmatprep.subr.mxu0 0.0
      %2948 = vmatpush1.msra.mxu0 0.0
      %2949 = vmatprep.subr.mxu0 0.0
      %2950 = vmatpush1.msra.mxu0 0.0
      %2951 = vmatprep.subr.mxu0 0.0
      %2952 = vmatpush1.msra.mxu0 0.0
      %2953 = vmatprep.subr.mxu0 0.0
      %2954 = vmatpush1.msra.mxu0 0.0
      %2955 = vmatprep.subr.mxu0 0.0
      %2956 = vmatpush1.msra.mxu0 0.0
      %2957 = vmatprep.subr.mxu0 0.0
      %2958 = vmatpush1.msra.mxu0 0.0
      %2959 = vmatprep.subr.mxu0 0.0
      %2960 = vmatpush1.msra.mxu0 0.0
      %2961 = vmatprep.subr.mxu0 0.0
      %2962 = vmatpush1.msra.mxu0 0.0
      %2963 = vmatprep.subr.mxu0 0.0
      %2964 = vmatpush1.msra.mxu0 0.0
      %2965 = vmatprep.subr.mxu0 0.0
      %2966 = vmatpush1.msra.mxu0 0.0
      %2967 = vmatprep.subr.mxu0 0.0
      %2968 = vmatpush1.msra.mxu0 0.0
      %2969 = vmatprep.subr.mxu0 0.0
      %2970 = vmatpush1.msra.mxu0 0.0
      %2971 = vmatprep.subr.mxu0 0.0
      %2972 = vmatpush1.msra.mxu0 0.0
      %2973 = vmatprep.mubr.f32.mxu0 0.0
      %2974 = vmatmul.mubr.f32.gmra.mrb[0].mxu0 %v2861
      %v2975 = vpop.f32.mrb[0].mxu0
      %v2976 = vadd.f32 0.0, %v2975
      %v2977 = vpop.f32.mrb[0].mxu0
      %2978 = vmatprep.mubr.f32.mxu0 0.0
      %2979 = vmatmul.mubr.f32.gmra.mrb[0].mxu0 %v2862
      %v2980 = vpop.f32.mrb[0].mxu0
      %v2981 = vadd.f32 0.0, %v2980
      %v2982 = vpop.f32.mrb[0].mxu0
      %2983 = vmatprep.mubr.f32.mxu0 0.0
      %2984 = vmatmul.mubr.f32.gmra.mrb[0].mxu0 %v2863
      %v2985 = vpop.f32.mrb[0].mxu0
      %v2986 = vadd.f32 0.0, %v2985
      %v2987 = vpop.f32.mrb[0].mxu0
      %2988 = vmatprep.mubr.f32.mxu0 0.0
      %2989 = vmatmul.mubr.f32.gmra.mrb[0].mxu0 %v2864
      %v2990 = vpop.f32.mrb[0].mxu0
      %v2991 = vadd.f32 0.0, %v2990
      %v2992 = vpop.f32.mrb[0].mxu0
      %2993 = vmatprep.mubr.f32.mxu0 0.0
      %2994 = vmatmul.mubr.f32.gmra.mrb[0].mxu0 %v2865
      %v2995 = vpop.f32.mrb[0].mxu0
      %v2996 = vadd.f32 0.0, %v2995
      %v2997 = vpop.f32.mrb[0].mxu0
      %2998 = vmatprep.mubr.f32.mxu0 0.0
      %2999 = vmatmul.mubr.f32.gmra.mrb[0].mxu0 %v2866
      %v3000 = vpop.f32.mrb[0].mxu0
      %v3001 = vadd.f32 0.0, %v3000
      %v3002 = vpop.f32.mrb[0].mxu0
      %3003 = vmatprep.mubr.f32.mxu0 0.0
      %3004 = vmatmul.mubr.f32.gmra.mrb[0].mxu0 %v2867
      %v3005 = vpop.f32.mrb[0].mxu0
      %v3006 = vadd.f32 0.0, %v3005
      %v3007 = vpop.f32.mrb[0].mxu0
      %3008 = vmatprep.mubr.f32.mxu0 0.0
      %3009 = vmatmul.mubr.f32.gmra.mrb[0].mxu0 %v2868
      %v3010 = vpop.f32.mrb[0].mxu0
      %v3011 = vadd.f32 0.0, %v3010
      %v3012 = vpop.f32.mrb[0].mxu0
      %3013 = vmatprep.mubr.f32.mxu0 0.0
      %3014 = vmatmul.mubr.f32.gmra.mrb[0].mxu0 %v2869
      %v3015 = vpop.f32.mrb[0].mxu0
      %v3016 = vadd.f32 0.0, %v3015
      %v3017 = vpop.f32.mrb[0].mxu0
      %3018 = vmatprep.mubr.f32.mxu0 0.0
      %3019 = vmatmul.mubr.f32.gmra.mrb[0].mxu0 %v2870
      %v3020 = vpop.f32.mrb[0].mxu0
      %v3021 = vadd.f32 0.0, %v3020
      %v3022 = vpop.f32.mrb[0].mxu0
      %3023 = vmatprep.mubr.f32.mxu0 0.0
      %3024 = vmatmul.mubr.f32.gmra.mrb[0].mxu0 %v2871
      %v3025 = vpop.f32.mrb[0].mxu0
      %v3026 = vadd.f32 0.0, %v3025
      %v3027 = vpop.f32.mrb[0].mxu0
      %3028 = vmatprep.mubr.f32.mxu0 0.0
      %3029 = vmatmul.mubr.f32.gmra.mrb[0].mxu0 %v2872
      %v3030 = vpop.f32.mrb[0].mxu0
      %v3031 = vadd.f32 0.0, %v3030
      %v3032 = vpop.f32.mrb[0].mxu0
      %3033 = vmatprep.mubr.f32.mxu0 0.0
      %3034 = vmatmul.mubr.f32.gmra.mrb[0].mxu0 %v2873
      %v3035 = vpop.f32.mrb[0].mxu0
      %v3036 = vadd.f32 0.0, %v3035
      %v3037 = vpop.f32.mrb[0].mxu0
      %3038 = vmatprep.mubr.f32.mxu0 0.0
      %3039 = vmatmul.mubr.f32.gmra.mrb[0].mxu0 %v2874
      %v3040 = vpop.f32.mrb[0].mxu0
      %v3041 = vadd.f32 0.0, %v3040
      %v3042 = vpop.f32.mrb[0].mxu0
      %3043 = vmatprep.mubr.f32.mxu0 0.0
      %3044 = vmatmul.mubr.f32.gmra.mrb[0].mxu0 %v2875
      %v3045 = vpop.f32.mrb[0].mxu0
      %v3046 = vadd.f32 0.0, %v3045
      %v3047 = vpop.f32.mrb[0].mxu0
      %3048 = vmatprep.mubr.f32.mxu0 0.0
      %3049 = vmatmul.mubr.f32.gmra.mrb[0].mxu0 %v2876
      %v3050 = vpop.f32.mrb[0].mxu0
      %v3051 = vadd.f32 0.0, %v3050
      %v3052 = vpop.f32.mrb[0].mxu0
      %3053 = vmatprep.mubr.f32.mxu0 0.0
      %3054 = vmatmul.mubr.f32.gmra.mrb[0].mxu0 %v2877
      %v3055 = vpop.f32.mrb[0].mxu0
      %v3056 = vadd.f32 0.0, %v3055
      %v3057 = vpop.f32.mrb[0].mxu0
      %3058 = vmatprep.mubr.f32.mxu0 0.0
      %3059 = vmatmul.mubr.f32.gmra.mrb[0].mxu0 %v2878
      %v3060 = vpop.f32.mrb[0].mxu0
      %v3061 = vadd.f32 0.0, %v3060
      %v3062 = vpop.f32.mrb[0].mxu0
      %3063 = vmatprep.mubr.f32.mxu0 0.0
      %3064 = vmatmul.mubr.f32.gmra.mrb[0].mxu0 %v2879
      %v3065 = vpop.f32.mrb[0].mxu0
      %v3066 = vadd.f32 0.0, %v3065
      %v3067 = vpop.f32.mrb[0].mxu0
      %3068 = vmatprep.mubr.f32.mxu0 0.0
      %3069 = vmatmul.mubr.f32.gmra.mrb[0].mxu0 %v2880
      %v3070 = vpop.f32.mrb[0].mxu0
      %v3071 = vadd.f32 0.0, %v3070
      %v3072 = vpop.f32.mrb[0].mxu0
      %3073 = vmatprep.mubr.f32.mxu0 0.0
      %3074 = vmatmul.mubr.f32.gmra.mrb[0].mxu0 %v2881
      %v3075 = vpop.f32.mrb[0].mxu0
      %v3076 = vadd.f32 0.0, %v3075
      %v3077 = vpop.f32.mrb[0].mxu0
      %3078 = vmatprep.mubr.f32.mxu0 0.0
      %3079 = vmatmul.mubr.f32.gmra.mrb[0].mxu0 %v2882
      %v3080 = vpop.f32.mrb[0].mxu0
      %v3081 = vadd.f32 0.0, %v3080
      %v3082 = vpop.f32.mrb[0].mxu0
      %3083 = vmatprep.mubr.f32.mxu0 0.0
      %3084 = vmatmul.mubr.f32.gmra.mrb[0].mxu0 %v2883
      %v3085 = vpop.f32.mrb[0].mxu0
      %v3086 = vadd.f32 0.0, %v3085
      %v3087 = vpop.f32.mrb[0].mxu0
      %3088 = vmatprep.mubr.f32.mxu0 0.0
      %3089 = vmatmul.mubr.f32.gmra.mrb[0].mxu0 %v2884
      %v3090 = vpop.f32.mrb[0].mxu0
      %v3091 = vadd.f32 0.0, %v3090
      %v3092 = vpop.f32.mrb[0].mxu0
      %3093 = vmatprep.mubr.f32.mxu0 0.0
      %3094 = vmatmul.mubr.f32.gmra.mrb[0].mxu0 %v2885
      %v3095 = vpop.f32.mrb[0].mxu0
      %v3096 = vadd.f32 0.0, %v3095
      %v3097 = vpop.f32.mrb[0].mxu0
      %3098 = vmatprep.mubr.f32.mxu0 0.0
      %3099 = vmatmul.mubr.f32.gmra.mrb[0].mxu0 %v2886
      %v3100 = vpop.f32.mrb[0].mxu0
      %v3101 = vadd.f32 0.0, %v3100
      %v3102 = vpop.f32.mrb[0].mxu0
      %3103 = vmatprep.mubr.f32.mxu0 0.0
      %3104 = vmatmul.mubr.f32.gmra.mrb[0].mxu0 %v2887
      %v3105 = vpop.f32.mrb[0].mxu0
      %v3106 = vadd.f32 0.0, %v3105
      %v3107 = vpop.f32.mrb[0].mxu0
      %3108 = vmatprep.mubr.f32.mxu0 0.0
      %3109 = vmatmul.mubr.f32.gmra.mrb[0].mxu0 %v2888
      %v3110 = vpop.f32.mrb[0].mxu0
      %v3111 = vadd.f32 0.0, %v3110
      %v3112 = vpop.f32.mrb[0].mxu0
      %3113 = vmatprep.mubr.f32.mxu0 0.0
      %3114 = vmatmul.mubr.f32.gmra.mrb[0].mxu0 %v2889
      %v3115 = vpop.f32.mrb[0].mxu0
      %v3116 = vadd.f32 0.0, %v3115
      %v3117 = vpop.f32.mrb[0].mxu0
      %3118 = vmatprep.mubr.f32.mxu0 0.0
      %3119 = vmatmul.mubr.f32.gmra.mrb[0].mxu0 %v2890
      %v3120 = vpop.f32.mrb[0].mxu0
      %v3121 = vadd.f32 0.0, %v3120
      %v3122 = vpop.f32.mrb[0].mxu0
      %3123 = vmatprep.mubr.f32.mxu0 0.0
      %3124 = vmatmul.mubr.f32.gmra.mrb[0].mxu0 %v2891
      %v3125 = vpop.f32.mrb[0].mxu0
      %v3126 = vadd.f32 0.0, %v3125
      %v3127 = vpop.f32.mrb[0].mxu0
      %3128 = vmatprep.mubr.f32.mxu0 0.0
      %3129 = vmatmul.mubr.f32.gmra.mrb[0].mxu0 %v2892
      %v3130 = vpop.f32.mrb[0].mxu0
      %v3131 = vadd.f32 0.0, %v3130
      %v3132 = vpop.f32.mrb[0].mxu0
      %3133 = vdwg.mxu0
      %v3134 = vadd.f32 %v2829, %v2976
      %v3135 = vadd.f32 %v2830, %v2981
      %v3136 = vadd.f32 %v2831, %v2986
      %v3137 = vadd.f32 %v2832, %v2991
      %v3138 = vadd.f32 %v2833, %v2996
      %v3139 = vadd.f32 %v2834, %v3001
      %v3140 = vadd.f32 %v2835, %v3006
      %v3141 = vadd.f32 %v2836, %v3011
      %v3142 = vadd.f32 %v2837, %v3016
      %v3143 = vadd.f32 %v2838, %v3021
      %v3144 = vadd.f32 %v2839, %v3026
      %v3145 = vadd.f32 %v2840, %v3031
      %v3146 = vadd.f32 %v2841, %v3036
      %v3147 = vadd.f32 %v2842, %v3041
      %v3148 = vadd.f32 %v2843, %v3046
      %v3149 = vadd.f32 %v2844, %v3051
      %v3150 = vadd.f32 %v2845, %v3056
      %v3151 = vadd.f32 %v2846, %v3061
      %v3152 = vadd.f32 %v2847, %v3066
      %v3153 = vadd.f32 %v2848, %v3071
      %v3154 = vadd.f32 %v2849, %v3076
      %v3155 = vadd.f32 %v2850, %v3081
      %v3156 = vadd.f32 %v2851, %v3086
      %v3157 = vadd.f32 %v2852, %v3091
      %v3158 = vadd.f32 %v2853, %v3096
      %v3159 = vadd.f32 %v2854, %v3101
      %v3160 = vadd.f32 %v2855, %v3106
      %v3161 = vadd.f32 %v2856, %v3111
      %v3162 = vadd.f32 %v2857, %v3116
      %v3163 = vadd.f32 %v2858, %v3121
      %v3164 = vadd.f32 %v2859, %v3126
      %v3165 = vadd.f32 %v2860, %v3131
      %v3166 = vld [vmem:[%s2555 + $0x2] sm:$0xff]
      %v3167 = vld [vmem:[%s2555 + $0xa] sm:$0xff]
      %v3168 = vld [vmem:[%s2555 + $0x1a] sm:$0xff]
      %v3169 = vld [vmem:[%s2555 + $0x22] sm:$0xff]
      %v3170 = vld [vmem:[%s2555 + $0x32] sm:$0xff]
      %v3171 = vld [vmem:[%s2555 + $0x3a] sm:$0xff]
      %v3172 = vld [vmem:[%s2555 + $0x4a] sm:$0xff]
      %v3173 = vld [vmem:[%s2555 + $0x52] sm:$0xff]
      %v3174 = vld [vmem:[%s2555 + $0x62] sm:$0xff]
      %v3175 = vld [vmem:[%s2555 + $0x6a] sm:$0xff]
      %v3176 = vld [vmem:[%s2555 + $0x7a] sm:$0xff]
      %v3177 = vld [vmem:[%s2555 + $0x82] sm:$0xff]
      %v3178 = vld [vmem:[%s2555 + $0x92] sm:$0xff]
      %v3179 = vld [vmem:[%s2555 + $0x9a] sm:$0xff]
      %v3180 = vld [vmem:[%s2555 + $0xaa] sm:$0xff]
      %v3181 = vld [vmem:[%s2555 + $0xb2] sm:$0xff]
      %v3182 = vld [vmem:[%s2555 + $0xc2] sm:$0xff]
      %v3183 = vld [vmem:[%s2555 + $0xca] sm:$0xff]
      %v3184 = vld [vmem:[%s2555 + $0xda] sm:$0xff]
      %v3185 = vld [vmem:[%s2555 + $0xe2] sm:$0xff]
      %v3186 = vld [vmem:[%s2555 + $0xf2] sm:$0xff]
      %v3187 = vld [vmem:[%s2555 + $0xfa] sm:$0xff]
      %v3188 = vld [vmem:[%s2555 + $0x10a] sm:$0xff]
      %v3189 = vld [vmem:[%s2555 + $0x112] sm:$0xff]
      %v3190 = vld [vmem:[%s2555 + $0x122] sm:$0xff]
      %v3191 = vld [vmem:[%s2555 + $0x12a] sm:$0xff]
      %v3192 = vld [vmem:[%s2555 + $0x13a] sm:$0xff]
      %v3193 = vld [vmem:[%s2555 + $0x142] sm:$0xff]
      %v3194 = vld [vmem:[%s2555 + $0x152] sm:$0xff]
      %v3195 = vld [vmem:[%s2555 + $0x15a] sm:$0xff]
      %v3196 = vld [vmem:[%s2555 + $0x16a] sm:$0xff]
      %v3197 = vld [vmem:[%s2555 + $0x172] sm:$0xff]
      %v3198 = vld [vmem:[%s3 + $0x400] sm:$0xff]
      %v3199 = vld [vmem:[%s3 + $0x408] sm:$0xff]
      %v3200 = vld [vmem:[%s3 + $0x410] sm:$0xff]
      %v3201 = vld [vmem:[%s3 + $0x418] sm:$0xff]
      %v3202 = vld [vmem:[%s3 + $0x420] sm:$0xff]
      %v3203 = vld [vmem:[%s3 + $0x428] sm:$0xff]
      %v3204 = vld [vmem:[%s3 + $0x430] sm:$0xff]
      %v3205 = vld [vmem:[%s3 + $0x438] sm:$0xff]
      %v3206 = vld [vmem:[%s3 + $0x440] sm:$0xff]
      %v3207 = vld [vmem:[%s3 + $0x448] sm:$0xff]
      %v3208 = vld [vmem:[%s3 + $0x450] sm:$0xff]
      %v3209 = vld [vmem:[%s3 + $0x458] sm:$0xff]
      %v3210 = vld [vmem:[%s3 + $0x460] sm:$0xff]
      %v3211 = vld [vmem:[%s3 + $0x468] sm:$0xff]
      %v3212 = vld [vmem:[%s3 + $0x470] sm:$0xff]
      %v3213 = vld [vmem:[%s3 + $0x478] sm:$0xff]
      %3214 = vmatprep.subr.mxu0 0.0
      %3215 = vmatpush1.msra.mxu0 %v3198
      %3216 = vmatprep.subr.mxu0 0.0
      %3217 = vmatpush1.msra.mxu0 %v3199
      %3218 = vmatprep.subr.mxu0 0.0
      %3219 = vmatpush1.msra.mxu0 %v3200
      %3220 = vmatprep.subr.mxu0 0.0
      %3221 = vmatpush1.msra.mxu0 %v3201
      %3222 = vmatprep.subr.mxu0 0.0
      %3223 = vmatpush1.msra.mxu0 %v3202
      %3224 = vmatprep.subr.mxu0 0.0
      %3225 = vmatpush1.msra.mxu0 %v3203
      %3226 = vmatprep.subr.mxu0 0.0
      %3227 = vmatpush1.msra.mxu0 %v3204
      %3228 = vmatprep.subr.mxu0 0.0
      %3229 = vmatpush1.msra.mxu0 %v3205
      %3230 = vmatprep.subr.mxu0 0.0
      %3231 = vmatpush1.msra.mxu0 %v3206
      %3232 = vmatprep.subr.mxu0 0.0
      %3233 = vmatpush1.msra.mxu0 %v3207
      %3234 = vmatprep.subr.mxu0 0.0
      %3235 = vmatpush1.msra.mxu0 %v3208
      %3236 = vmatprep.subr.mxu0 0.0
      %3237 = vmatpush1.msra.mxu0 %v3209
      %3238 = vmatprep.subr.mxu0 0.0
      %3239 = vmatpush1.msra.mxu0 %v3210
      %3240 = vmatprep.subr.mxu0 0.0
      %3241 = vmatpush1.msra.mxu0 %v3211
      %3242 = vmatprep.subr.mxu0 0.0
      %3243 = vmatpush1.msra.mxu0 %v3212
      %3244 = vmatprep.subr.mxu0 0.0
      %3245 = vmatpush1.msra.mxu0 %v3213
      %3246 = vmatprep.subr.mxu0 0.0
      %3247 = vmatpush1.msra.mxu0 0.0
      %3248 = vmatprep.subr.mxu0 0.0
      %3249 = vmatpush1.msra.mxu0 0.0
      %3250 = vmatprep.subr.mxu0 0.0
      %3251 = vmatpush1.msra.mxu0 0.0
      %3252 = vmatprep.subr.mxu0 0.0
      %3253 = vmatpush1.msra.mxu0 0.0
      %3254 = vmatprep.subr.mxu0 0.0
      %3255 = vmatpush1.msra.mxu0 0.0
      %3256 = vmatprep.subr.mxu0 0.0
      %3257 = vmatpush1.msra.mxu0 0.0
      %3258 = vmatprep.subr.mxu0 0.0
      %3259 = vmatpush1.msra.mxu0 0.0
      %3260 = vmatprep.subr.mxu0 0.0
      %3261 = vmatpush1.msra.mxu0 0.0
      %3262 = vmatprep.subr.mxu0 0.0
      %3263 = vmatpush1.msra.mxu0 0.0
      %3264 = vmatprep.subr.mxu0 0.0
      %3265 = vmatpush1.msra.mxu0 0.0
      %3266 = vmatprep.subr.mxu0 0.0
      %3267 = vmatpush1.msra.mxu0 0.0
      %3268 = vmatprep.subr.mxu0 0.0
      %3269 = vmatpush1.msra.mxu0 0.0
      %3270 = vmatprep.subr.mxu0 0.0
      %3271 = vmatpush1.msra.mxu0 0.0
      %3272 = vmatprep.subr.mxu0 0.0
      %3273 = vmatpush1.msra.mxu0 0.0
      %3274 = vmatprep.subr.mxu0 0.0
      %3275 = vmatpush1.msra.mxu0 0.0
      %3276 = vmatprep.subr.mxu0 0.0
      %3277 = vmatpush1.msra.mxu0 0.0
      %3278 = vmatprep.mubr.f32.mxu0 0.0
      %3279 = vmatmul.mubr.f32.gmra.mrb[0].mxu0 %v3166
      %v3280 = vpop.f32.mrb[0].mxu0
      %v3281 = vadd.f32 0.0, %v3280
      %v3282 = vpop.f32.mrb[0].mxu0
      %3283 = vmatprep.mubr.f32.mxu0 0.0
      %3284 = vmatmul.mubr.f32.gmra.mrb[0].mxu0 %v3167
      %v3285 = vpop.f32.mrb[0].mxu0
      %v3286 = vadd.f32 0.0, %v3285
      %v3287 = vpop.f32.mrb[0].mxu0
      %3288 = vmatprep.mubr.f32.mxu0 0.0
      %3289 = vmatmul.mubr.f32.gmra.mrb[0].mxu0 %v3168
      %v3290 = vpop.f32.mrb[0].mxu0
      %v3291 = vadd.f32 0.0, %v3290
      %v3292 = vpop.f32.mrb[0].mxu0
      %3293 = vmatprep.mubr.f32.mxu0 0.0
      %3294 = vmatmul.mubr.f32.gmra.mrb[0].mxu0 %v3169
      %v3295 = vpop.f32.mrb[0].mxu0
      %v3296 = vadd.f32 0.0, %v3295
      %v3297 = vpop.f32.mrb[0].mxu0
      %3298 = vmatprep.mubr.f32.mxu0 0.0
      %3299 = vmatmul.mubr.f32.gmra.mrb[0].mxu0 %v3170
      %v3300 = vpop.f32.mrb[0].mxu0
      %v3301 = vadd.f32 0.0, %v3300
      %v3302 = vpop.f32.mrb[0].mxu0
      %3303 = vmatprep.mubr.f32.mxu0 0.0
      %3304 = vmatmul.mubr.f32.gmra.mrb[0].mxu0 %v3171
      %v3305 = vpop.f32.mrb[0].mxu0
      %v3306 = vadd.f32 0.0, %v3305
      %v3307 = vpop.f32.mrb[0].mxu0
      %3308 = vmatprep.mubr.f32.mxu0 0.0
      %3309 = vmatmul.mubr.f32.gmra.mrb[0].mxu0 %v3172
      %v3310 = vpop.f32.mrb[0].mxu0
      %v3311 = vadd.f32 0.0, %v3310
      %v3312 = vpop.f32.mrb[0].mxu0
      %3313 = vmatprep.mubr.f32.mxu0 0.0
      %3314 = vmatmul.mubr.f32.gmra.mrb[0].mxu0 %v3173
      %v3315 = vpop.f32.mrb[0].mxu0
      %v3316 = vadd.f32 0.0, %v3315
      %v3317 = vpop.f32.mrb[0].mxu0
      %3318 = vmatprep.mubr.f32.mxu0 0.0
      %3319 = vmatmul.mubr.f32.gmra.mrb[0].mxu0 %v3174
      %v3320 = vpop.f32.mrb[0].mxu0
      %v3321 = vadd.f32 0.0, %v3320
      %v3322 = vpop.f32.mrb[0].mxu0
      %3323 = vmatprep.mubr.f32.mxu0 0.0
      %3324 = vmatmul.mubr.f32.gmra.mrb[0].mxu0 %v3175
      %v3325 = vpop.f32.mrb[0].mxu0
      %v3326 = vadd.f32 0.0, %v3325
      %v3327 = vpop.f32.mrb[0].mxu0
      %3328 = vmatprep.mubr.f32.mxu0 0.0
      %3329 = vmatmul.mubr.f32.gmra.mrb[0].mxu0 %v3176
      %v3330 = vpop.f32.mrb[0].mxu0
      %v3331 = vadd.f32 0.0, %v3330
      %v3332 = vpop.f32.mrb[0].mxu0
      %3333 = vmatprep.mubr.f32.mxu0 0.0
      %3334 = vmatmul.mubr.f32.gmra.mrb[0].mxu0 %v3177
      %v3335 = vpop.f32.mrb[0].mxu0
      %v3336 = vadd.f32 0.0, %v3335
      %v3337 = vpop.f32.mrb[0].mxu0
      %3338 = vmatprep.mubr.f32.mxu0 0.0
      %3339 = vmatmul.mubr.f32.gmra.mrb[0].mxu0 %v3178
      %v3340 = vpop.f32.mrb[0].mxu0
      %v3341 = vadd.f32 0.0, %v3340
      %v3342 = vpop.f32.mrb[0].mxu0
      %3343 = vmatprep.mubr.f32.mxu0 0.0
      %3344 = vmatmul.mubr.f32.gmra.mrb[0].mxu0 %v3179
      %v3345 = vpop.f32.mrb[0].mxu0
      %v3346 = vadd.f32 0.0, %v3345
      %v3347 = vpop.f32.mrb[0].mxu0
      %3348 = vmatprep.mubr.f32.mxu0 0.0
      %3349 = vmatmul.mubr.f32.gmra.mrb[0].mxu0 %v3180
      %v3350 = vpop.f32.mrb[0].mxu0
      %v3351 = vadd.f32 0.0, %v3350
      %v3352 = vpop.f32.mrb[0].mxu0
      %3353 = vmatprep.mubr.f32.mxu0 0.0
      %3354 = vmatmul.mubr.f32.gmra.mrb[0].mxu0 %v3181
      %v3355 = vpop.f32.mrb[0].mxu0
      %v3356 = vadd.f32 0.0, %v3355
      %v3357 = vpop.f32.mrb[0].mxu0
      %3358 = vmatprep.mubr.f32.mxu0 0.0
      %3359 = vmatmul.mubr.f32.gmra.mrb[0].mxu0 %v3182
      %v3360 = vpop.f32.mrb[0].mxu0
      %v3361 = vadd.f32 0.0, %v3360
      %v3362 = vpop.f32.mrb[0].mxu0
      %3363 = vmatprep.mubr.f32.mxu0 0.0
      %3364 = vmatmul.mubr.f32.gmra.mrb[0].mxu0 %v3183
      %v3365 = vpop.f32.mrb[0].mxu0
      %v3366 = vadd.f32 0.0, %v3365
      %v3367 = vpop.f32.mrb[0].mxu0
      %3368 = vmatprep.mubr.f32.mxu0 0.0
      %3369 = vmatmul.mubr.f32.gmra.mrb[0].mxu0 %v3184
      %v3370 = vpop.f32.mrb[0].mxu0
      %v3371 = vadd.f32 0.0, %v3370
      %v3372 = vpop.f32.mrb[0].mxu0
      %3373 = vmatprep.mubr.f32.mxu0 0.0
      %3374 = vmatmul.mubr.f32.gmra.mrb[0].mxu0 %v3185
      %v3375 = vpop.f32.mrb[0].mxu0
      %v3376 = vadd.f32 0.0, %v3375
      %v3377 = vpop.f32.mrb[0].mxu0
      %3378 = vmatprep.mubr.f32.mxu0 0.0
      %3379 = vmatmul.mubr.f32.gmra.mrb[0].mxu0 %v3186
      %v3380 = vpop.f32.mrb[0].mxu0
      %v3381 = vadd.f32 0.0, %v3380
      %v3382 = vpop.f32.mrb[0].mxu0
      %3383 = vmatprep.mubr.f32.mxu0 0.0
      %3384 = vmatmul.mubr.f32.gmra.mrb[0].mxu0 %v3187
      %v3385 = vpop.f32.mrb[0].mxu0
      %v3386 = vadd.f32 0.0, %v3385
      %v3387 = vpop.f32.mrb[0].mxu0
      %3388 = vmatprep.mubr.f32.mxu0 0.0
      %3389 = vmatmul.mubr.f32.gmra.mrb[0].mxu0 %v3188
      %v3390 = vpop.f32.mrb[0].mxu0
      %v3391 = vadd.f32 0.0, %v3390
      %v3392 = vpop.f32.mrb[0].mxu0
      %3393 = vmatprep.mubr.f32.mxu0 0.0
      %3394 = vmatmul.mubr.f32.gmra.mrb[0].mxu0 %v3189
      %v3395 = vpop.f32.mrb[0].mxu0
      %v3396 = vadd.f32 0.0, %v3395
      %v3397 = vpop.f32.mrb[0].mxu0
      %3398 = vmatprep.mubr.f32.mxu0 0.0
      %3399 = vmatmul.mubr.f32.gmra.mrb[0].mxu0 %v3190
      %v3400 = vpop.f32.mrb[0].mxu0
      %v3401 = vadd.f32 0.0, %v3400
      %v3402 = vpop.f32.mrb[0].mxu0
      %3403 = vmatprep.mubr.f32.mxu0 0.0
      %3404 = vmatmul.mubr.f32.gmra.mrb[0].mxu0 %v3191
      %v3405 = vpop.f32.mrb[0].mxu0
      %v3406 = vadd.f32 0.0, %v3405
      %v3407 = vpop.f32.mrb[0].mxu0
      %3408 = vmatprep.mubr.f32.mxu0 0.0
      %3409 = vmatmul.mubr.f32.gmra.mrb[0].mxu0 %v3192
      %v3410 = vpop.f32.mrb[0].mxu0
      %v3411 = vadd.f32 0.0, %v3410
      %v3412 = vpop.f32.mrb[0].mxu0
      %3413 = vmatprep.mubr.f32.mxu0 0.0
      %3414 = vmatmul.mubr.f32.gmra.mrb[0].mxu0 %v3193
      %v3415 = vpop.f32.mrb[0].mxu0
      %v3416 = vadd.f32 0.0, %v3415
      %v3417 = vpop.f32.mrb[0].mxu0
      %3418 = vmatprep.mubr.f32.mxu0 0.0
      %3419 = vmatmul.mubr.f32.gmra.mrb[0].mxu0 %v3194
      %v3420 = vpop.f32.mrb[0].mxu0
      %v3421 = vadd.f32 0.0, %v3420
      %v3422 = vpop.f32.mrb[0].mxu0
      %3423 = vmatprep.mubr.f32.mxu0 0.0
      %3424 = vmatmul.mubr.f32.gmra.mrb[0].mxu0 %v3195
      %v3425 = vpop.f32.mrb[0].mxu0
      %v3426 = vadd.f32 0.0, %v3425
      %v3427 = vpop.f32.mrb[0].mxu0
      %3428 = vmatprep.mubr.f32.mxu0 0.0
      %3429 = vmatmul.mubr.f32.gmra.mrb[0].mxu0 %v3196
      %v3430 = vpop.f32.mrb[0].mxu0
      %v3431 = vadd.f32 0.0, %v3430
      %v3432 = vpop.f32.mrb[0].mxu0
      %3433 = vmatprep.mubr.f32.mxu0 0.0
      %3434 = vmatmul.mubr.f32.gmra.mrb[0].mxu0 %v3197
      %v3435 = vpop.f32.mrb[0].mxu0
      %v3436 = vadd.f32 0.0, %v3435
      %v3437 = vpop.f32.mrb[0].mxu0
      %3438 = vdwg.mxu0
      %v3439 = vadd.f32 %v3134, %v3281
      %v3440 = vadd.f32 %v3135, %v3286
      %v3441 = vadd.f32 %v3136, %v3291
      %v3442 = vadd.f32 %v3137, %v3296
      %v3443 = vadd.f32 %v3138, %v3301
      %v3444 = vadd.f32 %v3139, %v3306
      %v3445 = vadd.f32 %v3140, %v3311
      %v3446 = vadd.f32 %v3141, %v3316
      %v3447 = vadd.f32 %v3142, %v3321
      %v3448 = vadd.f32 %v3143, %v3326
      %v3449 = vadd.f32 %v3144, %v3331
      %v3450 = vadd.f32 %v3145, %v3336
      %v3451 = vadd.f32 %v3146, %v3341
      %v3452 = vadd.f32 %v3147, %v3346
      %v3453 = vadd.f32 %v3148, %v3351
      %v3454 = vadd.f32 %v3149, %v3356
      %v3455 = vadd.f32 %v3150, %v3361
      %v3456 = vadd.f32 %v3151, %v3366
      %v3457 = vadd.f32 %v3152, %v3371
      %v3458 = vadd.f32 %v3153, %v3376
      %v3459 = vadd.f32 %v3154, %v3381
      %v3460 = vadd.f32 %v3155, %v3386
      %v3461 = vadd.f32 %v3156, %v3391
      %v3462 = vadd.f32 %v3157, %v3396
      %v3463 = vadd.f32 %v3158, %v3401
      %v3464 = vadd.f32 %v3159, %v3406
      %v3465 = vadd.f32 %v3160, %v3411
      %v3466 = vadd.f32 %v3161, %v3416
      %v3467 = vadd.f32 %v3162, %v3421
      %v3468 = vadd.f32 %v3163, %v3426
      %v3469 = vadd.f32 %v3164, %v3431
      %v3470 = vadd.f32 %v3165, %v3436
      %3471 = vst [vmem:[%s493] sm:$0xff] %v3439
      %3472 = vst [vmem:[%s493 + $0x8] sm:$0xff] %v3440
      %3473 = vst [vmem:[%s493 + $0x10] sm:$0xff] %v3441
      %3474 = vst [vmem:[%s493 + $0x18] sm:$0xff] %v3442
      %3475 = vst [vmem:[%s493 + $0x20] sm:$0xff] %v3443
      %3476 = vst [vmem:[%s493 + $0x28] sm:$0xff] %v3444
      %3477 = vst [vmem:[%s493 + $0x30] sm:$0xff] %v3445
      %3478 = vst [vmem:[%s493 + $0x38] sm:$0xff] %v3446
      %3479 = vst [vmem:[%s493 + $0x40] sm:$0xff] %v3447
      %3480 = vst [vmem:[%s493 + $0x48] sm:$0xff] %v3448
      %3481 = vst [vmem:[%s493 + $0x50] sm:$0xff] %v3449
      %3482 = vst [vmem:[%s493 + $0x58] sm:$0xff] %v3450
      %3483 = vst [vmem:[%s493 + $0x60] sm:$0xff] %v3451
      %3484 = vst [vmem:[%s493 + $0x68] sm:$0xff] %v3452
      %3485 = vst [vmem:[%s493 + $0x70] sm:$0xff] %v3453
      %3486 = vst [vmem:[%s493 + $0x78] sm:$0xff] %v3454
      %3487 = vst [vmem:[%s493 + $0x80] sm:$0xff] %v3455
      %3488 = vst [vmem:[%s493 + $0x88] sm:$0xff] %v3456
      %3489 = vst [vmem:[%s493 + $0x90] sm:$0xff] %v3457
      %3490 = vst [vmem:[%s493 + $0x98] sm:$0xff] %v3458
      %3491 = vst [vmem:[%s493 + $0xa0] sm:$0xff] %v3459
      %3492 = vst [vmem:[%s493 + $0xa8] sm:$0xff] %v3460
      %3493 = vst [vmem:[%s493 + $0xb0] sm:$0xff] %v3461
      %3494 = vst [vmem:[%s493 + $0xb8] sm:$0xff] %v3462
      %3495 = vst [vmem:[%s493 + $0xc0] sm:$0xff] %v3463
      %3496 = vst [vmem:[%s493 + $0xc8] sm:$0xff] %v3464
      %3497 = vst [vmem:[%s493 + $0xd0] sm:$0xff] %v3465
      %3498 = vst [vmem:[%s493 + $0xd8] sm:$0xff] %v3466
      %3499 = vst [vmem:[%s493 + $0xe0] sm:$0xff] %v3467
      %3500 = vst [vmem:[%s493 + $0xe8] sm:$0xff] %v3468
      %3501 = vst [vmem:[%s493 + $0xf0] sm:$0xff] %v3469
      %3502 = vst [vmem:[%s493 + $0xf8] sm:$0xff] %v3470
      %v3503 = vmul.f32 %v3439, %v3439
      %v3504 = vmul.f32 %v3440, %v3440
      %v3505 = vmul.f32 %v3441, %v3441
      %v3506 = vmul.f32 %v3442, %v3442
      %v3507 = vmul.f32 %v3443, %v3443
      %v3508 = vmul.f32 %v3444, %v3444
      %v3509 = vmul.f32 %v3445, %v3445
      %v3510 = vmul.f32 %v3446, %v3446
      %v3511 = vmul.f32 %v3447, %v3447
      %v3512 = vmul.f32 %v3448, %v3448
      %v3513 = vmul.f32 %v3449, %v3449
      %v3514 = vmul.f32 %v3450, %v3450
      %v3515 = vmul.f32 %v3451, %v3451
      %v3516 = vmul.f32 %v3452, %v3452
      %v3517 = vmul.f32 %v3453, %v3453
      %v3518 = vmul.f32 %v3454, %v3454
      %v3519 = vmul.f32 %v3455, %v3455
      %v3520 = vmul.f32 %v3456, %v3456
      %v3521 = vmul.f32 %v3457, %v3457
      %v3522 = vmul.f32 %v3458, %v3458
      %v3523 = vmul.f32 %v3459, %v3459
      %v3524 = vmul.f32 %v3460, %v3460
      %v3525 = vmul.f32 %v3461, %v3461
      %v3526 = vmul.f32 %v3462, %v3462
      %v3527 = vmul.f32 %v3463, %v3463
      %v3528 = vmul.f32 %v3464, %v3464
      %v3529 = vmul.f32 %v3465, %v3465
      %v3530 = vmul.f32 %v3466, %v3466
      %v3531 = vmul.f32 %v3467, %v3467
      %v3532 = vmul.f32 %v3468, %v3468
      %v3533 = vmul.f32 %v3469, %v3469
      %v3534 = vmul.f32 %v3470, %v3470
      %v3535 = vadd.f32 %v3439, %v3440
      %v3536 = vadd.f32 %v3535, %v3441
      %v3537 = vadd.f32 %v3536, %v3442
      %v3538 = vadd.f32 %v3537, %v3443
      %v3539 = vadd.f32 %v3538, %v3444
      %v3540 = vadd.f32 %v3539, %v3445
      %v3541 = vadd.f32 %v3540, %v3446
      %v3542 = vadd.f32 %v3541, %v3447
      %v3543 = vadd.f32 %v3542, %v3448
      %v3544 = vadd.f32 %v3543, %v3449
      %v3545 = vadd.f32 %v3544, %v3450
      %v3546 = vadd.f32 %v3545, %v3451
      %v3547 = vadd.f32 %v3546, %v3452
      %v3548 = vadd.f32 %v3547, %v3453
      %v3549 = vadd.f32 %v3548, %v3454
      %v3550 = vadd.f32 %v3549, %v3455
      %v3551 = vadd.f32 %v3550, %v3456
      %v3552 = vadd.f32 %v3551, %v3457
      %v3553 = vadd.f32 %v3552, %v3458
      %v3554 = vadd.f32 %v3553, %v3459
      %v3555 = vadd.f32 %v3554, %v3460
      %v3556 = vadd.f32 %v3555, %v3461
      %v3557 = vadd.f32 %v3556, %v3462
      %v3558 = vadd.f32 %v3557, %v3463
      %v3559 = vadd.f32 %v3558, %v3464
      %v3560 = vadd.f32 %v3559, %v3465
      %v3561 = vadd.f32 %v3560, %v3466
      %v3562 = vadd.f32 %v3561, %v3467
      %v3563 = vadd.f32 %v3562, %v3468
      %v3564 = vadd.f32 %v3563, %v3469
      %v3565 = vadd.f32 %v3564, %v3470
      %v3566 = vrot.slane %v3565, 4
      %v3567 = vadd.f32 %v3565, %v3566
      %v3568 = vrot.slane %v3567, 2
      %v3569 = vadd.f32 %v3567, %v3568
      %v3570 = vrot.slane %v3569, 1
      %v3571 = vadd.f32 %v3569, %v3570
      %3572 = vst [vmem:[%s500] sm:$0x1] %v3571
      %v3573 = vadd.f32 %v3503, %v3504
      %v3574 = vadd.f32 %v3573, %v3505
      %v3575 = vadd.f32 %v3574, %v3506
      %v3576 = vadd.f32 %v3575, %v3507
      %v3577 = vadd.f32 %v3576, %v3508
      %v3578 = vadd.f32 %v3577, %v3509
      %v3579 = vadd.f32 %v3578, %v3510
      %v3580 = vadd.f32 %v3579, %v3511
      %v3581 = vadd.f32 %v3580, %v3512
      %v3582 = vadd.f32 %v3581, %v3513
      %v3583 = vadd.f32 %v3582, %v3514
      %v3584 = vadd.f32 %v3583, %v3515
      %v3585 = vadd.f32 %v3584, %v3516
      %v3586 = vadd.f32 %v3585, %v3517
      %v3587 = vadd.f32 %v3586, %v3518
      %v3588 = vadd.f32 %v3587, %v3519
      %v3589 = vadd.f32 %v3588, %v3520
      %v3590 = vadd.f32 %v3589, %v3521
      %v3591 = vadd.f32 %v3590, %v3522
      %v3592 = vadd.f32 %v3591, %v3523
      %v3593 = vadd.f32 %v3592, %v3524
      %v3594 = vadd.f32 %v3593, %v3525
      %v3595 = vadd.f32 %v3594, %v3526
      %v3596 = vadd.f32 %v3595, %v3527
      %v3597 = vadd.f32 %v3596, %v3528
      %v3598 = vadd.f32 %v3597, %v3529
      %v3599 = vadd.f32 %v3598, %v3530
      %v3600 = vadd.f32 %v3599, %v3531
      %v3601 = vadd.f32 %v3600, %v3532
      %v3602 = vadd.f32 %v3601, %v3533
      %v3603 = vadd.f32 %v3602, %v3534
      %v3604 = vrot.slane %v3603, 4
      %v3605 = vadd.f32 %v3603, %v3604
      %v3606 = vrot.slane %v3605, 2
      %v3607 = vadd.f32 %v3605, %v3606
      %v3608 = vrot.slane %v3607, 1
      %v3609 = vadd.f32 %v3607, %v3608
      %3610 = vst [vmem:[%s506] sm:$0x1] %v3609
      %s3611 = smul.u32 16, %s25
      %p3612 = scmp.lt.s32.totalorder %s24, 1
      %s3613 = scalar_select %p3612, %s24, 1
      %p3614 = scmp.lt.s32.totalorder %s3611, 15
      %s3615 = scalar_select %p3614, %s3611, 15
      %s3616 = smul.addr %s3615, 2
      %s3617 = smul.addr %s3613, 32
      %s3618 = sadd.s32 %s3616, %s3617
      %s3619 = smul.addr %s3618, 8
      %s3620 = scalar_lea.vmem %s6, %s3619
      %p3621 = scmp.lt.s32.totalorder %s24, 1
      %s3622 = scalar_select %p3621, %s24, 1
      %p3623 = scmp.lt.s32.totalorder %s25, 0
      %s3624 = scalar_select %p3623, %s25, 0
      %s3625 = sadd.s32 %s3624, %s3622
      %s3626 = scalar_lea.vmem %s7, %s3625
      %p3627 = scmp.lt.s32.totalorder %s24, 1
      %s3628 = scalar_select %p3627, %s24, 1
      %p3629 = scmp.lt.s32.totalorder %s25, 0
      %s3630 = scalar_select %p3629, %s25, 0
      %s3631 = sadd.s32 %s3630, %s3628
      %s3632 = scalar_lea.vmem %s8, %s3631
      // Predicated region
      $region45: #{double_conv.4} parent=43 // pred_check
        %p3633 = pneg %p215
      $region46: #{double_conv.4} parent=43 // pred_check_branch
        %3635 = sbr.rel (%p3633) target = $region48
      $region47: #{double_conv.4} parent=43 // pred_region
        %s3636 = smul.u32 16, %s25
      $region48: #{double_conv.4} parent=43 // pred_fallthru
        _
      // Predicated region
      $region49: #{double_conv.4} parent=43 // pred_check
        %p3637 = pneg %p243
      $region50: #{double_conv.4} parent=43 // pred_check_branch
        %3639 = sbr.rel (%p3637) target = $region52
      $region51: #{double_conv.4} parent=43 // pred_region
        _
      $region52: #{double_conv.4} parent=43 // pred_fallthru
        _
      // Predicated region
      $region53: #{double_conv.4} parent=43 // pred_check
        %p3640 = pneg %p271
      $region54: #{double_conv.4} parent=43 // pred_check_branch
        %3642 = sbr.rel (%p3640) target = $region56
      $region55: #{double_conv.4} parent=43 // pred_region
        _
      $region56: #{double_conv.4} parent=43 // pred_fallthru
        _
    $region44: #{double_conv.4} parent=5 // pred_fallthru
      _
    %p3643 = scmp.le.s32.totalorder 2, %s15
    // Predicated region
    $region57: #{double_conv.4} parent=5 // pred_check
      %p3644 = pneg %p3643
    $region58: #{double_conv.4} parent=5 // pred_check_branch
      %3646 = sbr.rel (%p3644) target = $region60
    $region59: #{double_conv.4} parent=5 // pred_region
      %s3647 = ssub.s32 %s15, 2
      // Predicated region
      $region61: #{double_conv.4} parent=59 // pred_check
        %p3648 = pneg %p221
      $region62: #{double_conv.4} parent=59 // pred_check_branch
        %3650 = sbr.rel (%p3648) target = $region64
      $region63: #{double_conv.4} parent=59 // pred_region
        %s3651 = smul.u32 16, %s27
        %p3652 = scmp.lt.s32.totalorder %s26, 1
        %s3653 = scalar_select %p3652, %s26, 1
        %p3654 = scmp.lt.s32.totalorder %s3651, 15
        %s3655 = scalar_select %p3654, %s3651, 15
        %s3656 = smul.addr %s3655, 2
        %s3657 = smul.addr %s3653, 32
        %s3658 = sadd.s32 %s3656, %s3657
        %s3659 = smul.addr %s3658, 8
        %s3660 = scalar_lea.vmem %s6, %s3659
      $region64: #{double_conv.4} parent=59 // pred_fallthru
        _
      // Predicated region
      $region65: #{double_conv.4} parent=59 // pred_check
        %p3661 = pneg %p249
      $region66: #{double_conv.4} parent=59 // pred_check_branch
        %3663 = sbr.rel (%p3661) target = $region68
      $region67: #{double_conv.4} parent=59 // pred_region
        %p3664 = scmp.lt.s32.totalorder %s26, 1
        %s3665 = scalar_select %p3664, %s26, 1
        %p3666 = scmp.lt.s32.totalorder %s27, 0
        %s3667 = scalar_select %p3666, %s27, 0
        %s3668 = sadd.s32 %s3667, %s3665
        %s3669 = scalar_lea.vmem %s7, %s3668
      $region68: #{double_conv.4} parent=59 // pred_fallthru
        _
      // Predicated region
      $region69: #{double_conv.4} parent=59 // pred_check
        %p3670 = pneg %p277
      $region70: #{double_conv.4} parent=59 // pred_check_branch
        %3672 = sbr.rel (%p3670) target = $region72
      $region71: #{double_conv.4} parent=59 // pred_region
        %p3673 = scmp.lt.s32.totalorder %s26, 1
        %s3674 = scalar_select %p3673, %s26, 1
        %p3675 = scmp.lt.s32.totalorder %s27, 0
        %s3676 = scalar_select %p3675, %s27, 0
        %s3677 = sadd.s32 %s3676, %s3674
        %s3678 = scalar_lea.vmem %s8, %s3677
      $region72: #{double_conv.4} parent=59 // pred_fallthru
        _
    $region60: #{double_conv.4} parent=5 // pred_fallthru
      _
  $region6: #{double_conv.4} parent=0 // loop_footer
    %s19 = sadd.s32 1, %s15
  $region7: #{double_conv.4} parent=0 // loop_footer_branch
    %14 = sbr.rel target = $region3
  $region8: #{double_conv.4} parent=0 // loop_exit
    _

// kernel: double_conv.3
$region0: #{double_conv.3}
  #allocation0 [shape = 'u32[]', space=smem, size = 0x4, offset = 0x4, fixed_abs, tag = 'smem constant byte address 0x4 - core index']
  #allocation1 [shape = 'u32[144,128]{1,0:T(1,128)}', space=vmem, size = 0x12000, scoped, tag = 'internal scratch']
  #allocation2 [shape = 'f32[18,18,4]{2,1,0:T(8,128)}', space=vmem, size = 0x36000, scoped, tag = 'scratch operand']
  %s0 = inlined_call_operand.vmem [shape: f32[2,16,16,4], index: 0, kind: input, shape index: {}, may-alias: {0,1,2}]
  %s1 = inlined_call_operand.vmem [shape: f32[2,16,16,4], index: 1, kind: input, shape index: {}, may-alias: {0,1,2}]
  %s2 = inlined_call_operand.vmem [shape: f32[2,16,16,4], index: 2, kind: input, shape index: {}, may-alias: {0,1,2}]
  %s3 = inlined_call_operand.vmem [shape: f32[36,128], index: 3, kind: input, shape index: {}]
  %s4 = inlined_call_operand.vmem [shape: f32[2,16,16,128], index: 4, kind: output, shape index: {0}]
  %s5 = inlined_call_operand.vmem [shape: f32[2,1,1,128], index: 5, kind: output, shape index: {1}]
  %s6 = inlined_call_operand.vmem [shape: f32[2,1,1,128], index: 6, kind: output, shape index: {2}]
  %7 = xla_tuple %s4, %s5, %s6
  %s8 = sld [smem:[#allocation0]]
  $region65: #{double_conv.3} parent=0
    _
  %s10 = ssub.s32 1, %s8
  %s11 = scalar_select 0, %s10, %s8
  loop: start=0, step=1, limit=4
  $region2: #{double_conv.3} parent=0 // loop_pre_header
    _
  $region3: #{double_conv.3} parent=0 // loop_header
    %s13 = sphi 0, %s17
    %p14 = scmp.ge.s32.totalorder %s13, 4
    %s20 = sphi 0, %s32
    %s21 = sphi 0, %s28
    %s22 = sphi 0, %s20
    %s23 = sphi 0, %s21
    %s24 = sphi 0, %s22
    %s25 = sphi 0, %s23
    %s45 = sphi 0, %s47
    %s48 = sphi 0, %s45
    %s49 = sphi 0, %s48
    %s65 = sphi 0, %s49
    %s73 = sphi 0, %s75
    %s76 = sphi 0, %s73
    %s77 = sphi 0, %s76
    %s93 = sphi 0, %s77
    %s109 = sphi 0, %s111
    %s112 = sphi 0, %s109
    %s113 = sphi 0, %s112
    %s129 = sphi 0, %s113
    %s133 = sphi 0, %s133
    %s135 = sphi 0, %s133
    %s136 = sphi 0, %s135
    %s150 = sphi 0, %s136
    %s158 = sphi 0, %s160
    %s161 = sphi 0, %s158
    %s162 = sphi 0, %s161
    %s178 = sphi 0, %s162
    %s186 = sphi 0, %s188
    %s189 = sphi 0, %s186
    %s190 = sphi 0, %s189
    %s206 = sphi 0, %s190
    %s214 = sphi 0, %s216
    %s217 = sphi 0, %s214
    %s218 = sphi 0, %s217
    %s234 = sphi 0, %s218
  $region4: #{double_conv.3} parent=0 // loop_header_branch
    %16 = sbr.rel (%p14) target = $region8
  $region5: #{double_conv.3} parent=0 // loop_body
    %s18 = ssub.s32 %s13, 1
    %s19 = ssub.s32 %s13, 2
    %s26 = sadd.s32 1, %s21
    %p27 = scmp.ge.s32.totalorder %s26, 1
    %s28 = scalar_select %p27, 0, %s26
    %s29 = sadd.s32 1, %s20
    %s30 = scalar_select %p27, %s29, %s20
    %p31 = scmp.ge.s32.totalorder %s30, 2
    %s32 = scalar_select %p31, 0, %s30
    %s33 = smul.u32 %s21, 16
    %s34 = ssub.s32 %s33, 1
    %p35 = scmp.gt.s32.totalorder %s34, 0
    %s36 = scalar_select %p35, %s34, 0
    %s37 = smul.u32 %s28, 16
    %s38 = ssub.s32 %s37, 1
    %p39 = scmp.gt.s32.totalorder %s38, 0
    %s40 = scalar_select %p39, %s38, 0
    %s41 = ssub.s32 %s20, %s32
    %s42 = ssub.s32 %s36, %s40
    %s43 = sor.u32 %s41, %s42
    %p44 = scmp.eq.s32.totalorder %s43, 0
    %s46 = sadd.s32 %s45, 1
    %s47 = scalar_select %p44, %s45, %s46
    %p50 = pneg %p44
    %p51 = scmp.eq.s32.totalorder %s13, 1
    %p52 = por %p50, %p51
    %p53 = scmp.ne.s32.totalorder %s45, %s48
    %p54 = scmp.eq.s32.totalorder %s13, 0
    %p55 = por %p53, %p54
    %p56 = scmp.ne.s32.totalorder %s45, %s48
    %p57 = scmp.eq.s32.totalorder %s18, 1
    %p58 = por %p56, %p57
    %p59 = scmp.ne.s32.totalorder %s48, %s49
    %p60 = scmp.eq.s32.totalorder %s18, 0
    %p61 = por %p59, %p60
    %p62 = scmp.ne.s32.totalorder %s48, %s49
    %p63 = scmp.eq.s32.totalorder %s19, 1
    %p64 = por %p62, %p63
    %p66 = scmp.ne.s32.totalorder %s49, %s65
    %p67 = scmp.eq.s32.totalorder %s19, 0
    %p68 = por %p66, %p67
    %s69 = ssub.s32 %s20, %s32
    %s70 = ssub.s32 %s21, %s28
    %s71 = sor.u32 %s69, %s70
    %p72 = scmp.eq.s32.totalorder %s71, 0
    %s74 = sadd.s32 %s73, 1
    %s75 = scalar_select %p72, %s73, %s74
    %p78 = pneg %p72
    %p79 = scmp.eq.s32.totalorder %s13, 1
    %p80 = por %p78, %p79
    %p81 = scmp.ne.s32.totalorder %s73, %s76
    %p82 = scmp.eq.s32.totalorder %s13, 0
    %p83 = por %p81, %p82
    %p84 = scmp.ne.s32.totalorder %s73, %s76
    %p85 = scmp.eq.s32.totalorder %s18, 1
    %p86 = por %p84, %p85
    %p87 = scmp.ne.s32.totalorder %s76, %s77
    %p88 = scmp.eq.s32.totalorder %s18, 0
    %p89 = por %p87, %p88
    %p90 = scmp.ne.s32.totalorder %s76, %s77
    %p91 = scmp.eq.s32.totalorder %s19, 1
    %p92 = por %p90, %p91
    %p94 = scmp.ne.s32.totalorder %s77, %s93
    %p95 = scmp.eq.s32.totalorder %s19, 0
    %p96 = por %p94, %p95
    %s97 = smul.u32 %s21, 16
    %s98 = sadd.s32 %s97, 16
    %p99 = scmp.lt.s32.totalorder %s98, 15
    %s100 = scalar_select %p99, %s98, 15
    %s101 = smul.u32 %s28, 16
    %s102 = sadd.s32 %s101, 16
    %p103 = scmp.lt.s32.totalorder %s102, 15
    %s104 = scalar_select %p103, %s102, 15
    %s105 = ssub.s32 %s20, %s32
    %s106 = ssub.s32 %s100, %s104
    %s107 = sor.u32 %s105, %s106
    %p108 = scmp.eq.s32.totalorder %s107, 0
    %s110 = sadd.s32 %s109, 1
    %s111 = scalar_select %p108, %s109, %s110
    %p114 = pneg %p108
    %p115 = scmp.eq.s32.totalorder %s13, 1
    %p116 = por %p114, %p115
    %p117 = scmp.ne.s32.totalorder %s109, %s112
    %p118 = scmp.eq.s32.totalorder %s13, 0
    %p119 = por %p117, %p118
    %p120 = scmp.ne.s32.totalorder %s109, %s112
    %p121 = scmp.eq.s32.totalorder %s18, 1
    %p122 = por %p120, %p121
    %p123 = scmp.ne.s32.totalorder %s112, %s113
    %p124 = scmp.eq.s32.totalorder %s18, 0
    %p125 = por %p123, %p124
    %p126 = scmp.ne.s32.totalorder %s112, %s113
    %p127 = scmp.eq.s32.totalorder %s19, 1
    %p128 = por %p126, %p127
    %p130 = scmp.ne.s32.totalorder %s113, %s129
    %p131 = scmp.eq.s32.totalorder %s19, 0
    %p132 = por %p130, %p131
    %s134 = sadd.s32 %s133, 1
    %p137 = scmp.eq.s32.totalorder %s13, 1
    %p138 = scmp.ne.s32.totalorder %s133, %s135
    %p139 = scmp.eq.s32.totalorder %s13, 0
    %p140 = por %p138, %p139
    %p141 = scmp.ne.s32.totalorder %s133, %s135
    %p142 = scmp.eq.s32.totalorder %s18, 1
    %p143 = por %p141, %p142
    %p144 = scmp.ne.s32.totalorder %s135, %s136
    %p145 = scmp.eq.s32.totalorder %s18, 0
    %p146 = por %p144, %p145
    %p147 = scmp.ne.s32.totalorder %s135, %s136
    %p148 = scmp.eq.s32.totalorder %s19, 1
    %p149 = por %p147, %p148
    %p151 = scmp.ne.s32.totalorder %s136, %s150
    %p152 = scmp.eq.s32.totalorder %s19, 0
    %p153 = por %p151, %p152
    %s154 = ssub.s32 %s20, %s32
    %s155 = ssub.s32 %s21, %s28
    %s156 = sor.u32 %s154, %s155
    %p157 = scmp.eq.s32.totalorder %s156, 0
    %s159 = sadd.s32 %s158, 1
    %s160 = scalar_select %p157, %s158, %s159
    %p163 = pneg %p157
    %p164 = scmp.eq.s32.totalorder %s13, 1
    %p165 = por %p163, %p164
    %p166 = scmp.ne.s32.totalorder %s158, %s161
    %p167 = scmp.eq.s32.totalorder %s13, 0
    %p168 = por %p166, %p167
    %p169 = scmp.ne.s32.totalorder %s158, %s161
    %p170 = scmp.eq.s32.totalorder %s18, 1
    %p171 = por %p169, %p170
    %p172 = scmp.ne.s32.totalorder %s161, %s162
    %p173 = scmp.eq.s32.totalorder %s18, 0
    %p174 = por %p172, %p173
    %p175 = scmp.ne.s32.totalorder %s161, %s162
    %p176 = scmp.eq.s32.totalorder %s19, 1
    %p177 = por %p175, %p176
    %p179 = scmp.ne.s32.totalorder %s162, %s178
    %p180 = scmp.eq.s32.totalorder %s19, 0
    %p181 = por %p179, %p180
    %s182 = ssub.s32 %s20, %s32
    %s183 = ssub.s32 %s21, %s28
    %s184 = sor.u32 %s182, %s183
    %p185 = scmp.eq.s32.totalorder %s184, 0
    %s187 = sadd.s32 %s186, 1
    %s188 = scalar_select %p185, %s186, %s187
    %p191 = pneg %p185
    %p192 = scmp.eq.s32.totalorder %s13, 1
    %p193 = por %p191, %p192
    %p194 = scmp.ne.s32.totalorder %s186, %s189
    %p195 = scmp.eq.s32.totalorder %s13, 0
    %p196 = por %p194, %p195
    %p197 = scmp.ne.s32.totalorder %s186, %s189
    %p198 = scmp.eq.s32.totalorder %s18, 1
    %p199 = por %p197, %p198
    %p200 = scmp.ne.s32.totalorder %s189, %s190
    %p201 = scmp.eq.s32.totalorder %s18, 0
    %p202 = por %p200, %p201
    %p203 = scmp.ne.s32.totalorder %s189, %s190
    %p204 = scmp.eq.s32.totalorder %s19, 1
    %p205 = por %p203, %p204
    %p207 = scmp.ne.s32.totalorder %s190, %s206
    %p208 = scmp.eq.s32.totalorder %s19, 0
    %p209 = por %p207, %p208
    %s210 = ssub.s32 %s20, %s32
    %s211 = ssub.s32 %s21, %s28
    %s212 = sor.u32 %s210, %s211
    %p213 = scmp.eq.s32.totalorder %s212, 0
    %s215 = sadd.s32 %s214, 1
    %s216 = scalar_select %p213, %s214, %s215
    %p219 = pneg %p213
    %p220 = scmp.eq.s32.totalorder %s13, 1
    %p221 = por %p219, %p220
    %p222 = scmp.ne.s32.totalorder %s214, %s217
    %p223 = scmp.eq.s32.totalorder %s13, 0
    %p224 = por %p222, %p223
    %p225 = scmp.ne.s32.totalorder %s214, %s217
    %p226 = scmp.eq.s32.totalorder %s18, 1
    %p227 = por %p225, %p226
    %p228 = scmp.ne.s32.totalorder %s217, %s218
    %p229 = scmp.eq.s32.totalorder %s18, 0
    %p230 = por %p228, %p229
    %p231 = scmp.ne.s32.totalorder %s217, %s218
    %p232 = scmp.eq.s32.totalorder %s19, 1
    %p233 = por %p231, %p232
    %p235 = scmp.ne.s32.totalorder %s218, %s234
    %p236 = scmp.eq.s32.totalorder %s19, 0
    %p237 = por %p235, %p236
    %p238 = scmp.le.s32.totalorder 1, %s13
    %p239 = scmp.lt.s32.totalorder %s13, 3
    %p240 = pnand %p238, %p239
    %p241 = pneg %p240
    // Predicated region
    $region9: #{double_conv.3} parent=5 // pred_check
      _
    $region10: #{double_conv.3} parent=5 // pred_check_branch
      %243 = sbr.rel (%p240) target = $region12
    $region11: #{double_conv.3} parent=5 // pred_region
      %s244 = ssub.s32 %s13, 1
      // Predicated region
      $region13: #{double_conv.3} parent=11 // pred_check
        %p245 = pneg %p146
      $region14: #{double_conv.3} parent=11 // pred_check_branch
        %247 = sbr.rel (%p245) target = $region16
      $region15: #{double_conv.3} parent=11 // pred_region
        _
      $region16: #{double_conv.3} parent=11 // pred_fallthru
        _
    $region12: #{double_conv.3} parent=5 // pred_fallthru
      _
    %p248 = scmp.lt.s32.totalorder %s13, 2
    // Predicated region
    $region17: #{double_conv.3} parent=5 // pred_check
      %p249 = pneg %p248
    $region18: #{double_conv.3} parent=5 // pred_check_branch
      %251 = sbr.rel (%p249) target = $region20
    $region19: #{double_conv.3} parent=5 // pred_region
      // Predicated region
      $region21: #{double_conv.3} parent=19 // pred_check
        %p252 = pneg %p55
      $region22: #{double_conv.3} parent=19 // pred_check_branch
        %254 = sbr.rel (%p252) target = $region24
      $region23: #{double_conv.3} parent=19 // pred_region
        %s255 = smul.u32 %s21, 16
        %s256 = ssub.s32 %s255, 1
        %p257 = scmp.gt.s32.totalorder %s256, 0
        %s258 = scalar_select %p257, %s256, 0
        %p259 = scmp.lt.s32.totalorder %s20, 1
        %s260 = scalar_select %p259, %s20, 1
        %p261 = scmp.lt.s32.totalorder %s258, 15
        %s262 = scalar_select %p261, %s258, 15
        %s263 = smul.addr %s262, 2
        %s264 = smul.addr %s260, 32
        %s265 = sadd.s32 %s263, %s264
        %s266 = smul.addr %s265, 8
        %s267 = scalar_lea.vmem %s0, %s266
        %s268 = smul.u32 %s21, 16
        %s269 = ssub.s32 %s268, 1
        %p270 = scmp.gt.s32.totalorder %s269, 0
        %s271 = scalar_select %p270, %s269, 0
      $region24: #{double_conv.3} parent=19 // pred_fallthru
        _
      // Predicated region
      $region25: #{double_conv.3} parent=19 // pred_check
        %p272 = pneg %p83
      $region26: #{double_conv.3} parent=19 // pred_check_branch
        %274 = sbr.rel (%p272) target = $region28
      $region27: #{double_conv.3} parent=19 // pred_region
        %s275 = smul.u32 16, %s21
        %p276 = scmp.lt.s32.totalorder %s20, 1
        %s277 = scalar_select %p276, %s20, 1
        %p278 = scmp.lt.s32.totalorder %s275, 15
        %s279 = scalar_select %p278, %s275, 15
        %s280 = smul.addr %s279, 2
        %s281 = smul.addr %s277, 32
        %s282 = sadd.s32 %s280, %s281
        %s283 = smul.addr %s282, 8
        %s284 = scalar_lea.vmem %s1, %s283
        %s285 = smul.u32 16, %s21
      $region28: #{double_conv.3} parent=19 // pred_fallthru
        _
      // Predicated region
      $region29: #{double_conv.3} parent=19 // pred_check
        %p286 = pneg %p119
      $region30: #{double_conv.3} parent=19 // pred_check_branch
        %288 = sbr.rel (%p286) target = $region32
      $region31: #{double_conv.3} parent=19 // pred_region
        %s289 = smul.u32 %s21, 16
        %s290 = sadd.s32 %s289, 16
        %p291 = scmp.lt.s32.totalorder %s290, 15
        %s292 = scalar_select %p291, %s290, 15
        %p293 = scmp.lt.s32.totalorder %s20, 1
        %s294 = scalar_select %p293, %s20, 1
        %p295 = scmp.lt.s32.totalorder %s292, 15
        %s296 = scalar_select %p295, %s292, 15
        %s297 = smul.addr %s296, 2
        %s298 = smul.addr %s294, 32
        %s299 = sadd.s32 %s297, %s298
        %s300 = smul.addr %s299, 8
        %s301 = scalar_lea.vmem %s2, %s300
        %s302 = smul.u32 %s21, 16
        %s303 = sadd.s32 %s302, 16
        %p304 = scmp.lt.s32.totalorder %s303, 15
        %s305 = scalar_select %p304, %s303, 15
      $region32: #{double_conv.3} parent=19 // pred_fallthru
        _
    $region20: #{double_conv.3} parent=5 // pred_fallthru
      _
    %p306 = scmp.le.s32.totalorder 1, %s13
    %p307 = scmp.lt.s32.totalorder %s13, 3
    %p308 = pnand %p306, %p307
    %p309 = pneg %p308
    // Predicated region
    $region33: #{double_conv.3} parent=5 // pred_check
      _
    $region34: #{double_conv.3} parent=5 // pred_check_branch
      %311 = sbr.rel (%p308) target = $region36
    $region35: #{double_conv.3} parent=5 // pred_region
      %s312 = ssub.s32 %s13, 1
      %s313 = smul.u32 %s23, 16
      %s314 = ssub.s32 %s313, 1
      %p315 = scmp.gt.s32.totalorder %s314, 0
      %s316 = scalar_select %p315, %s314, 0
      %p317 = scmp.lt.s32.totalorder %s22, 1
      %s318 = scalar_select %p317, %s22, 1
      %p319 = scmp.lt.s32.totalorder %s316, 15
      %s320 = scalar_select %p319, %s316, 15
      %s321 = smul.addr %s320, 2
      %s322 = smul.addr %s318, 32
      %s323 = sadd.s32 %s321, %s322
      %s324 = smul.addr %s323, 8
      %s325 = scalar_lea.vmem %s0, %s324
      %p326 = pneg %p61
      %p327 = pneg %p58
      %s328 = smul.u32 16, %s23
      %p329 = scmp.lt.s32.totalorder %s22, 1
      %s330 = scalar_select %p329, %s22, 1
      %p331 = scmp.lt.s32.totalorder %s328, 15
      %s332 = scalar_select %p331, %s328, 15
      %s333 = smul.addr %s332, 2
      %s334 = smul.addr %s330, 32
      %s335 = sadd.s32 %s333, %s334
      %s336 = smul.addr %s335, 8
      %s337 = scalar_lea.vmem %s1, %s336
      %p338 = pneg %p89
      %p339 = pneg %p86
      %s340 = smul.u32 %s23, 16
      %s341 = sadd.s32 %s340, 16
      %p342 = scmp.lt.s32.totalorder %s341, 15
      %s343 = scalar_select %p342, %s341, 15
      %p344 = scmp.lt.s32.totalorder %s22, 1
      %s345 = scalar_select %p344, %s22, 1
      %p346 = scmp.lt.s32.totalorder %s343, 15
      %s347 = scalar_select %p346, %s343, 15
      %s348 = smul.addr %s347, 2
      %s349 = smul.addr %s345, 32
      %s350 = sadd.s32 %s348, %s349
      %s351 = smul.addr %s350, 8
      %s352 = scalar_lea.vmem %s2, %s351
      %p353 = pneg %p125
      %p354 = pneg %p122
      %p355 = pneg %p146
      %p356 = pneg %p143
      %p357 = pneg %p174
      %p358 = pneg %p171
      %s359 = smul.u32 16, %s23
      %p360 = scmp.lt.s32.totalorder %s22, 1
      %s361 = scalar_select %p360, %s22, 1
      %p362 = scmp.lt.s32.totalorder %s359, 15
      %s363 = scalar_select %p362, %s359, 15
      %s364 = smul.addr %s363, 2
      %s365 = smul.addr %s361, 32
      %s366 = sadd.s32 %s364, %s365
      %s367 = smul.addr %s366, 8
      %s368 = scalar_lea.vmem %s4, %s367
      %p369 = pneg %p202
      %p370 = pneg %p199
      %p371 = scmp.lt.s32.totalorder %s22, 1
      %s372 = scalar_select %p371, %s22, 1
      %p373 = scmp.lt.s32.totalorder %s23, 0
      %s374 = scalar_select %p373, %s23, 0
      %s375 = sadd.s32 %s374, %s372
      %s376 = scalar_lea.vmem %s5, %s375
      %p377 = pneg %p230
      %p378 = pneg %p227
      %p379 = scmp.lt.s32.totalorder %s22, 1
      %s380 = scalar_select %p379, %s22, 1
      %p381 = scmp.lt.s32.totalorder %s23, 0
      %s382 = scalar_select %p381, %s23, 0
      %s383 = sadd.s32 %s382, %s380
      %s384 = scalar_lea.vmem %s6, %s383
      %s385 = smul.u32 %s23, 16
      %s386 = ssub.s32 %s385, 1
      %p387 = scmp.gt.s32.totalorder %s386, 0
      %s388 = scalar_select %p387, %s386, 0
      %p389 = scmp.lt.s32.totalorder %s22, 1
      %s390 = scalar_select %p389, %s22, 1
      %p391 = scmp.lt.s32.totalorder %s388, 15
      %s392 = scalar_select %p391, %s388, 15
      %s393 = smul.addr %s392, 2
      %s394 = smul.addr %s390, 32
      %s395 = sadd.s32 %s393, %s394
      %s396 = smul.addr %s395, 8
      %s397 = scalar_lea.vmem %s0, %s396
      %s398 = smul.u32 %s23, 16
      %s399 = ssub.s32 %s398, 1
      %p400 = scmp.gt.s32.totalorder %s399, 0
      %s401 = scalar_select %p400, %s399, 0
      %s402 = smul.u32 16, %s23
      %p403 = scmp.lt.s32.totalorder %s22, 1
      %s404 = scalar_select %p403, %s22, 1
      %p405 = scmp.lt.s32.totalorder %s402, 15
      %s406 = scalar_select %p405, %s402, 15
      %s407 = smul.addr %s406, 2
      %s408 = smul.addr %s404, 32
      %s409 = sadd.s32 %s407, %s408
      %s410 = smul.addr %s409, 8
      %s411 = scalar_lea.vmem %s1, %s410
      %s412 = smul.u32 16, %s23
      %s413 = smul.u32 %s23, 16
      %s414 = sadd.s32 %s413, 16
      %p415 = scmp.lt.s32.totalorder %s414, 15
      %s416 = scalar_select %p415, %s414, 15
      %p417 = scmp.lt.s32.totalorder %s22, 1
      %s418 = scalar_select %p417, %s22, 1
      %p419 = scmp.lt.s32.totalorder %s416, 15
      %s420 = scalar_select %p419, %s416, 15
      %s421 = smul.addr %s420, 2
      %s422 = smul.addr %s418, 32
      %s423 = sadd.s32 %s421, %s422
      %s424 = smul.addr %s423, 8
      %s425 = scalar_lea.vmem %s2, %s424
      %s426 = smul.u32 %s23, 16
      %s427 = sadd.s32 %s426, 16
      %p428 = scmp.lt.s32.totalorder %s427, 15
      %s429 = scalar_select %p428, %s427, 15
      %s430 = smul.u32 16, %s23
      %p431 = scmp.lt.s32.totalorder %s22, 1
      %s432 = scalar_select %p431, %s22, 1
      %p433 = scmp.lt.s32.totalorder %s430, 15
      %s434 = scalar_select %p433, %s430, 15
      %s435 = smul.addr %s434, 2
      %s436 = smul.addr %s432, 32
      %s437 = sadd.s32 %s435, %s436
      %s438 = smul.addr %s437, 8
      %s439 = scalar_lea.vmem %s4, %s438
      %s440 = smul.u32 16, %s23
      %p441 = scmp.lt.s32.totalorder %s22, 1
      %s442 = scalar_select %p441, %s22, 1
      %p443 = scmp.lt.s32.totalorder %s23, 0
      %s444 = scalar_select %p443, %s23, 0
      %s445 = sadd.s32 %s444, %s442
      %s446 = scalar_lea.vmem %s5, %s445
      %p447 = scmp.lt.s32.totalorder %s22, 1
      %s448 = scalar_select %p447, %s22, 1
      %p449 = scmp.lt.s32.totalorder %s23, 0
      %s450 = scalar_select %p449, %s23, 0
      %s451 = sadd.s32 %s450, %s448
      %s452 = scalar_lea.vmem %s6, %s451
      %s453 = smul.u32 %s23, 16
      %vm454 = vcmask 24576
      %455 = vst.msk [vmem:[#allocation2] sm:$0x1] %vm454, 0.0
      %456 = vst.msk [vmem:[#allocation2 + $0x18] sm:$0x1] %vm454, 0.0
      %457 = vst.msk [vmem:[#allocation2 + $0x30] sm:$0x1] %vm454, 0.0
      %458 = vst.msk [vmem:[#allocation2 + $0x48] sm:$0x1] %vm454, 0.0
      %459 = vst.msk [vmem:[#allocation2 + $0x60] sm:$0x1] %vm454, 0.0
      %460 = vst.msk [vmem:[#allocation2 + $0x78] sm:$0x1] %vm454, 0.0
      %461 = vst.msk [vmem:[#allocation2 + $0x90] sm:$0x1] %vm454, 0.0
      %462 = vst.msk [vmem:[#allocation2 + $0xa8] sm:$0x1] %vm454, 0.0
      %463 = vst.msk [vmem:[#allocation2 + $0xc0] sm:$0x1] %vm454, 0.0
      %464 = vst.msk [vmem:[#allocation2 + $0xd8] sm:$0x1] %vm454, 0.0
      %465 = vst.msk [vmem:[#allocation2 + $0xf0] sm:$0x1] %vm454, 0.0
      %466 = vst.msk [vmem:[#allocation2 + $0x108] sm:$0x1] %vm454, 0.0
      %467 = vst.msk [vmem:[#allocation2 + $0x120] sm:$0x1] %vm454, 0.0
      %468 = vst.msk [vmem:[#allocation2 + $0x138] sm:$0x1] %vm454, 0.0
      %469 = vst.msk [vmem:[#allocation2 + $0x150] sm:$0x1] %vm454, 0.0
      %470 = vst.msk [vmem:[#allocation2 + $0x168] sm:$0x1] %vm454, 0.0
      %471 = vst.msk [vmem:[#allocation2 + $0x180] sm:$0x1] %vm454, 0.0
      %472 = vst.msk [vmem:[#allocation2 + $0x198] sm:$0x1] %vm454, 0.0
      %473 = vst.msk [vmem:[#allocation2 + $0x11] sm:$0x1] %vm454, 0.0
      %474 = vst.msk [vmem:[#allocation2 + $0x29] sm:$0x1] %vm454, 0.0
      %475 = vst.msk [vmem:[#allocation2 + $0x41] sm:$0x1] %vm454, 0.0
      %476 = vst.msk [vmem:[#allocation2 + $0x59] sm:$0x1] %vm454, 0.0
      %477 = vst.msk [vmem:[#allocation2 + $0x71] sm:$0x1] %vm454, 0.0
      %478 = vst.msk [vmem:[#allocation2 + $0x89] sm:$0x1] %vm454, 0.0
      %479 = vst.msk [vmem:[#allocation2 + $0xa1] sm:$0x1] %vm454, 0.0
      %480 = vst.msk [vmem:[#allocation2 + $0xb9] sm:$0x1] %vm454, 0.0
      %481 = vst.msk [vmem:[#allocation2 + $0xd1] sm:$0x1] %vm454, 0.0
      %482 = vst.msk [vmem:[#allocation2 + $0xe9] sm:$0x1] %vm454, 0.0
      %483 = vst.msk [vmem:[#allocation2 + $0x101] sm:$0x1] %vm454, 0.0
      %484 = vst.msk [vmem:[#allocation2 + $0x119] sm:$0x1] %vm454, 0.0
      %485 = vst.msk [vmem:[#allocation2 + $0x131] sm:$0x1] %vm454, 0.0
      %486 = vst.msk [vmem:[#allocation2 + $0x149] sm:$0x1] %vm454, 0.0
      %487 = vst.msk [vmem:[#allocation2 + $0x161] sm:$0x1] %vm454, 0.0
      %488 = vst.msk [vmem:[#allocation2 + $0x179] sm:$0x1] %vm454, 0.0
      %489 = vst.msk [vmem:[#allocation2 + $0x191] sm:$0x1] %vm454, 0.0
      %490 = vst.msk [vmem:[#allocation2 + $0x1a9] sm:$0x1] %vm454, 0.0
      %v491 = vld [vmem:[%s411] sm:$0xff]
      %v492 = vld [vmem:[%s411 + $0x8] sm:$0xff]
      %v493 = vld [vmem:[%s411 + $0x10] sm:$0xff]
      %v494 = vld [vmem:[%s411 + $0x18] sm:$0xff]
      %v495 = vld [vmem:[%s411 + $0x20] sm:$0xff]
      %v496 = vld [vmem:[%s411 + $0x28] sm:$0xff]
      %v497 = vld [vmem:[%s411 + $0x30] sm:$0xff]
      %v498 = vld [vmem:[%s411 + $0x38] sm:$0xff]
      %v499 = vld [vmem:[%s411 + $0x40] sm:$0xff]
      %v500 = vld [vmem:[%s411 + $0x48] sm:$0xff]
      %v501 = vld [vmem:[%s411 + $0x50] sm:$0xff]
      %v502 = vld [vmem:[%s411 + $0x58] sm:$0xff]
      %v503 = vld [vmem:[%s411 + $0x60] sm:$0xff]
      %v504 = vld [vmem:[%s411 + $0x68] sm:$0xff]
      %v505 = vld [vmem:[%s411 + $0x70] sm:$0xff]
      %v506 = vld [vmem:[%s411 + $0x78] sm:$0xff]
      %v507 = vld [vmem:[%s411 + $0x80] sm:$0xff]
      %v508 = vld [vmem:[%s411 + $0x88] sm:$0xff]
      %v509 = vld [vmem:[%s411 + $0x90] sm:$0xff]
      %v510 = vld [vmem:[%s411 + $0x98] sm:$0xff]
      %v511 = vld [vmem:[%s411 + $0xa0] sm:$0xff]
      %v512 = vld [vmem:[%s411 + $0xa8] sm:$0xff]
      %v513 = vld [vmem:[%s411 + $0xb0] sm:$0xff]
      %v514 = vld [vmem:[%s411 + $0xb8] sm:$0xff]
      %v515 = vld [vmem:[%s411 + $0xc0] sm:$0xff]
      %v516 = vld [vmem:[%s411 + $0xc8] sm:$0xff]
      %v517 = vld [vmem:[%s411 + $0xd0] sm:$0xff]
      %v518 = vld [vmem:[%s411 + $0xd8] sm:$0xff]
      %v519 = vld [vmem:[%s411 + $0xe0] sm:$0xff]
      %v520 = vld [vmem:[%s411 + $0xe8] sm:$0xff]
      %v521 = vld [vmem:[%s411 + $0xf0] sm:$0xff]
      %v522 = vld [vmem:[%s411 + $0xf8] sm:$0xff]
      %s523 = scalar_lea.vmem [#allocation2], 24
      %vm524 = vcmask 31744
      %525 = vst.msk [vmem:[%s523 + $0x1] sm:$0xff] %vm524, %v491
      %526 = vst.msk [vmem:[%s523 + $0x9] sm:$0xff] %vm524, %v492
      %527 = vst.msk [vmem:[%s523 + $0x19] sm:$0xff] %vm524, %v493
      %528 = vst.msk [vmem:[%s523 + $0x21] sm:$0xff] %vm524, %v494
      %529 = vst.msk [vmem:[%s523 + $0x31] sm:$0xff] %vm524, %v495
      %530 = vst.msk [vmem:[%s523 + $0x39] sm:$0xff] %vm524, %v496
      %531 = vst.msk [vmem:[%s523 + $0x49] sm:$0xff] %vm524, %v497
      %532 = vst.msk [vmem:[%s523 + $0x51] sm:$0xff] %vm524, %v498
      %533 = vst.msk [vmem:[%s523 + $0x61] sm:$0xff] %vm524, %v499
      %534 = vst.msk [vmem:[%s523 + $0x69] sm:$0xff] %vm524, %v500
      %535 = vst.msk [vmem:[%s523 + $0x79] sm:$0xff] %vm524, %v501
      %536 = vst.msk [vmem:[%s523 + $0x81] sm:$0xff] %vm524, %v502
      %537 = vst.msk [vmem:[%s523 + $0x91] sm:$0xff] %vm524, %v503
      %538 = vst.msk [vmem:[%s523 + $0x99] sm:$0xff] %vm524, %v504
      %539 = vst.msk [vmem:[%s523 + $0xa9] sm:$0xff] %vm524, %v505
      %540 = vst.msk [vmem:[%s523 + $0xb1] sm:$0xff] %vm524, %v506
      %541 = vst.msk [vmem:[%s523 + $0xc1] sm:$0xff] %vm524, %v507
      %542 = vst.msk [vmem:[%s523 + $0xc9] sm:$0xff] %vm524, %v508
      %543 = vst.msk [vmem:[%s523 + $0xd9] sm:$0xff] %vm524, %v509
      %544 = vst.msk [vmem:[%s523 + $0xe1] sm:$0xff] %vm524, %v510
      %545 = vst.msk [vmem:[%s523 + $0xf1] sm:$0xff] %vm524, %v511
      %546 = vst.msk [vmem:[%s523 + $0xf9] sm:$0xff] %vm524, %v512
      %547 = vst.msk [vmem:[%s523 + $0x109] sm:$0xff] %vm524, %v513
      %548 = vst.msk [vmem:[%s523 + $0x111] sm:$0xff] %vm524, %v514
      %549 = vst.msk [vmem:[%s523 + $0x121] sm:$0xff] %vm524, %v515
      %550 = vst.msk [vmem:[%s523 + $0x129] sm:$0xff] %vm524, %v516
      %551 = vst.msk [vmem:[%s523 + $0x139] sm:$0xff] %vm524, %v517
      %552 = vst.msk [vmem:[%s523 + $0x141] sm:$0xff] %vm524, %v518
      %553 = vst.msk [vmem:[%s523 + $0x151] sm:$0xff] %vm524, %v519
      %554 = vst.msk [vmem:[%s523 + $0x159] sm:$0xff] %vm524, %v520
      %555 = vst.msk [vmem:[%s523 + $0x169] sm:$0xff] %vm524, %v521
      %556 = vst.msk [vmem:[%s523 + $0x171] sm:$0xff] %vm524, %v522
      %v557 = vld [vmem:[%s397] sm:$0xff]
      %v558 = vld [vmem:[%s397 + $0x8] sm:$0xff]
      %p559 = scmp.gt.s32.totalorder %s453, 0
      %s560 = scalar_select %p559, 1, 0
      %v561 = vstv %s560
      %vm562 = vcmp.eq.s32.totalorder %v561, 1
      %v563 = vsel %vm562, %v557, 0.0
      %v564 = vsel %vm562, %v558, 0.0
      %565 = vst.msk [vmem:[#allocation2 + $0x1] sm:$0xff] %vm524, %v563
      %566 = vst.msk [vmem:[#allocation2 + $0x9] sm:$0xff] %vm524, %v564
      %v567 = vld [vmem:[%s425] sm:$0xff]
      %v568 = vld [vmem:[%s425 + $0x8] sm:$0xff]
      %s569 = sadd.s32 %s453, 16
      %p570 = scmp.lt.s32.totalorder %s569, 16
      %s571 = scalar_select %p570, 1, 0
      %v572 = vstv %s571
      %vm573 = vcmp.eq.s32.totalorder %v572, 1
      %v574 = vsel %vm573, %v567, 0.0
      %v575 = vsel %vm573, %v568, 0.0
      %s576 = scalar_lea.vmem [#allocation2], 408
      %577 = vst.msk [vmem:[%s576 + $0x1] sm:$0xff] %vm524, %v574
      %578 = vst.msk [vmem:[%s576 + $0x9] sm:$0xff] %vm524, %v575
      %v579 = vld [vmem:[#allocation2] sm:$0xff]
      %v580 = vld [vmem:[#allocation2 + $0x8] sm:$0xff]
      %v581 = vld [vmem:[#allocation2 + $0x18] sm:$0xff]
      %v582 = vld [vmem:[#allocation2 + $0x20] sm:$0xff]
      %v583 = vld [vmem:[#allocation2 + $0x30] sm:$0xff]
      %v584 = vld [vmem:[#allocation2 + $0x38] sm:$0xff]
      %v585 = vld [vmem:[#allocation2 + $0x48] sm:$0xff]
      %v586 = vld [vmem:[#allocation2 + $0x50] sm:$0xff]
      %v587 = vld [vmem:[#allocation2 + $0x60] sm:$0xff]
      %v588 = vld [vmem:[#allocation2 + $0x68] sm:$0xff]
      %v589 = vld [vmem:[#allocation2 + $0x78] sm:$0xff]
      %v590 = vld [vmem:[#allocation2 + $0x80] sm:$0xff]
      %v591 = vld [vmem:[#allocation2 + $0x90] sm:$0xff]
      %v592 = vld [vmem:[#allocation2 + $0x98] sm:$0xff]
      %v593 = vld [vmem:[#allocation2 + $0xa8] sm:$0xff]
      %v594 = vld [vmem:[#allocation2 + $0xb0] sm:$0xff]
      %v595 = vld [vmem:[#allocation2 + $0xc0] sm:$0xff]
      %v596 = vld [vmem:[#allocation2 + $0xc8] sm:$0xff]
      %v597 = vld [vmem:[#allocation2 + $0xd8] sm:$0xff]
      %v598 = vld [vmem:[#allocation2 + $0xe0] sm:$0xff]
      %v599 = vld [vmem:[#allocation2 + $0xf0] sm:$0xff]
      %v600 = vld [vmem:[#allocation2 + $0xf8] sm:$0xff]
      %v601 = vld [vmem:[#allocation2 + $0x108] sm:$0xff]
      %v602 = vld [vmem:[#allocation2 + $0x110] sm:$0xff]
      %v603 = vld [vmem:[#allocation2 + $0x120] sm:$0xff]
      %v604 = vld [vmem:[#allocation2 + $0x128] sm:$0xff]
      %v605 = vld [vmem:[#allocation2 + $0x138] sm:$0xff]
      %v606 = vld [vmem:[#allocation2 + $0x140] sm:$0xff]
      %v607 = vld [vmem:[#allocation2 + $0x150] sm:$0xff]
      %v608 = vld [vmem:[#allocation2 + $0x158] sm:$0xff]
      %v609 = vld [vmem:[#allocation2 + $0x168] sm:$0xff]
      %v610 = vld [vmem:[#allocation2 + $0x170] sm:$0xff]
      %v611 = vld [vmem:[%s3] sm:$0xf]
      %v612 = vld [vmem:[#allocation2 + $0x1] sm:$0xff]
      %v613 = vld [vmem:[#allocation2 + $0x9] sm:$0xff]
      %v614 = vld [vmem:[#allocation2 + $0x19] sm:$0xff]
      %v615 = vld [vmem:[#allocation2 + $0x21] sm:$0xff]
      %v616 = vld [vmem:[#allocation2 + $0x31] sm:$0xff]
      %v617 = vld [vmem:[#allocation2 + $0x39] sm:$0xff]
      %v618 = vld [vmem:[#allocation2 + $0x49] sm:$0xff]
      %v619 = vld [vmem:[#allocation2 + $0x51] sm:$0xff]
      %v620 = vld [vmem:[#allocation2 + $0x61] sm:$0xff]
      %v621 = vld [vmem:[#allocation2 + $0x69] sm:$0xff]
      %v622 = vld [vmem:[#allocation2 + $0x79] sm:$0xff]
      %v623 = vld [vmem:[#allocation2 + $0x81] sm:$0xff]
      %v624 = vld [vmem:[#allocation2 + $0x91] sm:$0xff]
      %v625 = vld [vmem:[#allocation2 + $0x99] sm:$0xff]
      %v626 = vld [vmem:[#allocation2 + $0xa9] sm:$0xff]
      %v627 = vld [vmem:[#allocation2 + $0xb1] sm:$0xff]
      %v628 = vld [vmem:[#allocation2 + $0xc1] sm:$0xff]
      %v629 = vld [vmem:[#allocation2 + $0xc9] sm:$0xff]
      %v630 = vld [vmem:[#allocation2 + $0xd9] sm:$0xff]
      %v631 = vld [vmem:[#allocation2 + $0xe1] sm:$0xff]
      %v632 = vld [vmem:[#allocation2 + $0xf1] sm:$0xff]
      %v633 = vld [vmem:[#allocation2 + $0xf9] sm:$0xff]
      %v634 = vld [vmem:[#allocation2 + $0x109] sm:$0xff]
      %v635 = vld [vmem:[#allocation2 + $0x111] sm:$0xff]
      %v636 = vld [vmem:[#allocation2 + $0x121] sm:$0xff]
      %v637 = vld [vmem:[#allocation2 + $0x129] sm:$0xff]
      %v638 = vld [vmem:[#allocation2 + $0x139] sm:$0xff]
      %v639 = vld [vmem:[#allocation2 + $0x141] sm:$0xff]
      %v640 = vld [vmem:[#allocation2 + $0x151] sm:$0xff]
      %v641 = vld [vmem:[#allocation2 + $0x159] sm:$0xff]
      %v642 = vld [vmem:[#allocation2 + $0x169] sm:$0xff]
      %v643 = vld [vmem:[#allocation2 + $0x171] sm:$0xff]
      %v644 = vld [vmem:[%s3 + $0x4] sm:$0xf]
      %v646 = vsel %vm524, %v612, 0
      %v649 = vsel %vm524, %v613, 0
      %v652 = vsel %vm524, %v614, 0
      %v655 = vsel %vm524, %v615, 0
      %v658 = vsel %vm524, %v616, 0
      %v661 = vsel %vm524, %v617, 0
      %v664 = vsel %vm524, %v618, 0
      %v667 = vsel %vm524, %v619, 0
      %v670 = vsel %vm524, %v620, 0
      %v673 = vsel %vm524, %v621, 0
      %v676 = vsel %vm524, %v622, 0
      %v679 = vsel %vm524, %v623, 0
      %v682 = vsel %vm524, %v624, 0
      %v685 = vsel %vm524, %v625, 0
      %v688 = vsel %vm524, %v626, 0
      %v691 = vsel %vm524, %v627, 0
      %v694 = vsel %vm524, %v628, 0
      %v697 = vsel %vm524, %v629, 0
      %v700 = vsel %vm524, %v630, 0
      %v703 = vsel %vm524, %v631, 0
      %v706 = vsel %vm524, %v632, 0
      %v709 = vsel %vm524, %v633, 0
      %v712 = vsel %vm524, %v634, 0
      %v715 = vsel %vm524, %v635, 0
      %v718 = vsel %vm524, %v636, 0
      %v721 = vsel %vm524, %v637, 0
      %v724 = vsel %vm524, %v638, 0
      %v727 = vsel %vm524, %v639, 0
      %v730 = vsel %vm524, %v640, 0
      %v733 = vsel %vm524, %v641, 0
      %v736 = vsel %vm524, %v642, 0
      %v739 = vsel %vm524, %v643, 0
      %vm741 = vcmask 1043456
      %v743 = vsel %vm741, %v644, 0
      %745 = vmatprep.subr.mxu0 0.0
      %746 = vmatpush1.msra.mxu0 %v743
      %747 = vmatprep.subr.mxu0 0.0
      %748 = vmatpush1.msra.mxu0 0.0
      %749 = vmatprep.subr.mxu0 0.0
      %750 = vmatpush1.msra.mxu0 0.0
      %751 = vmatprep.subr.mxu0 0.0
      %752 = vmatpush1.msra.mxu0 0.0
      %753 = vmatprep.subr.mxu0 0.0
      %754 = vmatpush1.msra.mxu0 0.0
      %755 = vmatprep.subr.mxu0 0.0
      %756 = vmatpush1.msra.mxu0 0.0
      %757 = vmatprep.subr.mxu0 0.0
      %758 = vmatpush1.msra.mxu0 0.0
      %759 = vmatprep.subr.mxu0 0.0
      %760 = vmatpush1.msra.mxu0 0.0
      %761 = vmatprep.subr.mxu0 0.0
      %762 = vmatpush1.msra.mxu0 0.0
      %763 = vmatprep.subr.mxu0 0.0
      %764 = vmatpush1.msra.mxu0 0.0
      %765 = vmatprep.subr.mxu0 0.0
      %766 = vmatpush1.msra.mxu0 0.0
      %767 = vmatprep.subr.mxu0 0.0
      %768 = vmatpush1.msra.mxu0 0.0
      %769 = vmatprep.subr.mxu0 0.0
      %770 = vmatpush1.msra.mxu0 0.0
      %771 = vmatprep.subr.mxu0 0.0
      %772 = vmatpush1.msra.mxu0 0.0
      %773 = vmatprep.subr.mxu0 0.0
      %774 = vmatpush1.msra.mxu0 0.0
      %775 = vmatprep.subr.mxu0 0.0
      %776 = vmatpush1.msra.mxu0 0.0
      %777 = vmatprep.subr.mxu0 0.0
      %778 = vmatpush1.msra.mxu0 0.0
      %779 = vmatprep.subr.mxu0 0.0
      %780 = vmatpush1.msra.mxu0 0.0
      %781 = vmatprep.subr.mxu0 0.0
      %782 = vmatpush1.msra.mxu0 0.0
      %783 = vmatprep.subr.mxu0 0.0
      %784 = vmatpush1.msra.mxu0 0.0
      %785 = vmatprep.subr.mxu0 0.0
      %786 = vmatpush1.msra.mxu0 0.0
      %787 = vmatprep.subr.mxu0 0.0
      %788 = vmatpush1.msra.mxu0 0.0
      %789 = vmatprep.subr.mxu0 0.0
      %790 = vmatpush1.msra.mxu0 0.0
      %791 = vmatprep.subr.mxu0 0.0
      %792 = vmatpush1.msra.mxu0 0.0
      %793 = vmatprep.subr.mxu0 0.0
      %794 = vmatpush1.msra.mxu0 0.0
      %795 = vmatprep.subr.mxu0 0.0
      %796 = vmatpush1.msra.mxu0 0.0
      %797 = vmatprep.subr.mxu0 0.0
      %798 = vmatpush1.msra.mxu0 0.0
      %799 = vmatprep.subr.mxu0 0.0
      %800 = vmatpush1.msra.mxu0 0.0
      %801 = vmatprep.subr.mxu0 0.0
      %802 = vmatpush1.msra.mxu0 0.0
      %803 = vmatprep.subr.mxu0 0.0
      %804 = vmatpush1.msra.mxu0 0.0
      %805 = vmatprep.subr.mxu0 0.0
      %806 = vmatpush1.msra.mxu0 0.0
      %807 = vmatprep.subr.mxu0 0.0
      %808 = vmatpush1.msra.mxu0 0.0
      %809 = vmatprep.mubr.f32.mxu0 0.0
      %810 = vmatmul.mubr.f32.gmra.mrb[0].mxu0 %v646
      %v811 = vpop.f32.mrb[0].mxu0
      %v812 = vadd.f32 0.0, %v811
      %v813 = vpop.f32.mrb[0].mxu0
      %814 = vmatprep.mubr.f32.mxu0 0.0
      %815 = vmatmul.mubr.f32.gmra.mrb[0].mxu0 %v649
      %v816 = vpop.f32.mrb[0].mxu0
      %v817 = vadd.f32 0.0, %v816
      %v818 = vpop.f32.mrb[0].mxu0
      %819 = vmatprep.mubr.f32.mxu0 0.0
      %820 = vmatmul.mubr.f32.gmra.mrb[0].mxu0 %v652
      %v821 = vpop.f32.mrb[0].mxu0
      %v822 = vadd.f32 0.0, %v821
      %v823 = vpop.f32.mrb[0].mxu0
      %824 = vmatprep.mubr.f32.mxu0 0.0
      %825 = vmatmul.mubr.f32.gmra.mrb[0].mxu0 %v655
      %v826 = vpop.f32.mrb[0].mxu0
      %v827 = vadd.f32 0.0, %v826
      %v828 = vpop.f32.mrb[0].mxu0
      %829 = vmatprep.mubr.f32.mxu0 0.0
      %830 = vmatmul.mubr.f32.gmra.mrb[0].mxu0 %v658
      %v831 = vpop.f32.mrb[0].mxu0
      %v832 = vadd.f32 0.0, %v831
      %v833 = vpop.f32.mrb[0].mxu0
      %834 = vmatprep.mubr.f32.mxu0 0.0
      %835 = vmatmul.mubr.f32.gmra.mrb[0].mxu0 %v661
      %v836 = vpop.f32.mrb[0].mxu0
      %v837 = vadd.f32 0.0, %v836
      %v838 = vpop.f32.mrb[0].mxu0
      %839 = vmatprep.mubr.f32.mxu0 0.0
      %840 = vmatmul.mubr.f32.gmra.mrb[0].mxu0 %v664
      %v841 = vpop.f32.mrb[0].mxu0
      %v842 = vadd.f32 0.0, %v841
      %v843 = vpop.f32.mrb[0].mxu0
      %844 = vmatprep.mubr.f32.mxu0 0.0
      %845 = vmatmul.mubr.f32.gmra.mrb[0].mxu0 %v667
      %v846 = vpop.f32.mrb[0].mxu0
      %v847 = vadd.f32 0.0, %v846
      %v848 = vpop.f32.mrb[0].mxu0
      %849 = vmatprep.mubr.f32.mxu0 0.0
      %850 = vmatmul.mubr.f32.gmra.mrb[0].mxu0 %v670
      %v851 = vpop.f32.mrb[0].mxu0
      %v852 = vadd.f32 0.0, %v851
      %v853 = vpop.f32.mrb[0].mxu0
      %854 = vmatprep.mubr.f32.mxu0 0.0
      %855 = vmatmul.mubr.f32.gmra.mrb[0].mxu0 %v673
      %v856 = vpop.f32.mrb[0].mxu0
      %v857 = vadd.f32 0.0, %v856
      %v858 = vpop.f32.mrb[0].mxu0
      %859 = vmatprep.mubr.f32.mxu0 0.0
      %860 = vmatmul.mubr.f32.gmra.mrb[0].mxu0 %v676
      %v861 = vpop.f32.mrb[0].mxu0
      %v862 = vadd.f32 0.0, %v861
      %v863 = vpop.f32.mrb[0].mxu0
      %864 = vmatprep.mubr.f32.mxu0 0.0
      %865 = vmatmul.mubr.f32.gmra.mrb[0].mxu0 %v679
      %v866 = vpop.f32.mrb[0].mxu0
      %v867 = vadd.f32 0.0, %v866
      %v868 = vpop.f32.mrb[0].mxu0
      %869 = vmatprep.mubr.f32.mxu0 0.0
      %870 = vmatmul.mubr.f32.gmra.mrb[0].mxu0 %v682
      %v871 = vpop.f32.mrb[0].mxu0
      %v872 = vadd.f32 0.0, %v871
      %v873 = vpop.f32.mrb[0].mxu0
      %874 = vmatprep.mubr.f32.mxu0 0.0
      %875 = vmatmul.mubr.f32.gmra.mrb[0].mxu0 %v685
      %v876 = vpop.f32.mrb[0].mxu0
      %v877 = vadd.f32 0.0, %v876
      %v878 = vpop.f32.mrb[0].mxu0
      %879 = vmatprep.mubr.f32.mxu0 0.0
      %880 = vmatmul.mubr.f32.gmra.mrb[0].mxu0 %v688
      %v881 = vpop.f32.mrb[0].mxu0
      %v882 = vadd.f32 0.0, %v881
      %v883 = vpop.f32.mrb[0].mxu0
      %884 = vmatprep.mubr.f32.mxu0 0.0
      %885 = vmatmul.mubr.f32.gmra.mrb[0].mxu0 %v691
      %v886 = vpop.f32.mrb[0].mxu0
      %v887 = vadd.f32 0.0, %v886
      %v888 = vpop.f32.mrb[0].mxu0
      %889 = vmatprep.mubr.f32.mxu0 0.0
      %890 = vmatmul.mubr.f32.gmra.mrb[0].mxu0 %v694
      %v891 = vpop.f32.mrb[0].mxu0
      %v892 = vadd.f32 0.0, %v891
      %v893 = vpop.f32.mrb[0].mxu0
      %894 = vmatprep.mubr.f32.mxu0 0.0
      %895 = vmatmul.mubr.f32.gmra.mrb[0].mxu0 %v697
      %v896 = vpop.f32.mrb[0].mxu0
      %v897 = vadd.f32 0.0, %v896
      %v898 = vpop.f32.mrb[0].mxu0
      %899 = vmatprep.mubr.f32.mxu0 0.0
      %900 = vmatmul.mubr.f32.gmra.mrb[0].mxu0 %v700
      %v901 = vpop.f32.mrb[0].mxu0
      %v902 = vadd.f32 0.0, %v901
      %v903 = vpop.f32.mrb[0].mxu0
      %904 = vmatprep.mubr.f32.mxu0 0.0
      %905 = vmatmul.mubr.f32.gmra.mrb[0].mxu0 %v703
      %v906 = vpop.f32.mrb[0].mxu0
      %v907 = vadd.f32 0.0, %v906
      %v908 = vpop.f32.mrb[0].mxu0
      %909 = vmatprep.mubr.f32.mxu0 0.0
      %910 = vmatmul.mubr.f32.gmra.mrb[0].mxu0 %v706
      %v911 = vpop.f32.mrb[0].mxu0
      %v912 = vadd.f32 0.0, %v911
      %v913 = vpop.f32.mrb[0].mxu0
      %914 = vmatprep.mubr.f32.mxu0 0.0
      %915 = vmatmul.mubr.f32.gmra.mrb[0].mxu0 %v709
      %v916 = vpop.f32.mrb[0].mxu0
      %v917 = vadd.f32 0.0, %v916
      %v918 = vpop.f32.mrb[0].mxu0
      %919 = vmatprep.mubr.f32.mxu0 0.0
      %920 = vmatmul.mubr.f32.gmra.mrb[0].mxu0 %v712
      %v921 = vpop.f32.mrb[0].mxu0
      %v922 = vadd.f32 0.0, %v921
      %v923 = vpop.f32.mrb[0].mxu0
      %924 = vmatprep.mubr.f32.mxu0 0.0
      %925 = vmatmul.mubr.f32.gmra.mrb[0].mxu0 %v715
      %v926 = vpop.f32.mrb[0].mxu0
      %v927 = vadd.f32 0.0, %v926
      %v928 = vpop.f32.mrb[0].mxu0
      %929 = vmatprep.mubr.f32.mxu0 0.0
      %930 = vmatmul.mubr.f32.gmra.mrb[0].mxu0 %v718
      %v931 = vpop.f32.mrb[0].mxu0
      %v932 = vadd.f32 0.0, %v931
      %v933 = vpop.f32.mrb[0].mxu0
      %934 = vmatprep.mubr.f32.mxu0 0.0
      %935 = vmatmul.mubr.f32.gmra.mrb[0].mxu0 %v721
      %v936 = vpop.f32.mrb[0].mxu0
      %v937 = vadd.f32 0.0, %v936
      %v938 = vpop.f32.mrb[0].mxu0
      %939 = vmatprep.mubr.f32.mxu0 0.0
      %940 = vmatmul.mubr.f32.gmra.mrb[0].mxu0 %v724
      %v941 = vpop.f32.mrb[0].mxu0
      %v942 = vadd.f32 0.0, %v941
      %v943 = vpop.f32.mrb[0].mxu0
      %944 = vmatprep.mubr.f32.mxu0 0.0
      %945 = vmatmul.mubr.f32.gmra.mrb[0].mxu0 %v727
      %v946 = vpop.f32.mrb[0].mxu0
      %v947 = vadd.f32 0.0, %v946
      %v948 = vpop.f32.mrb[0].mxu0
      %949 = vmatprep.mubr.f32.mxu0 0.0
      %950 = vmatmul.mubr.f32.gmra.mrb[0].mxu0 %v730
      %v951 = vpop.f32.mrb[0].mxu0
      %v952 = vadd.f32 0.0, %v951
      %v953 = vpop.f32.mrb[0].mxu0
      %954 = vmatprep.mubr.f32.mxu0 0.0
      %955 = vmatmul.mubr.f32.gmra.mrb[0].mxu0 %v733
      %v956 = vpop.f32.mrb[0].mxu0
      %v957 = vadd.f32 0.0, %v956
      %v958 = vpop.f32.mrb[0].mxu0
      %959 = vmatprep.mubr.f32.mxu0 0.0
      %960 = vmatmul.mubr.f32.gmra.mrb[0].mxu0 %v736
      %v961 = vpop.f32.mrb[0].mxu0
      %v962 = vadd.f32 0.0, %v961
      %v963 = vpop.f32.mrb[0].mxu0
      %964 = vmatprep.mubr.f32.mxu0 0.0
      %965 = vmatmul.mubr.f32.gmra.mrb[0].mxu0 %v739
      %v966 = vpop.f32.mrb[0].mxu0
      %v967 = vadd.f32 0.0, %v966
      %v968 = vpop.f32.mrb[0].mxu0
      %969 = vdwg.mxu0
      %v971 = vsel %vm524, %v579, 0
      %v974 = vsel %vm524, %v580, 0
      %v977 = vsel %vm524, %v581, 0
      %v980 = vsel %vm524, %v582, 0
      %v983 = vsel %vm524, %v583, 0
      %v986 = vsel %vm524, %v584, 0
      %v989 = vsel %vm524, %v585, 0
      %v992 = vsel %vm524, %v586, 0
      %v995 = vsel %vm524, %v587, 0
      %v998 = vsel %vm524, %v588, 0
      %v1001 = vsel %vm524, %v589, 0
      %v1004 = vsel %vm524, %v590, 0
      %v1007 = vsel %vm524, %v591, 0
      %v1010 = vsel %vm524, %v592, 0
      %v1013 = vsel %vm524, %v593, 0
      %v1016 = vsel %vm524, %v594, 0
      %v1019 = vsel %vm524, %v595, 0
      %v1022 = vsel %vm524, %v596, 0
      %v1025 = vsel %vm524, %v597, 0
      %v1028 = vsel %vm524, %v598, 0
      %v1031 = vsel %vm524, %v599, 0
      %v1034 = vsel %vm524, %v600, 0
      %v1037 = vsel %vm524, %v601, 0
      %v1040 = vsel %vm524, %v602, 0
      %v1043 = vsel %vm524, %v603, 0
      %v1046 = vsel %vm524, %v604, 0
      %v1049 = vsel %vm524, %v605, 0
      %v1052 = vsel %vm524, %v606, 0
      %v1055 = vsel %vm524, %v607, 0
      %v1058 = vsel %vm524, %v608, 0
      %v1061 = vsel %vm524, %v609, 0
      %v1064 = vsel %vm524, %v610, 0
      %v1067 = vsel %vm741, %v611, 0
      %1069 = vmatprep.subr.mxu0 0.0
      %1070 = vmatpush1.msra.mxu0 %v1067
      %1071 = vmatprep.subr.mxu0 0.0
      %1072 = vmatpush1.msra.mxu0 0.0
      %1073 = vmatprep.subr.mxu0 0.0
      %1074 = vmatpush1.msra.mxu0 0.0
      %1075 = vmatprep.subr.mxu0 0.0
      %1076 = vmatpush1.msra.mxu0 0.0
      %1077 = vmatprep.subr.mxu0 0.0
      %1078 = vmatpush1.msra.mxu0 0.0
      %1079 = vmatprep.subr.mxu0 0.0
      %1080 = vmatpush1.msra.mxu0 0.0
      %1081 = vmatprep.subr.mxu0 0.0
      %1082 = vmatpush1.msra.mxu0 0.0
      %1083 = vmatprep.subr.mxu0 0.0
      %1084 = vmatpush1.msra.mxu0 0.0
      %1085 = vmatprep.subr.mxu0 0.0
      %1086 = vmatpush1.msra.mxu0 0.0
      %1087 = vmatprep.subr.mxu0 0.0
      %1088 = vmatpush1.msra.mxu0 0.0
      %1089 = vmatprep.subr.mxu0 0.0
      %1090 = vmatpush1.msra.mxu0 0.0
      %1091 = vmatprep.subr.mxu0 0.0
      %1092 = vmatpush1.msra.mxu0 0.0
      %1093 = vmatprep.subr.mxu0 0.0
      %1094 = vmatpush1.msra.mxu0 0.0
      %1095 = vmatprep.subr.mxu0 0.0
      %1096 = vmatpush1.msra.mxu0 0.0
      %1097 = vmatprep.subr.mxu0 0.0
      %1098 = vmatpush1.msra.mxu0 0.0
      %1099 = vmatprep.subr.mxu0 0.0
      %1100 = vmatpush1.msra.mxu0 0.0
      %1101 = vmatprep.subr.mxu0 0.0
      %1102 = vmatpush1.msra.mxu0 0.0
      %1103 = vmatprep.subr.mxu0 0.0
      %1104 = vmatpush1.msra.mxu0 0.0
      %1105 = vmatprep.subr.mxu0 0.0
      %1106 = vmatpush1.msra.mxu0 0.0
      %1107 = vmatprep.subr.mxu0 0.0
      %1108 = vmatpush1.msra.mxu0 0.0
      %1109 = vmatprep.subr.mxu0 0.0
      %1110 = vmatpush1.msra.mxu0 0.0
      %1111 = vmatprep.subr.mxu0 0.0
      %1112 = vmatpush1.msra.mxu0 0.0
      %1113 = vmatprep.subr.mxu0 0.0
      %1114 = vmatpush1.msra.mxu0 0.0
      %1115 = vmatprep.subr.mxu0 0.0
      %1116 = vmatpush1.msra.mxu0 0.0
      %1117 = vmatprep.subr.mxu0 0.0
      %1118 = vmatpush1.msra.mxu0 0.0
      %1119 = vmatprep.subr.mxu0 0.0
      %1120 = vmatpush1.msra.mxu0 0.0
      %1121 = vmatprep.subr.mxu0 0.0
      %1122 = vmatpush1.msra.mxu0 0.0
      %1123 = vmatprep.subr.mxu0 0.0
      %1124 = vmatpush1.msra.mxu0 0.0
      %1125 = vmatprep.subr.mxu0 0.0
      %1126 = vmatpush1.msra.mxu0 0.0
      %1127 = vmatprep.subr.mxu0 0.0
      %1128 = vmatpush1.msra.mxu0 0.0
      %1129 = vmatprep.subr.mxu0 0.0
      %1130 = vmatpush1.msra.mxu0 0.0
      %1131 = vmatprep.subr.mxu0 0.0
      %1132 = vmatpush1.msra.mxu0 0.0
      %1133 = vmatprep.mubr.f32.mxu0 0.0
      %1134 = vmatmul.mubr.f32.gmra.mrb[0].mxu0 %v971
      %v1135 = vpop.f32.mrb[0].mxu0
      %v1136 = vadd.f32 %v812, %v1135
      %v1137 = vpop.f32.mrb[0].mxu0
      %1138 = vmatprep.mubr.f32.mxu0 0.0
      %1139 = vmatmul.mubr.f32.gmra.mrb[0].mxu0 %v974
      %v1140 = vpop.f32.mrb[0].mxu0
      %v1141 = vadd.f32 %v817, %v1140
      %v1142 = vpop.f32.mrb[0].mxu0
      %1143 = vmatprep.mubr.f32.mxu0 0.0
      %1144 = vmatmul.mubr.f32.gmra.mrb[0].mxu0 %v977
      %v1145 = vpop.f32.mrb[0].mxu0
      %v1146 = vadd.f32 %v822, %v1145
      %v1147 = vpop.f32.mrb[0].mxu0
      %1148 = vmatprep.mubr.f32.mxu0 0.0
      %1149 = vmatmul.mubr.f32.gmra.mrb[0].mxu0 %v980
      %v1150 = vpop.f32.mrb[0].mxu0
      %v1151 = vadd.f32 %v827, %v1150
      %v1152 = vpop.f32.mrb[0].mxu0
      %1153 = vmatprep.mubr.f32.mxu0 0.0
      %1154 = vmatmul.mubr.f32.gmra.mrb[0].mxu0 %v983
      %v1155 = vpop.f32.mrb[0].mxu0
      %v1156 = vadd.f32 %v832, %v1155
      %v1157 = vpop.f32.mrb[0].mxu0
      %1158 = vmatprep.mubr.f32.mxu0 0.0
      %1159 = vmatmul.mubr.f32.gmra.mrb[0].mxu0 %v986
      %v1160 = vpop.f32.mrb[0].mxu0
      %v1161 = vadd.f32 %v837, %v1160
      %v1162 = vpop.f32.mrb[0].mxu0
      %1163 = vmatprep.mubr.f32.mxu0 0.0
      %1164 = vmatmul.mubr.f32.gmra.mrb[0].mxu0 %v989
      %v1165 = vpop.f32.mrb[0].mxu0
      %v1166 = vadd.f32 %v842, %v1165
      %v1167 = vpop.f32.mrb[0].mxu0
      %1168 = vmatprep.mubr.f32.mxu0 0.0
      %1169 = vmatmul.mubr.f32.gmra.mrb[0].mxu0 %v992
      %v1170 = vpop.f32.mrb[0].mxu0
      %v1171 = vadd.f32 %v847, %v1170
      %v1172 = vpop.f32.mrb[0].mxu0
      %1173 = vmatprep.mubr.f32.mxu0 0.0
      %1174 = vmatmul.mubr.f32.gmra.mrb[0].mxu0 %v995
      %v1175 = vpop.f32.mrb[0].mxu0
      %v1176 = vadd.f32 %v852, %v1175
      %v1177 = vpop.f32.mrb[0].mxu0
      %1178 = vmatprep.mubr.f32.mxu0 0.0
      %1179 = vmatmul.mubr.f32.gmra.mrb[0].mxu0 %v998
      %v1180 = vpop.f32.mrb[0].mxu0
      %v1181 = vadd.f32 %v857, %v1180
      %v1182 = vpop.f32.mrb[0].mxu0
      %1183 = vmatprep.mubr.f32.mxu0 0.0
      %1184 = vmatmul.mubr.f32.gmra.mrb[0].mxu0 %v1001
      %v1185 = vpop.f32.mrb[0].mxu0
      %v1186 = vadd.f32 %v862, %v1185
      %v1187 = vpop.f32.mrb[0].mxu0
      %1188 = vmatprep.mubr.f32.mxu0 0.0
      %1189 = vmatmul.mubr.f32.gmra.mrb[0].mxu0 %v1004
      %v1190 = vpop.f32.mrb[0].mxu0
      %v1191 = vadd.f32 %v867, %v1190
      %v1192 = vpop.f32.mrb[0].mxu0
      %1193 = vmatprep.mubr.f32.mxu0 0.0
      %1194 = vmatmul.mubr.f32.gmra.mrb[0].mxu0 %v1007
      %v1195 = vpop.f32.mrb[0].mxu0
      %v1196 = vadd.f32 %v872, %v1195
      %v1197 = vpop.f32.mrb[0].mxu0
      %1198 = vmatprep.mubr.f32.mxu0 0.0
      %1199 = vmatmul.mubr.f32.gmra.mrb[0].mxu0 %v1010
      %v1200 = vpop.f32.mrb[0].mxu0
      %v1201 = vadd.f32 %v877, %v1200
      %v1202 = vpop.f32.mrb[0].mxu0
      %1203 = vmatprep.mubr.f32.mxu0 0.0
      %1204 = vmatmul.mubr.f32.gmra.mrb[0].mxu0 %v1013
      %v1205 = vpop.f32.mrb[0].mxu0
      %v1206 = vadd.f32 %v882, %v1205
      %v1207 = vpop.f32.mrb[0].mxu0
      %1208 = vmatprep.mubr.f32.mxu0 0.0
      %1209 = vmatmul.mubr.f32.gmra.mrb[0].mxu0 %v1016
      %v1210 = vpop.f32.mrb[0].mxu0
      %v1211 = vadd.f32 %v887, %v1210
      %v1212 = vpop.f32.mrb[0].mxu0
      %1213 = vmatprep.mubr.f32.mxu0 0.0
      %1214 = vmatmul.mubr.f32.gmra.mrb[0].mxu0 %v1019
      %v1215 = vpop.f32.mrb[0].mxu0
      %v1216 = vadd.f32 %v892, %v1215
      %v1217 = vpop.f32.mrb[0].mxu0
      %1218 = vmatprep.mubr.f32.mxu0 0.0
      %1219 = vmatmul.mubr.f32.gmra.mrb[0].mxu0 %v1022
      %v1220 = vpop.f32.mrb[0].mxu0
      %v1221 = vadd.f32 %v897, %v1220
      %v1222 = vpop.f32.mrb[0].mxu0
      %1223 = vmatprep.mubr.f32.mxu0 0.0
      %1224 = vmatmul.mubr.f32.gmra.mrb[0].mxu0 %v1025
      %v1225 = vpop.f32.mrb[0].mxu0
      %v1226 = vadd.f32 %v902, %v1225
      %v1227 = vpop.f32.mrb[0].mxu0
      %1228 = vmatprep.mubr.f32.mxu0 0.0
      %1229 = vmatmul.mubr.f32.gmra.mrb[0].mxu0 %v1028
      %v1230 = vpop.f32.mrb[0].mxu0
      %v1231 = vadd.f32 %v907, %v1230
      %v1232 = vpop.f32.mrb[0].mxu0
      %1233 = vmatprep.mubr.f32.mxu0 0.0
      %1234 = vmatmul.mubr.f32.gmra.mrb[0].mxu0 %v1031
      %v1235 = vpop.f32.mrb[0].mxu0
      %v1236 = vadd.f32 %v912, %v1235
      %v1237 = vpop.f32.mrb[0].mxu0
      %1238 = vmatprep.mubr.f32.mxu0 0.0
      %1239 = vmatmul.mubr.f32.gmra.mrb[0].mxu0 %v1034
      %v1240 = vpop.f32.mrb[0].mxu0
      %v1241 = vadd.f32 %v917, %v1240
      %v1242 = vpop.f32.mrb[0].mxu0
      %1243 = vmatprep.mubr.f32.mxu0 0.0
      %1244 = vmatmul.mubr.f32.gmra.mrb[0].mxu0 %v1037
      %v1245 = vpop.f32.mrb[0].mxu0
      %v1246 = vadd.f32 %v922, %v1245
      %v1247 = vpop.f32.mrb[0].mxu0
      %1248 = vmatprep.mubr.f32.mxu0 0.0
      %1249 = vmatmul.mubr.f32.gmra.mrb[0].mxu0 %v1040
      %v1250 = vpop.f32.mrb[0].mxu0
      %v1251 = vadd.f32 %v927, %v1250
      %v1252 = vpop.f32.mrb[0].mxu0
      %1253 = vmatprep.mubr.f32.mxu0 0.0
      %1254 = vmatmul.mubr.f32.gmra.mrb[0].mxu0 %v1043
      %v1255 = vpop.f32.mrb[0].mxu0
      %v1256 = vadd.f32 %v932, %v1255
      %v1257 = vpop.f32.mrb[0].mxu0
      %1258 = vmatprep.mubr.f32.mxu0 0.0
      %1259 = vmatmul.mubr.f32.gmra.mrb[0].mxu0 %v1046
      %v1260 = vpop.f32.mrb[0].mxu0
      %v1261 = vadd.f32 %v937, %v1260
      %v1262 = vpop.f32.mrb[0].mxu0
      %1263 = vmatprep.mubr.f32.mxu0 0.0
      %1264 = vmatmul.mubr.f32.gmra.mrb[0].mxu0 %v1049
      %v1265 = vpop.f32.mrb[0].mxu0
      %v1266 = vadd.f32 %v942, %v1265
      %v1267 = vpop.f32.mrb[0].mxu0
      %1268 = vmatprep.mubr.f32.mxu0 0.0
      %1269 = vmatmul.mubr.f32.gmra.mrb[0].mxu0 %v1052
      %v1270 = vpop.f32.mrb[0].mxu0
      %v1271 = vadd.f32 %v947, %v1270
      %v1272 = vpop.f32.mrb[0].mxu0
      %1273 = vmatprep.mubr.f32.mxu0 0.0
      %1274 = vmatmul.mubr.f32.gmra.mrb[0].mxu0 %v1055
      %v1275 = vpop.f32.mrb[0].mxu0
      %v1276 = vadd.f32 %v952, %v1275
      %v1277 = vpop.f32.mrb[0].mxu0
      %1278 = vmatprep.mubr.f32.mxu0 0.0
      %1279 = vmatmul.mubr.f32.gmra.mrb[0].mxu0 %v1058
      %v1280 = vpop.f32.mrb[0].mxu0
      %v1281 = vadd.f32 %v957, %v1280
      %v1282 = vpop.f32.mrb[0].mxu0
      %1283 = vmatprep.mubr.f32.mxu0 0.0
      %1284 = vmatmul.mubr.f32.gmra.mrb[0].mxu0 %v1061
      %v1285 = vpop.f32.mrb[0].mxu0
      %v1286 = vadd.f32 %v962, %v1285
      %v1287 = vpop.f32.mrb[0].mxu0
      %1288 = vmatprep.mubr.f32.mxu0 0.0
      %1289 = vmatmul.mubr.f32.gmra.mrb[0].mxu0 %v1064
      %v1290 = vpop.f32.mrb[0].mxu0
      %v1291 = vadd.f32 %v967, %v1290
      %v1292 = vpop.f32.mrb[0].mxu0
      %1293 = vdwg.mxu0
      %v1294 = vld [vmem:[#allocation2 + $0x2] sm:$0xff]
      %v1295 = vld [vmem:[#allocation2 + $0xa] sm:$0xff]
      %v1296 = vld [vmem:[#allocation2 + $0x1a] sm:$0xff]
      %v1297 = vld [vmem:[#allocation2 + $0x22] sm:$0xff]
      %v1298 = vld [vmem:[#allocation2 + $0x32] sm:$0xff]
      %v1299 = vld [vmem:[#allocation2 + $0x3a] sm:$0xff]
      %v1300 = vld [vmem:[#allocation2 + $0x4a] sm:$0xff]
      %v1301 = vld [vmem:[#allocation2 + $0x52] sm:$0xff]
      %v1302 = vld [vmem:[#allocation2 + $0x62] sm:$0xff]
      %v1303 = vld [vmem:[#allocation2 + $0x6a] sm:$0xff]
      %v1304 = vld [vmem:[#allocation2 + $0x7a] sm:$0xff]
      %v1305 = vld [vmem:[#allocation2 + $0x82] sm:$0xff]
      %v1306 = vld [vmem:[#allocation2 + $0x92] sm:$0xff]
      %v1307 = vld [vmem:[#allocation2 + $0x9a] sm:$0xff]
      %v1308 = vld [vmem:[#allocation2 + $0xaa] sm:$0xff]
      %v1309 = vld [vmem:[#allocation2 + $0xb2] sm:$0xff]
      %v1310 = vld [vmem:[#allocation2 + $0xc2] sm:$0xff]
      %v1311 = vld [vmem:[#allocation2 + $0xca] sm:$0xff]
      %v1312 = vld [vmem:[#allocation2 + $0xda] sm:$0xff]
      %v1313 = vld [vmem:[#allocation2 + $0xe2] sm:$0xff]
      %v1314 = vld [vmem:[#allocation2 + $0xf2] sm:$0xff]
      %v1315 = vld [vmem:[#allocation2 + $0xfa] sm:$0xff]
      %v1316 = vld [vmem:[#allocation2 + $0x10a] sm:$0xff]
      %v1317 = vld [vmem:[#allocation2 + $0x112] sm:$0xff]
      %v1318 = vld [vmem:[#allocation2 + $0x122] sm:$0xff]
      %v1319 = vld [vmem:[#allocation2 + $0x12a] sm:$0xff]
      %v1320 = vld [vmem:[#allocation2 + $0x13a] sm:$0xff]
      %v1321 = vld [vmem:[#allocation2 + $0x142] sm:$0xff]
      %v1322 = vld [vmem:[#allocation2 + $0x152] sm:$0xff]
      %v1323 = vld [vmem:[#allocation2 + $0x15a] sm:$0xff]
      %v1324 = vld [vmem:[#allocation2 + $0x16a] sm:$0xff]
      %v1325 = vld [vmem:[#allocation2 + $0x172] sm:$0xff]
      %v1326 = vld [vmem:[%s3 + $0x8] sm:$0xf]
      %v1328 = vsel %vm524, %v1294, 0
      %v1331 = vsel %vm524, %v1295, 0
      %v1334 = vsel %vm524, %v1296, 0
      %v1337 = vsel %vm524, %v1297, 0
      %v1340 = vsel %vm524, %v1298, 0
      %v1343 = vsel %vm524, %v1299, 0
      %v1346 = vsel %vm524, %v1300, 0
      %v1349 = vsel %vm524, %v1301, 0
      %v1352 = vsel %vm524, %v1302, 0
      %v1355 = vsel %vm524, %v1303, 0
      %v1358 = vsel %vm524, %v1304, 0
      %v1361 = vsel %vm524, %v1305, 0
      %v1364 = vsel %vm524, %v1306, 0
      %v1367 = vsel %vm524, %v1307, 0
      %v1370 = vsel %vm524, %v1308, 0
      %v1373 = vsel %vm524, %v1309, 0
      %v1376 = vsel %vm524, %v1310, 0
      %v1379 = vsel %vm524, %v1311, 0
      %v1382 = vsel %vm524, %v1312, 0
      %v1385 = vsel %vm524, %v1313, 0
      %v1388 = vsel %vm524, %v1314, 0
      %v1391 = vsel %vm524, %v1315, 0
      %v1394 = vsel %vm524, %v1316, 0
      %v1397 = vsel %vm524, %v1317, 0
      %v1400 = vsel %vm524, %v1318, 0
      %v1403 = vsel %vm524, %v1319, 0
      %v1406 = vsel %vm524, %v1320, 0
      %v1409 = vsel %vm524, %v1321, 0
      %v1412 = vsel %vm524, %v1322, 0
      %v1415 = vsel %vm524, %v1323, 0
      %v1418 = vsel %vm524, %v1324, 0
      %v1421 = vsel %vm524, %v1325, 0
      %v1424 = vsel %vm741, %v1326, 0
      %1426 = vmatprep.subr.mxu0 0.0
      %1427 = vmatpush1.msra.mxu0 %v1424
      %1428 = vmatprep.subr.mxu0 0.0
      %1429 = vmatpush1.msra.mxu0 0.0
      %1430 = vmatprep.subr.mxu0 0.0
      %1431 = vmatpush1.msra.mxu0 0.0
      %1432 = vmatprep.subr.mxu0 0.0
      %1433 = vmatpush1.msra.mxu0 0.0
      %1434 = vmatprep.subr.mxu0 0.0
      %1435 = vmatpush1.msra.mxu0 0.0
      %1436 = vmatprep.subr.mxu0 0.0
      %1437 = vmatpush1.msra.mxu0 0.0
      %1438 = vmatprep.subr.mxu0 0.0
      %1439 = vmatpush1.msra.mxu0 0.0
      %1440 = vmatprep.subr.mxu0 0.0
      %1441 = vmatpush1.msra.mxu0 0.0
      %1442 = vmatprep.subr.mxu0 0.0
      %1443 = vmatpush1.msra.mxu0 0.0
      %1444 = vmatprep.subr.mxu0 0.0
      %1445 = vmatpush1.msra.mxu0 0.0
      %1446 = vmatprep.subr.mxu0 0.0
      %1447 = vmatpush1.msra.mxu0 0.0
      %1448 = vmatprep.subr.mxu0 0.0
      %1449 = vmatpush1.msra.mxu0 0.0
      %1450 = vmatprep.subr.mxu0 0.0
      %1451 = vmatpush1.msra.mxu0 0.0
      %1452 = vmatprep.subr.mxu0 0.0
      %1453 = vmatpush1.msra.mxu0 0.0
      %1454 = vmatprep.subr.mxu0 0.0
      %1455 = vmatpush1.msra.mxu0 0.0
      %1456 = vmatprep.subr.mxu0 0.0
      %1457 = vmatpush1.msra.mxu0 0.0
      %1458 = vmatprep.subr.mxu0 0.0
      %1459 = vmatpush1.msra.mxu0 0.0
      %1460 = vmatprep.subr.mxu0 0.0
      %1461 = vmatpush1.msra.mxu0 0.0
      %1462 = vmatprep.subr.mxu0 0.0
      %1463 = vmatpush1.msra.mxu0 0.0
      %1464 = vmatprep.subr.mxu0 0.0
      %1465 = vmatpush1.msra.mxu0 0.0
      %1466 = vmatprep.subr.mxu0 0.0
      %1467 = vmatpush1.msra.mxu0 0.0
      %1468 = vmatprep.subr.mxu0 0.0
      %1469 = vmatpush1.msra.mxu0 0.0
      %1470 = vmatprep.subr.mxu0 0.0
      %1471 = vmatpush1.msra.mxu0 0.0
      %1472 = vmatprep.subr.mxu0 0.0
      %1473 = vmatpush1.msra.mxu0 0.0
      %1474 = vmatprep.subr.mxu0 0.0
      %1475 = vmatpush1.msra.mxu0 0.0
      %1476 = vmatprep.subr.mxu0 0.0
      %1477 = vmatpush1.msra.mxu0 0.0
      %1478 = vmatprep.subr.mxu0 0.0
      %1479 = vmatpush1.msra.mxu0 0.0
      %1480 = vmatprep.subr.mxu0 0.0
      %1481 = vmatpush1.msra.mxu0 0.0
      %1482 = vmatprep.subr.mxu0 0.0
      %1483 = vmatpush1.msra.mxu0 0.0
      %1484 = vmatprep.subr.mxu0 0.0
      %1485 = vmatpush1.msra.mxu0 0.0
      %1486 = vmatprep.subr.mxu0 0.0
      %1487 = vmatpush1.msra.mxu0 0.0
      %1488 = vmatprep.subr.mxu0 0.0
      %1489 = vmatpush1.msra.mxu0 0.0
      %1490 = vmatprep.mubr.f32.mxu0 0.0
      %1491 = vmatmul.mubr.f32.gmra.mrb[0].mxu0 %v1328
      %v1492 = vpop.f32.mrb[0].mxu0
      %v1493 = vadd.f32 0.0, %v1492
      %v1494 = vpop.f32.mrb[0].mxu0
      %1495 = vmatprep.mubr.f32.mxu0 0.0
      %1496 = vmatmul.mubr.f32.gmra.mrb[0].mxu0 %v1331
      %v1497 = vpop.f32.mrb[0].mxu0
      %v1498 = vadd.f32 0.0, %v1497
      %v1499 = vpop.f32.mrb[0].mxu0
      %1500 = vmatprep.mubr.f32.mxu0 0.0
      %1501 = vmatmul.mubr.f32.gmra.mrb[0].mxu0 %v1334
      %v1502 = vpop.f32.mrb[0].mxu0
      %v1503 = vadd.f32 0.0, %v1502
      %v1504 = vpop.f32.mrb[0].mxu0
      %1505 = vmatprep.mubr.f32.mxu0 0.0
      %1506 = vmatmul.mubr.f32.gmra.mrb[0].mxu0 %v1337
      %v1507 = vpop.f32.mrb[0].mxu0
      %v1508 = vadd.f32 0.0, %v1507
      %v1509 = vpop.f32.mrb[0].mxu0
      %1510 = vmatprep.mubr.f32.mxu0 0.0
      %1511 = vmatmul.mubr.f32.gmra.mrb[0].mxu0 %v1340
      %v1512 = vpop.f32.mrb[0].mxu0
      %v1513 = vadd.f32 0.0, %v1512
      %v1514 = vpop.f32.mrb[0].mxu0
      %1515 = vmatprep.mubr.f32.mxu0 0.0
      %1516 = vmatmul.mubr.f32.gmra.mrb[0].mxu0 %v1343
      %v1517 = vpop.f32.mrb[0].mxu0
      %v1518 = vadd.f32 0.0, %v1517
      %v1519 = vpop.f32.mrb[0].mxu0
      %1520 = vmatprep.mubr.f32.mxu0 0.0
      %1521 = vmatmul.mubr.f32.gmra.mrb[0].mxu0 %v1346
      %v1522 = vpop.f32.mrb[0].mxu0
      %v1523 = vadd.f32 0.0, %v1522
      %v1524 = vpop.f32.mrb[0].mxu0
      %1525 = vmatprep.mubr.f32.mxu0 0.0
      %1526 = vmatmul.mubr.f32.gmra.mrb[0].mxu0 %v1349
      %v1527 = vpop.f32.mrb[0].mxu0
      %v1528 = vadd.f32 0.0, %v1527
      %v1529 = vpop.f32.mrb[0].mxu0
      %1530 = vmatprep.mubr.f32.mxu0 0.0
      %1531 = vmatmul.mubr.f32.gmra.mrb[0].mxu0 %v1352
      %v1532 = vpop.f32.mrb[0].mxu0
      %v1533 = vadd.f32 0.0, %v1532
      %v1534 = vpop.f32.mrb[0].mxu0
      %1535 = vmatprep.mubr.f32.mxu0 0.0
      %1536 = vmatmul.mubr.f32.gmra.mrb[0].mxu0 %v1355
      %v1537 = vpop.f32.mrb[0].mxu0
      %v1538 = vadd.f32 0.0, %v1537
      %v1539 = vpop.f32.mrb[0].mxu0
      %1540 = vmatprep.mubr.f32.mxu0 0.0
      %1541 = vmatmul.mubr.f32.gmra.mrb[0].mxu0 %v1358
      %v1542 = vpop.f32.mrb[0].mxu0
      %v1543 = vadd.f32 0.0, %v1542
      %v1544 = vpop.f32.mrb[0].mxu0
      %1545 = vmatprep.mubr.f32.mxu0 0.0
      %1546 = vmatmul.mubr.f32.gmra.mrb[0].mxu0 %v1361
      %v1547 = vpop.f32.mrb[0].mxu0
      %v1548 = vadd.f32 0.0, %v1547
      %v1549 = vpop.f32.mrb[0].mxu0
      %1550 = vmatprep.mubr.f32.mxu0 0.0
      %1551 = vmatmul.mubr.f32.gmra.mrb[0].mxu0 %v1364
      %v1552 = vpop.f32.mrb[0].mxu0
      %v1553 = vadd.f32 0.0, %v1552
      %v1554 = vpop.f32.mrb[0].mxu0
      %1555 = vmatprep.mubr.f32.mxu0 0.0
      %1556 = vmatmul.mubr.f32.gmra.mrb[0].mxu0 %v1367
      %v1557 = vpop.f32.mrb[0].mxu0
      %v1558 = vadd.f32 0.0, %v1557
      %v1559 = vpop.f32.mrb[0].mxu0
      %1560 = vmatprep.mubr.f32.mxu0 0.0
      %1561 = vmatmul.mubr.f32.gmra.mrb[0].mxu0 %v1370
      %v1562 = vpop.f32.mrb[0].mxu0
      %v1563 = vadd.f32 0.0, %v1562
      %v1564 = vpop.f32.mrb[0].mxu0
      %1565 = vmatprep.mubr.f32.mxu0 0.0
      %1566 = vmatmul.mubr.f32.gmra.mrb[0].mxu0 %v1373
      %v1567 = vpop.f32.mrb[0].mxu0
      %v1568 = vadd.f32 0.0, %v1567
      %v1569 = vpop.f32.mrb[0].mxu0
      %1570 = vmatprep.mubr.f32.mxu0 0.0
      %1571 = vmatmul.mubr.f32.gmra.mrb[0].mxu0 %v1376
      %v1572 = vpop.f32.mrb[0].mxu0
      %v1573 = vadd.f32 0.0, %v1572
      %v1574 = vpop.f32.mrb[0].mxu0
      %1575 = vmatprep.mubr.f32.mxu0 0.0
      %1576 = vmatmul.mubr.f32.gmra.mrb[0].mxu0 %v1379
      %v1577 = vpop.f32.mrb[0].mxu0
      %v1578 = vadd.f32 0.0, %v1577
      %v1579 = vpop.f32.mrb[0].mxu0
      %1580 = vmatprep.mubr.f32.mxu0 0.0
      %1581 = vmatmul.mubr.f32.gmra.mrb[0].mxu0 %v1382
      %v1582 = vpop.f32.mrb[0].mxu0
      %v1583 = vadd.f32 0.0, %v1582
      %v1584 = vpop.f32.mrb[0].mxu0
      %1585 = vmatprep.mubr.f32.mxu0 0.0
      %1586 = vmatmul.mubr.f32.gmra.mrb[0].mxu0 %v1385
      %v1587 = vpop.f32.mrb[0].mxu0
      %v1588 = vadd.f32 0.0, %v1587
      %v1589 = vpop.f32.mrb[0].mxu0
      %1590 = vmatprep.mubr.f32.mxu0 0.0
      %1591 = vmatmul.mubr.f32.gmra.mrb[0].mxu0 %v1388
      %v1592 = vpop.f32.mrb[0].mxu0
      %v1593 = vadd.f32 0.0, %v1592
      %v1594 = vpop.f32.mrb[0].mxu0
      %1595 = vmatprep.mubr.f32.mxu0 0.0
      %1596 = vmatmul.mubr.f32.gmra.mrb[0].mxu0 %v1391
      %v1597 = vpop.f32.mrb[0].mxu0
      %v1598 = vadd.f32 0.0, %v1597
      %v1599 = vpop.f32.mrb[0].mxu0
      %1600 = vmatprep.mubr.f32.mxu0 0.0
      %1601 = vmatmul.mubr.f32.gmra.mrb[0].mxu0 %v1394
      %v1602 = vpop.f32.mrb[0].mxu0
      %v1603 = vadd.f32 0.0, %v1602
      %v1604 = vpop.f32.mrb[0].mxu0
      %1605 = vmatprep.mubr.f32.mxu0 0.0
      %1606 = vmatmul.mubr.f32.gmra.mrb[0].mxu0 %v1397
      %v1607 = vpop.f32.mrb[0].mxu0
      %v1608 = vadd.f32 0.0, %v1607
      %v1609 = vpop.f32.mrb[0].mxu0
      %1610 = vmatprep.mubr.f32.mxu0 0.0
      %1611 = vmatmul.mubr.f32.gmra.mrb[0].mxu0 %v1400
      %v1612 = vpop.f32.mrb[0].mxu0
      %v1613 = vadd.f32 0.0, %v1612
      %v1614 = vpop.f32.mrb[0].mxu0
      %1615 = vmatprep.mubr.f32.mxu0 0.0
      %1616 = vmatmul.mubr.f32.gmra.mrb[0].mxu0 %v1403
      %v1617 = vpop.f32.mrb[0].mxu0
      %v1618 = vadd.f32 0.0, %v1617
      %v1619 = vpop.f32.mrb[0].mxu0
      %1620 = vmatprep.mubr.f32.mxu0 0.0
      %1621 = vmatmul.mubr.f32.gmra.mrb[0].mxu0 %v1406
      %v1622 = vpop.f32.mrb[0].mxu0
      %v1623 = vadd.f32 0.0, %v1622
      %v1624 = vpop.f32.mrb[0].mxu0
      %1625 = vmatprep.mubr.f32.mxu0 0.0
      %1626 = vmatmul.mubr.f32.gmra.mrb[0].mxu0 %v1409
      %v1627 = vpop.f32.mrb[0].mxu0
      %v1628 = vadd.f32 0.0, %v1627
      %v1629 = vpop.f32.mrb[0].mxu0
      %1630 = vmatprep.mubr.f32.mxu0 0.0
      %1631 = vmatmul.mubr.f32.gmra.mrb[0].mxu0 %v1412
      %v1632 = vpop.f32.mrb[0].mxu0
      %v1633 = vadd.f32 0.0, %v1632
      %v1634 = vpop.f32.mrb[0].mxu0
      %1635 = vmatprep.mubr.f32.mxu0 0.0
      %1636 = vmatmul.mubr.f32.gmra.mrb[0].mxu0 %v1415
      %v1637 = vpop.f32.mrb[0].mxu0
      %v1638 = vadd.f32 0.0, %v1637
      %v1639 = vpop.f32.mrb[0].mxu0
      %1640 = vmatprep.mubr.f32.mxu0 0.0
      %1641 = vmatmul.mubr.f32.gmra.mrb[0].mxu0 %v1418
      %v1642 = vpop.f32.mrb[0].mxu0
      %v1643 = vadd.f32 0.0, %v1642
      %v1644 = vpop.f32.mrb[0].mxu0
      %1645 = vmatprep.mubr.f32.mxu0 0.0
      %1646 = vmatmul.mubr.f32.gmra.mrb[0].mxu0 %v1421
      %v1647 = vpop.f32.mrb[0].mxu0
      %v1648 = vadd.f32 0.0, %v1647
      %v1649 = vpop.f32.mrb[0].mxu0
      %1650 = vdwg.mxu0
      %v1651 = vadd.f32 %v1136, %v1493
      %v1652 = vadd.f32 %v1141, %v1498
      %v1653 = vadd.f32 %v1146, %v1503
      %v1654 = vadd.f32 %v1151, %v1508
      %v1655 = vadd.f32 %v1156, %v1513
      %v1656 = vadd.f32 %v1161, %v1518
      %v1657 = vadd.f32 %v1166, %v1523
      %v1658 = vadd.f32 %v1171, %v1528
      %v1659 = vadd.f32 %v1176, %v1533
      %v1660 = vadd.f32 %v1181, %v1538
      %v1661 = vadd.f32 %v1186, %v1543
      %v1662 = vadd.f32 %v1191, %v1548
      %v1663 = vadd.f32 %v1196, %v1553
      %v1664 = vadd.f32 %v1201, %v1558
      %v1665 = vadd.f32 %v1206, %v1563
      %v1666 = vadd.f32 %v1211, %v1568
      %v1667 = vadd.f32 %v1216, %v1573
      %v1668 = vadd.f32 %v1221, %v1578
      %v1669 = vadd.f32 %v1226, %v1583
      %v1670 = vadd.f32 %v1231, %v1588
      %v1671 = vadd.f32 %v1236, %v1593
      %v1672 = vadd.f32 %v1241, %v1598
      %v1673 = vadd.f32 %v1246, %v1603
      %v1674 = vadd.f32 %v1251, %v1608
      %v1675 = vadd.f32 %v1256, %v1613
      %v1676 = vadd.f32 %v1261, %v1618
      %v1677 = vadd.f32 %v1266, %v1623
      %v1678 = vadd.f32 %v1271, %v1628
      %v1679 = vadd.f32 %v1276, %v1633
      %v1680 = vadd.f32 %v1281, %v1638
      %v1681 = vadd.f32 %v1286, %v1643
      %v1682 = vadd.f32 %v1291, %v1648
      %v1683 = vld [vmem:[%s523] sm:$0xff]
      %v1684 = vld [vmem:[%s523 + $0x8] sm:$0xff]
      %v1685 = vld [vmem:[%s523 + $0x18] sm:$0xff]
      %v1686 = vld [vmem:[%s523 + $0x20] sm:$0xff]
      %v1687 = vld [vmem:[%s523 + $0x30] sm:$0xff]
      %v1688 = vld [vmem:[%s523 + $0x38] sm:$0xff]
      %v1689 = vld [vmem:[%s523 + $0x48] sm:$0xff]
      %v1690 = vld [vmem:[%s523 + $0x50] sm:$0xff]
      %v1691 = vld [vmem:[%s523 + $0x60] sm:$0xff]
      %v1692 = vld [vmem:[%s523 + $0x68] sm:$0xff]
      %v1693 = vld [vmem:[%s523 + $0x78] sm:$0xff]
      %v1694 = vld [vmem:[%s523 + $0x80] sm:$0xff]
      %v1695 = vld [vmem:[%s523 + $0x90] sm:$0xff]
      %v1696 = vld [vmem:[%s523 + $0x98] sm:$0xff]
      %v1697 = vld [vmem:[%s523 + $0xa8] sm:$0xff]
      %v1698 = vld [vmem:[%s523 + $0xb0] sm:$0xff]
      %v1699 = vld [vmem:[%s523 + $0xc0] sm:$0xff]
      %v1700 = vld [vmem:[%s523 + $0xc8] sm:$0xff]
      %v1701 = vld [vmem:[%s523 + $0xd8] sm:$0xff]
      %v1702 = vld [vmem:[%s523 + $0xe0] sm:$0xff]
      %v1703 = vld [vmem:[%s523 + $0xf0] sm:$0xff]
      %v1704 = vld [vmem:[%s523 + $0xf8] sm:$0xff]
      %v1705 = vld [vmem:[%s523 + $0x108] sm:$0xff]
      %v1706 = vld [vmem:[%s523 + $0x110] sm:$0xff]
      %v1707 = vld [vmem:[%s523 + $0x120] sm:$0xff]
      %v1708 = vld [vmem:[%s523 + $0x128] sm:$0xff]
      %v1709 = vld [vmem:[%s523 + $0x138] sm:$0xff]
      %v1710 = vld [vmem:[%s523 + $0x140] sm:$0xff]
      %v1711 = vld [vmem:[%s523 + $0x150] sm:$0xff]
      %v1712 = vld [vmem:[%s523 + $0x158] sm:$0xff]
      %v1713 = vld [vmem:[%s523 + $0x168] sm:$0xff]
      %v1714 = vld [vmem:[%s523 + $0x170] sm:$0xff]
      %v1715 = vld [vmem:[%s3 + $0xc] sm:$0xf]
      %v1717 = vsel %vm524, %v1683, 0
      %v1720 = vsel %vm524, %v1684, 0
      %v1723 = vsel %vm524, %v1685, 0
      %v1726 = vsel %vm524, %v1686, 0
      %v1729 = vsel %vm524, %v1687, 0
      %v1732 = vsel %vm524, %v1688, 0
      %v1735 = vsel %vm524, %v1689, 0
      %v1738 = vsel %vm524, %v1690, 0
      %v1741 = vsel %vm524, %v1691, 0
      %v1744 = vsel %vm524, %v1692, 0
      %v1747 = vsel %vm524, %v1693, 0
      %v1750 = vsel %vm524, %v1694, 0
      %v1753 = vsel %vm524, %v1695, 0
      %v1756 = vsel %vm524, %v1696, 0
      %v1759 = vsel %vm524, %v1697, 0
      %v1762 = vsel %vm524, %v1698, 0
      %v1765 = vsel %vm524, %v1699, 0
      %v1768 = vsel %vm524, %v1700, 0
      %v1771 = vsel %vm524, %v1701, 0
      %v1774 = vsel %vm524, %v1702, 0
      %v1777 = vsel %vm524, %v1703, 0
      %v1780 = vsel %vm524, %v1704, 0
      %v1783 = vsel %vm524, %v1705, 0
      %v1786 = vsel %vm524, %v1706, 0
      %v1789 = vsel %vm524, %v1707, 0
      %v1792 = vsel %vm524, %v1708, 0
      %v1795 = vsel %vm524, %v1709, 0
      %v1798 = vsel %vm524, %v1710, 0
      %v1801 = vsel %vm524, %v1711, 0
      %v1804 = vsel %vm524, %v1712, 0
      %v1807 = vsel %vm524, %v1713, 0
      %v1810 = vsel %vm524, %v1714, 0
      %v1813 = vsel %vm741, %v1715, 0
      %1815 = vmatprep.subr.mxu0 0.0
      %1816 = vmatpush1.msra.mxu0 %v1813
      %1817 = vmatprep.subr.mxu0 0.0
      %1818 = vmatpush1.msra.mxu0 0.0
      %1819 = vmatprep.subr.mxu0 0.0
      %1820 = vmatpush1.msra.mxu0 0.0
      %1821 = vmatprep.subr.mxu0 0.0
      %1822 = vmatpush1.msra.mxu0 0.0
      %1823 = vmatprep.subr.mxu0 0.0
      %1824 = vmatpush1.msra.mxu0 0.0
      %1825 = vmatprep.subr.mxu0 0.0
      %1826 = vmatpush1.msra.mxu0 0.0
      %1827 = vmatprep.subr.mxu0 0.0
      %1828 = vmatpush1.msra.mxu0 0.0
      %1829 = vmatprep.subr.mxu0 0.0
      %1830 = vmatpush1.msra.mxu0 0.0
      %1831 = vmatprep.subr.mxu0 0.0
      %1832 = vmatpush1.msra.mxu0 0.0
      %1833 = vmatprep.subr.mxu0 0.0
      %1834 = vmatpush1.msra.mxu0 0.0
      %1835 = vmatprep.subr.mxu0 0.0
      %1836 = vmatpush1.msra.mxu0 0.0
      %1837 = vmatprep.subr.mxu0 0.0
      %1838 = vmatpush1.msra.mxu0 0.0
      %1839 = vmatprep.subr.mxu0 0.0
      %1840 = vmatpush1.msra.mxu0 0.0
      %1841 = vmatprep.subr.mxu0 0.0
      %1842 = vmatpush1.msra.mxu0 0.0
      %1843 = vmatprep.subr.mxu0 0.0
      %1844 = vmatpush1.msra.mxu0 0.0
      %1845 = vmatprep.subr.mxu0 0.0
      %1846 = vmatpush1.msra.mxu0 0.0
      %1847 = vmatprep.subr.mxu0 0.0
      %1848 = vmatpush1.msra.mxu0 0.0
      %1849 = vmatprep.subr.mxu0 0.0
      %1850 = vmatpush1.msra.mxu0 0.0
      %1851 = vmatprep.subr.mxu0 0.0
      %1852 = vmatpush1.msra.mxu0 0.0
      %1853 = vmatprep.subr.mxu0 0.0
      %1854 = vmatpush1.msra.mxu0 0.0
      %1855 = vmatprep.subr.mxu0 0.0
      %1856 = vmatpush1.msra.mxu0 0.0
      %1857 = vmatprep.subr.mxu0 0.0
      %1858 = vmatpush1.msra.mxu0 0.0
      %1859 = vmatprep.subr.mxu0 0.0
      %1860 = vmatpush1.msra.mxu0 0.0
      %1861 = vmatprep.subr.mxu0 0.0
      %1862 = vmatpush1.msra.mxu0 0.0
      %1863 = vmatprep.subr.mxu0 0.0
      %1864 = vmatpush1.msra.mxu0 0.0
      %1865 = vmatprep.subr.mxu0 0.0
      %1866 = vmatpush1.msra.mxu0 0.0
      %1867 = vmatprep.subr.mxu0 0.0
      %1868 = vmatpush1.msra.mxu0 0.0
      %1869 = vmatprep.subr.mxu0 0.0
      %1870 = vmatpush1.msra.mxu0 0.0
      %1871 = vmatprep.subr.mxu0 0.0
      %1872 = vmatpush1.msra.mxu0 0.0
      %1873 = vmatprep.subr.mxu0 0.0
      %1874 = vmatpush1.msra.mxu0 0.0
      %1875 = vmatprep.subr.mxu0 0.0
      %1876 = vmatpush1.msra.mxu0 0.0
      %1877 = vmatprep.subr.mxu0 0.0
      %1878 = vmatpush1.msra.mxu0 0.0
      %1879 = vmatprep.mubr.f32.mxu0 0.0
      %1880 = vmatmul.mubr.f32.gmra.mrb[0].mxu0 %v1717
      %v1881 = vpop.f32.mrb[0].mxu0
      %v1882 = vadd.f32 0.0, %v1881
      %v1883 = vpop.f32.mrb[0].mxu0
      %1884 = vmatprep.mubr.f32.mxu0 0.0
      %1885 = vmatmul.mubr.f32.gmra.mrb[0].mxu0 %v1720
      %v1886 = vpop.f32.mrb[0].mxu0
      %v1887 = vadd.f32 0.0, %v1886
      %v1888 = vpop.f32.mrb[0].mxu0
      %1889 = vmatprep.mubr.f32.mxu0 0.0
      %1890 = vmatmul.mubr.f32.gmra.mrb[0].mxu0 %v1723
      %v1891 = vpop.f32.mrb[0].mxu0
      %v1892 = vadd.f32 0.0, %v1891
      %v1893 = vpop.f32.mrb[0].mxu0
      %1894 = vmatprep.mubr.f32.mxu0 0.0
      %1895 = vmatmul.mubr.f32.gmra.mrb[0].mxu0 %v1726
      %v1896 = vpop.f32.mrb[0].mxu0
      %v1897 = vadd.f32 0.0, %v1896
      %v1898 = vpop.f32.mrb[0].mxu0
      %1899 = vmatprep.mubr.f32.mxu0 0.0
      %1900 = vmatmul.mubr.f32.gmra.mrb[0].mxu0 %v1729
      %v1901 = vpop.f32.mrb[0].mxu0
      %v1902 = vadd.f32 0.0, %v1901
      %v1903 = vpop.f32.mrb[0].mxu0
      %1904 = vmatprep.mubr.f32.mxu0 0.0
      %1905 = vmatmul.mubr.f32.gmra.mrb[0].mxu0 %v1732
      %v1906 = vpop.f32.mrb[0].mxu0
      %v1907 = vadd.f32 0.0, %v1906
      %v1908 = vpop.f32.mrb[0].mxu0
      %1909 = vmatprep.mubr.f32.mxu0 0.0
      %1910 = vmatmul.mubr.f32.gmra.mrb[0].mxu0 %v1735
      %v1911 = vpop.f32.mrb[0].mxu0
      %v1912 = vadd.f32 0.0, %v1911
      %v1913 = vpop.f32.mrb[0].mxu0
      %1914 = vmatprep.mubr.f32.mxu0 0.0
      %1915 = vmatmul.mubr.f32.gmra.mrb[0].mxu0 %v1738
      %v1916 = vpop.f32.mrb[0].mxu0
      %v1917 = vadd.f32 0.0, %v1916
      %v1918 = vpop.f32.mrb[0].mxu0
      %1919 = vmatprep.mubr.f32.mxu0 0.0
      %1920 = vmatmul.mubr.f32.gmra.mrb[0].mxu0 %v1741
      %v1921 = vpop.f32.mrb[0].mxu0
      %v1922 = vadd.f32 0.0, %v1921
      %v1923 = vpop.f32.mrb[0].mxu0
      %1924 = vmatprep.mubr.f32.mxu0 0.0
      %1925 = vmatmul.mubr.f32.gmra.mrb[0].mxu0 %v1744
      %v1926 = vpop.f32.mrb[0].mxu0
      %v1927 = vadd.f32 0.0, %v1926
      %v1928 = vpop.f32.mrb[0].mxu0
      %1929 = vmatprep.mubr.f32.mxu0 0.0
      %1930 = vmatmul.mubr.f32.gmra.mrb[0].mxu0 %v1747
      %v1931 = vpop.f32.mrb[0].mxu0
      %v1932 = vadd.f32 0.0, %v1931
      %v1933 = vpop.f32.mrb[0].mxu0
      %1934 = vmatprep.mubr.f32.mxu0 0.0
      %1935 = vmatmul.mubr.f32.gmra.mrb[0].mxu0 %v1750
      %v1936 = vpop.f32.mrb[0].mxu0
      %v1937 = vadd.f32 0.0, %v1936
      %v1938 = vpop.f32.mrb[0].mxu0
      %1939 = vmatprep.mubr.f32.mxu0 0.0
      %1940 = vmatmul.mubr.f32.gmra.mrb[0].mxu0 %v1753
      %v1941 = vpop.f32.mrb[0].mxu0
      %v1942 = vadd.f32 0.0, %v1941
      %v1943 = vpop.f32.mrb[0].mxu0
      %1944 = vmatprep.mubr.f32.mxu0 0.0
      %1945 = vmatmul.mubr.f32.gmra.mrb[0].mxu0 %v1756
      %v1946 = vpop.f32.mrb[0].mxu0
      %v1947 = vadd.f32 0.0, %v1946
      %v1948 = vpop.f32.mrb[0].mxu0
      %1949 = vmatprep.mubr.f32.mxu0 0.0
      %1950 = vmatmul.mubr.f32.gmra.mrb[0].mxu0 %v1759
      %v1951 = vpop.f32.mrb[0].mxu0
      %v1952 = vadd.f32 0.0, %v1951
      %v1953 = vpop.f32.mrb[0].mxu0
      %1954 = vmatprep.mubr.f32.mxu0 0.0
      %1955 = vmatmul.mubr.f32.gmra.mrb[0].mxu0 %v1762
      %v1956 = vpop.f32.mrb[0].mxu0
      %v1957 = vadd.f32 0.0, %v1956
      %v1958 = vpop.f32.mrb[0].mxu0
      %1959 = vmatprep.mubr.f32.mxu0 0.0
      %1960 = vmatmul.mubr.f32.gmra.mrb[0].mxu0 %v1765
      %v1961 = vpop.f32.mrb[0].mxu0
      %v1962 = vadd.f32 0.0, %v1961
      %v1963 = vpop.f32.mrb[0].mxu0
      %1964 = vmatprep.mubr.f32.mxu0 0.0
      %1965 = vmatmul.mubr.f32.gmra.mrb[0].mxu0 %v1768
      %v1966 = vpop.f32.mrb[0].mxu0
      %v1967 = vadd.f32 0.0, %v1966
      %v1968 = vpop.f32.mrb[0].mxu0
      %1969 = vmatprep.mubr.f32.mxu0 0.0
      %1970 = vmatmul.mubr.f32.gmra.mrb[0].mxu0 %v1771
      %v1971 = vpop.f32.mrb[0].mxu0
      %v1972 = vadd.f32 0.0, %v1971
      %v1973 = vpop.f32.mrb[0].mxu0
      %1974 = vmatprep.mubr.f32.mxu0 0.0
      %1975 = vmatmul.mubr.f32.gmra.mrb[0].mxu0 %v1774
      %v1976 = vpop.f32.mrb[0].mxu0
      %v1977 = vadd.f32 0.0, %v1976
      %v1978 = vpop.f32.mrb[0].mxu0
      %1979 = vmatprep.mubr.f32.mxu0 0.0
      %1980 = vmatmul.mubr.f32.gmra.mrb[0].mxu0 %v1777
      %v1981 = vpop.f32.mrb[0].mxu0
      %v1982 = vadd.f32 0.0, %v1981
      %v1983 = vpop.f32.mrb[0].mxu0
      %1984 = vmatprep.mubr.f32.mxu0 0.0
      %1985 = vmatmul.mubr.f32.gmra.mrb[0].mxu0 %v1780
      %v1986 = vpop.f32.mrb[0].mxu0
      %v1987 = vadd.f32 0.0, %v1986
      %v1988 = vpop.f32.mrb[0].mxu0
      %1989 = vmatprep.mubr.f32.mxu0 0.0
      %1990 = vmatmul.mubr.f32.gmra.mrb[0].mxu0 %v1783
      %v1991 = vpop.f32.mrb[0].mxu0
      %v1992 = vadd.f32 0.0, %v1991
      %v1993 = vpop.f32.mrb[0].mxu0
      %1994 = vmatprep.mubr.f32.mxu0 0.0
      %1995 = vmatmul.mubr.f32.gmra.mrb[0].mxu0 %v1786
      %v1996 = vpop.f32.mrb[0].mxu0
      %v1997 = vadd.f32 0.0, %v1996
      %v1998 = vpop.f32.mrb[0].mxu0
      %1999 = vmatprep.mubr.f32.mxu0 0.0
      %2000 = vmatmul.mubr.f32.gmra.mrb[0].mxu0 %v1789
      %v2001 = vpop.f32.mrb[0].mxu0
      %v2002 = vadd.f32 0.0, %v2001
      %v2003 = vpop.f32.mrb[0].mxu0
      %2004 = vmatprep.mubr.f32.mxu0 0.0
      %2005 = vmatmul.mubr.f32.gmra.mrb[0].mxu0 %v1792
      %v2006 = vpop.f32.mrb[0].mxu0
      %v2007 = vadd.f32 0.0, %v2006
      %v2008 = vpop.f32.mrb[0].mxu0
      %2009 = vmatprep.mubr.f32.mxu0 0.0
      %2010 = vmatmul.mubr.f32.gmra.mrb[0].mxu0 %v1795
      %v2011 = vpop.f32.mrb[0].mxu0
      %v2012 = vadd.f32 0.0, %v2011
      %v2013 = vpop.f32.mrb[0].mxu0
      %2014 = vmatprep.mubr.f32.mxu0 0.0
      %2015 = vmatmul.mubr.f32.gmra.mrb[0].mxu0 %v1798
      %v2016 = vpop.f32.mrb[0].mxu0
      %v2017 = vadd.f32 0.0, %v2016
      %v2018 = vpop.f32.mrb[0].mxu0
      %2019 = vmatprep.mubr.f32.mxu0 0.0
      %2020 = vmatmul.mubr.f32.gmra.mrb[0].mxu0 %v1801
      %v2021 = vpop.f32.mrb[0].mxu0
      %v2022 = vadd.f32 0.0, %v2021
      %v2023 = vpop.f32.mrb[0].mxu0
      %2024 = vmatprep.mubr.f32.mxu0 0.0
      %2025 = vmatmul.mubr.f32.gmra.mrb[0].mxu0 %v1804
      %v2026 = vpop.f32.mrb[0].mxu0
      %v2027 = vadd.f32 0.0, %v2026
      %v2028 = vpop.f32.mrb[0].mxu0
      %2029 = vmatprep.mubr.f32.mxu0 0.0
      %2030 = vmatmul.mubr.f32.gmra.mrb[0].mxu0 %v1807
      %v2031 = vpop.f32.mrb[0].mxu0
      %v2032 = vadd.f32 0.0, %v2031
      %v2033 = vpop.f32.mrb[0].mxu0
      %2034 = vmatprep.mubr.f32.mxu0 0.0
      %2035 = vmatmul.mubr.f32.gmra.mrb[0].mxu0 %v1810
      %v2036 = vpop.f32.mrb[0].mxu0
      %v2037 = vadd.f32 0.0, %v2036
      %v2038 = vpop.f32.mrb[0].mxu0
      %2039 = vdwg.mxu0
      %v2040 = vadd.f32 %v1651, %v1882
      %v2041 = vadd.f32 %v1652, %v1887
      %v2042 = vadd.f32 %v1653, %v1892
      %v2043 = vadd.f32 %v1654, %v1897
      %v2044 = vadd.f32 %v1655, %v1902
      %v2045 = vadd.f32 %v1656, %v1907
      %v2046 = vadd.f32 %v1657, %v1912
      %v2047 = vadd.f32 %v1658, %v1917
      %v2048 = vadd.f32 %v1659, %v1922
      %v2049 = vadd.f32 %v1660, %v1927
      %v2050 = vadd.f32 %v1661, %v1932
      %v2051 = vadd.f32 %v1662, %v1937
      %v2052 = vadd.f32 %v1663, %v1942
      %v2053 = vadd.f32 %v1664, %v1947
      %v2054 = vadd.f32 %v1665, %v1952
      %v2055 = vadd.f32 %v1666, %v1957
      %v2056 = vadd.f32 %v1667, %v1962
      %v2057 = vadd.f32 %v1668, %v1967
      %v2058 = vadd.f32 %v1669, %v1972
      %v2059 = vadd.f32 %v1670, %v1977
      %v2060 = vadd.f32 %v1671, %v1982
      %v2061 = vadd.f32 %v1672, %v1987
      %v2062 = vadd.f32 %v1673, %v1992
      %v2063 = vadd.f32 %v1674, %v1997
      %v2064 = vadd.f32 %v1675, %v2002
      %v2065 = vadd.f32 %v1676, %v2007
      %v2066 = vadd.f32 %v1677, %v2012
      %v2067 = vadd.f32 %v1678, %v2017
      %v2068 = vadd.f32 %v1679, %v2022
      %v2069 = vadd.f32 %v1680, %v2027
      %v2070 = vadd.f32 %v1681, %v2032
      %v2071 = vadd.f32 %v1682, %v2037
      %v2072 = vld [vmem:[%s523 + $0x1] sm:$0xff]
      %v2073 = vld [vmem:[%s523 + $0x9] sm:$0xff]
      %v2074 = vld [vmem:[%s523 + $0x19] sm:$0xff]
      %v2075 = vld [vmem:[%s523 + $0x21] sm:$0xff]
      %v2076 = vld [vmem:[%s523 + $0x31] sm:$0xff]
      %v2077 = vld [vmem:[%s523 + $0x39] sm:$0xff]
      %v2078 = vld [vmem:[%s523 + $0x49] sm:$0xff]
      %v2079 = vld [vmem:[%s523 + $0x51] sm:$0xff]
      %v2080 = vld [vmem:[%s523 + $0x61] sm:$0xff]
      %v2081 = vld [vmem:[%s523 + $0x69] sm:$0xff]
      %v2082 = vld [vmem:[%s523 + $0x79] sm:$0xff]
      %v2083 = vld [vmem:[%s523 + $0x81] sm:$0xff]
      %v2084 = vld [vmem:[%s523 + $0x91] sm:$0xff]
      %v2085 = vld [vmem:[%s523 + $0x99] sm:$0xff]
      %v2086 = vld [vmem:[%s523 + $0xa9] sm:$0xff]
      %v2087 = vld [vmem:[%s523 + $0xb1] sm:$0xff]
      %v2088 = vld [vmem:[%s523 + $0xc1] sm:$0xff]
      %v2089 = vld [vmem:[%s523 + $0xc9] sm:$0xff]
      %v2090 = vld [vmem:[%s523 + $0xd9] sm:$0xff]
      %v2091 = vld [vmem:[%s523 + $0xe1] sm:$0xff]
      %v2092 = vld [vmem:[%s523 + $0xf1] sm:$0xff]
      %v2093 = vld [vmem:[%s523 + $0xf9] sm:$0xff]
      %v2094 = vld [vmem:[%s523 + $0x109] sm:$0xff]
      %v2095 = vld [vmem:[%s523 + $0x111] sm:$0xff]
      %v2096 = vld [vmem:[%s523 + $0x121] sm:$0xff]
      %v2097 = vld [vmem:[%s523 + $0x129] sm:$0xff]
      %v2098 = vld [vmem:[%s523 + $0x139] sm:$0xff]
      %v2099 = vld [vmem:[%s523 + $0x141] sm:$0xff]
      %v2100 = vld [vmem:[%s523 + $0x151] sm:$0xff]
      %v2101 = vld [vmem:[%s523 + $0x159] sm:$0xff]
      %v2102 = vld [vmem:[%s523 + $0x169] sm:$0xff]
      %v2103 = vld [vmem:[%s523 + $0x171] sm:$0xff]
      %v2104 = vld [vmem:[%s3 + $0x10] sm:$0xf]
      %v2106 = vsel %vm524, %v2072, 0
      %v2109 = vsel %vm524, %v2073, 0
      %v2112 = vsel %vm524, %v2074, 0
      %v2115 = vsel %vm524, %v2075, 0
      %v2118 = vsel %vm524, %v2076, 0
      %v2121 = vsel %vm524, %v2077, 0
      %v2124 = vsel %vm524, %v2078, 0
      %v2127 = vsel %vm524, %v2079, 0
      %v2130 = vsel %vm524, %v2080, 0
      %v2133 = vsel %vm524, %v2081, 0
      %v2136 = vsel %vm524, %v2082, 0
      %v2139 = vsel %vm524, %v2083, 0
      %v2142 = vsel %vm524, %v2084, 0
      %v2145 = vsel %vm524, %v2085, 0
      %v2148 = vsel %vm524, %v2086, 0
      %v2151 = vsel %vm524, %v2087, 0
      %v2154 = vsel %vm524, %v2088, 0
      %v2157 = vsel %vm524, %v2089, 0
      %v2160 = vsel %vm524, %v2090, 0
      %v2163 = vsel %vm524, %v2091, 0
      %v2166 = vsel %vm524, %v2092, 0
      %v2169 = vsel %vm524, %v2093, 0
      %v2172 = vsel %vm524, %v2094, 0
      %v2175 = vsel %vm524, %v2095, 0
      %v2178 = vsel %vm524, %v2096, 0
      %v2181 = vsel %vm524, %v2097, 0
      %v2184 = vsel %vm524, %v2098, 0
      %v2187 = vsel %vm524, %v2099, 0
      %v2190 = vsel %vm524, %v2100, 0
      %v2193 = vsel %vm524, %v2101, 0
      %v2196 = vsel %vm524, %v2102, 0
      %v2199 = vsel %vm524, %v2103, 0
      %v2202 = vsel %vm741, %v2104, 0
      %2204 = vmatprep.subr.mxu0 0.0
      %2205 = vmatpush1.msra.mxu0 %v2202
      %2206 = vmatprep.subr.mxu0 0.0
      %2207 = vmatpush1.msra.mxu0 0.0
      %2208 = vmatprep.subr.mxu0 0.0
      %2209 = vmatpush1.msra.mxu0 0.0
      %2210 = vmatprep.subr.mxu0 0.0
      %2211 = vmatpush1.msra.mxu0 0.0
      %2212 = vmatprep.subr.mxu0 0.0
      %2213 = vmatpush1.msra.mxu0 0.0
      %2214 = vmatprep.subr.mxu0 0.0
      %2215 = vmatpush1.msra.mxu0 0.0
      %2216 = vmatprep.subr.mxu0 0.0
      %2217 = vmatpush1.msra.mxu0 0.0
      %2218 = vmatprep.subr.mxu0 0.0
      %2219 = vmatpush1.msra.mxu0 0.0
      %2220 = vmatprep.subr.mxu0 0.0
      %2221 = vmatpush1.msra.mxu0 0.0
      %2222 = vmatprep.subr.mxu0 0.0
      %2223 = vmatpush1.msra.mxu0 0.0
      %2224 = vmatprep.subr.mxu0 0.0
      %2225 = vmatpush1.msra.mxu0 0.0
      %2226 = vmatprep.subr.mxu0 0.0
      %2227 = vmatpush1.msra.mxu0 0.0
      %2228 = vmatprep.subr.mxu0 0.0
      %2229 = vmatpush1.msra.mxu0 0.0
      %2230 = vmatprep.subr.mxu0 0.0
      %2231 = vmatpush1.msra.mxu0 0.0
      %2232 = vmatprep.subr.mxu0 0.0
      %2233 = vmatpush1.msra.mxu0 0.0
      %2234 = vmatprep.subr.mxu0 0.0
      %2235 = vmatpush1.msra.mxu0 0.0
      %2236 = vmatprep.subr.mxu0 0.0
      %2237 = vmatpush1.msra.mxu0 0.0
      %2238 = vmatprep.subr.mxu0 0.0
      %2239 = vmatpush1.msra.mxu0 0.0
      %2240 = vmatprep.subr.mxu0 0.0
      %2241 = vmatpush1.msra.mxu0 0.0
      %2242 = vmatprep.subr.mxu0 0.0
      %2243 = vmatpush1.msra.mxu0 0.0
      %2244 = vmatprep.subr.mxu0 0.0
      %2245 = vmatpush1.msra.mxu0 0.0
      %2246 = vmatprep.subr.mxu0 0.0
      %2247 = vmatpush1.msra.mxu0 0.0
      %2248 = vmatprep.subr.mxu0 0.0
      %2249 = vmatpush1.msra.mxu0 0.0
      %2250 = vmatprep.subr.mxu0 0.0
      %2251 = vmatpush1.msra.mxu0 0.0
      %2252 = vmatprep.subr.mxu0 0.0
      %2253 = vmatpush1.msra.mxu0 0.0
      %2254 = vmatprep.subr.mxu0 0.0
      %2255 = vmatpush1.msra.mxu0 0.0
      %2256 = vmatprep.subr.mxu0 0.0
      %2257 = vmatpush1.msra.mxu0 0.0
      %2258 = vmatprep.subr.mxu0 0.0
      %2259 = vmatpush1.msra.mxu0 0.0
      %2260 = vmatprep.subr.mxu0 0.0
      %2261 = vmatpush1.msra.mxu0 0.0
      %2262 = vmatprep.subr.mxu0 0.0
      %2263 = vmatpush1.msra.mxu0 0.0
      %2264 = vmatprep.subr.mxu0 0.0
      %2265 = vmatpush1.msra.mxu0 0.0
      %2266 = vmatprep.subr.mxu0 0.0
      %2267 = vmatpush1.msra.mxu0 0.0
      %2268 = vmatprep.mubr.f32.mxu0 0.0
      %2269 = vmatmul.mubr.f32.gmra.mrb[0].mxu0 %v2106
      %v2270 = vpop.f32.mrb[0].mxu0
      %v2271 = vadd.f32 0.0, %v2270
      %v2272 = vpop.f32.mrb[0].mxu0
      %2273 = vmatprep.mubr.f32.mxu0 0.0
      %2274 = vmatmul.mubr.f32.gmra.mrb[0].mxu0 %v2109
      %v2275 = vpop.f32.mrb[0].mxu0
      %v2276 = vadd.f32 0.0, %v2275
      %v2277 = vpop.f32.mrb[0].mxu0
      %2278 = vmatprep.mubr.f32.mxu0 0.0
      %2279 = vmatmul.mubr.f32.gmra.mrb[0].mxu0 %v2112
      %v2280 = vpop.f32.mrb[0].mxu0
      %v2281 = vadd.f32 0.0, %v2280
      %v2282 = vpop.f32.mrb[0].mxu0
      %2283 = vmatprep.mubr.f32.mxu0 0.0
      %2284 = vmatmul.mubr.f32.gmra.mrb[0].mxu0 %v2115
      %v2285 = vpop.f32.mrb[0].mxu0
      %v2286 = vadd.f32 0.0, %v2285
      %v2287 = vpop.f32.mrb[0].mxu0
      %2288 = vmatprep.mubr.f32.mxu0 0.0
      %2289 = vmatmul.mubr.f32.gmra.mrb[0].mxu0 %v2118
      %v2290 = vpop.f32.mrb[0].mxu0
      %v2291 = vadd.f32 0.0, %v2290
      %v2292 = vpop.f32.mrb[0].mxu0
      %2293 = vmatprep.mubr.f32.mxu0 0.0
      %2294 = vmatmul.mubr.f32.gmra.mrb[0].mxu0 %v2121
      %v2295 = vpop.f32.mrb[0].mxu0
      %v2296 = vadd.f32 0.0, %v2295
      %v2297 = vpop.f32.mrb[0].mxu0
      %2298 = vmatprep.mubr.f32.mxu0 0.0
      %2299 = vmatmul.mubr.f32.gmra.mrb[0].mxu0 %v2124
      %v2300 = vpop.f32.mrb[0].mxu0
      %v2301 = vadd.f32 0.0, %v2300
      %v2302 = vpop.f32.mrb[0].mxu0
      %2303 = vmatprep.mubr.f32.mxu0 0.0
      %2304 = vmatmul.mubr.f32.gmra.mrb[0].mxu0 %v2127
      %v2305 = vpop.f32.mrb[0].mxu0
      %v2306 = vadd.f32 0.0, %v2305
      %v2307 = vpop.f32.mrb[0].mxu0
      %2308 = vmatprep.mubr.f32.mxu0 0.0
      %2309 = vmatmul.mubr.f32.gmra.mrb[0].mxu0 %v2130
      %v2310 = vpop.f32.mrb[0].mxu0
      %v2311 = vadd.f32 0.0, %v2310
      %v2312 = vpop.f32.mrb[0].mxu0
      %2313 = vmatprep.mubr.f32.mxu0 0.0
      %2314 = vmatmul.mubr.f32.gmra.mrb[0].mxu0 %v2133
      %v2315 = vpop.f32.mrb[0].mxu0
      %v2316 = vadd.f32 0.0, %v2315
      %v2317 = vpop.f32.mrb[0].mxu0
      %2318 = vmatprep.mubr.f32.mxu0 0.0
      %2319 = vmatmul.mubr.f32.gmra.mrb[0].mxu0 %v2136
      %v2320 = vpop.f32.mrb[0].mxu0
      %v2321 = vadd.f32 0.0, %v2320
      %v2322 = vpop.f32.mrb[0].mxu0
      %2323 = vmatprep.mubr.f32.mxu0 0.0
      %2324 = vmatmul.mubr.f32.gmra.mrb[0].mxu0 %v2139
      %v2325 = vpop.f32.mrb[0].mxu0
      %v2326 = vadd.f32 0.0, %v2325
      %v2327 = vpop.f32.mrb[0].mxu0
      %2328 = vmatprep.mubr.f32.mxu0 0.0
      %2329 = vmatmul.mubr.f32.gmra.mrb[0].mxu0 %v2142
      %v2330 = vpop.f32.mrb[0].mxu0
      %v2331 = vadd.f32 0.0, %v2330
      %v2332 = vpop.f32.mrb[0].mxu0
      %2333 = vmatprep.mubr.f32.mxu0 0.0
      %2334 = vmatmul.mubr.f32.gmra.mrb[0].mxu0 %v2145
      %v2335 = vpop.f32.mrb[0].mxu0
      %v2336 = vadd.f32 0.0, %v2335
      %v2337 = vpop.f32.mrb[0].mxu0
      %2338 = vmatprep.mubr.f32.mxu0 0.0
      %2339 = vmatmul.mubr.f32.gmra.mrb[0].mxu0 %v2148
      %v2340 = vpop.f32.mrb[0].mxu0
      %v2341 = vadd.f32 0.0, %v2340
      %v2342 = vpop.f32.mrb[0].mxu0
      %2343 = vmatprep.mubr.f32.mxu0 0.0
      %2344 = vmatmul.mubr.f32.gmra.mrb[0].mxu0 %v2151
      %v2345 = vpop.f32.mrb[0].mxu0
      %v2346 = vadd.f32 0.0, %v2345
      %v2347 = vpop.f32.mrb[0].mxu0
      %2348 = vmatprep.mubr.f32.mxu0 0.0
      %2349 = vmatmul.mubr.f32.gmra.mrb[0].mxu0 %v2154
      %v2350 = vpop.f32.mrb[0].mxu0
      %v2351 = vadd.f32 0.0, %v2350
      %v2352 = vpop.f32.mrb[0].mxu0
      %2353 = vmatprep.mubr.f32.mxu0 0.0
      %2354 = vmatmul.mubr.f32.gmra.mrb[0].mxu0 %v2157
      %v2355 = vpop.f32.mrb[0].mxu0
      %v2356 = vadd.f32 0.0, %v2355
      %v2357 = vpop.f32.mrb[0].mxu0
      %2358 = vmatprep.mubr.f32.mxu0 0.0
      %2359 = vmatmul.mubr.f32.gmra.mrb[0].mxu0 %v2160
      %v2360 = vpop.f32.mrb[0].mxu0
      %v2361 = vadd.f32 0.0, %v2360
      %v2362 = vpop.f32.mrb[0].mxu0
      %2363 = vmatprep.mubr.f32.mxu0 0.0
      %2364 = vmatmul.mubr.f32.gmra.mrb[0].mxu0 %v2163
      %v2365 = vpop.f32.mrb[0].mxu0
      %v2366 = vadd.f32 0.0, %v2365
      %v2367 = vpop.f32.mrb[0].mxu0
      %2368 = vmatprep.mubr.f32.mxu0 0.0
      %2369 = vmatmul.mubr.f32.gmra.mrb[0].mxu0 %v2166
      %v2370 = vpop.f32.mrb[0].mxu0
      %v2371 = vadd.f32 0.0, %v2370
      %v2372 = vpop.f32.mrb[0].mxu0
      %2373 = vmatprep.mubr.f32.mxu0 0.0
      %2374 = vmatmul.mubr.f32.gmra.mrb[0].mxu0 %v2169
      %v2375 = vpop.f32.mrb[0].mxu0
      %v2376 = vadd.f32 0.0, %v2375
      %v2377 = vpop.f32.mrb[0].mxu0
      %2378 = vmatprep.mubr.f32.mxu0 0.0
      %2379 = vmatmul.mubr.f32.gmra.mrb[0].mxu0 %v2172
      %v2380 = vpop.f32.mrb[0].mxu0
      %v2381 = vadd.f32 0.0, %v2380
      %v2382 = vpop.f32.mrb[0].mxu0
      %2383 = vmatprep.mubr.f32.mxu0 0.0
      %2384 = vmatmul.mubr.f32.gmra.mrb[0].mxu0 %v2175
      %v2385 = vpop.f32.mrb[0].mxu0
      %v2386 = vadd.f32 0.0, %v2385
      %v2387 = vpop.f32.mrb[0].mxu0
      %2388 = vmatprep.mubr.f32.mxu0 0.0
      %2389 = vmatmul.mubr.f32.gmra.mrb[0].mxu0 %v2178
      %v2390 = vpop.f32.mrb[0].mxu0
      %v2391 = vadd.f32 0.0, %v2390
      %v2392 = vpop.f32.mrb[0].mxu0
      %2393 = vmatprep.mubr.f32.mxu0 0.0
      %2394 = vmatmul.mubr.f32.gmra.mrb[0].mxu0 %v2181
      %v2395 = vpop.f32.mrb[0].mxu0
      %v2396 = vadd.f32 0.0, %v2395
      %v2397 = vpop.f32.mrb[0].mxu0
      %2398 = vmatprep.mubr.f32.mxu0 0.0
      %2399 = vmatmul.mubr.f32.gmra.mrb[0].mxu0 %v2184
      %v2400 = vpop.f32.mrb[0].mxu0
      %v2401 = vadd.f32 0.0, %v2400
      %v2402 = vpop.f32.mrb[0].mxu0
      %2403 = vmatprep.mubr.f32.mxu0 0.0
      %2404 = vmatmul.mubr.f32.gmra.mrb[0].mxu0 %v2187
      %v2405 = vpop.f32.mrb[0].mxu0
      %v2406 = vadd.f32 0.0, %v2405
      %v2407 = vpop.f32.mrb[0].mxu0
      %2408 = vmatprep.mubr.f32.mxu0 0.0
      %2409 = vmatmul.mubr.f32.gmra.mrb[0].mxu0 %v2190
      %v2410 = vpop.f32.mrb[0].mxu0
      %v2411 = vadd.f32 0.0, %v2410
      %v2412 = vpop.f32.mrb[0].mxu0
      %2413 = vmatprep.mubr.f32.mxu0 0.0
      %2414 = vmatmul.mubr.f32.gmra.mrb[0].mxu0 %v2193
      %v2415 = vpop.f32.mrb[0].mxu0
      %v2416 = vadd.f32 0.0, %v2415
      %v2417 = vpop.f32.mrb[0].mxu0
      %2418 = vmatprep.mubr.f32.mxu0 0.0
      %2419 = vmatmul.mubr.f32.gmra.mrb[0].mxu0 %v2196
      %v2420 = vpop.f32.mrb[0].mxu0
      %v2421 = vadd.f32 0.0, %v2420
      %v2422 = vpop.f32.mrb[0].mxu0
      %2423 = vmatprep.mubr.f32.mxu0 0.0
      %2424 = vmatmul.mubr.f32.gmra.mrb[0].mxu0 %v2199
      %v2425 = vpop.f32.mrb[0].mxu0
      %v2426 = vadd.f32 0.0, %v2425
      %v2427 = vpop.f32.mrb[0].mxu0
      %2428 = vdwg.mxu0
      %v2429 = vadd.f32 %v2040, %v2271
      %v2430 = vadd.f32 %v2041, %v2276
      %v2431 = vadd.f32 %v2042, %v2281
      %v2432 = vadd.f32 %v2043, %v2286
      %v2433 = vadd.f32 %v2044, %v2291
      %v2434 = vadd.f32 %v2045, %v2296
      %v2435 = vadd.f32 %v2046, %v2301
      %v2436 = vadd.f32 %v2047, %v2306
      %v2437 = vadd.f32 %v2048, %v2311
      %v2438 = vadd.f32 %v2049, %v2316
      %v2439 = vadd.f32 %v2050, %v2321
      %v2440 = vadd.f32 %v2051, %v2326
      %v2441 = vadd.f32 %v2052, %v2331
      %v2442 = vadd.f32 %v2053, %v2336
      %v2443 = vadd.f32 %v2054, %v2341
      %v2444 = vadd.f32 %v2055, %v2346
      %v2445 = vadd.f32 %v2056, %v2351
      %v2446 = vadd.f32 %v2057, %v2356
      %v2447 = vadd.f32 %v2058, %v2361
      %v2448 = vadd.f32 %v2059, %v2366
      %v2449 = vadd.f32 %v2060, %v2371
      %v2450 = vadd.f32 %v2061, %v2376
      %v2451 = vadd.f32 %v2062, %v2381
      %v2452 = vadd.f32 %v2063, %v2386
      %v2453 = vadd.f32 %v2064, %v2391
      %v2454 = vadd.f32 %v2065, %v2396
      %v2455 = vadd.f32 %v2066, %v2401
      %v2456 = vadd.f32 %v2067, %v2406
      %v2457 = vadd.f32 %v2068, %v2411
      %v2458 = vadd.f32 %v2069, %v2416
      %v2459 = vadd.f32 %v2070, %v2421
      %v2460 = vadd.f32 %v2071, %v2426
      %v2461 = vld [vmem:[%s523 + $0x2] sm:$0xff]
      %v2462 = vld [vmem:[%s523 + $0xa] sm:$0xff]
      %v2463 = vld [vmem:[%s523 + $0x1a] sm:$0xff]
      %v2464 = vld [vmem:[%s523 + $0x22] sm:$0xff]
      %v2465 = vld [vmem:[%s523 + $0x32] sm:$0xff]
      %v2466 = vld [vmem:[%s523 + $0x3a] sm:$0xff]
      %v2467 = vld [vmem:[%s523 + $0x4a] sm:$0xff]
      %v2468 = vld [vmem:[%s523 + $0x52] sm:$0xff]
      %v2469 = vld [vmem:[%s523 + $0x62] sm:$0xff]
      %v2470 = vld [vmem:[%s523 + $0x6a] sm:$0xff]
      %v2471 = vld [vmem:[%s523 + $0x7a] sm:$0xff]
      %v2472 = vld [vmem:[%s523 + $0x82] sm:$0xff]
      %v2473 = vld [vmem:[%s523 + $0x92] sm:$0xff]
      %v2474 = vld [vmem:[%s523 + $0x9a] sm:$0xff]
      %v2475 = vld [vmem:[%s523 + $0xaa] sm:$0xff]
      %v2476 = vld [vmem:[%s523 + $0xb2] sm:$0xff]
      %v2477 = vld [vmem:[%s523 + $0xc2] sm:$0xff]
      %v2478 = vld [vmem:[%s523 + $0xca] sm:$0xff]
      %v2479 = vld [vmem:[%s523 + $0xda] sm:$0xff]
      %v2480 = vld [vmem:[%s523 + $0xe2] sm:$0xff]
      %v2481 = vld [vmem:[%s523 + $0xf2] sm:$0xff]
      %v2482 = vld [vmem:[%s523 + $0xfa] sm:$0xff]
      %v2483 = vld [vmem:[%s523 + $0x10a] sm:$0xff]
      %v2484 = vld [vmem:[%s523 + $0x112] sm:$0xff]
      %v2485 = vld [vmem:[%s523 + $0x122] sm:$0xff]
      %v2486 = vld [vmem:[%s523 + $0x12a] sm:$0xff]
      %v2487 = vld [vmem:[%s523 + $0x13a] sm:$0xff]
      %v2488 = vld [vmem:[%s523 + $0x142] sm:$0xff]
      %v2489 = vld [vmem:[%s523 + $0x152] sm:$0xff]
      %v2490 = vld [vmem:[%s523 + $0x15a] sm:$0xff]
      %v2491 = vld [vmem:[%s523 + $0x16a] sm:$0xff]
      %v2492 = vld [vmem:[%s523 + $0x172] sm:$0xff]
      %v2493 = vld [vmem:[%s3 + $0x14] sm:$0xf]
      %v2495 = vsel %vm524, %v2461, 0
      %v2498 = vsel %vm524, %v2462, 0
      %v2501 = vsel %vm524, %v2463, 0
      %v2504 = vsel %vm524, %v2464, 0
      %v2507 = vsel %vm524, %v2465, 0
      %v2510 = vsel %vm524, %v2466, 0
      %v2513 = vsel %vm524, %v2467, 0
      %v2516 = vsel %vm524, %v2468, 0
      %v2519 = vsel %vm524, %v2469, 0
      %v2522 = vsel %vm524, %v2470, 0
      %v2525 = vsel %vm524, %v2471, 0
      %v2528 = vsel %vm524, %v2472, 0
      %v2531 = vsel %vm524, %v2473, 0
      %v2534 = vsel %vm524, %v2474, 0
      %v2537 = vsel %vm524, %v2475, 0
      %v2540 = vsel %vm524, %v2476, 0
      %v2543 = vsel %vm524, %v2477, 0
      %v2546 = vsel %vm524, %v2478, 0
      %v2549 = vsel %vm524, %v2479, 0
      %v2552 = vsel %vm524, %v2480, 0
      %v2555 = vsel %vm524, %v2481, 0
      %v2558 = vsel %vm524, %v2482, 0
      %v2561 = vsel %vm524, %v2483, 0
      %v2564 = vsel %vm524, %v2484, 0
      %v2567 = vsel %vm524, %v2485, 0
      %v2570 = vsel %vm524, %v2486, 0
      %v2573 = vsel %vm524, %v2487, 0
      %v2576 = vsel %vm524, %v2488, 0
      %v2579 = vsel %vm524, %v2489, 0
      %v2582 = vsel %vm524, %v2490, 0
      %v2585 = vsel %vm524, %v2491, 0
      %v2588 = vsel %vm524, %v2492, 0
      %v2591 = vsel %vm741, %v2493, 0
      %2593 = vmatprep.subr.mxu0 0.0
      %2594 = vmatpush1.msra.mxu0 %v2591
      %2595 = vmatprep.subr.mxu0 0.0
      %2596 = vmatpush1.msra.mxu0 0.0
      %2597 = vmatprep.subr.mxu0 0.0
      %2598 = vmatpush1.msra.mxu0 0.0
      %2599 = vmatprep.subr.mxu0 0.0
      %2600 = vmatpush1.msra.mxu0 0.0
      %2601 = vmatprep.subr.mxu0 0.0
      %2602 = vmatpush1.msra.mxu0 0.0
      %2603 = vmatprep.subr.mxu0 0.0
      %2604 = vmatpush1.msra.mxu0 0.0
      %2605 = vmatprep.subr.mxu0 0.0
      %2606 = vmatpush1.msra.mxu0 0.0
      %2607 = vmatprep.subr.mxu0 0.0
      %2608 = vmatpush1.msra.mxu0 0.0
      %2609 = vmatprep.subr.mxu0 0.0
      %2610 = vmatpush1.msra.mxu0 0.0
      %2611 = vmatprep.subr.mxu0 0.0
      %2612 = vmatpush1.msra.mxu0 0.0
      %2613 = vmatprep.subr.mxu0 0.0
      %2614 = vmatpush1.msra.mxu0 0.0
      %2615 = vmatprep.subr.mxu0 0.0
      %2616 = vmatpush1.msra.mxu0 0.0
      %2617 = vmatprep.subr.mxu0 0.0
      %2618 = vmatpush1.msra.mxu0 0.0
      %2619 = vmatprep.subr.mxu0 0.0
      %2620 = vmatpush1.msra.mxu0 0.0
      %2621 = vmatprep.subr.mxu0 0.0
      %2622 = vmatpush1.msra.mxu0 0.0
      %2623 = vmatprep.subr.mxu0 0.0
      %2624 = vmatpush1.msra.mxu0 0.0
      %2625 = vmatprep.subr.mxu0 0.0
      %2626 = vmatpush1.msra.mxu0 0.0
      %2627 = vmatprep.subr.mxu0 0.0
      %2628 = vmatpush1.msra.mxu0 0.0
      %2629 = vmatprep.subr.mxu0 0.0
      %2630 = vmatpush1.msra.mxu0 0.0
      %2631 = vmatprep.subr.mxu0 0.0
      %2632 = vmatpush1.msra.mxu0 0.0
      %2633 = vmatprep.subr.mxu0 0.0
      %2634 = vmatpush1.msra.mxu0 0.0
      %2635 = vmatprep.subr.mxu0 0.0
      %2636 = vmatpush1.msra.mxu0 0.0
      %2637 = vmatprep.subr.mxu0 0.0
      %2638 = vmatpush1.msra.mxu0 0.0
      %2639 = vmatprep.subr.mxu0 0.0
      %2640 = vmatpush1.msra.mxu0 0.0
      %2641 = vmatprep.subr.mxu0 0.0
      %2642 = vmatpush1.msra.mxu0 0.0
      %2643 = vmatprep.subr.mxu0 0.0
      %2644 = vmatpush1.msra.mxu0 0.0
      %2645 = vmatprep.subr.mxu0 0.0
      %2646 = vmatpush1.msra.mxu0 0.0
      %2647 = vmatprep.subr.mxu0 0.0
      %2648 = vmatpush1.msra.mxu0 0.0
      %2649 = vmatprep.subr.mxu0 0.0
      %2650 = vmatpush1.msra.mxu0 0.0
      %2651 = vmatprep.subr.mxu0 0.0
      %2652 = vmatpush1.msra.mxu0 0.0
      %2653 = vmatprep.subr.mxu0 0.0
      %2654 = vmatpush1.msra.mxu0 0.0
      %2655 = vmatprep.subr.mxu0 0.0
      %2656 = vmatpush1.msra.mxu0 0.0
      %2657 = vmatprep.mubr.f32.mxu0 0.0
      %2658 = vmatmul.mubr.f32.gmra.mrb[0].mxu0 %v2495
      %v2659 = vpop.f32.mrb[0].mxu0
      %v2660 = vadd.f32 0.0, %v2659
      %v2661 = vpop.f32.mrb[0].mxu0
      %2662 = vmatprep.mubr.f32.mxu0 0.0
      %2663 = vmatmul.mubr.f32.gmra.mrb[0].mxu0 %v2498
      %v2664 = vpop.f32.mrb[0].mxu0
      %v2665 = vadd.f32 0.0, %v2664
      %v2666 = vpop.f32.mrb[0].mxu0
      %2667 = vmatprep.mubr.f32.mxu0 0.0
      %2668 = vmatmul.mubr.f32.gmra.mrb[0].mxu0 %v2501
      %v2669 = vpop.f32.mrb[0].mxu0
      %v2670 = vadd.f32 0.0, %v2669
      %v2671 = vpop.f32.mrb[0].mxu0
      %2672 = vmatprep.mubr.f32.mxu0 0.0
      %2673 = vmatmul.mubr.f32.gmra.mrb[0].mxu0 %v2504
      %v2674 = vpop.f32.mrb[0].mxu0
      %v2675 = vadd.f32 0.0, %v2674
      %v2676 = vpop.f32.mrb[0].mxu0
      %2677 = vmatprep.mubr.f32.mxu0 0.0
      %2678 = vmatmul.mubr.f32.gmra.mrb[0].mxu0 %v2507
      %v2679 = vpop.f32.mrb[0].mxu0
      %v2680 = vadd.f32 0.0, %v2679
      %v2681 = vpop.f32.mrb[0].mxu0
      %2682 = vmatprep.mubr.f32.mxu0 0.0
      %2683 = vmatmul.mubr.f32.gmra.mrb[0].mxu0 %v2510
      %v2684 = vpop.f32.mrb[0].mxu0
      %v2685 = vadd.f32 0.0, %v2684
      %v2686 = vpop.f32.mrb[0].mxu0
      %2687 = vmatprep.mubr.f32.mxu0 0.0
      %2688 = vmatmul.mubr.f32.gmra.mrb[0].mxu0 %v2513
      %v2689 = vpop.f32.mrb[0].mxu0
      %v2690 = vadd.f32 0.0, %v2689
      %v2691 = vpop.f32.mrb[0].mxu0
      %2692 = vmatprep.mubr.f32.mxu0 0.0
      %2693 = vmatmul.mubr.f32.gmra.mrb[0].mxu0 %v2516
      %v2694 = vpop.f32.mrb[0].mxu0
      %v2695 = vadd.f32 0.0, %v2694
      %v2696 = vpop.f32.mrb[0].mxu0
      %2697 = vmatprep.mubr.f32.mxu0 0.0
      %2698 = vmatmul.mubr.f32.gmra.mrb[0].mxu0 %v2519
      %v2699 = vpop.f32.mrb[0].mxu0
      %v2700 = vadd.f32 0.0, %v2699
      %v2701 = vpop.f32.mrb[0].mxu0
      %2702 = vmatprep.mubr.f32.mxu0 0.0
      %2703 = vmatmul.mubr.f32.gmra.mrb[0].mxu0 %v2522
      %v2704 = vpop.f32.mrb[0].mxu0
      %v2705 = vadd.f32 0.0, %v2704
      %v2706 = vpop.f32.mrb[0].mxu0
      %2707 = vmatprep.mubr.f32.mxu0 0.0
      %2708 = vmatmul.mubr.f32.gmra.mrb[0].mxu0 %v2525
      %v2709 = vpop.f32.mrb[0].mxu0
      %v2710 = vadd.f32 0.0, %v2709
      %v2711 = vpop.f32.mrb[0].mxu0
      %2712 = vmatprep.mubr.f32.mxu0 0.0
      %2713 = vmatmul.mubr.f32.gmra.mrb[0].mxu0 %v2528
      %v2714 = vpop.f32.mrb[0].mxu0
      %v2715 = vadd.f32 0.0, %v2714
      %v2716 = vpop.f32.mrb[0].mxu0
      %2717 = vmatprep.mubr.f32.mxu0 0.0
      %2718 = vmatmul.mubr.f32.gmra.mrb[0].mxu0 %v2531
      %v2719 = vpop.f32.mrb[0].mxu0
      %v2720 = vadd.f32 0.0, %v2719
      %v2721 = vpop.f32.mrb[0].mxu0
      %2722 = vmatprep.mubr.f32.mxu0 0.0
      %2723 = vmatmul.mubr.f32.gmra.mrb[0].mxu0 %v2534
      %v2724 = vpop.f32.mrb[0].mxu0
      %v2725 = vadd.f32 0.0, %v2724
      %v2726 = vpop.f32.mrb[0].mxu0
      %2727 = vmatprep.mubr.f32.mxu0 0.0
      %2728 = vmatmul.mubr.f32.gmra.mrb[0].mxu0 %v2537
      %v2729 = vpop.f32.mrb[0].mxu0
      %v2730 = vadd.f32 0.0, %v2729
      %v2731 = vpop.f32.mrb[0].mxu0
      %2732 = vmatprep.mubr.f32.mxu0 0.0
      %2733 = vmatmul.mubr.f32.gmra.mrb[0].mxu0 %v2540
      %v2734 = vpop.f32.mrb[0].mxu0
      %v2735 = vadd.f32 0.0, %v2734
      %v2736 = vpop.f32.mrb[0].mxu0
      %2737 = vmatprep.mubr.f32.mxu0 0.0
      %2738 = vmatmul.mubr.f32.gmra.mrb[0].mxu0 %v2543
      %v2739 = vpop.f32.mrb[0].mxu0
      %v2740 = vadd.f32 0.0, %v2739
      %v2741 = vpop.f32.mrb[0].mxu0
      %2742 = vmatprep.mubr.f32.mxu0 0.0
      %2743 = vmatmul.mubr.f32.gmra.mrb[0].mxu0 %v2546
      %v2744 = vpop.f32.mrb[0].mxu0
      %v2745 = vadd.f32 0.0, %v2744
      %v2746 = vpop.f32.mrb[0].mxu0
      %2747 = vmatprep.mubr.f32.mxu0 0.0
      %2748 = vmatmul.mubr.f32.gmra.mrb[0].mxu0 %v2549
      %v2749 = vpop.f32.mrb[0].mxu0
      %v2750 = vadd.f32 0.0, %v2749
      %v2751 = vpop.f32.mrb[0].mxu0
      %2752 = vmatprep.mubr.f32.mxu0 0.0
      %2753 = vmatmul.mubr.f32.gmra.mrb[0].mxu0 %v2552
      %v2754 = vpop.f32.mrb[0].mxu0
      %v2755 = vadd.f32 0.0, %v2754
      %v2756 = vpop.f32.mrb[0].mxu0
      %2757 = vmatprep.mubr.f32.mxu0 0.0
      %2758 = vmatmul.mubr.f32.gmra.mrb[0].mxu0 %v2555
      %v2759 = vpop.f32.mrb[0].mxu0
      %v2760 = vadd.f32 0.0, %v2759
      %v2761 = vpop.f32.mrb[0].mxu0
      %2762 = vmatprep.mubr.f32.mxu0 0.0
      %2763 = vmatmul.mubr.f32.gmra.mrb[0].mxu0 %v2558
      %v2764 = vpop.f32.mrb[0].mxu0
      %v2765 = vadd.f32 0.0, %v2764
      %v2766 = vpop.f32.mrb[0].mxu0
      %2767 = vmatprep.mubr.f32.mxu0 0.0
      %2768 = vmatmul.mubr.f32.gmra.mrb[0].mxu0 %v2561
      %v2769 = vpop.f32.mrb[0].mxu0
      %v2770 = vadd.f32 0.0, %v2769
      %v2771 = vpop.f32.mrb[0].mxu0
      %2772 = vmatprep.mubr.f32.mxu0 0.0
      %2773 = vmatmul.mubr.f32.gmra.mrb[0].mxu0 %v2564
      %v2774 = vpop.f32.mrb[0].mxu0
      %v2775 = vadd.f32 0.0, %v2774
      %v2776 = vpop.f32.mrb[0].mxu0
      %2777 = vmatprep.mubr.f32.mxu0 0.0
      %2778 = vmatmul.mubr.f32.gmra.mrb[0].mxu0 %v2567
      %v2779 = vpop.f32.mrb[0].mxu0
      %v2780 = vadd.f32 0.0, %v2779
      %v2781 = vpop.f32.mrb[0].mxu0
      %2782 = vmatprep.mubr.f32.mxu0 0.0
      %2783 = vmatmul.mubr.f32.gmra.mrb[0].mxu0 %v2570
      %v2784 = vpop.f32.mrb[0].mxu0
      %v2785 = vadd.f32 0.0, %v2784
      %v2786 = vpop.f32.mrb[0].mxu0
      %2787 = vmatprep.mubr.f32.mxu0 0.0
      %2788 = vmatmul.mubr.f32.gmra.mrb[0].mxu0 %v2573
      %v2789 = vpop.f32.mrb[0].mxu0
      %v2790 = vadd.f32 0.0, %v2789
      %v2791 = vpop.f32.mrb[0].mxu0
      %2792 = vmatprep.mubr.f32.mxu0 0.0
      %2793 = vmatmul.mubr.f32.gmra.mrb[0].mxu0 %v2576
      %v2794 = vpop.f32.mrb[0].mxu0
      %v2795 = vadd.f32 0.0, %v2794
      %v2796 = vpop.f32.mrb[0].mxu0
      %2797 = vmatprep.mubr.f32.mxu0 0.0
      %2798 = vmatmul.mubr.f32.gmra.mrb[0].mxu0 %v2579
      %v2799 = vpop.f32.mrb[0].mxu0
      %v2800 = vadd.f32 0.0, %v2799
      %v2801 = vpop.f32.mrb[0].mxu0
      %2802 = vmatprep.mubr.f32.mxu0 0.0
      %2803 = vmatmul.mubr.f32.gmra.mrb[0].mxu0 %v2582
      %v2804 = vpop.f32.mrb[0].mxu0
      %v2805 = vadd.f32 0.0, %v2804
      %v2806 = vpop.f32.mrb[0].mxu0
      %2807 = vmatprep.mubr.f32.mxu0 0.0
      %2808 = vmatmul.mubr.f32.gmra.mrb[0].mxu0 %v2585
      %v2809 = vpop.f32.mrb[0].mxu0
      %v2810 = vadd.f32 0.0, %v2809
      %v2811 = vpop.f32.mrb[0].mxu0
      %2812 = vmatprep.mubr.f32.mxu0 0.0
      %2813 = vmatmul.mubr.f32.gmra.mrb[0].mxu0 %v2588
      %v2814 = vpop.f32.mrb[0].mxu0
      %v2815 = vadd.f32 0.0, %v2814
      %v2816 = vpop.f32.mrb[0].mxu0
      %2817 = vdwg.mxu0
      %v2818 = vadd.f32 %v2429, %v2660
      %v2819 = vadd.f32 %v2430, %v2665
      %v2820 = vadd.f32 %v2431, %v2670
      %v2821 = vadd.f32 %v2432, %v2675
      %v2822 = vadd.f32 %v2433, %v2680
      %v2823 = vadd.f32 %v2434, %v2685
      %v2824 = vadd.f32 %v2435, %v2690
      %v2825 = vadd.f32 %v2436, %v2695
      %v2826 = vadd.f32 %v2437, %v2700
      %v2827 = vadd.f32 %v2438, %v2705
      %v2828 = vadd.f32 %v2439, %v2710
      %v2829 = vadd.f32 %v2440, %v2715
      %v2830 = vadd.f32 %v2441, %v2720
      %v2831 = vadd.f32 %v2442, %v2725
      %v2832 = vadd.f32 %v2443, %v2730
      %v2833 = vadd.f32 %v2444, %v2735
      %v2834 = vadd.f32 %v2445, %v2740
      %v2835 = vadd.f32 %v2446, %v2745
      %v2836 = vadd.f32 %v2447, %v2750
      %v2837 = vadd.f32 %v2448, %v2755
      %v2838 = vadd.f32 %v2449, %v2760
      %v2839 = vadd.f32 %v2450, %v2765
      %v2840 = vadd.f32 %v2451, %v2770
      %v2841 = vadd.f32 %v2452, %v2775
      %v2842 = vadd.f32 %v2453, %v2780
      %v2843 = vadd.f32 %v2454, %v2785
      %v2844 = vadd.f32 %v2455, %v2790
      %v2845 = vadd.f32 %v2456, %v2795
      %v2846 = vadd.f32 %v2457, %v2800
      %v2847 = vadd.f32 %v2458, %v2805
      %v2848 = vadd.f32 %v2459, %v2810
      %v2849 = vadd.f32 %v2460, %v2815
      %s2850 = scalar_lea.vmem [#allocation2], 48
      %v2851 = vld [vmem:[%s2850] sm:$0xff]
      %v2852 = vld [vmem:[%s2850 + $0x8] sm:$0xff]
      %v2853 = vld [vmem:[%s2850 + $0x18] sm:$0xff]
      %v2854 = vld [vmem:[%s2850 + $0x20] sm:$0xff]
      %v2855 = vld [vmem:[%s2850 + $0x30] sm:$0xff]
      %v2856 = vld [vmem:[%s2850 + $0x38] sm:$0xff]
      %v2857 = vld [vmem:[%s2850 + $0x48] sm:$0xff]
      %v2858 = vld [vmem:[%s2850 + $0x50] sm:$0xff]
      %v2859 = vld [vmem:[%s2850 + $0x60] sm:$0xff]
      %v2860 = vld [vmem:[%s2850 + $0x68] sm:$0xff]
      %v2861 = vld [vmem:[%s2850 + $0x78] sm:$0xff]
      %v2862 = vld [vmem:[%s2850 + $0x80] sm:$0xff]
      %v2863 = vld [vmem:[%s2850 + $0x90] sm:$0xff]
      %v2864 = vld [vmem:[%s2850 + $0x98] sm:$0xff]
      %v2865 = vld [vmem:[%s2850 + $0xa8] sm:$0xff]
      %v2866 = vld [vmem:[%s2850 + $0xb0] sm:$0xff]
      %v2867 = vld [vmem:[%s2850 + $0xc0] sm:$0xff]
      %v2868 = vld [vmem:[%s2850 + $0xc8] sm:$0xff]
      %v2869 = vld [vmem:[%s2850 + $0xd8] sm:$0xff]
      %v2870 = vld [vmem:[%s2850 + $0xe0] sm:$0xff]
      %v2871 = vld [vmem:[%s2850 + $0xf0] sm:$0xff]
      %v2872 = vld [vmem:[%s2850 + $0xf8] sm:$0xff]
      %v2873 = vld [vmem:[%s2850 + $0x108] sm:$0xff]
      %v2874 = vld [vmem:[%s2850 + $0x110] sm:$0xff]
      %v2875 = vld [vmem:[%s2850 + $0x120] sm:$0xff]
      %v2876 = vld [vmem:[%s2850 + $0x128] sm:$0xff]
      %v2877 = vld [vmem:[%s2850 + $0x138] sm:$0xff]
      %v2878 = vld [vmem:[%s2850 + $0x140] sm:$0xff]
      %v2879 = vld [vmem:[%s2850 + $0x150] sm:$0xff]
      %v2880 = vld [vmem:[%s2850 + $0x158] sm:$0xff]
      %v2881 = vld [vmem:[%s2850 + $0x168] sm:$0xff]
      %v2882 = vld [vmem:[%s2850 + $0x170] sm:$0xff]
      %v2883 = vld [vmem:[%s3 + $0x18] sm:$0xf]
      %v2885 = vsel %vm524, %v2851, 0
      %v2888 = vsel %vm524, %v2852, 0
      %v2891 = vsel %vm524, %v2853, 0
      %v2894 = vsel %vm524, %v2854, 0
      %v2897 = vsel %vm524, %v2855, 0
      %v2900 = vsel %vm524, %v2856, 0
      %v2903 = vsel %vm524, %v2857, 0
      %v2906 = vsel %vm524, %v2858, 0
      %v2909 = vsel %vm524, %v2859, 0
      %v2912 = vsel %vm524, %v2860, 0
      %v2915 = vsel %vm524, %v2861, 0
      %v2918 = vsel %vm524, %v2862, 0
      %v2921 = vsel %vm524, %v2863, 0
      %v2924 = vsel %vm524, %v2864, 0
      %v2927 = vsel %vm524, %v2865, 0
      %v2930 = vsel %vm524, %v2866, 0
      %v2933 = vsel %vm524, %v2867, 0
      %v2936 = vsel %vm524, %v2868, 0
      %v2939 = vsel %vm524, %v2869, 0
      %v2942 = vsel %vm524, %v2870, 0
      %v2945 = vsel %vm524, %v2871, 0
      %v2948 = vsel %vm524, %v2872, 0
      %v2951 = vsel %vm524, %v2873, 0
      %v2954 = vsel %vm524, %v2874, 0
      %v2957 = vsel %vm524, %v2875, 0
      %v2960 = vsel %vm524, %v2876, 0
      %v2963 = vsel %vm524, %v2877, 0
      %v2966 = vsel %vm524, %v2878, 0
      %v2969 = vsel %vm524, %v2879, 0
      %v2972 = vsel %vm524, %v2880, 0
      %v2975 = vsel %vm524, %v2881, 0
      %v2978 = vsel %vm524, %v2882, 0
      %v2981 = vsel %vm741, %v2883, 0
      %2983 = vmatprep.subr.mxu0 0.0
      %2984 = vmatpush1.msra.mxu0 %v2981
      %2985 = vmatprep.subr.mxu0 0.0
      %2986 = vmatpush1.msra.mxu0 0.0
      %2987 = vmatprep.subr.mxu0 0.0
      %2988 = vmatpush1.msra.mxu0 0.0
      %2989 = vmatprep.subr.mxu0 0.0
      %2990 = vmatpush1.msra.mxu0 0.0
      %2991 = vmatprep.subr.mxu0 0.0
      %2992 = vmatpush1.msra.mxu0 0.0
      %2993 = vmatprep.subr.mxu0 0.0
      %2994 = vmatpush1.msra.mxu0 0.0
      %2995 = vmatprep.subr.mxu0 0.0
      %2996 = vmatpush1.msra.mxu0 0.0
      %2997 = vmatprep.subr.mxu0 0.0
      %2998 = vmatpush1.msra.mxu0 0.0
      %2999 = vmatprep.subr.mxu0 0.0
      %3000 = vmatpush1.msra.mxu0 0.0
      %3001 = vmatprep.subr.mxu0 0.0
      %3002 = vmatpush1.msra.mxu0 0.0
      %3003 = vmatprep.subr.mxu0 0.0
      %3004 = vmatpush1.msra.mxu0 0.0
      %3005 = vmatprep.subr.mxu0 0.0
      %3006 = vmatpush1.msra.mxu0 0.0
      %3007 = vmatprep.subr.mxu0 0.0
      %3008 = vmatpush1.msra.mxu0 0.0
      %3009 = vmatprep.subr.mxu0 0.0
      %3010 = vmatpush1.msra.mxu0 0.0
      %3011 = vmatprep.subr.mxu0 0.0
      %3012 = vmatpush1.msra.mxu0 0.0
      %3013 = vmatprep.subr.mxu0 0.0
      %3014 = vmatpush1.msra.mxu0 0.0
      %3015 = vmatprep.subr.mxu0 0.0
      %3016 = vmatpush1.msra.mxu0 0.0
      %3017 = vmatprep.subr.mxu0 0.0
      %3018 = vmatpush1.msra.mxu0 0.0
      %3019 = vmatprep.subr.mxu0 0.0
      %3020 = vmatpush1.msra.mxu0 0.0
      %3021 = vmatprep.subr.mxu0 0.0
      %3022 = vmatpush1.msra.mxu0 0.0
      %3023 = vmatprep.subr.mxu0 0.0
      %3024 = vmatpush1.msra.mxu0 0.0
      %3025 = vmatprep.subr.mxu0 0.0
      %3026 = vmatpush1.msra.mxu0 0.0
      %3027 = vmatprep.subr.mxu0 0.0
      %3028 = vmatpush1.msra.mxu0 0.0
      %3029 = vmatprep.subr.mxu0 0.0
      %3030 = vmatpush1.msra.mxu0 0.0
      %3031 = vmatprep.subr.mxu0 0.0
      %3032 = vmatpush1.msra.mxu0 0.0
      %3033 = vmatprep.subr.mxu0 0.0
      %3034 = vmatpush1.msra.mxu0 0.0
      %3035 = vmatprep.subr.mxu0 0.0
      %3036 = vmatpush1.msra.mxu0 0.0
      %3037 = vmatprep.subr.mxu0 0.0
      %3038 = vmatpush1.msra.mxu0 0.0
      %3039 = vmatprep.subr.mxu0 0.0
      %3040 = vmatpush1.msra.mxu0 0.0
      %3041 = vmatprep.subr.mxu0 0.0
      %3042 = vmatpush1.msra.mxu0 0.0
      %3043 = vmatprep.subr.mxu0 0.0
      %3044 = vmatpush1.msra.mxu0 0.0
      %3045 = vmatprep.subr.mxu0 0.0
      %3046 = vmatpush1.msra.mxu0 0.0
      %3047 = vmatprep.mubr.f32.mxu0 0.0
      %3048 = vmatmul.mubr.f32.gmra.mrb[0].mxu0 %v2885
      %v3049 = vpop.f32.mrb[0].mxu0
      %v3050 = vadd.f32 0.0, %v3049
      %v3051 = vpop.f32.mrb[0].mxu0
      %3052 = vmatprep.mubr.f32.mxu0 0.0
      %3053 = vmatmul.mubr.f32.gmra.mrb[0].mxu0 %v2888
      %v3054 = vpop.f32.mrb[0].mxu0
      %v3055 = vadd.f32 0.0, %v3054
      %v3056 = vpop.f32.mrb[0].mxu0
      %3057 = vmatprep.mubr.f32.mxu0 0.0
      %3058 = vmatmul.mubr.f32.gmra.mrb[0].mxu0 %v2891
      %v3059 = vpop.f32.mrb[0].mxu0
      %v3060 = vadd.f32 0.0, %v3059
      %v3061 = vpop.f32.mrb[0].mxu0
      %3062 = vmatprep.mubr.f32.mxu0 0.0
      %3063 = vmatmul.mubr.f32.gmra.mrb[0].mxu0 %v2894
      %v3064 = vpop.f32.mrb[0].mxu0
      %v3065 = vadd.f32 0.0, %v3064
      %v3066 = vpop.f32.mrb[0].mxu0
      %3067 = vmatprep.mubr.f32.mxu0 0.0
      %3068 = vmatmul.mubr.f32.gmra.mrb[0].mxu0 %v2897
      %v3069 = vpop.f32.mrb[0].mxu0
      %v3070 = vadd.f32 0.0, %v3069
      %v3071 = vpop.f32.mrb[0].mxu0
      %3072 = vmatprep.mubr.f32.mxu0 0.0
      %3073 = vmatmul.mubr.f32.gmra.mrb[0].mxu0 %v2900
      %v3074 = vpop.f32.mrb[0].mxu0
      %v3075 = vadd.f32 0.0, %v3074
      %v3076 = vpop.f32.mrb[0].mxu0
      %3077 = vmatprep.mubr.f32.mxu0 0.0
      %3078 = vmatmul.mubr.f32.gmra.mrb[0].mxu0 %v2903
      %v3079 = vpop.f32.mrb[0].mxu0
      %v3080 = vadd.f32 0.0, %v3079
      %v3081 = vpop.f32.mrb[0].mxu0
      %3082 = vmatprep.mubr.f32.mxu0 0.0
      %3083 = vmatmul.mubr.f32.gmra.mrb[0].mxu0 %v2906
      %v3084 = vpop.f32.mrb[0].mxu0
      %v3085 = vadd.f32 0.0, %v3084
      %v3086 = vpop.f32.mrb[0].mxu0
      %3087 = vmatprep.mubr.f32.mxu0 0.0
      %3088 = vmatmul.mubr.f32.gmra.mrb[0].mxu0 %v2909
      %v3089 = vpop.f32.mrb[0].mxu0
      %v3090 = vadd.f32 0.0, %v3089
      %v3091 = vpop.f32.mrb[0].mxu0
      %3092 = vmatprep.mubr.f32.mxu0 0.0
      %3093 = vmatmul.mubr.f32.gmra.mrb[0].mxu0 %v2912
      %v3094 = vpop.f32.mrb[0].mxu0
      %v3095 = vadd.f32 0.0, %v3094
      %v3096 = vpop.f32.mrb[0].mxu0
      %3097 = vmatprep.mubr.f32.mxu0 0.0
      %3098 = vmatmul.mubr.f32.gmra.mrb[0].mxu0 %v2915
      %v3099 = vpop.f32.mrb[0].mxu0
      %v3100 = vadd.f32 0.0, %v3099
      %v3101 = vpop.f32.mrb[0].mxu0
      %3102 = vmatprep.mubr.f32.mxu0 0.0
      %3103 = vmatmul.mubr.f32.gmra.mrb[0].mxu0 %v2918
      %v3104 = vpop.f32.mrb[0].mxu0
      %v3105 = vadd.f32 0.0, %v3104
      %v3106 = vpop.f32.mrb[0].mxu0
      %3107 = vmatprep.mubr.f32.mxu0 0.0
      %3108 = vmatmul.mubr.f32.gmra.mrb[0].mxu0 %v2921
      %v3109 = vpop.f32.mrb[0].mxu0
      %v3110 = vadd.f32 0.0, %v3109
      %v3111 = vpop.f32.mrb[0].mxu0
      %3112 = vmatprep.mubr.f32.mxu0 0.0
      %3113 = vmatmul.mubr.f32.gmra.mrb[0].mxu0 %v2924
      %v3114 = vpop.f32.mrb[0].mxu0
      %v3115 = vadd.f32 0.0, %v3114
      %v3116 = vpop.f32.mrb[0].mxu0
      %3117 = vmatprep.mubr.f32.mxu0 0.0
      %3118 = vmatmul.mubr.f32.gmra.mrb[0].mxu0 %v2927
      %v3119 = vpop.f32.mrb[0].mxu0
      %v3120 = vadd.f32 0.0, %v3119
      %v3121 = vpop.f32.mrb[0].mxu0
      %3122 = vmatprep.mubr.f32.mxu0 0.0
      %3123 = vmatmul.mubr.f32.gmra.mrb[0].mxu0 %v2930
      %v3124 = vpop.f32.mrb[0].mxu0
      %v3125 = vadd.f32 0.0, %v3124
      %v3126 = vpop.f32.mrb[0].mxu0
      %3127 = vmatprep.mubr.f32.mxu0 0.0
      %3128 = vmatmul.mubr.f32.gmra.mrb[0].mxu0 %v2933
      %v3129 = vpop.f32.mrb[0].mxu0
      %v3130 = vadd.f32 0.0, %v3129
      %v3131 = vpop.f32.mrb[0].mxu0
      %3132 = vmatprep.mubr.f32.mxu0 0.0
      %3133 = vmatmul.mubr.f32.gmra.mrb[0].mxu0 %v2936
      %v3134 = vpop.f32.mrb[0].mxu0
      %v3135 = vadd.f32 0.0, %v3134
      %v3136 = vpop.f32.mrb[0].mxu0
      %3137 = vmatprep.mubr.f32.mxu0 0.0
      %3138 = vmatmul.mubr.f32.gmra.mrb[0].mxu0 %v2939
      %v3139 = vpop.f32.mrb[0].mxu0
      %v3140 = vadd.f32 0.0, %v3139
      %v3141 = vpop.f32.mrb[0].mxu0
      %3142 = vmatprep.mubr.f32.mxu0 0.0
      %3143 = vmatmul.mubr.f32.gmra.mrb[0].mxu0 %v2942
      %v3144 = vpop.f32.mrb[0].mxu0
      %v3145 = vadd.f32 0.0, %v3144
      %v3146 = vpop.f32.mrb[0].mxu0
      %3147 = vmatprep.mubr.f32.mxu0 0.0
      %3148 = vmatmul.mubr.f32.gmra.mrb[0].mxu0 %v2945
      %v3149 = vpop.f32.mrb[0].mxu0
      %v3150 = vadd.f32 0.0, %v3149
      %v3151 = vpop.f32.mrb[0].mxu0
      %3152 = vmatprep.mubr.f32.mxu0 0.0
      %3153 = vmatmul.mubr.f32.gmra.mrb[0].mxu0 %v2948
      %v3154 = vpop.f32.mrb[0].mxu0
      %v3155 = vadd.f32 0.0, %v3154
      %v3156 = vpop.f32.mrb[0].mxu0
      %3157 = vmatprep.mubr.f32.mxu0 0.0
      %3158 = vmatmul.mubr.f32.gmra.mrb[0].mxu0 %v2951
      %v3159 = vpop.f32.mrb[0].mxu0
      %v3160 = vadd.f32 0.0, %v3159
      %v3161 = vpop.f32.mrb[0].mxu0
      %3162 = vmatprep.mubr.f32.mxu0 0.0
      %3163 = vmatmul.mubr.f32.gmra.mrb[0].mxu0 %v2954
      %v3164 = vpop.f32.mrb[0].mxu0
      %v3165 = vadd.f32 0.0, %v3164
      %v3166 = vpop.f32.mrb[0].mxu0
      %3167 = vmatprep.mubr.f32.mxu0 0.0
      %3168 = vmatmul.mubr.f32.gmra.mrb[0].mxu0 %v2957
      %v3169 = vpop.f32.mrb[0].mxu0
      %v3170 = vadd.f32 0.0, %v3169
      %v3171 = vpop.f32.mrb[0].mxu0
      %3172 = vmatprep.mubr.f32.mxu0 0.0
      %3173 = vmatmul.mubr.f32.gmra.mrb[0].mxu0 %v2960
      %v3174 = vpop.f32.mrb[0].mxu0
      %v3175 = vadd.f32 0.0, %v3174
      %v3176 = vpop.f32.mrb[0].mxu0
      %3177 = vmatprep.mubr.f32.mxu0 0.0
      %3178 = vmatmul.mubr.f32.gmra.mrb[0].mxu0 %v2963
      %v3179 = vpop.f32.mrb[0].mxu0
      %v3180 = vadd.f32 0.0, %v3179
      %v3181 = vpop.f32.mrb[0].mxu0
      %3182 = vmatprep.mubr.f32.mxu0 0.0
      %3183 = vmatmul.mubr.f32.gmra.mrb[0].mxu0 %v2966
      %v3184 = vpop.f32.mrb[0].mxu0
      %v3185 = vadd.f32 0.0, %v3184
      %v3186 = vpop.f32.mrb[0].mxu0
      %3187 = vmatprep.mubr.f32.mxu0 0.0
      %3188 = vmatmul.mubr.f32.gmra.mrb[0].mxu0 %v2969
      %v3189 = vpop.f32.mrb[0].mxu0
      %v3190 = vadd.f32 0.0, %v3189
      %v3191 = vpop.f32.mrb[0].mxu0
      %3192 = vmatprep.mubr.f32.mxu0 0.0
      %3193 = vmatmul.mubr.f32.gmra.mrb[0].mxu0 %v2972
      %v3194 = vpop.f32.mrb[0].mxu0
      %v3195 = vadd.f32 0.0, %v3194
      %v3196 = vpop.f32.mrb[0].mxu0
      %3197 = vmatprep.mubr.f32.mxu0 0.0
      %3198 = vmatmul.mubr.f32.gmra.mrb[0].mxu0 %v2975
      %v3199 = vpop.f32.mrb[0].mxu0
      %v3200 = vadd.f32 0.0, %v3199
      %v3201 = vpop.f32.mrb[0].mxu0
      %3202 = vmatprep.mubr.f32.mxu0 0.0
      %3203 = vmatmul.mubr.f32.gmra.mrb[0].mxu0 %v2978
      %v3204 = vpop.f32.mrb[0].mxu0
      %v3205 = vadd.f32 0.0, %v3204
      %v3206 = vpop.f32.mrb[0].mxu0
      %3207 = vdwg.mxu0
      %v3208 = vadd.f32 %v2818, %v3050
      %v3209 = vadd.f32 %v2819, %v3055
      %v3210 = vadd.f32 %v2820, %v3060
      %v3211 = vadd.f32 %v2821, %v3065
      %v3212 = vadd.f32 %v2822, %v3070
      %v3213 = vadd.f32 %v2823, %v3075
      %v3214 = vadd.f32 %v2824, %v3080
      %v3215 = vadd.f32 %v2825, %v3085
      %v3216 = vadd.f32 %v2826, %v3090
      %v3217 = vadd.f32 %v2827, %v3095
      %v3218 = vadd.f32 %v2828, %v3100
      %v3219 = vadd.f32 %v2829, %v3105
      %v3220 = vadd.f32 %v2830, %v3110
      %v3221 = vadd.f32 %v2831, %v3115
      %v3222 = vadd.f32 %v2832, %v3120
      %v3223 = vadd.f32 %v2833, %v3125
      %v3224 = vadd.f32 %v2834, %v3130
      %v3225 = vadd.f32 %v2835, %v3135
      %v3226 = vadd.f32 %v2836, %v3140
      %v3227 = vadd.f32 %v2837, %v3145
      %v3228 = vadd.f32 %v2838, %v3150
      %v3229 = vadd.f32 %v2839, %v3155
      %v3230 = vadd.f32 %v2840, %v3160
      %v3231 = vadd.f32 %v2841, %v3165
      %v3232 = vadd.f32 %v2842, %v3170
      %v3233 = vadd.f32 %v2843, %v3175
      %v3234 = vadd.f32 %v2844, %v3180
      %v3235 = vadd.f32 %v2845, %v3185
      %v3236 = vadd.f32 %v2846, %v3190
      %v3237 = vadd.f32 %v2847, %v3195
      %v3238 = vadd.f32 %v2848, %v3200
      %v3239 = vadd.f32 %v2849, %v3205
      %v3240 = vld [vmem:[%s2850 + $0x1] sm:$0xff]
      %v3241 = vld [vmem:[%s2850 + $0x9] sm:$0xff]
      %v3242 = vld [vmem:[%s2850 + $0x19] sm:$0xff]
      %v3243 = vld [vmem:[%s2850 + $0x21] sm:$0xff]
      %v3244 = vld [vmem:[%s2850 + $0x31] sm:$0xff]
      %v3245 = vld [vmem:[%s2850 + $0x39] sm:$0xff]
      %v3246 = vld [vmem:[%s2850 + $0x49] sm:$0xff]
      %v3247 = vld [vmem:[%s2850 + $0x51] sm:$0xff]
      %v3248 = vld [vmem:[%s2850 + $0x61] sm:$0xff]
      %v3249 = vld [vmem:[%s2850 + $0x69] sm:$0xff]
      %v3250 = vld [vmem:[%s2850 + $0x79] sm:$0xff]
      %v3251 = vld [vmem:[%s2850 + $0x81] sm:$0xff]
      %v3252 = vld [vmem:[%s2850 + $0x91] sm:$0xff]
      %v3253 = vld [vmem:[%s2850 + $0x99] sm:$0xff]
      %v3254 = vld [vmem:[%s2850 + $0xa9] sm:$0xff]
      %v3255 = vld [vmem:[%s2850 + $0xb1] sm:$0xff]
      %v3256 = vld [vmem:[%s2850 + $0xc1] sm:$0xff]
      %v3257 = vld [vmem:[%s2850 + $0xc9] sm:$0xff]
      %v3258 = vld [vmem:[%s2850 + $0xd9] sm:$0xff]
      %v3259 = vld [vmem:[%s2850 + $0xe1] sm:$0xff]
      %v3260 = vld [vmem:[%s2850 + $0xf1] sm:$0xff]
      %v3261 = vld [vmem:[%s2850 + $0xf9] sm:$0xff]
      %v3262 = vld [vmem:[%s2850 + $0x109] sm:$0xff]
      %v3263 = vld [vmem:[%s2850 + $0x111] sm:$0xff]
      %v3264 = vld [vmem:[%s2850 + $0x121] sm:$0xff]
      %v3265 = vld [vmem:[%s2850 + $0x129] sm:$0xff]
      %v3266 = vld [vmem:[%s2850 + $0x139] sm:$0xff]
      %v3267 = vld [vmem:[%s2850 + $0x141] sm:$0xff]
      %v3268 = vld [vmem:[%s2850 + $0x151] sm:$0xff]
      %v3269 = vld [vmem:[%s2850 + $0x159] sm:$0xff]
      %v3270 = vld [vmem:[%s2850 + $0x169] sm:$0xff]
      %v3271 = vld [vmem:[%s2850 + $0x171] sm:$0xff]
      %v3272 = vld [vmem:[%s3 + $0x1c] sm:$0xf]
      %v3274 = vsel %vm524, %v3240, 0
      %v3277 = vsel %vm524, %v3241, 0
      %v3280 = vsel %vm524, %v3242, 0
      %v3283 = vsel %vm524, %v3243, 0
      %v3286 = vsel %vm524, %v3244, 0
      %v3289 = vsel %vm524, %v3245, 0
      %v3292 = vsel %vm524, %v3246, 0
      %v3295 = vsel %vm524, %v3247, 0
      %v3298 = vsel %vm524, %v3248, 0
      %v3301 = vsel %vm524, %v3249, 0
      %v3304 = vsel %vm524, %v3250, 0
      %v3307 = vsel %vm524, %v3251, 0
      %v3310 = vsel %vm524, %v3252, 0
      %v3313 = vsel %vm524, %v3253, 0
      %v3316 = vsel %vm524, %v3254, 0
      %v3319 = vsel %vm524, %v3255, 0
      %v3322 = vsel %vm524, %v3256, 0
      %v3325 = vsel %vm524, %v3257, 0
      %v3328 = vsel %vm524, %v3258, 0
      %v3331 = vsel %vm524, %v3259, 0
      %v3334 = vsel %vm524, %v3260, 0
      %v3337 = vsel %vm524, %v3261, 0
      %v3340 = vsel %vm524, %v3262, 0
      %v3343 = vsel %vm524, %v3263, 0
      %v3346 = vsel %vm524, %v3264, 0
      %v3349 = vsel %vm524, %v3265, 0
      %v3352 = vsel %vm524, %v3266, 0
      %v3355 = vsel %vm524, %v3267, 0
      %v3358 = vsel %vm524, %v3268, 0
      %v3361 = vsel %vm524, %v3269, 0
      %v3364 = vsel %vm524, %v3270, 0
      %v3367 = vsel %vm524, %v3271, 0
      %v3370 = vsel %vm741, %v3272, 0
      %3372 = vmatprep.subr.mxu0 0.0
      %3373 = vmatpush1.msra.mxu0 %v3370
      %3374 = vmatprep.subr.mxu0 0.0
      %3375 = vmatpush1.msra.mxu0 0.0
      %3376 = vmatprep.subr.mxu0 0.0
      %3377 = vmatpush1.msra.mxu0 0.0
      %3378 = vmatprep.subr.mxu0 0.0
      %3379 = vmatpush1.msra.mxu0 0.0
      %3380 = vmatprep.subr.mxu0 0.0
      %3381 = vmatpush1.msra.mxu0 0.0
      %3382 = vmatprep.subr.mxu0 0.0
      %3383 = vmatpush1.msra.mxu0 0.0
      %3384 = vmatprep.subr.mxu0 0.0
      %3385 = vmatpush1.msra.mxu0 0.0
      %3386 = vmatprep.subr.mxu0 0.0
      %3387 = vmatpush1.msra.mxu0 0.0
      %3388 = vmatprep.subr.mxu0 0.0
      %3389 = vmatpush1.msra.mxu0 0.0
      %3390 = vmatprep.subr.mxu0 0.0
      %3391 = vmatpush1.msra.mxu0 0.0
      %3392 = vmatprep.subr.mxu0 0.0
      %3393 = vmatpush1.msra.mxu0 0.0
      %3394 = vmatprep.subr.mxu0 0.0
      %3395 = vmatpush1.msra.mxu0 0.0
      %3396 = vmatprep.subr.mxu0 0.0
      %3397 = vmatpush1.msra.mxu0 0.0
      %3398 = vmatprep.subr.mxu0 0.0
      %3399 = vmatpush1.msra.mxu0 0.0
      %3400 = vmatprep.subr.mxu0 0.0
      %3401 = vmatpush1.msra.mxu0 0.0
      %3402 = vmatprep.subr.mxu0 0.0
      %3403 = vmatpush1.msra.mxu0 0.0
      %3404 = vmatprep.subr.mxu0 0.0
      %3405 = vmatpush1.msra.mxu0 0.0
      %3406 = vmatprep.subr.mxu0 0.0
      %3407 = vmatpush1.msra.mxu0 0.0
      %3408 = vmatprep.subr.mxu0 0.0
      %3409 = vmatpush1.msra.mxu0 0.0
      %3410 = vmatprep.subr.mxu0 0.0
      %3411 = vmatpush1.msra.mxu0 0.0
      %3412 = vmatprep.subr.mxu0 0.0
      %3413 = vmatpush1.msra.mxu0 0.0
      %3414 = vmatprep.subr.mxu0 0.0
      %3415 = vmatpush1.msra.mxu0 0.0
      %3416 = vmatprep.subr.mxu0 0.0
      %3417 = vmatpush1.msra.mxu0 0.0
      %3418 = vmatprep.subr.mxu0 0.0
      %3419 = vmatpush1.msra.mxu0 0.0
      %3420 = vmatprep.subr.mxu0 0.0
      %3421 = vmatpush1.msra.mxu0 0.0
      %3422 = vmatprep.subr.mxu0 0.0
      %3423 = vmatpush1.msra.mxu0 0.0
      %3424 = vmatprep.subr.mxu0 0.0
      %3425 = vmatpush1.msra.mxu0 0.0
      %3426 = vmatprep.subr.mxu0 0.0
      %3427 = vmatpush1.msra.mxu0 0.0
      %3428 = vmatprep.subr.mxu0 0.0
      %3429 = vmatpush1.msra.mxu0 0.0
      %3430 = vmatprep.subr.mxu0 0.0
      %3431 = vmatpush1.msra.mxu0 0.0
      %3432 = vmatprep.subr.mxu0 0.0
      %3433 = vmatpush1.msra.mxu0 0.0
      %3434 = vmatprep.subr.mxu0 0.0
      %3435 = vmatpush1.msra.mxu0 0.0
      %3436 = vmatprep.mubr.f32.mxu0 0.0
      %3437 = vmatmul.mubr.f32.gmra.mrb[0].mxu0 %v3274
      %v3438 = vpop.f32.mrb[0].mxu0
      %v3439 = vadd.f32 0.0, %v3438
      %v3440 = vpop.f32.mrb[0].mxu0
      %3441 = vmatprep.mubr.f32.mxu0 0.0
      %3442 = vmatmul.mubr.f32.gmra.mrb[0].mxu0 %v3277
      %v3443 = vpop.f32.mrb[0].mxu0
      %v3444 = vadd.f32 0.0, %v3443
      %v3445 = vpop.f32.mrb[0].mxu0
      %3446 = vmatprep.mubr.f32.mxu0 0.0
      %3447 = vmatmul.mubr.f32.gmra.mrb[0].mxu0 %v3280
      %v3448 = vpop.f32.mrb[0].mxu0
      %v3449 = vadd.f32 0.0, %v3448
      %v3450 = vpop.f32.mrb[0].mxu0
      %3451 = vmatprep.mubr.f32.mxu0 0.0
      %3452 = vmatmul.mubr.f32.gmra.mrb[0].mxu0 %v3283
      %v3453 = vpop.f32.mrb[0].mxu0
      %v3454 = vadd.f32 0.0, %v3453
      %v3455 = vpop.f32.mrb[0].mxu0
      %3456 = vmatprep.mubr.f32.mxu0 0.0
      %3457 = vmatmul.mubr.f32.gmra.mrb[0].mxu0 %v3286
      %v3458 = vpop.f32.mrb[0].mxu0
      %v3459 = vadd.f32 0.0, %v3458
      %v3460 = vpop.f32.mrb[0].mxu0
      %3461 = vmatprep.mubr.f32.mxu0 0.0
      %3462 = vmatmul.mubr.f32.gmra.mrb[0].mxu0 %v3289
      %v3463 = vpop.f32.mrb[0].mxu0
      %v3464 = vadd.f32 0.0, %v3463
      %v3465 = vpop.f32.mrb[0].mxu0
      %3466 = vmatprep.mubr.f32.mxu0 0.0
      %3467 = vmatmul.mubr.f32.gmra.mrb[0].mxu0 %v3292
      %v3468 = vpop.f32.mrb[0].mxu0
      %v3469 = vadd.f32 0.0, %v3468
      %v3470 = vpop.f32.mrb[0].mxu0
      %3471 = vmatprep.mubr.f32.mxu0 0.0
      %3472 = vmatmul.mubr.f32.gmra.mrb[0].mxu0 %v3295
      %v3473 = vpop.f32.mrb[0].mxu0
      %v3474 = vadd.f32 0.0, %v3473
      %v3475 = vpop.f32.mrb[0].mxu0
      %3476 = vmatprep.mubr.f32.mxu0 0.0
      %3477 = vmatmul.mubr.f32.gmra.mrb[0].mxu0 %v3298
      %v3478 = vpop.f32.mrb[0].mxu0
      %v3479 = vadd.f32 0.0, %v3478
      %v3480 = vpop.f32.mrb[0].mxu0
      %3481 = vmatprep.mubr.f32.mxu0 0.0
      %3482 = vmatmul.mubr.f32.gmra.mrb[0].mxu0 %v3301
      %v3483 = vpop.f32.mrb[0].mxu0
      %v3484 = vadd.f32 0.0, %v3483
      %v3485 = vpop.f32.mrb[0].mxu0
      %3486 = vmatprep.mubr.f32.mxu0 0.0
      %3487 = vmatmul.mubr.f32.gmra.mrb[0].mxu0 %v3304
      %v3488 = vpop.f32.mrb[0].mxu0
      %v3489 = vadd.f32 0.0, %v3488
      %v3490 = vpop.f32.mrb[0].mxu0
      %3491 = vmatprep.mubr.f32.mxu0 0.0
      %3492 = vmatmul.mubr.f32.gmra.mrb[0].mxu0 %v3307
      %v3493 = vpop.f32.mrb[0].mxu0
      %v3494 = vadd.f32 0.0, %v3493
      %v3495 = vpop.f32.mrb[0].mxu0
      %3496 = vmatprep.mubr.f32.mxu0 0.0
      %3497 = vmatmul.mubr.f32.gmra.mrb[0].mxu0 %v3310
      %v3498 = vpop.f32.mrb[0].mxu0
      %v3499 = vadd.f32 0.0, %v3498
      %v3500 = vpop.f32.mrb[0].mxu0
      %3501 = vmatprep.mubr.f32.mxu0 0.0
      %3502 = vmatmul.mubr.f32.gmra.mrb[0].mxu0 %v3313
      %v3503 = vpop.f32.mrb[0].mxu0
      %v3504 = vadd.f32 0.0, %v3503
      %v3505 = vpop.f32.mrb[0].mxu0
      %3506 = vmatprep.mubr.f32.mxu0 0.0
      %3507 = vmatmul.mubr.f32.gmra.mrb[0].mxu0 %v3316
      %v3508 = vpop.f32.mrb[0].mxu0
      %v3509 = vadd.f32 0.0, %v3508
      %v3510 = vpop.f32.mrb[0].mxu0
      %3511 = vmatprep.mubr.f32.mxu0 0.0
      %3512 = vmatmul.mubr.f32.gmra.mrb[0].mxu0 %v3319
      %v3513 = vpop.f32.mrb[0].mxu0
      %v3514 = vadd.f32 0.0, %v3513
      %v3515 = vpop.f32.mrb[0].mxu0
      %3516 = vmatprep.mubr.f32.mxu0 0.0
      %3517 = vmatmul.mubr.f32.gmra.mrb[0].mxu0 %v3322
      %v3518 = vpop.f32.mrb[0].mxu0
      %v3519 = vadd.f32 0.0, %v3518
      %v3520 = vpop.f32.mrb[0].mxu0
      %3521 = vmatprep.mubr.f32.mxu0 0.0
      %3522 = vmatmul.mubr.f32.gmra.mrb[0].mxu0 %v3325
      %v3523 = vpop.f32.mrb[0].mxu0
      %v3524 = vadd.f32 0.0, %v3523
      %v3525 = vpop.f32.mrb[0].mxu0
      %3526 = vmatprep.mubr.f32.mxu0 0.0
      %3527 = vmatmul.mubr.f32.gmra.mrb[0].mxu0 %v3328
      %v3528 = vpop.f32.mrb[0].mxu0
      %v3529 = vadd.f32 0.0, %v3528
      %v3530 = vpop.f32.mrb[0].mxu0
      %3531 = vmatprep.mubr.f32.mxu0 0.0
      %3532 = vmatmul.mubr.f32.gmra.mrb[0].mxu0 %v3331
      %v3533 = vpop.f32.mrb[0].mxu0
      %v3534 = vadd.f32 0.0, %v3533
      %v3535 = vpop.f32.mrb[0].mxu0
      %3536 = vmatprep.mubr.f32.mxu0 0.0
      %3537 = vmatmul.mubr.f32.gmra.mrb[0].mxu0 %v3334
      %v3538 = vpop.f32.mrb[0].mxu0
      %v3539 = vadd.f32 0.0, %v3538
      %v3540 = vpop.f32.mrb[0].mxu0
      %3541 = vmatprep.mubr.f32.mxu0 0.0
      %3542 = vmatmul.mubr.f32.gmra.mrb[0].mxu0 %v3337
      %v3543 = vpop.f32.mrb[0].mxu0
      %v3544 = vadd.f32 0.0, %v3543
      %v3545 = vpop.f32.mrb[0].mxu0
      %3546 = vmatprep.mubr.f32.mxu0 0.0
      %3547 = vmatmul.mubr.f32.gmra.mrb[0].mxu0 %v3340
      %v3548 = vpop.f32.mrb[0].mxu0
      %v3549 = vadd.f32 0.0, %v3548
      %v3550 = vpop.f32.mrb[0].mxu0
      %3551 = vmatprep.mubr.f32.mxu0 0.0
      %3552 = vmatmul.mubr.f32.gmra.mrb[0].mxu0 %v3343
      %v3553 = vpop.f32.mrb[0].mxu0
      %v3554 = vadd.f32 0.0, %v3553
      %v3555 = vpop.f32.mrb[0].mxu0
      %3556 = vmatprep.mubr.f32.mxu0 0.0
      %3557 = vmatmul.mubr.f32.gmra.mrb[0].mxu0 %v3346
      %v3558 = vpop.f32.mrb[0].mxu0
      %v3559 = vadd.f32 0.0, %v3558
      %v3560 = vpop.f32.mrb[0].mxu0
      %3561 = vmatprep.mubr.f32.mxu0 0.0
      %3562 = vmatmul.mubr.f32.gmra.mrb[0].mxu0 %v3349
      %v3563 = vpop.f32.mrb[0].mxu0
      %v3564 = vadd.f32 0.0, %v3563
      %v3565 = vpop.f32.mrb[0].mxu0
      %3566 = vmatprep.mubr.f32.mxu0 0.0
      %3567 = vmatmul.mubr.f32.gmra.mrb[0].mxu0 %v3352
      %v3568 = vpop.f32.mrb[0].mxu0
      %v3569 = vadd.f32 0.0, %v3568
      %v3570 = vpop.f32.mrb[0].mxu0
      %3571 = vmatprep.mubr.f32.mxu0 0.0
      %3572 = vmatmul.mubr.f32.gmra.mrb[0].mxu0 %v3355
      %v3573 = vpop.f32.mrb[0].mxu0
      %v3574 = vadd.f32 0.0, %v3573
      %v3575 = vpop.f32.mrb[0].mxu0
      %3576 = vmatprep.mubr.f32.mxu0 0.0
      %3577 = vmatmul.mubr.f32.gmra.mrb[0].mxu0 %v3358
      %v3578 = vpop.f32.mrb[0].mxu0
      %v3579 = vadd.f32 0.0, %v3578
      %v3580 = vpop.f32.mrb[0].mxu0
      %3581 = vmatprep.mubr.f32.mxu0 0.0
      %3582 = vmatmul.mubr.f32.gmra.mrb[0].mxu0 %v3361
      %v3583 = vpop.f32.mrb[0].mxu0
      %v3584 = vadd.f32 0.0, %v3583
      %v3585 = vpop.f32.mrb[0].mxu0
      %3586 = vmatprep.mubr.f32.mxu0 0.0
      %3587 = vmatmul.mubr.f32.gmra.mrb[0].mxu0 %v3364
      %v3588 = vpop.f32.mrb[0].mxu0
      %v3589 = vadd.f32 0.0, %v3588
      %v3590 = vpop.f32.mrb[0].mxu0
      %3591 = vmatprep.mubr.f32.mxu0 0.0
      %3592 = vmatmul.mubr.f32.gmra.mrb[0].mxu0 %v3367
      %v3593 = vpop.f32.mrb[0].mxu0
      %v3594 = vadd.f32 0.0, %v3593
      %v3595 = vpop.f32.mrb[0].mxu0
      %3596 = vdwg.mxu0
      %v3597 = vadd.f32 %v3208, %v3439
      %v3598 = vadd.f32 %v3209, %v3444
      %v3599 = vadd.f32 %v3210, %v3449
      %v3600 = vadd.f32 %v3211, %v3454
      %v3601 = vadd.f32 %v3212, %v3459
      %v3602 = vadd.f32 %v3213, %v3464
      %v3603 = vadd.f32 %v3214, %v3469
      %v3604 = vadd.f32 %v3215, %v3474
      %v3605 = vadd.f32 %v3216, %v3479
      %v3606 = vadd.f32 %v3217, %v3484
      %v3607 = vadd.f32 %v3218, %v3489
      %v3608 = vadd.f32 %v3219, %v3494
      %v3609 = vadd.f32 %v3220, %v3499
      %v3610 = vadd.f32 %v3221, %v3504
      %v3611 = vadd.f32 %v3222, %v3509
      %v3612 = vadd.f32 %v3223, %v3514
      %v3613 = vadd.f32 %v3224, %v3519
      %v3614 = vadd.f32 %v3225, %v3524
      %v3615 = vadd.f32 %v3226, %v3529
      %v3616 = vadd.f32 %v3227, %v3534
      %v3617 = vadd.f32 %v3228, %v3539
      %v3618 = vadd.f32 %v3229, %v3544
      %v3619 = vadd.f32 %v3230, %v3549
      %v3620 = vadd.f32 %v3231, %v3554
      %v3621 = vadd.f32 %v3232, %v3559
      %v3622 = vadd.f32 %v3233, %v3564
      %v3623 = vadd.f32 %v3234, %v3569
      %v3624 = vadd.f32 %v3235, %v3574
      %v3625 = vadd.f32 %v3236, %v3579
      %v3626 = vadd.f32 %v3237, %v3584
      %v3627 = vadd.f32 %v3238, %v3589
      %v3628 = vadd.f32 %v3239, %v3594
      %v3629 = vld [vmem:[%s2850 + $0x2] sm:$0xff]
      %v3630 = vld [vmem:[%s2850 + $0xa] sm:$0xff]
      %v3631 = vld [vmem:[%s2850 + $0x1a] sm:$0xff]
      %v3632 = vld [vmem:[%s2850 + $0x22] sm:$0xff]
      %v3633 = vld [vmem:[%s2850 + $0x32] sm:$0xff]
      %v3634 = vld [vmem:[%s2850 + $0x3a] sm:$0xff]
      %v3635 = vld [vmem:[%s2850 + $0x4a] sm:$0xff]
      %v3636 = vld [vmem:[%s2850 + $0x52] sm:$0xff]
      %v3637 = vld [vmem:[%s2850 + $0x62] sm:$0xff]
      %v3638 = vld [vmem:[%s2850 + $0x6a] sm:$0xff]
      %v3639 = vld [vmem:[%s2850 + $0x7a] sm:$0xff]
      %v3640 = vld [vmem:[%s2850 + $0x82] sm:$0xff]
      %v3641 = vld [vmem:[%s2850 + $0x92] sm:$0xff]
      %v3642 = vld [vmem:[%s2850 + $0x9a] sm:$0xff]
      %v3643 = vld [vmem:[%s2850 + $0xaa] sm:$0xff]
      %v3644 = vld [vmem:[%s2850 + $0xb2] sm:$0xff]
      %v3645 = vld [vmem:[%s2850 + $0xc2] sm:$0xff]
      %v3646 = vld [vmem:[%s2850 + $0xca] sm:$0xff]
      %v3647 = vld [vmem:[%s2850 + $0xda] sm:$0xff]
      %v3648 = vld [vmem:[%s2850 + $0xe2] sm:$0xff]
      %v3649 = vld [vmem:[%s2850 + $0xf2] sm:$0xff]
      %v3650 = vld [vmem:[%s2850 + $0xfa] sm:$0xff]
      %v3651 = vld [vmem:[%s2850 + $0x10a] sm:$0xff]
      %v3652 = vld [vmem:[%s2850 + $0x112] sm:$0xff]
      %v3653 = vld [vmem:[%s2850 + $0x122] sm:$0xff]
      %v3654 = vld [vmem:[%s2850 + $0x12a] sm:$0xff]
      %v3655 = vld [vmem:[%s2850 + $0x13a] sm:$0xff]
      %v3656 = vld [vmem:[%s2850 + $0x142] sm:$0xff]
      %v3657 = vld [vmem:[%s2850 + $0x152] sm:$0xff]
      %v3658 = vld [vmem:[%s2850 + $0x15a] sm:$0xff]
      %v3659 = vld [vmem:[%s2850 + $0x16a] sm:$0xff]
      %v3660 = vld [vmem:[%s2850 + $0x172] sm:$0xff]
      %v3661 = vld [vmem:[%s3 + $0x20] sm:$0xf]
      %v3663 = vsel %vm524, %v3629, 0
      %v3666 = vsel %vm524, %v3630, 0
      %v3669 = vsel %vm524, %v3631, 0
      %v3672 = vsel %vm524, %v3632, 0
      %v3675 = vsel %vm524, %v3633, 0
      %v3678 = vsel %vm524, %v3634, 0
      %v3681 = vsel %vm524, %v3635, 0
      %v3684 = vsel %vm524, %v3636, 0
      %v3687 = vsel %vm524, %v3637, 0
      %v3690 = vsel %vm524, %v3638, 0
      %v3693 = vsel %vm524, %v3639, 0
      %v3696 = vsel %vm524, %v3640, 0
      %v3699 = vsel %vm524, %v3641, 0
      %v3702 = vsel %vm524, %v3642, 0
      %v3705 = vsel %vm524, %v3643, 0
      %v3708 = vsel %vm524, %v3644, 0
      %v3711 = vsel %vm524, %v3645, 0
      %v3714 = vsel %vm524, %v3646, 0
      %v3717 = vsel %vm524, %v3647, 0
      %v3720 = vsel %vm524, %v3648, 0
      %v3723 = vsel %vm524, %v3649, 0
      %v3726 = vsel %vm524, %v3650, 0
      %v3729 = vsel %vm524, %v3651, 0
      %v3732 = vsel %vm524, %v3652, 0
      %v3735 = vsel %vm524, %v3653, 0
      %v3738 = vsel %vm524, %v3654, 0
      %v3741 = vsel %vm524, %v3655, 0
      %v3744 = vsel %vm524, %v3656, 0
      %v3747 = vsel %vm524, %v3657, 0
      %v3750 = vsel %vm524, %v3658, 0
      %v3753 = vsel %vm524, %v3659, 0
      %v3756 = vsel %vm524, %v3660, 0
      %v3759 = vsel %vm741, %v3661, 0
      %3761 = vmatprep.subr.mxu0 0.0
      %3762 = vmatpush1.msra.mxu0 %v3759
      %3763 = vmatprep.subr.mxu0 0.0
      %3764 = vmatpush1.msra.mxu0 0.0
      %3765 = vmatprep.subr.mxu0 0.0
      %3766 = vmatpush1.msra.mxu0 0.0
      %3767 = vmatprep.subr.mxu0 0.0
      %3768 = vmatpush1.msra.mxu0 0.0
      %3769 = vmatprep.subr.mxu0 0.0
      %3770 = vmatpush1.msra.mxu0 0.0
      %3771 = vmatprep.subr.mxu0 0.0
      %3772 = vmatpush1.msra.mxu0 0.0
      %3773 = vmatprep.subr.mxu0 0.0
      %3774 = vmatpush1.msra.mxu0 0.0
      %3775 = vmatprep.subr.mxu0 0.0
      %3776 = vmatpush1.msra.mxu0 0.0
      %3777 = vmatprep.subr.mxu0 0.0
      %3778 = vmatpush1.msra.mxu0 0.0
      %3779 = vmatprep.subr.mxu0 0.0
      %3780 = vmatpush1.msra.mxu0 0.0
      %3781 = vmatprep.subr.mxu0 0.0
      %3782 = vmatpush1.msra.mxu0 0.0
      %3783 = vmatprep.subr.mxu0 0.0
      %3784 = vmatpush1.msra.mxu0 0.0
      %3785 = vmatprep.subr.mxu0 0.0
      %3786 = vmatpush1.msra.mxu0 0.0
      %3787 = vmatprep.subr.mxu0 0.0
      %3788 = vmatpush1.msra.mxu0 0.0
      %3789 = vmatprep.subr.mxu0 0.0
      %3790 = vmatpush1.msra.mxu0 0.0
      %3791 = vmatprep.subr.mxu0 0.0
      %3792 = vmatpush1.msra.mxu0 0.0
      %3793 = vmatprep.subr.mxu0 0.0
      %3794 = vmatpush1.msra.mxu0 0.0
      %3795 = vmatprep.subr.mxu0 0.0
      %3796 = vmatpush1.msra.mxu0 0.0
      %3797 = vmatprep.subr.mxu0 0.0
      %3798 = vmatpush1.msra.mxu0 0.0
      %3799 = vmatprep.subr.mxu0 0.0
      %3800 = vmatpush1.msra.mxu0 0.0
      %3801 = vmatprep.subr.mxu0 0.0
      %3802 = vmatpush1.msra.mxu0 0.0
      %3803 = vmatprep.subr.mxu0 0.0
      %3804 = vmatpush1.msra.mxu0 0.0
      %3805 = vmatprep.subr.mxu0 0.0
      %3806 = vmatpush1.msra.mxu0 0.0
      %3807 = vmatprep.subr.mxu0 0.0
      %3808 = vmatpush1.msra.mxu0 0.0
      %3809 = vmatprep.subr.mxu0 0.0
      %3810 = vmatpush1.msra.mxu0 0.0
      %3811 = vmatprep.subr.mxu0 0.0
      %3812 = vmatpush1.msra.mxu0 0.0
      %3813 = vmatprep.subr.mxu0 0.0
      %3814 = vmatpush1.msra.mxu0 0.0
      %3815 = vmatprep.subr.mxu0 0.0
      %3816 = vmatpush1.msra.mxu0 0.0
      %3817 = vmatprep.subr.mxu0 0.0
      %3818 = vmatpush1.msra.mxu0 0.0
      %3819 = vmatprep.subr.mxu0 0.0
      %3820 = vmatpush1.msra.mxu0 0.0
      %3821 = vmatprep.subr.mxu0 0.0
      %3822 = vmatpush1.msra.mxu0 0.0
      %3823 = vmatprep.subr.mxu0 0.0
      %3824 = vmatpush1.msra.mxu0 0.0
      %3825 = vmatprep.mubr.f32.mxu0 0.0
      %3826 = vmatmul.mubr.f32.gmra.mrb[0].mxu0 %v3663
      %v3827 = vpop.f32.mrb[0].mxu0
      %v3828 = vadd.f32 0.0, %v3827
      %v3829 = vpop.f32.mrb[0].mxu0
      %3830 = vmatprep.mubr.f32.mxu0 0.0
      %3831 = vmatmul.mubr.f32.gmra.mrb[0].mxu0 %v3666
      %v3832 = vpop.f32.mrb[0].mxu0
      %v3833 = vadd.f32 0.0, %v3832
      %v3834 = vpop.f32.mrb[0].mxu0
      %3835 = vmatprep.mubr.f32.mxu0 0.0
      %3836 = vmatmul.mubr.f32.gmra.mrb[0].mxu0 %v3669
      %v3837 = vpop.f32.mrb[0].mxu0
      %v3838 = vadd.f32 0.0, %v3837
      %v3839 = vpop.f32.mrb[0].mxu0
      %3840 = vmatprep.mubr.f32.mxu0 0.0
      %3841 = vmatmul.mubr.f32.gmra.mrb[0].mxu0 %v3672
      %v3842 = vpop.f32.mrb[0].mxu0
      %v3843 = vadd.f32 0.0, %v3842
      %v3844 = vpop.f32.mrb[0].mxu0
      %3845 = vmatprep.mubr.f32.mxu0 0.0
      %3846 = vmatmul.mubr.f32.gmra.mrb[0].mxu0 %v3675
      %v3847 = vpop.f32.mrb[0].mxu0
      %v3848 = vadd.f32 0.0, %v3847
      %v3849 = vpop.f32.mrb[0].mxu0
      %3850 = vmatprep.mubr.f32.mxu0 0.0
      %3851 = vmatmul.mubr.f32.gmra.mrb[0].mxu0 %v3678
      %v3852 = vpop.f32.mrb[0].mxu0
      %v3853 = vadd.f32 0.0, %v3852
      %v3854 = vpop.f32.mrb[0].mxu0
      %3855 = vmatprep.mubr.f32.mxu0 0.0
      %3856 = vmatmul.mubr.f32.gmra.mrb[0].mxu0 %v3681
      %v3857 = vpop.f32.mrb[0].mxu0
      %v3858 = vadd.f32 0.0, %v3857
      %v3859 = vpop.f32.mrb[0].mxu0
      %3860 = vmatprep.mubr.f32.mxu0 0.0
      %3861 = vmatmul.mubr.f32.gmra.mrb[0].mxu0 %v3684
      %v3862 = vpop.f32.mrb[0].mxu0
      %v3863 = vadd.f32 0.0, %v3862
      %v3864 = vpop.f32.mrb[0].mxu0
      %3865 = vmatprep.mubr.f32.mxu0 0.0
      %3866 = vmatmul.mubr.f32.gmra.mrb[0].mxu0 %v3687
      %v3867 = vpop.f32.mrb[0].mxu0
      %v3868 = vadd.f32 0.0, %v3867
      %v3869 = vpop.f32.mrb[0].mxu0
      %3870 = vmatprep.mubr.f32.mxu0 0.0
      %3871 = vmatmul.mubr.f32.gmra.mrb[0].mxu0 %v3690
      %v3872 = vpop.f32.mrb[0].mxu0
      %v3873 = vadd.f32 0.0, %v3872
      %v3874 = vpop.f32.mrb[0].mxu0
      %3875 = vmatprep.mubr.f32.mxu0 0.0
      %3876 = vmatmul.mubr.f32.gmra.mrb[0].mxu0 %v3693
      %v3877 = vpop.f32.mrb[0].mxu0
      %v3878 = vadd.f32 0.0, %v3877
      %v3879 = vpop.f32.mrb[0].mxu0
      %3880 = vmatprep.mubr.f32.mxu0 0.0
      %3881 = vmatmul.mubr.f32.gmra.mrb[0].mxu0 %v3696
      %v3882 = vpop.f32.mrb[0].mxu0
      %v3883 = vadd.f32 0.0, %v3882
      %v3884 = vpop.f32.mrb[0].mxu0
      %3885 = vmatprep.mubr.f32.mxu0 0.0
      %3886 = vmatmul.mubr.f32.gmra.mrb[0].mxu0 %v3699
      %v3887 = vpop.f32.mrb[0].mxu0
      %v3888 = vadd.f32 0.0, %v3887
      %v3889 = vpop.f32.mrb[0].mxu0
      %3890 = vmatprep.mubr.f32.mxu0 0.0
      %3891 = vmatmul.mubr.f32.gmra.mrb[0].mxu0 %v3702
      %v3892 = vpop.f32.mrb[0].mxu0
      %v3893 = vadd.f32 0.0, %v3892
      %v3894 = vpop.f32.mrb[0].mxu0
      %3895 = vmatprep.mubr.f32.mxu0 0.0
      %3896 = vmatmul.mubr.f32.gmra.mrb[0].mxu0 %v3705
      %v3897 = vpop.f32.mrb[0].mxu0
      %v3898 = vadd.f32 0.0, %v3897
      %v3899 = vpop.f32.mrb[0].mxu0
      %3900 = vmatprep.mubr.f32.mxu0 0.0
      %3901 = vmatmul.mubr.f32.gmra.mrb[0].mxu0 %v3708
      %v3902 = vpop.f32.mrb[0].mxu0
      %v3903 = vadd.f32 0.0, %v3902
      %v3904 = vpop.f32.mrb[0].mxu0
      %3905 = vmatprep.mubr.f32.mxu0 0.0
      %3906 = vmatmul.mubr.f32.gmra.mrb[0].mxu0 %v3711
      %v3907 = vpop.f32.mrb[0].mxu0
      %v3908 = vadd.f32 0.0, %v3907
      %v3909 = vpop.f32.mrb[0].mxu0
      %3910 = vmatprep.mubr.f32.mxu0 0.0
      %3911 = vmatmul.mubr.f32.gmra.mrb[0].mxu0 %v3714
      %v3912 = vpop.f32.mrb[0].mxu0
      %v3913 = vadd.f32 0.0, %v3912
      %v3914 = vpop.f32.mrb[0].mxu0
      %3915 = vmatprep.mubr.f32.mxu0 0.0
      %3916 = vmatmul.mubr.f32.gmra.mrb[0].mxu0 %v3717
      %v3917 = vpop.f32.mrb[0].mxu0
      %v3918 = vadd.f32 0.0, %v3917
      %v3919 = vpop.f32.mrb[0].mxu0
      %3920 = vmatprep.mubr.f32.mxu0 0.0
      %3921 = vmatmul.mubr.f32.gmra.mrb[0].mxu0 %v3720
      %v3922 = vpop.f32.mrb[0].mxu0
      %v3923 = vadd.f32 0.0, %v3922
      %v3924 = vpop.f32.mrb[0].mxu0
      %3925 = vmatprep.mubr.f32.mxu0 0.0
      %3926 = vmatmul.mubr.f32.gmra.mrb[0].mxu0 %v3723
      %v3927 = vpop.f32.mrb[0].mxu0
      %v3928 = vadd.f32 0.0, %v3927
      %v3929 = vpop.f32.mrb[0].mxu0
      %3930 = vmatprep.mubr.f32.mxu0 0.0
      %3931 = vmatmul.mubr.f32.gmra.mrb[0].mxu0 %v3726
      %v3932 = vpop.f32.mrb[0].mxu0
      %v3933 = vadd.f32 0.0, %v3932
      %v3934 = vpop.f32.mrb[0].mxu0
      %3935 = vmatprep.mubr.f32.mxu0 0.0
      %3936 = vmatmul.mubr.f32.gmra.mrb[0].mxu0 %v3729
      %v3937 = vpop.f32.mrb[0].mxu0
      %v3938 = vadd.f32 0.0, %v3937
      %v3939 = vpop.f32.mrb[0].mxu0
      %3940 = vmatprep.mubr.f32.mxu0 0.0
      %3941 = vmatmul.mubr.f32.gmra.mrb[0].mxu0 %v3732
      %v3942 = vpop.f32.mrb[0].mxu0
      %v3943 = vadd.f32 0.0, %v3942
      %v3944 = vpop.f32.mrb[0].mxu0
      %3945 = vmatprep.mubr.f32.mxu0 0.0
      %3946 = vmatmul.mubr.f32.gmra.mrb[0].mxu0 %v3735
      %v3947 = vpop.f32.mrb[0].mxu0
      %v3948 = vadd.f32 0.0, %v3947
      %v3949 = vpop.f32.mrb[0].mxu0
      %3950 = vmatprep.mubr.f32.mxu0 0.0
      %3951 = vmatmul.mubr.f32.gmra.mrb[0].mxu0 %v3738
      %v3952 = vpop.f32.mrb[0].mxu0
      %v3953 = vadd.f32 0.0, %v3952
      %v3954 = vpop.f32.mrb[0].mxu0
      %3955 = vmatprep.mubr.f32.mxu0 0.0
      %3956 = vmatmul.mubr.f32.gmra.mrb[0].mxu0 %v3741
      %v3957 = vpop.f32.mrb[0].mxu0
      %v3958 = vadd.f32 0.0, %v3957
      %v3959 = vpop.f32.mrb[0].mxu0
      %3960 = vmatprep.mubr.f32.mxu0 0.0
      %3961 = vmatmul.mubr.f32.gmra.mrb[0].mxu0 %v3744
      %v3962 = vpop.f32.mrb[0].mxu0
      %v3963 = vadd.f32 0.0, %v3962
      %v3964 = vpop.f32.mrb[0].mxu0
      %3965 = vmatprep.mubr.f32.mxu0 0.0
      %3966 = vmatmul.mubr.f32.gmra.mrb[0].mxu0 %v3747
      %v3967 = vpop.f32.mrb[0].mxu0
      %v3968 = vadd.f32 0.0, %v3967
      %v3969 = vpop.f32.mrb[0].mxu0
      %3970 = vmatprep.mubr.f32.mxu0 0.0
      %3971 = vmatmul.mubr.f32.gmra.mrb[0].mxu0 %v3750
      %v3972 = vpop.f32.mrb[0].mxu0
      %v3973 = vadd.f32 0.0, %v3972
      %v3974 = vpop.f32.mrb[0].mxu0
      %3975 = vmatprep.mubr.f32.mxu0 0.0
      %3976 = vmatmul.mubr.f32.gmra.mrb[0].mxu0 %v3753
      %v3977 = vpop.f32.mrb[0].mxu0
      %v3978 = vadd.f32 0.0, %v3977
      %v3979 = vpop.f32.mrb[0].mxu0
      %3980 = vmatprep.mubr.f32.mxu0 0.0
      %3981 = vmatmul.mubr.f32.gmra.mrb[0].mxu0 %v3756
      %v3982 = vpop.f32.mrb[0].mxu0
      %v3983 = vadd.f32 0.0, %v3982
      %v3984 = vpop.f32.mrb[0].mxu0
      %3985 = vdwg.mxu0
      %v3986 = vadd.f32 %v3597, %v3828
      %v3987 = vadd.f32 %v3598, %v3833
      %v3988 = vadd.f32 %v3599, %v3838
      %v3989 = vadd.f32 %v3600, %v3843
      %v3990 = vadd.f32 %v3601, %v3848
      %v3991 = vadd.f32 %v3602, %v3853
      %v3992 = vadd.f32 %v3603, %v3858
      %v3993 = vadd.f32 %v3604, %v3863
      %v3994 = vadd.f32 %v3605, %v3868
      %v3995 = vadd.f32 %v3606, %v3873
      %v3996 = vadd.f32 %v3607, %v3878
      %v3997 = vadd.f32 %v3608, %v3883
      %v3998 = vadd.f32 %v3609, %v3888
      %v3999 = vadd.f32 %v3610, %v3893
      %v4000 = vadd.f32 %v3611, %v3898
      %v4001 = vadd.f32 %v3612, %v3903
      %v4002 = vadd.f32 %v3613, %v3908
      %v4003 = vadd.f32 %v3614, %v3913
      %v4004 = vadd.f32 %v3615, %v3918
      %v4005 = vadd.f32 %v3616, %v3923
      %v4006 = vadd.f32 %v3617, %v3928
      %v4007 = vadd.f32 %v3618, %v3933
      %v4008 = vadd.f32 %v3619, %v3938
      %v4009 = vadd.f32 %v3620, %v3943
      %v4010 = vadd.f32 %v3621, %v3948
      %v4011 = vadd.f32 %v3622, %v3953
      %v4012 = vadd.f32 %v3623, %v3958
      %v4013 = vadd.f32 %v3624, %v3963
      %v4014 = vadd.f32 %v3625, %v3968
      %v4015 = vadd.f32 %v3626, %v3973
      %v4016 = vadd.f32 %v3627, %v3978
      %v4017 = vadd.f32 %v3628, %v3983
      %4018 = vst [vmem:[%s439] sm:$0xff] %v3986
      %4019 = vst [vmem:[%s439 + $0x8] sm:$0xff] %v3987
      %4020 = vst [vmem:[%s439 + $0x10] sm:$0xff] %v3988
      %4021 = vst [vmem:[%s439 + $0x18] sm:$0xff] %v3989
      %4022 = vst [vmem:[%s439 + $0x20] sm:$0xff] %v3990
      %4023 = vst [vmem:[%s439 + $0x28] sm:$0xff] %v3991
      %4024 = vst [vmem:[%s439 + $0x30] sm:$0xff] %v3992
      %4025 = vst [vmem:[%s439 + $0x38] sm:$0xff] %v3993
      %4026 = vst [vmem:[%s439 + $0x40] sm:$0xff] %v3994
      %4027 = vst [vmem:[%s439 + $0x48] sm:$0xff] %v3995
      %4028 = vst [vmem:[%s439 + $0x50] sm:$0xff] %v3996
      %4029 = vst [vmem:[%s439 + $0x58] sm:$0xff] %v3997
      %4030 = vst [vmem:[%s439 + $0x60] sm:$0xff] %v3998
      %4031 = vst [vmem:[%s439 + $0x68] sm:$0xff] %v3999
      %4032 = vst [vmem:[%s439 + $0x70] sm:$0xff] %v4000
      %4033 = vst [vmem:[%s439 + $0x78] sm:$0xff] %v4001
      %4034 = vst [vmem:[%s439 + $0x80] sm:$0xff] %v4002
      %4035 = vst [vmem:[%s439 + $0x88] sm:$0xff] %v4003
      %4036 = vst [vmem:[%s439 + $0x90] sm:$0xff] %v4004
      %4037 = vst [vmem:[%s439 + $0x98] sm:$0xff] %v4005
      %4038 = vst [vmem:[%s439 + $0xa0] sm:$0xff] %v4006
      %4039 = vst [vmem:[%s439 + $0xa8] sm:$0xff] %v4007
      %4040 = vst [vmem:[%s439 + $0xb0] sm:$0xff] %v4008
      %4041 = vst [vmem:[%s439 + $0xb8] sm:$0xff] %v4009
      %4042 = vst [vmem:[%s439 + $0xc0] sm:$0xff] %v4010
      %4043 = vst [vmem:[%s439 + $0xc8] sm:$0xff] %v4011
      %4044 = vst [vmem:[%s439 + $0xd0] sm:$0xff] %v4012
      %4045 = vst [vmem:[%s439 + $0xd8] sm:$0xff] %v4013
      %4046 = vst [vmem:[%s439 + $0xe0] sm:$0xff] %v4014
      %4047 = vst [vmem:[%s439 + $0xe8] sm:$0xff] %v4015
      %4048 = vst [vmem:[%s439 + $0xf0] sm:$0xff] %v4016
      %4049 = vst [vmem:[%s439 + $0xf8] sm:$0xff] %v4017
      %v4050 = vmul.f32 %v3986, %v3986
      %v4051 = vmul.f32 %v3987, %v3987
      %v4052 = vmul.f32 %v3988, %v3988
      %v4053 = vmul.f32 %v3989, %v3989
      %v4054 = vmul.f32 %v3990, %v3990
      %v4055 = vmul.f32 %v3991, %v3991
      %v4056 = vmul.f32 %v3992, %v3992
      %v4057 = vmul.f32 %v3993, %v3993
      %v4058 = vmul.f32 %v3994, %v3994
      %v4059 = vmul.f32 %v3995, %v3995
      %v4060 = vmul.f32 %v3996, %v3996
      %v4061 = vmul.f32 %v3997, %v3997
      %v4062 = vmul.f32 %v3998, %v3998
      %v4063 = vmul.f32 %v3999, %v3999
      %v4064 = vmul.f32 %v4000, %v4000
      %v4065 = vmul.f32 %v4001, %v4001
      %v4066 = vmul.f32 %v4002, %v4002
      %v4067 = vmul.f32 %v4003, %v4003
      %v4068 = vmul.f32 %v4004, %v4004
      %v4069 = vmul.f32 %v4005, %v4005
      %v4070 = vmul.f32 %v4006, %v4006
      %v4071 = vmul.f32 %v4007, %v4007
      %v4072 = vmul.f32 %v4008, %v4008
      %v4073 = vmul.f32 %v4009, %v4009
      %v4074 = vmul.f32 %v4010, %v4010
      %v4075 = vmul.f32 %v4011, %v4011
      %v4076 = vmul.f32 %v4012, %v4012
      %v4077 = vmul.f32 %v4013, %v4013
      %v4078 = vmul.f32 %v4014, %v4014
      %v4079 = vmul.f32 %v4015, %v4015
      %v4080 = vmul.f32 %v4016, %v4016
      %v4081 = vmul.f32 %v4017, %v4017
      %v4082 = vadd.f32 %v3986, %v3987
      %v4083 = vadd.f32 %v4082, %v3988
      %v4084 = vadd.f32 %v4083, %v3989
      %v4085 = vadd.f32 %v4084, %v3990
      %v4086 = vadd.f32 %v4085, %v3991
      %v4087 = vadd.f32 %v4086, %v3992
      %v4088 = vadd.f32 %v4087, %v3993
      %v4089 = vadd.f32 %v4088, %v3994
      %v4090 = vadd.f32 %v4089, %v3995
      %v4091 = vadd.f32 %v4090, %v3996
      %v4092 = vadd.f32 %v4091, %v3997
      %v4093 = vadd.f32 %v4092, %v3998
      %v4094 = vadd.f32 %v4093, %v3999
      %v4095 = vadd.f32 %v4094, %v4000
      %v4096 = vadd.f32 %v4095, %v4001
      %v4097 = vadd.f32 %v4096, %v4002
      %v4098 = vadd.f32 %v4097, %v4003
      %v4099 = vadd.f32 %v4098, %v4004
      %v4100 = vadd.f32 %v4099, %v4005
      %v4101 = vadd.f32 %v4100, %v4006
      %v4102 = vadd.f32 %v4101, %v4007
      %v4103 = vadd.f32 %v4102, %v4008
      %v4104 = vadd.f32 %v4103, %v4009
      %v4105 = vadd.f32 %v4104, %v4010
      %v4106 = vadd.f32 %v4105, %v4011
      %v4107 = vadd.f32 %v4106, %v4012
      %v4108 = vadd.f32 %v4107, %v4013
      %v4109 = vadd.f32 %v4108, %v4014
      %v4110 = vadd.f32 %v4109, %v4015
      %v4111 = vadd.f32 %v4110, %v4016
      %v4112 = vadd.f32 %v4111, %v4017
      %v4113 = vrot.slane %v4112, 4
      %v4114 = vadd.f32 %v4112, %v4113
      %v4115 = vrot.slane %v4114, 2
      %v4116 = vadd.f32 %v4114, %v4115
      %v4117 = vrot.slane %v4116, 1
      %v4118 = vadd.f32 %v4116, %v4117
      %4119 = vst [vmem:[%s446] sm:$0x1] %v4118
      %v4120 = vadd.f32 %v4050, %v4051
      %v4121 = vadd.f32 %v4120, %v4052
      %v4122 = vadd.f32 %v4121, %v4053
      %v4123 = vadd.f32 %v4122, %v4054
      %v4124 = vadd.f32 %v4123, %v4055
      %v4125 = vadd.f32 %v4124, %v4056
      %v4126 = vadd.f32 %v4125, %v4057
      %v4127 = vadd.f32 %v4126, %v4058
      %v4128 = vadd.f32 %v4127, %v4059
      %v4129 = vadd.f32 %v4128, %v4060
      %v4130 = vadd.f32 %v4129, %v4061
      %v4131 = vadd.f32 %v4130, %v4062
      %v4132 = vadd.f32 %v4131, %v4063
      %v4133 = vadd.f32 %v4132, %v4064
      %v4134 = vadd.f32 %v4133, %v4065
      %v4135 = vadd.f32 %v4134, %v4066
      %v4136 = vadd.f32 %v4135, %v4067
      %v4137 = vadd.f32 %v4136, %v4068
      %v4138 = vadd.f32 %v4137, %v4069
      %v4139 = vadd.f32 %v4138, %v4070
      %v4140 = vadd.f32 %v4139, %v4071
      %v4141 = vadd.f32 %v4140, %v4072
      %v4142 = vadd.f32 %v4141, %v4073
      %v4143 = vadd.f32 %v4142, %v4074
      %v4144 = vadd.f32 %v4143, %v4075
      %v4145 = vadd.f32 %v4144, %v4076
      %v4146 = vadd.f32 %v4145, %v4077
      %v4147 = vadd.f32 %v4146, %v4078
      %v4148 = vadd.f32 %v4147, %v4079
      %v4149 = vadd.f32 %v4148, %v4080
      %v4150 = vadd.f32 %v4149, %v4081
      %v4151 = vrot.slane %v4150, 4
      %v4152 = vadd.f32 %v4150, %v4151
      %v4153 = vrot.slane %v4152, 2
      %v4154 = vadd.f32 %v4152, %v4153
      %v4155 = vrot.slane %v4154, 1
      %v4156 = vadd.f32 %v4154, %v4155
      %4157 = vst [vmem:[%s452] sm:$0x1] %v4156
      %s4158 = smul.u32 16, %s23
      %p4159 = scmp.lt.s32.totalorder %s22, 1
      %s4160 = scalar_select %p4159, %s22, 1
      %p4161 = scmp.lt.s32.totalorder %s4158, 15
      %s4162 = scalar_select %p4161, %s4158, 15
      %s4163 = smul.addr %s4162, 2
      %s4164 = smul.addr %s4160, 32
      %s4165 = sadd.s32 %s4163, %s4164
      %s4166 = smul.addr %s4165, 8
      %s4167 = scalar_lea.vmem %s4, %s4166
      %p4168 = scmp.lt.s32.totalorder %s22, 1
      %s4169 = scalar_select %p4168, %s22, 1
      %p4170 = scmp.lt.s32.totalorder %s23, 0
      %s4171 = scalar_select %p4170, %s23, 0
      %s4172 = sadd.s32 %s4171, %s4169
      %s4173 = scalar_lea.vmem %s5, %s4172
      %p4174 = scmp.lt.s32.totalorder %s22, 1
      %s4175 = scalar_select %p4174, %s22, 1
      %p4176 = scmp.lt.s32.totalorder %s23, 0
      %s4177 = scalar_select %p4176, %s23, 0
      %s4178 = sadd.s32 %s4177, %s4175
      %s4179 = scalar_lea.vmem %s6, %s4178
      // Predicated region
      $region37: #{double_conv.3} parent=35 // pred_check
        %p4180 = pneg %p171
      $region38: #{double_conv.3} parent=35 // pred_check_branch
        %4182 = sbr.rel (%p4180) target = $region40
      $region39: #{double_conv.3} parent=35 // pred_region
        %s4183 = smul.u32 16, %s23
      $region40: #{double_conv.3} parent=35 // pred_fallthru
        _
      // Predicated region
      $region41: #{double_conv.3} parent=35 // pred_check
        %p4184 = pneg %p199
      $region42: #{double_conv.3} parent=35 // pred_check_branch
        %4186 = sbr.rel (%p4184) target = $region44
      $region43: #{double_conv.3} parent=35 // pred_region
        _
      $region44: #{double_conv.3} parent=35 // pred_fallthru
        _
      // Predicated region
      $region45: #{double_conv.3} parent=35 // pred_check
        %p4187 = pneg %p227
      $region46: #{double_conv.3} parent=35 // pred_check_branch
        %4189 = sbr.rel (%p4187) target = $region48
      $region47: #{double_conv.3} parent=35 // pred_region
        _
      $region48: #{double_conv.3} parent=35 // pred_fallthru
        _
    $region36: #{double_conv.3} parent=5 // pred_fallthru
      _
    %p4190 = scmp.le.s32.totalorder 2, %s13
    // Predicated region
    $region49: #{double_conv.3} parent=5 // pred_check
      %p4191 = pneg %p4190
    $region50: #{double_conv.3} parent=5 // pred_check_branch
      %4193 = sbr.rel (%p4191) target = $region52
    $region51: #{double_conv.3} parent=5 // pred_region
      %s4194 = ssub.s32 %s13, 2
      // Predicated region
      $region53: #{double_conv.3} parent=51 // pred_check
        %p4195 = pneg %p177
      $region54: #{double_conv.3} parent=51 // pred_check_branch
        %4197 = sbr.rel (%p4195) target = $region56
      $region55: #{double_conv.3} parent=51 // pred_region
        %s4198 = smul.u32 16, %s25
        %p4199 = scmp.lt.s32.totalorder %s24, 1
        %s4200 = scalar_select %p4199, %s24, 1
        %p4201 = scmp.lt.s32.totalorder %s4198, 15
        %s4202 = scalar_select %p4201, %s4198, 15
        %s4203 = smul.addr %s4202, 2
        %s4204 = smul.addr %s4200, 32
        %s4205 = sadd.s32 %s4203, %s4204
        %s4206 = smul.addr %s4205, 8
        %s4207 = scalar_lea.vmem %s4, %s4206
      $region56: #{double_conv.3} parent=51 // pred_fallthru
        _
      // Predicated region
      $region57: #{double_conv.3} parent=51 // pred_check
        %p4208 = pneg %p205
      $region58: #{double_conv.3} parent=51 // pred_check_branch
        %4210 = sbr.rel (%p4208) target = $region60
      $region59: #{double_conv.3} parent=51 // pred_region
        %p4211 = scmp.lt.s32.totalorder %s24, 1
        %s4212 = scalar_select %p4211, %s24, 1
        %p4213 = scmp.lt.s32.totalorder %s25, 0
        %s4214 = scalar_select %p4213, %s25, 0
        %s4215 = sadd.s32 %s4214, %s4212
        %s4216 = scalar_lea.vmem %s5, %s4215
      $region60: #{double_conv.3} parent=51 // pred_fallthru
        _
      // Predicated region
      $region61: #{double_conv.3} parent=51 // pred_check
        %p4217 = pneg %p233
      $region62: #{double_conv.3} parent=51 // pred_check_branch
        %4219 = sbr.rel (%p4217) target = $region64
      $region63: #{double_conv.3} parent=51 // pred_region
        %p4220 = scmp.lt.s32.totalorder %s24, 1
        %s4221 = scalar_select %p4220, %s24, 1
        %p4222 = scmp.lt.s32.totalorder %s25, 0
        %s4223 = scalar_select %p4222, %s25, 0
        %s4224 = sadd.s32 %s4223, %s4221
        %s4225 = scalar_lea.vmem %s6, %s4224
      $region64: #{double_conv.3} parent=51 // pred_fallthru
        _
    $region52: #{double_conv.3} parent=5 // pred_fallthru
      _
  $region6: #{double_conv.3} parent=0 // loop_footer
    %s17 = sadd.s32 1, %s13
  $region7: #{double_conv.3} parent=0 // loop_footer_branch
    %12 = sbr.rel target = $region3
  $region8: #{double_conv.3} parent=0 // loop_exit
    _

</llo_original>
